<compile_context>
chip_gen: v7x
topology: tpu7x:2x2x1
jax: 0.10.0
libtpu: 0.0.40
codegen_flags: <defaults>
</compile_context>

<pallas_src>
import jax
import jax.numpy as jnp
import numpy as np
from jax.experimental import pallas as pl
from jax.experimental.pallas import tpu as pltpu

STACKS = 3
C = 256                         # module hard-codes 256 channels
B = 2
HK = WK = 4                     # template feature spatial size
HS = WS = 8                     # search feature spatial size
HO, WO = HS - HK + 1, WS - WK + 1        # depthwise-xcorr output (5x5)
HP, WP = HO + 2, WO + 2                  # pad=1 spatial size for the 3x3 conv (7x7)
NK = B * HK * WK                # 32 template rows
NS = B * HS * WS                # 128 search rows
NPOS = B * HP * WP              # 98 padded-grid positions (border rows discarded later)
MARGIN = WP + 1                 # shift margin so every 3x3 tap offset stays in-bounds


# ----------------------------- fused Pallas kernel --------------------------------

def _atts_stack_kernel(kf_ref, sf_ref, wk_ref, bk_ref, ws_ref, bs_ref,
                       w3_ref, b3_ref, w1_ref, b1_ref, o_ref,
                       k2_scr, s2_scr, flat_scr):
    s = pl.program_id(0)

    # --- 1x1 conv (BN folded) + ReLU: template (M=32) and search (M=128), bf16 MXU / f32 acc
    k2 = jnp.dot(kf_ref[0].astype(jnp.bfloat16), wk_ref[0],
                 preferred_element_type=jnp.float32)
    k2_scr[...] = jnp.maximum(k2 + bk_ref[0], 0.0)                      # (32, 256) f32

    s2 = jnp.dot(sf_ref[0].astype(jnp.bfloat16), ws_ref[0],
                 preferred_element_type=jnp.float32)
    s2_scr[...] = jnp.maximum(s2 + bs_ref[0], 0.0)                      # (128, 256) f32

    # --- depthwise xcorr (f32), written straight into the zero-padded row-flat buffer.
    # flat row layout: MARGIN + b*HP*WP + ip*WP + jp  <->  padded feature F[b, ip, jp, :]
    flat_scr[...] = jnp.zeros_like(flat_scr)
    for b in range(B):
        for i in range(HO):
            acc = jnp.zeros((WO, C), jnp.float32)
            for di in range(HK):
                base = b * HS * WS + (i + di) * WS
                for dj in range(WK):
                    win = s2_scr[pl.ds(base + dj, WO), :]               # (5, 256)
                    tap = k2_scr[pl.ds(b * HK * WK + di * WK + dj, 1), :]   # (1, 256)
                    acc = acc + win * tap                               # sublane broadcast
            flat_scr[pl.ds(MARGIN + b * HP * WP + (i + 1) * WP + 1, WO), :] = acc

    # --- 3x3 conv (+bias, ReLU): 9 shifted-slab matmuls over all 98 padded positions.
    # Interior positions read only correct same-batch rows; border rows are garbage and
    # get sliced away in the wrapper.
    h = jnp.zeros((NPOS, C), jnp.float32)
    for t in range(9):
        di, dj = t // 3, t % 3
        off = MARGIN + (di - 1) * WP + (dj - 1)
        slab = flat_scr[pl.ds(off, NPOS), :].astype(jnp.bfloat16)       # (98, 256)
        h = h + jnp.dot(slab, w3_ref[0, t], preferred_element_type=jnp.float32)
    h = jnp.maximum(h + b3_ref[0], 0.0)                                 # (98, 256)

    # --- final 1x1 conv -> 1 channel: VPU multiply + lane reduction (no N=1 MXU matmul)
    att = jnp.sum(h * w1_ref[0], axis=-1, keepdims=True) + b1_ref[s]    # (98, 1)
    o_ref[0] = att


def atts_head_fused(kf_all, sf_all, wk, bk, ws, bs, w3, b3, w1, b1):
    return pl.pallas_call(
        _atts_stack_kernel,
        out_shape=jax.ShapeDtypeStruct((STACKS, NPOS, 1), jnp.float32),
        grid=(STACKS,),
        in_specs=[
            pl.BlockSpec((1, NK, C), lambda s: (s, 0, 0)),      # template feats (f32)
            pl.BlockSpec((1, NS, C), lambda s: (s, 0, 0)),      # search feats   (f32)
            pl.BlockSpec((1, C, C), lambda s: (s, 0, 0)),       # wk (bf16, BN folded)
            pl.BlockSpec((1, 1, C), lambda s: (s, 0, 0)),       # bk (f32)
            pl.BlockSpec((1, C, C), lambda s: (s, 0, 0)),       # ws (bf16, BN folded)
            pl.BlockSpec((1, 1, C), lambda s: (s, 0, 0)),       # bs (f32)
            pl.BlockSpec((1, 9, C, C), lambda s: (s, 0, 0, 0)), # w3 (bf16)
            pl.BlockSpec((1, 1, C), lambda s: (s, 0, 0)),       # b3 (f32)
            pl.BlockSpec((1, 1, C), lambda s: (s, 0, 0)),       # w1 row (f32)
            pl.BlockSpec(memory_space=pltpu.MemorySpace.SMEM),  # b1 per stack (scalars)
        ],
        out_specs=pl.BlockSpec((1, NPOS, 1), lambda s: (s, 0, 0)),
        scratch_shapes=[
            pltpu.VMEM((NK, C), jnp.float32),                   # k2
            pltpu.VMEM((NS, C), jnp.float32),                   # s2
            pltpu.VMEM((2 * MARGIN + NPOS, C), jnp.float32),    # zero-padded row-flat feat
        ],
        compiler_params=pltpu.CompilerParams(
            dimension_semantics=("parallel",)),                 # v7x: stacks split over TCs
    )(kf_all, sf_all, wk, bk, ws, bs, w3, b3, w1, b1)


atts_head_fused = jax.jit(atts_head_fused)


# ----------------------------- forward wrapper ------------------------------------

def atts_head_forward(kernel_feats, search_feats, sp):
    """kernel_feats / search_feats: lists of 3 NHWC tensors; sp: stacked params."""
    kf_all = jnp.stack([kf.reshape(NK, C) for kf in kernel_feats])      # (3, 32, 256)
    sf_all = jnp.stack([sf.reshape(NS, C) for sf in search_feats])      # (3, 128, 256)
    att = atts_head_fused(kf_all, sf_all, sp["wk"], sp["bk"], sp["ws"], sp["bs"],
                          sp["w3"], sp["b3"], sp["w1"], sp["b1"])       # (3, 98, 1)
    # drop the padded border rows (tiny plain-JAX slice on ~1 KB of data)
    att = att.reshape(STACKS, B, HP, WP, 1)[:, :, 1:1 + HO, 1:1 + WO, :]
    return [att[i] for i in range(STACKS)]   # each (B, HO, WO, 1) == NCHW (B, 1, HO, WO)


# ----------------------------- parameters (deterministic) -------------------------

def fold_bn(w, gamma, beta, mean, var, eps=1e-5):
    # eval-mode BatchNorm2d folded exactly into the preceding bias-free 1x1 conv
    scale = gamma / jnp.sqrt(var + eps)
    return w * scale[None, :], (beta - mean * scale)[None, :]


def make_params(key):
    ks = jax.random.split(key, 13)
    # 1x1 conv weights stored as (Cin, Cout)  (== torch weight[:, :, 0, 0].T)
    wk = 0.05 * jax.random.normal(ks[0], (C, C), jnp.float32)
    ws = 0.05 * jax.random.normal(ks[1], (C, C), jnp.float32)
    gk = 1.0 + 0.1 * jax.random.normal(ks[2], (C,), jnp.float32)
    bk = 0.1 * jax.random.normal(ks[3], (C,), jnp.float32)
    mk = 0.1 * jax.random.normal(ks[4], (C,), jnp.float32)
    vk = 0.5 + jax.random.uniform(ks[5], (C,), jnp.float32)
    gs = 1.0 + 0.1 * jax.random.normal(ks[6], (C,), jnp.float32)
    bs = 0.1 * jax.random.normal(ks[7], (C,), jnp.float32)
    ms = 0.1 * jax.random.normal(ks[8], (C,), jnp.float32)
    vs = 0.5 + jax.random.uniform(ks[9], (C,), jnp.float32)
    wkf, bkf = fold_bn(wk, gk, bk, mk, vk)
    wsf, bsf = fold_bn(ws, gs, bs, ms, vs)
    # 3x3 conv (with bias, no BN): stored as (kh*kw, Cin, Cout); bf16 for MXU / DMA
    w3 = 0.02 * jax.random.normal(ks[10], (9, C, C), jnp.float32)
    b3 = 0.1 * jax.random.normal(ks[11], (1, C), jnp.float32)
    # final 1x1 conv -> 1 channel, bias constant -2.19 (as in the torch init)
    w1 = 0.05 * jax.random.normal(ks[12], (1, C), jnp.float32)
    b1 = jnp.array(-2.19, jnp.float32)
    return dict(wk=wkf.astype(jnp.bfloat16), bk=bkf,
                ws=wsf.astype(jnp.bfloat16), bs=bsf,
                w3=w3.astype(jnp.bfloat16), b3=b3, w1=w1, b1=b1)


def stack_params(params):
    return {k: jnp.stack([p[k] for p in params]) for k in params[0]}


# ----------------------------- pure-JAX reference ---------------------------------

def ref_forward(kernel_feats, search_feats, params):
    hp = jax.lax.Precision.HIGHEST
    outs = []
    for kf, sf, p in zip(kernel_feats, search_feats, params):
        wk = p["wk"].astype(jnp.float32)
        ws = p["ws"].astype(jnp.float32)
        w3 = p["w3"].astype(jnp.float32)
        k2 = jax.nn.relu(jnp.einsum("bhwc,cd->bhwd", kf, wk, precision=hp) + p["bk"])
        s2 = jax.nn.relu(jnp.einsum("bhwc,cd->bhwd", sf, ws, precision=hp) + p["bs"])
        feat = jnp.zeros((B, HO, WO, C), jnp.float32)
        for di in range(HK):
            for dj in range(WK):
                feat = feat + s2[:, di:di + HO, dj:dj + WO, :] * k2[:, di:di + 1, dj:dj + 1, :]
        fp = jnp.pad(feat, ((0, 0), (1, 1), (1, 1), (0, 0)))
        h = jnp.zeros((B, HO, WO, C), jnp.float32)
        for di in range(3):
            for dj in range(3):
                h = h + jnp.einsum("bhwc,cd->bhwd",
                                   fp[:, di:di + HO, dj:dj + WO, :],
                                   w3[di * 3 + dj], precision=hp)
        h = jax.nn.relu(h + p["b3"])
        out = jnp.einsum("bhwc,c->bhw", h, p["w1"][0], precision=hp)[..., None] + p["b1"]
        outs.append(out)
    return outs


# ----------------------------- main ------------------------------------------------

if __name__ == "__main__":
    root = jax.random.PRNGKey(0)
    kin, kp = jax.random.split(root)
    fkeys = jax.random.split(kin, 2 * STACKS)
    kernel_feats = [jax.random.normal(fkeys[i], (B, HK, WK, C), jnp.float32)
                    for i in range(STACKS)]
    search_feats = [jax.random.normal(fkeys[STACKS + i], (B, HS, WS, C), jnp.float32)
                    for i in range(STACKS)]
    pkeys = jax.random.split(kp, STACKS)
    params = [make_params(pkeys[i]) for i in range(STACKS)]
    sp = stack_params(params)

    outs = atts_head_forward(kernel_feats, search_feats, sp)
    outs = [jax.block_until_ready(o) for o in outs]

    refs = ref_forward(kernel_feats, search_feats, params)
    for o, r in zip(outs, refs):
        assert o.shape == (B, HO, WO, 1), o.shape
        np.testing.assert_allclose(np.asarray(o), np.asarray(r), rtol=2e-2, atol=2e-2)

    print("KERNEL_OK")
</pallas_src>

<mosaic_0001>
module attributes {stable_mosaic.version = 11 : i64} {
  func.func @_atts_stack_kernel(%arg0: i32, %arg1: memref<1x32x256xf32, #tpu.memory_space<vmem>>, %arg2: memref<1x128x256xf32, #tpu.memory_space<vmem>>, %arg3: memref<1x256x256xbf16, #tpu.memory_space<vmem>>, %arg4: memref<1x1x256xf32, #tpu.memory_space<vmem>>, %arg5: memref<1x256x256xbf16, #tpu.memory_space<vmem>>, %arg6: memref<1x1x256xf32, #tpu.memory_space<vmem>>, %arg7: memref<1x9x256x256xbf16, #tpu.memory_space<vmem>>, %arg8: memref<1x1x256xf32, #tpu.memory_space<vmem>>, %arg9: memref<1x1x256xf32, #tpu.memory_space<vmem>>, %arg10: memref<3xf32, #tpu.memory_space<smem>>, %arg11: memref<1x98x1xf32, #tpu.memory_space<vmem>>, %arg12: memref<32x256xf32, #tpu.memory_space<vmem>>, %arg13: memref<128x256xf32, #tpu.memory_space<vmem>>, %arg14: memref<114x256xf32, #tpu.memory_space<vmem>>) attributes {dimension_semantics = [#tpu.dimension_semantics<parallel>], iteration_bounds = array<i64: 3>, scalar_prefetch = 0 : i64, scratch_operands = 3 : i64, tpu.core_type = #tpu.core_type<tc>, window_params = [{transform_indices = @transform_0, window_bounds = array<i64: 1, 32, 256>}, {transform_indices = @transform_1, window_bounds = array<i64: 1, 128, 256>}, {transform_indices = @transform_2, window_bounds = array<i64: 1, 256, 256>}, {transform_indices = @transform_3, window_bounds = array<i64: 1, 1, 256>}, {transform_indices = @transform_4, window_bounds = array<i64: 1, 256, 256>}, {transform_indices = @transform_5, window_bounds = array<i64: 1, 1, 256>}, {transform_indices = @transform_6, window_bounds = array<i64: 1, 9, 256, 256>}, {transform_indices = @transform_7, window_bounds = array<i64: 1, 1, 256>}, {transform_indices = @transform_8, window_bounds = array<i64: 1, 1, 256>}, {transform_indices = @transform_9, window_bounds = array<i64: 3>}, {transform_indices = @transform_10, window_bounds = array<i64: 1, 98, 1>}]} {
    %c0 = arith.constant 0 : index
    %c0_0 = arith.constant 0 : index
    %c0_1 = arith.constant 0 : index
    %0 = vector.load %arg1[%c0, %c0_0, %c0_1] : memref<1x32x256xf32, #tpu.memory_space<vmem>>, vector<1x32x256xf32>
    %1 = vector.shape_cast %0 : vector<1x32x256xf32> to vector<32x256xf32>
    %2 = arith.truncf %1 : vector<32x256xf32> to vector<32x256xbf16>
    %c0_2 = arith.constant 0 : index
    %c0_3 = arith.constant 0 : index
    %c0_4 = arith.constant 0 : index
    %3 = vector.load %arg3[%c0_2, %c0_3, %c0_4] : memref<1x256x256xbf16, #tpu.memory_space<vmem>>, vector<1x256x256xbf16>
    %4 = vector.shape_cast %3 : vector<1x256x256xbf16> to vector<256x256xbf16>
    %cst = arith.constant dense<0.000000e+00> : vector<32x256xf32>
    %5 = tpu.matmul %2, %4, %cst {dimension_numbers = #tpu.dot_dimension_numbers<[1], [0], [0], [1], [0, 0, 1, 1], [], []>} : vector<32x256xbf16>, vector<256x256xbf16>, vector<32x256xf32> -> vector<32x256xf32>
    %c0_5 = arith.constant 0 : index
    %c0_6 = arith.constant 0 : index
    %c0_7 = arith.constant 0 : index
    %6 = vector.load %arg4[%c0_5, %c0_6, %c0_7] : memref<1x1x256xf32, #tpu.memory_space<vmem>>, vector<1x1x256xf32>
    %7 = vector.shape_cast %6 : vector<1x1x256xf32> to vector<1x256xf32>
    %8 = vector.broadcast %7 : vector<1x256xf32> to vector<32x256xf32>
    %9 = arith.addf %5, %8 : vector<32x256xf32>
    %cst_8 = arith.constant 0.000000e+00 : f32
    %10 = vector.broadcast %cst_8 : f32 to vector<32x256xf32>
    %11 = arith.maximumf %9, %10 : vector<32x256xf32>
    %c0_9 = arith.constant 0 : index
    %c0_10 = arith.constant 0 : index
    %12 = vector.load %arg12[%c0_9, %c0_10] : memref<32x256xf32, #tpu.memory_space<vmem>>, vector<32x256xf32>
    tpu.vector_store %arg12[%c0_9, %c0_10], %11 {strides = array<i32>} : memref<32x256xf32, #tpu.memory_space<vmem>>, vector<32x256xf32>,
    %c0_11 = arith.constant 0 : index
    %c0_12 = arith.constant 0 : index
    %c0_13 = arith.constant 0 : index
    %13 = vector.load %arg2[%c0_11, %c0_12, %c0_13] : memref<1x128x256xf32, #tpu.memory_space<vmem>>, vector<1x128x256xf32>
    %14 = vector.shape_cast %13 : vector<1x128x256xf32> to vector<128x256xf32>
    %15 = arith.truncf %14 : vector<128x256xf32> to vector<128x256xbf16>
    %c0_14 = arith.constant 0 : index
    %c0_15 = arith.constant 0 : index
    %c0_16 = arith.constant 0 : index
    %16 = vector.load %arg5[%c0_14, %c0_15, %c0_16] : memref<1x256x256xbf16, #tpu.memory_space<vmem>>, vector<1x256x256xbf16>
    %17 = vector.shape_cast %16 : vector<1x256x256xbf16> to vector<256x256xbf16>
    %cst_17 = arith.constant dense<0.000000e+00> : vector<128x256xf32>
    %18 = tpu.matmul %15, %17, %cst_17 {dimension_numbers = #tpu.dot_dimension_numbers<[1], [0], [0], [1], [0, 0, 1, 1], [], []>} : vector<128x256xbf16>, vector<256x256xbf16>, vector<128x256xf32> -> vector<128x256xf32>
    %c0_18 = arith.constant 0 : index
    %c0_19 = arith.constant 0 : index
    %c0_20 = arith.constant 0 : index
    %19 = vector.load %arg6[%c0_18, %c0_19, %c0_20] : memref<1x1x256xf32, #tpu.memory_space<vmem>>, vector<1x1x256xf32>
    %20 = vector.shape_cast %19 : vector<1x1x256xf32> to vector<1x256xf32>
    %21 = vector.broadcast %20 : vector<1x256xf32> to vector<128x256xf32>
    %22 = arith.addf %18, %21 : vector<128x256xf32>
    %cst_21 = arith.constant 0.000000e+00 : f32
    %23 = vector.broadcast %cst_21 : f32 to vector<128x256xf32>
    %24 = arith.maximumf %22, %23 : vector<128x256xf32>
    %c0_22 = arith.constant 0 : index
    %c0_23 = arith.constant 0 : index
    %25 = vector.load %arg13[%c0_22, %c0_23] : memref<128x256xf32, #tpu.memory_space<vmem>>, vector<128x256xf32>
    tpu.vector_store %arg13[%c0_22, %c0_23], %24 {strides = array<i32>} : memref<128x256xf32, #tpu.memory_space<vmem>>, vector<128x256xf32>,
    %cst_24 = arith.constant 0.000000e+00 : f32
    %26 = vector.broadcast %cst_24 : f32 to vector<114x256xf32>
    %c0_25 = arith.constant 0 : index
    %c0_26 = arith.constant 0 : index
    %27 = vector.load %arg14[%c0_25, %c0_26] : memref<114x256xf32, #tpu.memory_space<vmem>>, vector<114x256xf32>
    tpu.vector_store %arg14[%c0_25, %c0_26], %26 {strides = array<i32>} : memref<114x256xf32, #tpu.memory_space<vmem>>, vector<114x256xf32>,
    %cst_27 = arith.constant 0.000000e+00 : f32
    %28 = vector.broadcast %cst_27 : f32 to vector<5x256xf32>
    %c0_28 = arith.constant 0 : index
    %c0_29 = arith.constant 0 : index
    %29 = vector.load %arg13[%c0_28, %c0_29] : memref<128x256xf32, #tpu.memory_space<vmem>>, vector<5x256xf32>
    %c0_30 = arith.constant 0 : index
    %c0_31 = arith.constant 0 : index
    %30 = vector.load %arg12[%c0_30, %c0_31] : memref<32x256xf32, #tpu.memory_space<vmem>>, vector<1x256xf32>
    %31 = vector.broadcast %30 : vector<1x256xf32> to vector<5x256xf32>
    %32 = arith.mulf %29, %31 : vector<5x256xf32>
    %33 = arith.addf %28, %32 : vector<5x256xf32>
    %c1 = arith.constant 1 : index
    %c0_32 = arith.constant 0 : index
    %34 = vector.load %arg13[%c1, %c0_32] : memref<128x256xf32, #tpu.memory_space<vmem>>, vector<5x256xf32>
    %c1_33 = arith.constant 1 : index
    %c0_34 = arith.constant 0 : index
    %35 = vector.load %arg12[%c1_33, %c0_34] : memref<32x256xf32, #tpu.memory_space<vmem>>, vector<1x256xf32>
    %36 = vector.broadcast %35 : vector<1x256xf32> to vector<5x256xf32>
    %37 = arith.mulf %34, %36 : vector<5x256xf32>
    %38 = arith.addf %33, %37 : vector<5x256xf32>
    %c2 = arith.constant 2 : index
    %c0_35 = arith.constant 0 : index
    %39 = vector.load %arg13[%c2, %c0_35] : memref<128x256xf32, #tpu.memory_space<vmem>>, vector<5x256xf32>
    %c2_36 = arith.constant 2 : index
    %c0_37 = arith.constant 0 : index
    %40 = vector.load %arg12[%c2_36, %c0_37] : memref<32x256xf32, #tpu.memory_space<vmem>>, vector<1x256xf32>
    %41 = vector.broadcast %40 : vector<1x256xf32> to vector<5x256xf32>
    %42 = arith.mulf %39, %41 : vector<5x256xf32>
    %43 = arith.addf %38, %42 : vector<5x256xf32>
    %c3 = arith.constant 3 : index
    %c0_38 = arith.constant 0 : index
    %44 = vector.load %arg13[%c3, %c0_38] : memref<128x256xf32, #tpu.memory_space<vmem>>, vector<5x256xf32>
    %c3_39 = arith.constant 3 : index
    %c0_40 = arith.constant 0 : index
    %45 = vector.load %arg12[%c3_39, %c0_40] : memref<32x256xf32, #tpu.memory_space<vmem>>, vector<1x256xf32>
    %46 = vector.broadcast %45 : vector<1x256xf32> to vector<5x256xf32>
    %47 = arith.mulf %44, %46 : vector<5x256xf32>
    %48 = arith.addf %43, %47 : vector<5x256xf32>
    %c8 = arith.constant 8 : index
    %c0_41 = arith.constant 0 : index
    %49 = vector.load %arg13[%c8, %c0_41] : memref<128x256xf32, #tpu.memory_space<vmem>>, vector<5x256xf32>
    %c4 = arith.constant 4 : index
    %c0_42 = arith.constant 0 : index
    %50 = vector.load %arg12[%c4, %c0_42] : memref<32x256xf32, #tpu.memory_space<vmem>>, vector<1x256xf32>
    %51 = vector.broadcast %50 : vector<1x256xf32> to vector<5x256xf32>
    %52 = arith.mulf %49, %51 : vector<5x256xf32>
    %53 = arith.addf %48, %52 : vector<5x256xf32>
    %c9 = arith.constant 9 : index
    %c0_43 = arith.constant 0 : index
    %54 = vector.load %arg13[%c9, %c0_43] : memref<128x256xf32, #tpu.memory_space<vmem>>, vector<5x256xf32>
    %c5 = arith.constant 5 : index
    %c0_44 = arith.constant 0 : index
    %55 = vector.load %arg12[%c5, %c0_44] : memref<32x256xf32, #tpu.memory_space<vmem>>, vector<1x256xf32>
    %56 = vector.broadcast %55 : vector<1x256xf32> to vector<5x256xf32>
    %57 = arith.mulf %54, %56 : vector<5x256xf32>
    %58 = arith.addf %53, %57 : vector<5x256xf32>
    %c10 = arith.constant 10 : index
    %c0_45 = arith.constant 0 : index
    %59 = vector.load %arg13[%c10, %c0_45] : memref<128x256xf32, #tpu.memory_space<vmem>>, vector<5x256xf32>
    %c6 = arith.constant 6 : index
    %c0_46 = arith.constant 0 : index
    %60 = vector.load %arg12[%c6, %c0_46] : memref<32x256xf32, #tpu.memory_space<vmem>>, vector<1x256xf32>
    %61 = vector.broadcast %60 : vector<1x256xf32> to vector<5x256xf32>
    %62 = arith.mulf %59, %61 : vector<5x256xf32>
    %63 = arith.addf %58, %62 : vector<5x256xf32>
    %c11 = arith.constant 11 : index
    %c0_47 = arith.constant 0 : index
    %64 = vector.load %arg13[%c11, %c0_47] : memref<128x256xf32, #tpu.memory_space<vmem>>, vector<5x256xf32>
    %c7 = arith.constant 7 : index
    %c0_48 = arith.constant 0 : index
    %65 = vector.load %arg12[%c7, %c0_48] : memref<32x256xf32, #tpu.memory_space<vmem>>, vector<1x256xf32>
    %66 = vector.broadcast %65 : vector<1x256xf32> to vector<5x256xf32>
    %67 = arith.mulf %64, %66 : vector<5x256xf32>
    %68 = arith.addf %63, %67 : vector<5x256xf32>
    %c16 = arith.constant 16 : index
    %c0_49 = arith.constant 0 : index
    %69 = vector.load %arg13[%c16, %c0_49] : memref<128x256xf32, #tpu.memory_space<vmem>>, vector<5x256xf32>
    %c8_50 = arith.constant 8 : index
    %c0_51 = arith.constant 0 : index
    %70 = vector.load %arg12[%c8_50, %c0_51] : memref<32x256xf32, #tpu.memory_space<vmem>>, vector<1x256xf32>
    %71 = vector.broadcast %70 : vector<1x256xf32> to vector<5x256xf32>
    %72 = arith.mulf %69, %71 : vector<5x256xf32>
    %73 = arith.addf %68, %72 : vector<5x256xf32>
    %c17 = arith.constant 17 : index
    %c0_52 = arith.constant 0 : index
    %74 = vector.load %arg13[%c17, %c0_52] : memref<128x256xf32, #tpu.memory_space<vmem>>, vector<5x256xf32>
    %c9_53 = arith.constant 9 : index
    %c0_54 = arith.constant 0 : index
    %75 = vector.load %arg12[%c9_53, %c0_54] : memref<32x256xf32, #tpu.memory_space<vmem>>, vector<1x256xf32>
    %76 = vector.broadcast %75 : vector<1x256xf32> to vector<5x256xf32>
    %77 = arith.mulf %74, %76 : vector<5x256xf32>
    %78 = arith.addf %73, %77 : vector<5x256xf32>
    %c18 = arith.constant 18 : index
    %c0_55 = arith.constant 0 : index
    %79 = vector.load %arg13[%c18, %c0_55] : memref<128x256xf32, #tpu.memory_space<vmem>>, vector<5x256xf32>
    %c10_56 = arith.constant 10 : index
    %c0_57 = arith.constant 0 : index
    %80 = vector.load %arg12[%c10_56, %c0_57] : memref<32x256xf32, #tpu.memory_space<vmem>>, vector<1x256xf32>
    %81 = vector.broadcast %80 : vector<1x256xf32> to vector<5x256xf32>
    %82 = arith.mulf %79, %81 : vector<5x256xf32>
    %83 = arith.addf %78, %82 : vector<5x256xf32>
    %c19 = arith.constant 19 : index
    %c0_58 = arith.constant 0 : index
    %84 = vector.load %arg13[%c19, %c0_58] : memref<128x256xf32, #tpu.memory_space<vmem>>, vector<5x256xf32>
    %c11_59 = arith.constant 11 : index
    %c0_60 = arith.constant 0 : index
    %85 = vector.load %arg12[%c11_59, %c0_60] : memref<32x256xf32, #tpu.memory_space<vmem>>, vector<1x256xf32>
    %86 = vector.broadcast %85 : vector<1x256xf32> to vector<5x256xf32>
    %87 = arith.mulf %84, %86 : vector<5x256xf32>
    %88 = arith.addf %83, %87 : vector<5x256xf32>
    %c24 = arith.constant 24 : index
    %c0_61 = arith.constant 0 : index
    %89 = vector.load %arg13[%c24, %c0_61] : memref<128x256xf32, #tpu.memory_space<vmem>>, vector<5x256xf32>
    %c12 = arith.constant 12 : index
    %c0_62 = arith.constant 0 : index
    %90 = vector.load %arg12[%c12, %c0_62] : memref<32x256xf32, #tpu.memory_space<vmem>>, vector<1x256xf32>
    %91 = vector.broadcast %90 : vector<1x256xf32> to vector<5x256xf32>
    %92 = arith.mulf %89, %91 : vector<5x256xf32>
    %93 = arith.addf %88, %92 : vector<5x256xf32>
    %c25 = arith.constant 25 : index
    %c0_63 = arith.constant 0 : index
    %94 = vector.load %arg13[%c25, %c0_63] : memref<128x256xf32, #tpu.memory_space<vmem>>, vector<5x256xf32>
    %c13 = arith.constant 13 : index
    %c0_64 = arith.constant 0 : index
    %95 = vector.load %arg12[%c13, %c0_64] : memref<32x256xf32, #tpu.memory_space<vmem>>, vector<1x256xf32>
    %96 = vector.broadcast %95 : vector<1x256xf32> to vector<5x256xf32>
    %97 = arith.mulf %94, %96 : vector<5x256xf32>
    %98 = arith.addf %93, %97 : vector<5x256xf32>
    %c26 = arith.constant 26 : index
    %c0_65 = arith.constant 0 : index
    %99 = vector.load %arg13[%c26, %c0_65] : memref<128x256xf32, #tpu.memory_space<vmem>>, vector<5x256xf32>
    %c14 = arith.constant 14 : index
    %c0_66 = arith.constant 0 : index
    %100 = vector.load %arg12[%c14, %c0_66] : memref<32x256xf32, #tpu.memory_space<vmem>>, vector<1x256xf32>
    %101 = vector.broadcast %100 : vector<1x256xf32> to vector<5x256xf32>
    %102 = arith.mulf %99, %101 : vector<5x256xf32>
    %103 = arith.addf %98, %102 : vector<5x256xf32>
    %c27 = arith.constant 27 : index
    %c0_67 = arith.constant 0 : index
    %104 = vector.load %arg13[%c27, %c0_67] : memref<128x256xf32, #tpu.memory_space<vmem>>, vector<5x256xf32>
    %c15 = arith.constant 15 : index
    %c0_68 = arith.constant 0 : index
    %105 = vector.load %arg12[%c15, %c0_68] : memref<32x256xf32, #tpu.memory_space<vmem>>, vector<1x256xf32>
    %106 = vector.broadcast %105 : vector<1x256xf32> to vector<5x256xf32>
    %107 = arith.mulf %104, %106 : vector<5x256xf32>
    %108 = arith.addf %103, %107 : vector<5x256xf32>
    %c16_69 = arith.constant 16 : index
    %c0_70 = arith.constant 0 : index
    %109 = vector.load %arg14[%c16_69, %c0_70] : memref<114x256xf32, #tpu.memory_space<vmem>>, vector<5x256xf32>
    tpu.vector_store %arg14[%c16_69, %c0_70], %108 {strides = array<i32>} : memref<114x256xf32, #tpu.memory_space<vmem>>, vector<5x256xf32>,
    %cst_71 = arith.constant 0.000000e+00 : f32
    %110 = vector.broadcast %cst_71 : f32 to vector<5x256xf32>
    %c8_72 = arith.constant 8 : index
    %c0_73 = arith.constant 0 : index
    %111 = vector.load %arg13[%c8_72, %c0_73] : memref<128x256xf32, #tpu.memory_space<vmem>>, vector<5x256xf32>
    %c0_74 = arith.constant 0 : index
    %c0_75 = arith.constant 0 : index
    %112 = vector.load %arg12[%c0_74, %c0_75] : memref<32x256xf32, #tpu.memory_space<vmem>>, vector<1x256xf32>
    %113 = vector.broadcast %112 : vector<1x256xf32> to vector<5x256xf32>
    %114 = arith.mulf %111, %113 : vector<5x256xf32>
    %115 = arith.addf %110, %114 : vector<5x256xf32>
    %c9_76 = arith.constant 9 : index
    %c0_77 = arith.constant 0 : index
    %116 = vector.load %arg13[%c9_76, %c0_77] : memref<128x256xf32, #tpu.memory_space<vmem>>, vector<5x256xf32>
    %c1_78 = arith.constant 1 : index
    %c0_79 = arith.constant 0 : index
    %117 = vector.load %arg12[%c1_78, %c0_79] : memref<32x256xf32, #tpu.memory_space<vmem>>, vector<1x256xf32>
    %118 = vector.broadcast %117 : vector<1x256xf32> to vector<5x256xf32>
    %119 = arith.mulf %116, %118 : vector<5x256xf32>
    %120 = arith.addf %115, %119 : vector<5x256xf32>
    %c10_80 = arith.constant 10 : index
    %c0_81 = arith.constant 0 : index
    %121 = vector.load %arg13[%c10_80, %c0_81] : memref<128x256xf32, #tpu.memory_space<vmem>>, vector<5x256xf32>
    %c2_82 = arith.constant 2 : index
    %c0_83 = arith.constant 0 : index
    %122 = vector.load %arg12[%c2_82, %c0_83] : memref<32x256xf32, #tpu.memory_space<vmem>>, vector<1x256xf32>
    %123 = vector.broadcast %122 : vector<1x256xf32> to vector<5x256xf32>
    %124 = arith.mulf %121, %123 : vector<5x256xf32>
    %125 = arith.addf %120, %124 : vector<5x256xf32>
    %c11_84 = arith.constant 11 : index
    %c0_85 = arith.constant 0 : index
    %126 = vector.load %arg13[%c11_84, %c0_85] : memref<128x256xf32, #tpu.memory_space<vmem>>, vector<5x256xf32>
    %c3_86 = arith.constant 3 : index
    %c0_87 = arith.constant 0 : index
    %127 = vector.load %arg12[%c3_86, %c0_87] : memref<32x256xf32, #tpu.memory_space<vmem>>, vector<1x256xf32>
    %128 = vector.broadcast %127 : vector<1x256xf32> to vector<5x256xf32>
    %129 = arith.mulf %126, %128 : vector<5x256xf32>
    %130 = arith.addf %125, %129 : vector<5x256xf32>
    %c16_88 = arith.constant 16 : index
    %c0_89 = arith.constant 0 : index
    %131 = vector.load %arg13[%c16_88, %c0_89] : memref<128x256xf32, #tpu.memory_space<vmem>>, vector<5x256xf32>
    %c4_90 = arith.constant 4 : index
    %c0_91 = arith.constant 0 : index
    %132 = vector.load %arg12[%c4_90, %c0_91] : memref<32x256xf32, #tpu.memory_space<vmem>>, vector<1x256xf32>
    %133 = vector.broadcast %132 : vector<1x256xf32> to vector<5x256xf32>
    %134 = arith.mulf %131, %133 : vector<5x256xf32>
    %135 = arith.addf %130, %134 : vector<5x256xf32>
    %c17_92 = arith.constant 17 : index
    %c0_93 = arith.constant 0 : index
    %136 = vector.load %arg13[%c17_92, %c0_93] : memref<128x256xf32, #tpu.memory_space<vmem>>, vector<5x256xf32>
    %c5_94 = arith.constant 5 : index
    %c0_95 = arith.constant 0 : index
    %137 = vector.load %arg12[%c5_94, %c0_95] : memref<32x256xf32, #tpu.memory_space<vmem>>, vector<1x256xf32>
    %138 = vector.broadcast %137 : vector<1x256xf32> to vector<5x256xf32>
    %139 = arith.mulf %136, %138 : vector<5x256xf32>
    %140 = arith.addf %135, %139 : vector<5x256xf32>
    %c18_96 = arith.constant 18 : index
    %c0_97 = arith.constant 0 : index
    %141 = vector.load %arg13[%c18_96, %c0_97] : memref<128x256xf32, #tpu.memory_space<vmem>>, vector<5x256xf32>
    %c6_98 = arith.constant 6 : index
    %c0_99 = arith.constant 0 : index
    %142 = vector.load %arg12[%c6_98, %c0_99] : memref<32x256xf32, #tpu.memory_space<vmem>>, vector<1x256xf32>
    %143 = vector.broadcast %142 : vector<1x256xf32> to vector<5x256xf32>
    %144 = arith.mulf %141, %143 : vector<5x256xf32>
    %145 = arith.addf %140, %144 : vector<5x256xf32>
    %c19_100 = arith.constant 19 : index
    %c0_101 = arith.constant 0 : index
    %146 = vector.load %arg13[%c19_100, %c0_101] : memref<128x256xf32, #tpu.memory_space<vmem>>, vector<5x256xf32>
    %c7_102 = arith.constant 7 : index
    %c0_103 = arith.constant 0 : index
    %147 = vector.load %arg12[%c7_102, %c0_103] : memref<32x256xf32, #tpu.memory_space<vmem>>, vector<1x256xf32>
    %148 = vector.broadcast %147 : vector<1x256xf32> to vector<5x256xf32>
    %149 = arith.mulf %146, %148 : vector<5x256xf32>
    %150 = arith.addf %145, %149 : vector<5x256xf32>
    %c24_104 = arith.constant 24 : index
    %c0_105 = arith.constant 0 : index
    %151 = vector.load %arg13[%c24_104, %c0_105] : memref<128x256xf32, #tpu.memory_space<vmem>>, vector<5x256xf32>
    %c8_106 = arith.constant 8 : index
    %c0_107 = arith.constant 0 : index
    %152 = vector.load %arg12[%c8_106, %c0_107] : memref<32x256xf32, #tpu.memory_space<vmem>>, vector<1x256xf32>
    %153 = vector.broadcast %152 : vector<1x256xf32> to vector<5x256xf32>
    %154 = arith.mulf %151, %153 : vector<5x256xf32>
    %155 = arith.addf %150, %154 : vector<5x256xf32>
    %c25_108 = arith.constant 25 : index
    %c0_109 = arith.constant 0 : index
    %156 = vector.load %arg13[%c25_108, %c0_109] : memref<128x256xf32, #tpu.memory_space<vmem>>, vector<5x256xf32>
    %c9_110 = arith.constant 9 : index
    %c0_111 = arith.constant 0 : index
    %157 = vector.load %arg12[%c9_110, %c0_111] : memref<32x256xf32, #tpu.memory_space<vmem>>, vector<1x256xf32>
    %158 = vector.broadcast %157 : vector<1x256xf32> to vector<5x256xf32>
    %159 = arith.mulf %156, %158 : vector<5x256xf32>
    %160 = arith.addf %155, %159 : vector<5x256xf32>
    %c26_112 = arith.constant 26 : index
    %c0_113 = arith.constant 0 : index
    %161 = vector.load %arg13[%c26_112, %c0_113] : memref<128x256xf32, #tpu.memory_space<vmem>>, vector<5x256xf32>
    %c10_114 = arith.constant 10 : index
    %c0_115 = arith.constant 0 : index
    %162 = vector.load %arg12[%c10_114, %c0_115] : memref<32x256xf32, #tpu.memory_space<vmem>>, vector<1x256xf32>
    %163 = vector.broadcast %162 : vector<1x256xf32> to vector<5x256xf32>
    %164 = arith.mulf %161, %163 : vector<5x256xf32>
    %165 = arith.addf %160, %164 : vector<5x256xf32>
    %c27_116 = arith.constant 27 : index
    %c0_117 = arith.constant 0 : index
    %166 = vector.load %arg13[%c27_116, %c0_117] : memref<128x256xf32, #tpu.memory_space<vmem>>, vector<5x256xf32>
    %c11_118 = arith.constant 11 : index
    %c0_119 = arith.constant 0 : index
    %167 = vector.load %arg12[%c11_118, %c0_119] : memref<32x256xf32, #tpu.memory_space<vmem>>, vector<1x256xf32>
    %168 = vector.broadcast %167 : vector<1x256xf32> to vector<5x256xf32>
    %169 = arith.mulf %166, %168 : vector<5x256xf32>
    %170 = arith.addf %165, %169 : vector<5x256xf32>
    %c32 = arith.constant 32 : index
    %c0_120 = arith.constant 0 : index
    %171 = vector.load %arg13[%c32, %c0_120] : memref<128x256xf32, #tpu.memory_space<vmem>>, vector<5x256xf32>
    %c12_121 = arith.constant 12 : index
    %c0_122 = arith.constant 0 : index
    %172 = vector.load %arg12[%c12_121, %c0_122] : memref<32x256xf32, #tpu.memory_space<vmem>>, vector<1x256xf32>
    %173 = vector.broadcast %172 : vector<1x256xf32> to vector<5x256xf32>
    %174 = arith.mulf %171, %173 : vector<5x256xf32>
    %175 = arith.addf %170, %174 : vector<5x256xf32>
    %c33 = arith.constant 33 : index
    %c0_123 = arith.constant 0 : index
    %176 = vector.load %arg13[%c33, %c0_123] : memref<128x256xf32, #tpu.memory_space<vmem>>, vector<5x256xf32>
    %c13_124 = arith.constant 13 : index
    %c0_125 = arith.constant 0 : index
    %177 = vector.load %arg12[%c13_124, %c0_125] : memref<32x256xf32, #tpu.memory_space<vmem>>, vector<1x256xf32>
    %178 = vector.broadcast %177 : vector<1x256xf32> to vector<5x256xf32>
    %179 = arith.mulf %176, %178 : vector<5x256xf32>
    %180 = arith.addf %175, %179 : vector<5x256xf32>
    %c34 = arith.constant 34 : index
    %c0_126 = arith.constant 0 : index
    %181 = vector.load %arg13[%c34, %c0_126] : memref<128x256xf32, #tpu.memory_space<vmem>>, vector<5x256xf32>
    %c14_127 = arith.constant 14 : index
    %c0_128 = arith.constant 0 : index
    %182 = vector.load %arg12[%c14_127, %c0_128] : memref<32x256xf32, #tpu.memory_space<vmem>>, vector<1x256xf32>
    %183 = vector.broadcast %182 : vector<1x256xf32> to vector<5x256xf32>
    %184 = arith.mulf %181, %183 : vector<5x256xf32>
    %185 = arith.addf %180, %184 : vector<5x256xf32>
    %c35 = arith.constant 35 : index
    %c0_129 = arith.constant 0 : index
    %186 = vector.load %arg13[%c35, %c0_129] : memref<128x256xf32, #tpu.memory_space<vmem>>, vector<5x256xf32>
    %c15_130 = arith.constant 15 : index
    %c0_131 = arith.constant 0 : index
    %187 = vector.load %arg12[%c15_130, %c0_131] : memref<32x256xf32, #tpu.memory_space<vmem>>, vector<1x256xf32>
    %188 = vector.broadcast %187 : vector<1x256xf32> to vector<5x256xf32>
    %189 = arith.mulf %186, %188 : vector<5x256xf32>
    %190 = arith.addf %185, %189 : vector<5x256xf32>
    %c23 = arith.constant 23 : index
    %c0_132 = arith.constant 0 : index
    %191 = vector.load %arg14[%c23, %c0_132] : memref<114x256xf32, #tpu.memory_space<vmem>>, vector<5x256xf32>
    tpu.vector_store %arg14[%c23, %c0_132], %190 {strides = array<i32>} : memref<114x256xf32, #tpu.memory_space<vmem>>, vector<5x256xf32>,
    %cst_133 = arith.constant 0.000000e+00 : f32
    %192 = vector.broadcast %cst_133 : f32 to vector<5x256xf32>
    %c16_134 = arith.constant 16 : index
    %c0_135 = arith.constant 0 : index
    %193 = vector.load %arg13[%c16_134, %c0_135] : memref<128x256xf32, #tpu.memory_space<vmem>>, vector<5x256xf32>
    %c0_136 = arith.constant 0 : index
    %c0_137 = arith.constant 0 : index
    %194 = vector.load %arg12[%c0_136, %c0_137] : memref<32x256xf32, #tpu.memory_space<vmem>>, vector<1x256xf32>
    %195 = vector.broadcast %194 : vector<1x256xf32> to vector<5x256xf32>
    %196 = arith.mulf %193, %195 : vector<5x256xf32>
    %197 = arith.addf %192, %196 : vector<5x256xf32>
    %c17_138 = arith.constant 17 : index
    %c0_139 = arith.constant 0 : index
    %198 = vector.load %arg13[%c17_138, %c0_139] : memref<128x256xf32, #tpu.memory_space<vmem>>, vector<5x256xf32>
    %c1_140 = arith.constant 1 : index
    %c0_141 = arith.constant 0 : index
    %199 = vector.load %arg12[%c1_140, %c0_141] : memref<32x256xf32, #tpu.memory_space<vmem>>, vector<1x256xf32>
    %200 = vector.broadcast %199 : vector<1x256xf32> to vector<5x256xf32>
    %201 = arith.mulf %198, %200 : vector<5x256xf32>
    %202 = arith.addf %197, %201 : vector<5x256xf32>
    %c18_142 = arith.constant 18 : index
    %c0_143 = arith.constant 0 : index
    %203 = vector.load %arg13[%c18_142, %c0_143] : memref<128x256xf32, #tpu.memory_space<vmem>>, vector<5x256xf32>
    %c2_144 = arith.constant 2 : index
    %c0_145 = arith.constant 0 : index
    %204 = vector.load %arg12[%c2_144, %c0_145] : memref<32x256xf32, #tpu.memory_space<vmem>>, vector<1x256xf32>
    %205 = vector.broadcast %204 : vector<1x256xf32> to vector<5x256xf32>
    %206 = arith.mulf %203, %205 : vector<5x256xf32>
    %207 = arith.addf %202, %206 : vector<5x256xf32>
    %c19_146 = arith.constant 19 : index
    %c0_147 = arith.constant 0 : index
    %208 = vector.load %arg13[%c19_146, %c0_147] : memref<128x256xf32, #tpu.memory_space<vmem>>, vector<5x256xf32>
    %c3_148 = arith.constant 3 : index
    %c0_149 = arith.constant 0 : index
    %209 = vector.load %arg12[%c3_148, %c0_149] : memref<32x256xf32, #tpu.memory_space<vmem>>, vector<1x256xf32>
    %210 = vector.broadcast %209 : vector<1x256xf32> to vector<5x256xf32>
    %211 = arith.mulf %208, %210 : vector<5x256xf32>
    %212 = arith.addf %207, %211 : vector<5x256xf32>
    %c24_150 = arith.constant 24 : index
    %c0_151 = arith.constant 0 : index
    %213 = vector.load %arg13[%c24_150, %c0_151] : memref<128x256xf32, #tpu.memory_space<vmem>>, vector<5x256xf32>
    %c4_152 = arith.constant 4 : index
    %c0_153 = arith.constant 0 : index
    %214 = vector.load %arg12[%c4_152, %c0_153] : memref<32x256xf32, #tpu.memory_space<vmem>>, vector<1x256xf32>
    %215 = vector.broadcast %214 : vector<1x256xf32> to vector<5x256xf32>
    %216 = arith.mulf %213, %215 : vector<5x256xf32>
    %217 = arith.addf %212, %216 : vector<5x256xf32>
    %c25_154 = arith.constant 25 : index
    %c0_155 = arith.constant 0 : index
    %218 = vector.load %arg13[%c25_154, %c0_155] : memref<128x256xf32, #tpu.memory_space<vmem>>, vector<5x256xf32>
    %c5_156 = arith.constant 5 : index
    %c0_157 = arith.constant 0 : index
    %219 = vector.load %arg12[%c5_156, %c0_157] : memref<32x256xf32, #tpu.memory_space<vmem>>, vector<1x256xf32>
    %220 = vector.broadcast %219 : vector<1x256xf32> to vector<5x256xf32>
    %221 = arith.mulf %218, %220 : vector<5x256xf32>
    %222 = arith.addf %217, %221 : vector<5x256xf32>
    %c26_158 = arith.constant 26 : index
    %c0_159 = arith.constant 0 : index
    %223 = vector.load %arg13[%c26_158, %c0_159] : memref<128x256xf32, #tpu.memory_space<vmem>>, vector<5x256xf32>
    %c6_160 = arith.constant 6 : index
    %c0_161 = arith.constant 0 : index
    %224 = vector.load %arg12[%c6_160, %c0_161] : memref<32x256xf32, #tpu.memory_space<vmem>>, vector<1x256xf32>
    %225 = vector.broadcast %224 : vector<1x256xf32> to vector<5x256xf32>
    %226 = arith.mulf %223, %225 : vector<5x256xf32>
    %227 = arith.addf %222, %226 : vector<5x256xf32>
    %c27_162 = arith.constant 27 : index
    %c0_163 = arith.constant 0 : index
    %228 = vector.load %arg13[%c27_162, %c0_163] : memref<128x256xf32, #tpu.memory_space<vmem>>, vector<5x256xf32>
    %c7_164 = arith.constant 7 : index
    %c0_165 = arith.constant 0 : index
    %229 = vector.load %arg12[%c7_164, %c0_165] : memref<32x256xf32, #tpu.memory_space<vmem>>, vector<1x256xf32>
    %230 = vector.broadcast %229 : vector<1x256xf32> to vector<5x256xf32>
    %231 = arith.mulf %228, %230 : vector<5x256xf32>
    %232 = arith.addf %227, %231 : vector<5x256xf32>
    %c32_166 = arith.constant 32 : index
    %c0_167 = arith.constant 0 : index
    %233 = vector.load %arg13[%c32_166, %c0_167] : memref<128x256xf32, #tpu.memory_space<vmem>>, vector<5x256xf32>
    %c8_168 = arith.constant 8 : index
    %c0_169 = arith.constant 0 : index
    %234 = vector.load %arg12[%c8_168, %c0_169] : memref<32x256xf32, #tpu.memory_space<vmem>>, vector<1x256xf32>
    %235 = vector.broadcast %234 : vector<1x256xf32> to vector<5x256xf32>
    %236 = arith.mulf %233, %235 : vector<5x256xf32>
    %237 = arith.addf %232, %236 : vector<5x256xf32>
    %c33_170 = arith.constant 33 : index
    %c0_171 = arith.constant 0 : index
    %238 = vector.load %arg13[%c33_170, %c0_171] : memref<128x256xf32, #tpu.memory_space<vmem>>, vector<5x256xf32>
    %c9_172 = arith.constant 9 : index
    %c0_173 = arith.constant 0 : index
    %239 = vector.load %arg12[%c9_172, %c0_173] : memref<32x256xf32, #tpu.memory_space<vmem>>, vector<1x256xf32>
    %240 = vector.broadcast %239 : vector<1x256xf32> to vector<5x256xf32>
    %241 = arith.mulf %238, %240 : vector<5x256xf32>
    %242 = arith.addf %237, %241 : vector<5x256xf32>
    %c34_174 = arith.constant 34 : index
    %c0_175 = arith.constant 0 : index
    %243 = vector.load %arg13[%c34_174, %c0_175] : memref<128x256xf32, #tpu.memory_space<vmem>>, vector<5x256xf32>
    %c10_176 = arith.constant 10 : index
    %c0_177 = arith.constant 0 : index
    %244 = vector.load %arg12[%c10_176, %c0_177] : memref<32x256xf32, #tpu.memory_space<vmem>>, vector<1x256xf32>
    %245 = vector.broadcast %244 : vector<1x256xf32> to vector<5x256xf32>
    %246 = arith.mulf %243, %245 : vector<5x256xf32>
    %247 = arith.addf %242, %246 : vector<5x256xf32>
    %c35_178 = arith.constant 35 : index
    %c0_179 = arith.constant 0 : index
    %248 = vector.load %arg13[%c35_178, %c0_179] : memref<128x256xf32, #tpu.memory_space<vmem>>, vector<5x256xf32>
    %c11_180 = arith.constant 11 : index
    %c0_181 = arith.constant 0 : index
    %249 = vector.load %arg12[%c11_180, %c0_181] : memref<32x256xf32, #tpu.memory_space<vmem>>, vector<1x256xf32>
    %250 = vector.broadcast %249 : vector<1x256xf32> to vector<5x256xf32>
    %251 = arith.mulf %248, %250 : vector<5x256xf32>
    %252 = arith.addf %247, %251 : vector<5x256xf32>
    %c40 = arith.constant 40 : index
    %c0_182 = arith.constant 0 : index
    %253 = vector.load %arg13[%c40, %c0_182] : memref<128x256xf32, #tpu.memory_space<vmem>>, vector<5x256xf32>
    %c12_183 = arith.constant 12 : index
    %c0_184 = arith.constant 0 : index
    %254 = vector.load %arg12[%c12_183, %c0_184] : memref<32x256xf32, #tpu.memory_space<vmem>>, vector<1x256xf32>
    %255 = vector.broadcast %254 : vector<1x256xf32> to vector<5x256xf32>
    %256 = arith.mulf %253, %255 : vector<5x256xf32>
    %257 = arith.addf %252, %256 : vector<5x256xf32>
    %c41 = arith.constant 41 : index
    %c0_185 = arith.constant 0 : index
    %258 = vector.load %arg13[%c41, %c0_185] : memref<128x256xf32, #tpu.memory_space<vmem>>, vector<5x256xf32>
    %c13_186 = arith.constant 13 : index
    %c0_187 = arith.constant 0 : index
    %259 = vector.load %arg12[%c13_186, %c0_187] : memref<32x256xf32, #tpu.memory_space<vmem>>, vector<1x256xf32>
    %260 = vector.broadcast %259 : vector<1x256xf32> to vector<5x256xf32>
    %261 = arith.mulf %258, %260 : vector<5x256xf32>
    %262 = arith.addf %257, %261 : vector<5x256xf32>
    %c42 = arith.constant 42 : index
    %c0_188 = arith.constant 0 : index
    %263 = vector.load %arg13[%c42, %c0_188] : memref<128x256xf32, #tpu.memory_space<vmem>>, vector<5x256xf32>
    %c14_189 = arith.constant 14 : index
    %c0_190 = arith.constant 0 : index
    %264 = vector.load %arg12[%c14_189, %c0_190] : memref<32x256xf32, #tpu.memory_space<vmem>>, vector<1x256xf32>
    %265 = vector.broadcast %264 : vector<1x256xf32> to vector<5x256xf32>
    %266 = arith.mulf %263, %265 : vector<5x256xf32>
    %267 = arith.addf %262, %266 : vector<5x256xf32>
    %c43 = arith.constant 43 : index
    %c0_191 = arith.constant 0 : index
    %268 = vector.load %arg13[%c43, %c0_191] : memref<128x256xf32, #tpu.memory_space<vmem>>, vector<5x256xf32>
    %c15_192 = arith.constant 15 : index
    %c0_193 = arith.constant 0 : index
    %269 = vector.load %arg12[%c15_192, %c0_193] : memref<32x256xf32, #tpu.memory_space<vmem>>, vector<1x256xf32>
    %270 = vector.broadcast %269 : vector<1x256xf32> to vector<5x256xf32>
    %271 = arith.mulf %268, %270 : vector<5x256xf32>
    %272 = arith.addf %267, %271 : vector<5x256xf32>
    %c30 = arith.constant 30 : index
    %c0_194 = arith.constant 0 : index
    %273 = vector.load %arg14[%c30, %c0_194] : memref<114x256xf32, #tpu.memory_space<vmem>>, vector<5x256xf32>
    tpu.vector_store %arg14[%c30, %c0_194], %272 {strides = array<i32>} : memref<114x256xf32, #tpu.memory_space<vmem>>, vector<5x256xf32>,
    %cst_195 = arith.constant 0.000000e+00 : f32
    %274 = vector.broadcast %cst_195 : f32 to vector<5x256xf32>
    %c24_196 = arith.constant 24 : index
    %c0_197 = arith.constant 0 : index
    %275 = vector.load %arg13[%c24_196, %c0_197] : memref<128x256xf32, #tpu.memory_space<vmem>>, vector<5x256xf32>
    %c0_198 = arith.constant 0 : index
    %c0_199 = arith.constant 0 : index
    %276 = vector.load %arg12[%c0_198, %c0_199] : memref<32x256xf32, #tpu.memory_space<vmem>>, vector<1x256xf32>
    %277 = vector.broadcast %276 : vector<1x256xf32> to vector<5x256xf32>
    %278 = arith.mulf %275, %277 : vector<5x256xf32>
    %279 = arith.addf %274, %278 : vector<5x256xf32>
    %c25_200 = arith.constant 25 : index
    %c0_201 = arith.constant 0 : index
    %280 = vector.load %arg13[%c25_200, %c0_201] : memref<128x256xf32, #tpu.memory_space<vmem>>, vector<5x256xf32>
    %c1_202 = arith.constant 1 : index
    %c0_203 = arith.constant 0 : index
    %281 = vector.load %arg12[%c1_202, %c0_203] : memref<32x256xf32, #tpu.memory_space<vmem>>, vector<1x256xf32>
    %282 = vector.broadcast %281 : vector<1x256xf32> to vector<5x256xf32>
    %283 = arith.mulf %280, %282 : vector<5x256xf32>
    %284 = arith.addf %279, %283 : vector<5x256xf32>
    %c26_204 = arith.constant 26 : index
    %c0_205 = arith.constant 0 : index
    %285 = vector.load %arg13[%c26_204, %c0_205] : memref<128x256xf32, #tpu.memory_space<vmem>>, vector<5x256xf32>
    %c2_206 = arith.constant 2 : index
    %c0_207 = arith.constant 0 : index
    %286 = vector.load %arg12[%c2_206, %c0_207] : memref<32x256xf32, #tpu.memory_space<vmem>>, vector<1x256xf32>
    %287 = vector.broadcast %286 : vector<1x256xf32> to vector<5x256xf32>
    %288 = arith.mulf %285, %287 : vector<5x256xf32>
    %289 = arith.addf %284, %288 : vector<5x256xf32>
    %c27_208 = arith.constant 27 : index
    %c0_209 = arith.constant 0 : index
    %290 = vector.load %arg13[%c27_208, %c0_209] : memref<128x256xf32, #tpu.memory_space<vmem>>, vector<5x256xf32>
    %c3_210 = arith.constant 3 : index
    %c0_211 = arith.constant 0 : index
    %291 = vector.load %arg12[%c3_210, %c0_211] : memref<32x256xf32, #tpu.memory_space<vmem>>, vector<1x256xf32>
    %292 = vector.broadcast %291 : vector<1x256xf32> to vector<5x256xf32>
    %293 = arith.mulf %290, %292 : vector<5x256xf32>
    %294 = arith.addf %289, %293 : vector<5x256xf32>
    %c32_212 = arith.constant 32 : index
    %c0_213 = arith.constant 0 : index
    %295 = vector.load %arg13[%c32_212, %c0_213] : memref<128x256xf32, #tpu.memory_space<vmem>>, vector<5x256xf32>
    %c4_214 = arith.constant 4 : index
    %c0_215 = arith.constant 0 : index
    %296 = vector.load %arg12[%c4_214, %c0_215] : memref<32x256xf32, #tpu.memory_space<vmem>>, vector<1x256xf32>
    %297 = vector.broadcast %296 : vector<1x256xf32> to vector<5x256xf32>
    %298 = arith.mulf %295, %297 : vector<5x256xf32>
    %299 = arith.addf %294, %298 : vector<5x256xf32>
    %c33_216 = arith.constant 33 : index
    %c0_217 = arith.constant 0 : index
    %300 = vector.load %arg13[%c33_216, %c0_217] : memref<128x256xf32, #tpu.memory_space<vmem>>, vector<5x256xf32>
    %c5_218 = arith.constant 5 : index
    %c0_219 = arith.constant 0 : index
    %301 = vector.load %arg12[%c5_218, %c0_219] : memref<32x256xf32, #tpu.memory_space<vmem>>, vector<1x256xf32>
    %302 = vector.broadcast %301 : vector<1x256xf32> to vector<5x256xf32>
    %303 = arith.mulf %300, %302 : vector<5x256xf32>
    %304 = arith.addf %299, %303 : vector<5x256xf32>
    %c34_220 = arith.constant 34 : index
    %c0_221 = arith.constant 0 : index
    %305 = vector.load %arg13[%c34_220, %c0_221] : memref<128x256xf32, #tpu.memory_space<vmem>>, vector<5x256xf32>
    %c6_222 = arith.constant 6 : index
    %c0_223 = arith.constant 0 : index
    %306 = vector.load %arg12[%c6_222, %c0_223] : memref<32x256xf32, #tpu.memory_space<vmem>>, vector<1x256xf32>
    %307 = vector.broadcast %306 : vector<1x256xf32> to vector<5x256xf32>
    %308 = arith.mulf %305, %307 : vector<5x256xf32>
    %309 = arith.addf %304, %308 : vector<5x256xf32>
    %c35_224 = arith.constant 35 : index
    %c0_225 = arith.constant 0 : index
    %310 = vector.load %arg13[%c35_224, %c0_225] : memref<128x256xf32, #tpu.memory_space<vmem>>, vector<5x256xf32>
    %c7_226 = arith.constant 7 : index
    %c0_227 = arith.constant 0 : index
    %311 = vector.load %arg12[%c7_226, %c0_227] : memref<32x256xf32, #tpu.memory_space<vmem>>, vector<1x256xf32>
    %312 = vector.broadcast %311 : vector<1x256xf32> to vector<5x256xf32>
    %313 = arith.mulf %310, %312 : vector<5x256xf32>
    %314 = arith.addf %309, %313 : vector<5x256xf32>
    %c40_228 = arith.constant 40 : index
    %c0_229 = arith.constant 0 : index
    %315 = vector.load %arg13[%c40_228, %c0_229] : memref<128x256xf32, #tpu.memory_space<vmem>>, vector<5x256xf32>
    %c8_230 = arith.constant 8 : index
    %c0_231 = arith.constant 0 : index
    %316 = vector.load %arg12[%c8_230, %c0_231] : memref<32x256xf32, #tpu.memory_space<vmem>>, vector<1x256xf32>
    %317 = vector.broadcast %316 : vector<1x256xf32> to vector<5x256xf32>
    %318 = arith.mulf %315, %317 : vector<5x256xf32>
    %319 = arith.addf %314, %318 : vector<5x256xf32>
    %c41_232 = arith.constant 41 : index
    %c0_233 = arith.constant 0 : index
    %320 = vector.load %arg13[%c41_232, %c0_233] : memref<128x256xf32, #tpu.memory_space<vmem>>, vector<5x256xf32>
    %c9_234 = arith.constant 9 : index
    %c0_235 = arith.constant 0 : index
    %321 = vector.load %arg12[%c9_234, %c0_235] : memref<32x256xf32, #tpu.memory_space<vmem>>, vector<1x256xf32>
    %322 = vector.broadcast %321 : vector<1x256xf32> to vector<5x256xf32>
    %323 = arith.mulf %320, %322 : vector<5x256xf32>
    %324 = arith.addf %319, %323 : vector<5x256xf32>
    %c42_236 = arith.constant 42 : index
    %c0_237 = arith.constant 0 : index
    %325 = vector.load %arg13[%c42_236, %c0_237] : memref<128x256xf32, #tpu.memory_space<vmem>>, vector<5x256xf32>
    %c10_238 = arith.constant 10 : index
    %c0_239 = arith.constant 0 : index
    %326 = vector.load %arg12[%c10_238, %c0_239] : memref<32x256xf32, #tpu.memory_space<vmem>>, vector<1x256xf32>
    %327 = vector.broadcast %326 : vector<1x256xf32> to vector<5x256xf32>
    %328 = arith.mulf %325, %327 : vector<5x256xf32>
    %329 = arith.addf %324, %328 : vector<5x256xf32>
    %c43_240 = arith.constant 43 : index
    %c0_241 = arith.constant 0 : index
    %330 = vector.load %arg13[%c43_240, %c0_241] : memref<128x256xf32, #tpu.memory_space<vmem>>, vector<5x256xf32>
    %c11_242 = arith.constant 11 : index
    %c0_243 = arith.constant 0 : index
    %331 = vector.load %arg12[%c11_242, %c0_243] : memref<32x256xf32, #tpu.memory_space<vmem>>, vector<1x256xf32>
    %332 = vector.broadcast %331 : vector<1x256xf32> to vector<5x256xf32>
    %333 = arith.mulf %330, %332 : vector<5x256xf32>
    %334 = arith.addf %329, %333 : vector<5x256xf32>
    %c48 = arith.constant 48 : index
    %c0_244 = arith.constant 0 : index
    %335 = vector.load %arg13[%c48, %c0_244] : memref<128x256xf32, #tpu.memory_space<vmem>>, vector<5x256xf32>
    %c12_245 = arith.constant 12 : index
    %c0_246 = arith.constant 0 : index
    %336 = vector.load %arg12[%c12_245, %c0_246] : memref<32x256xf32, #tpu.memory_space<vmem>>, vector<1x256xf32>
    %337 = vector.broadcast %336 : vector<1x256xf32> to vector<5x256xf32>
    %338 = arith.mulf %335, %337 : vector<5x256xf32>
    %339 = arith.addf %334, %338 : vector<5x256xf32>
    %c49 = arith.constant 49 : index
    %c0_247 = arith.constant 0 : index
    %340 = vector.load %arg13[%c49, %c0_247] : memref<128x256xf32, #tpu.memory_space<vmem>>, vector<5x256xf32>
    %c13_248 = arith.constant 13 : index
    %c0_249 = arith.constant 0 : index
    %341 = vector.load %arg12[%c13_248, %c0_249] : memref<32x256xf32, #tpu.memory_space<vmem>>, vector<1x256xf32>
    %342 = vector.broadcast %341 : vector<1x256xf32> to vector<5x256xf32>
    %343 = arith.mulf %340, %342 : vector<5x256xf32>
    %344 = arith.addf %339, %343 : vector<5x256xf32>
    %c50 = arith.constant 50 : index
    %c0_250 = arith.constant 0 : index
    %345 = vector.load %arg13[%c50, %c0_250] : memref<128x256xf32, #tpu.memory_space<vmem>>, vector<5x256xf32>
    %c14_251 = arith.constant 14 : index
    %c0_252 = arith.constant 0 : index
    %346 = vector.load %arg12[%c14_251, %c0_252] : memref<32x256xf32, #tpu.memory_space<vmem>>, vector<1x256xf32>
    %347 = vector.broadcast %346 : vector<1x256xf32> to vector<5x256xf32>
    %348 = arith.mulf %345, %347 : vector<5x256xf32>
    %349 = arith.addf %344, %348 : vector<5x256xf32>
    %c51 = arith.constant 51 : index
    %c0_253 = arith.constant 0 : index
    %350 = vector.load %arg13[%c51, %c0_253] : memref<128x256xf32, #tpu.memory_space<vmem>>, vector<5x256xf32>
    %c15_254 = arith.constant 15 : index
    %c0_255 = arith.constant 0 : index
    %351 = vector.load %arg12[%c15_254, %c0_255] : memref<32x256xf32, #tpu.memory_space<vmem>>, vector<1x256xf32>
    %352 = vector.broadcast %351 : vector<1x256xf32> to vector<5x256xf32>
    %353 = arith.mulf %350, %352 : vector<5x256xf32>
    %354 = arith.addf %349, %353 : vector<5x256xf32>
    %c37 = arith.constant 37 : index
    %c0_256 = arith.constant 0 : index
    %355 = vector.load %arg14[%c37, %c0_256] : memref<114x256xf32, #tpu.memory_space<vmem>>, vector<5x256xf32>
    tpu.vector_store %arg14[%c37, %c0_256], %354 {strides = array<i32>} : memref<114x256xf32, #tpu.memory_space<vmem>>, vector<5x256xf32>,
    %cst_257 = arith.constant 0.000000e+00 : f32
    %356 = vector.broadcast %cst_257 : f32 to vector<5x256xf32>
    %c32_258 = arith.constant 32 : index
    %c0_259 = arith.constant 0 : index
    %357 = vector.load %arg13[%c32_258, %c0_259] : memref<128x256xf32, #tpu.memory_space<vmem>>, vector<5x256xf32>
    %c0_260 = arith.constant 0 : index
    %c0_261 = arith.constant 0 : index
    %358 = vector.load %arg12[%c0_260, %c0_261] : memref<32x256xf32, #tpu.memory_space<vmem>>, vector<1x256xf32>
    %359 = vector.broadcast %358 : vector<1x256xf32> to vector<5x256xf32>
    %360 = arith.mulf %357, %359 : vector<5x256xf32>
    %361 = arith.addf %356, %360 : vector<5x256xf32>
    %c33_262 = arith.constant 33 : index
    %c0_263 = arith.constant 0 : index
    %362 = vector.load %arg13[%c33_262, %c0_263] : memref<128x256xf32, #tpu.memory_space<vmem>>, vector<5x256xf32>
    %c1_264 = arith.constant 1 : index
    %c0_265 = arith.constant 0 : index
    %363 = vector.load %arg12[%c1_264, %c0_265] : memref<32x256xf32, #tpu.memory_space<vmem>>, vector<1x256xf32>
    %364 = vector.broadcast %363 : vector<1x256xf32> to vector<5x256xf32>
    %365 = arith.mulf %362, %364 : vector<5x256xf32>
    %366 = arith.addf %361, %365 : vector<5x256xf32>
    %c34_266 = arith.constant 34 : index
    %c0_267 = arith.constant 0 : index
    %367 = vector.load %arg13[%c34_266, %c0_267] : memref<128x256xf32, #tpu.memory_space<vmem>>, vector<5x256xf32>
    %c2_268 = arith.constant 2 : index
    %c0_269 = arith.constant 0 : index
    %368 = vector.load %arg12[%c2_268, %c0_269] : memref<32x256xf32, #tpu.memory_space<vmem>>, vector<1x256xf32>
    %369 = vector.broadcast %368 : vector<1x256xf32> to vector<5x256xf32>
    %370 = arith.mulf %367, %369 : vector<5x256xf32>
    %371 = arith.addf %366, %370 : vector<5x256xf32>
    %c35_270 = arith.constant 35 : index
    %c0_271 = arith.constant 0 : index
    %372 = vector.load %arg13[%c35_270, %c0_271] : memref<128x256xf32, #tpu.memory_space<vmem>>, vector<5x256xf32>
    %c3_272 = arith.constant 3 : index
    %c0_273 = arith.constant 0 : index
    %373 = vector.load %arg12[%c3_272, %c0_273] : memref<32x256xf32, #tpu.memory_space<vmem>>, vector<1x256xf32>
    %374 = vector.broadcast %373 : vector<1x256xf32> to vector<5x256xf32>
    %375 = arith.mulf %372, %374 : vector<5x256xf32>
    %376 = arith.addf %371, %375 : vector<5x256xf32>
    %c40_274 = arith.constant 40 : index
    %c0_275 = arith.constant 0 : index
    %377 = vector.load %arg13[%c40_274, %c0_275] : memref<128x256xf32, #tpu.memory_space<vmem>>, vector<5x256xf32>
    %c4_276 = arith.constant 4 : index
    %c0_277 = arith.constant 0 : index
    %378 = vector.load %arg12[%c4_276, %c0_277] : memref<32x256xf32, #tpu.memory_space<vmem>>, vector<1x256xf32>
    %379 = vector.broadcast %378 : vector<1x256xf32> to vector<5x256xf32>
    %380 = arith.mulf %377, %379 : vector<5x256xf32>
    %381 = arith.addf %376, %380 : vector<5x256xf32>
    %c41_278 = arith.constant 41 : index
    %c0_279 = arith.constant 0 : index
    %382 = vector.load %arg13[%c41_278, %c0_279] : memref<128x256xf32, #tpu.memory_space<vmem>>, vector<5x256xf32>
    %c5_280 = arith.constant 5 : index
    %c0_281 = arith.constant 0 : index
    %383 = vector.load %arg12[%c5_280, %c0_281] : memref<32x256xf32, #tpu.memory_space<vmem>>, vector<1x256xf32>
    %384 = vector.broadcast %383 : vector<1x256xf32> to vector<5x256xf32>
    %385 = arith.mulf %382, %384 : vector<5x256xf32>
    %386 = arith.addf %381, %385 : vector<5x256xf32>
    %c42_282 = arith.constant 42 : index
    %c0_283 = arith.constant 0 : index
    %387 = vector.load %arg13[%c42_282, %c0_283] : memref<128x256xf32, #tpu.memory_space<vmem>>, vector<5x256xf32>
    %c6_284 = arith.constant 6 : index
    %c0_285 = arith.constant 0 : index
    %388 = vector.load %arg12[%c6_284, %c0_285] : memref<32x256xf32, #tpu.memory_space<vmem>>, vector<1x256xf32>
    %389 = vector.broadcast %388 : vector<1x256xf32> to vector<5x256xf32>
    %390 = arith.mulf %387, %389 : vector<5x256xf32>
    %391 = arith.addf %386, %390 : vector<5x256xf32>
    %c43_286 = arith.constant 43 : index
    %c0_287 = arith.constant 0 : index
    %392 = vector.load %arg13[%c43_286, %c0_287] : memref<128x256xf32, #tpu.memory_space<vmem>>, vector<5x256xf32>
    %c7_288 = arith.constant 7 : index
    %c0_289 = arith.constant 0 : index
    %393 = vector.load %arg12[%c7_288, %c0_289] : memref<32x256xf32, #tpu.memory_space<vmem>>, vector<1x256xf32>
    %394 = vector.broadcast %393 : vector<1x256xf32> to vector<5x256xf32>
    %395 = arith.mulf %392, %394 : vector<5x256xf32>
    %396 = arith.addf %391, %395 : vector<5x256xf32>
    %c48_290 = arith.constant 48 : index
    %c0_291 = arith.constant 0 : index
    %397 = vector.load %arg13[%c48_290, %c0_291] : memref<128x256xf32, #tpu.memory_space<vmem>>, vector<5x256xf32>
    %c8_292 = arith.constant 8 : index
    %c0_293 = arith.constant 0 : index
    %398 = vector.load %arg12[%c8_292, %c0_293] : memref<32x256xf32, #tpu.memory_space<vmem>>, vector<1x256xf32>
    %399 = vector.broadcast %398 : vector<1x256xf32> to vector<5x256xf32>
    %400 = arith.mulf %397, %399 : vector<5x256xf32>
    %401 = arith.addf %396, %400 : vector<5x256xf32>
    %c49_294 = arith.constant 49 : index
    %c0_295 = arith.constant 0 : index
    %402 = vector.load %arg13[%c49_294, %c0_295] : memref<128x256xf32, #tpu.memory_space<vmem>>, vector<5x256xf32>
    %c9_296 = arith.constant 9 : index
    %c0_297 = arith.constant 0 : index
    %403 = vector.load %arg12[%c9_296, %c0_297] : memref<32x256xf32, #tpu.memory_space<vmem>>, vector<1x256xf32>
    %404 = vector.broadcast %403 : vector<1x256xf32> to vector<5x256xf32>
    %405 = arith.mulf %402, %404 : vector<5x256xf32>
    %406 = arith.addf %401, %405 : vector<5x256xf32>
    %c50_298 = arith.constant 50 : index
    %c0_299 = arith.constant 0 : index
    %407 = vector.load %arg13[%c50_298, %c0_299] : memref<128x256xf32, #tpu.memory_space<vmem>>, vector<5x256xf32>
    %c10_300 = arith.constant 10 : index
    %c0_301 = arith.constant 0 : index
    %408 = vector.load %arg12[%c10_300, %c0_301] : memref<32x256xf32, #tpu.memory_space<vmem>>, vector<1x256xf32>
    %409 = vector.broadcast %408 : vector<1x256xf32> to vector<5x256xf32>
    %410 = arith.mulf %407, %409 : vector<5x256xf32>
    %411 = arith.addf %406, %410 : vector<5x256xf32>
    %c51_302 = arith.constant 51 : index
    %c0_303 = arith.constant 0 : index
    %412 = vector.load %arg13[%c51_302, %c0_303] : memref<128x256xf32, #tpu.memory_space<vmem>>, vector<5x256xf32>
    %c11_304 = arith.constant 11 : index
    %c0_305 = arith.constant 0 : index
    %413 = vector.load %arg12[%c11_304, %c0_305] : memref<32x256xf32, #tpu.memory_space<vmem>>, vector<1x256xf32>
    %414 = vector.broadcast %413 : vector<1x256xf32> to vector<5x256xf32>
    %415 = arith.mulf %412, %414 : vector<5x256xf32>
    %416 = arith.addf %411, %415 : vector<5x256xf32>
    %c56 = arith.constant 56 : index
    %c0_306 = arith.constant 0 : index
    %417 = vector.load %arg13[%c56, %c0_306] : memref<128x256xf32, #tpu.memory_space<vmem>>, vector<5x256xf32>
    %c12_307 = arith.constant 12 : index
    %c0_308 = arith.constant 0 : index
    %418 = vector.load %arg12[%c12_307, %c0_308] : memref<32x256xf32, #tpu.memory_space<vmem>>, vector<1x256xf32>
    %419 = vector.broadcast %418 : vector<1x256xf32> to vector<5x256xf32>
    %420 = arith.mulf %417, %419 : vector<5x256xf32>
    %421 = arith.addf %416, %420 : vector<5x256xf32>
    %c57 = arith.constant 57 : index
    %c0_309 = arith.constant 0 : index
    %422 = vector.load %arg13[%c57, %c0_309] : memref<128x256xf32, #tpu.memory_space<vmem>>, vector<5x256xf32>
    %c13_310 = arith.constant 13 : index
    %c0_311 = arith.constant 0 : index
    %423 = vector.load %arg12[%c13_310, %c0_311] : memref<32x256xf32, #tpu.memory_space<vmem>>, vector<1x256xf32>
    %424 = vector.broadcast %423 : vector<1x256xf32> to vector<5x256xf32>
    %425 = arith.mulf %422, %424 : vector<5x256xf32>
    %426 = arith.addf %421, %425 : vector<5x256xf32>
    %c58 = arith.constant 58 : index
    %c0_312 = arith.constant 0 : index
    %427 = vector.load %arg13[%c58, %c0_312] : memref<128x256xf32, #tpu.memory_space<vmem>>, vector<5x256xf32>
    %c14_313 = arith.constant 14 : index
    %c0_314 = arith.constant 0 : index
    %428 = vector.load %arg12[%c14_313, %c0_314] : memref<32x256xf32, #tpu.memory_space<vmem>>, vector<1x256xf32>
    %429 = vector.broadcast %428 : vector<1x256xf32> to vector<5x256xf32>
    %430 = arith.mulf %427, %429 : vector<5x256xf32>
    %431 = arith.addf %426, %430 : vector<5x256xf32>
    %c59 = arith.constant 59 : index
    %c0_315 = arith.constant 0 : index
    %432 = vector.load %arg13[%c59, %c0_315] : memref<128x256xf32, #tpu.memory_space<vmem>>, vector<5x256xf32>
    %c15_316 = arith.constant 15 : index
    %c0_317 = arith.constant 0 : index
    %433 = vector.load %arg12[%c15_316, %c0_317] : memref<32x256xf32, #tpu.memory_space<vmem>>, vector<1x256xf32>
    %434 = vector.broadcast %433 : vector<1x256xf32> to vector<5x256xf32>
    %435 = arith.mulf %432, %434 : vector<5x256xf32>
    %436 = arith.addf %431, %435 : vector<5x256xf32>
    %c44 = arith.constant 44 : index
    %c0_318 = arith.constant 0 : index
    %437 = vector.load %arg14[%c44, %c0_318] : memref<114x256xf32, #tpu.memory_space<vmem>>, vector<5x256xf32>
    tpu.vector_store %arg14[%c44, %c0_318], %436 {strides = array<i32>} : memref<114x256xf32, #tpu.memory_space<vmem>>, vector<5x256xf32>,
    %cst_319 = arith.constant 0.000000e+00 : f32
    %438 = vector.broadcast %cst_319 : f32 to vector<5x256xf32>
    %c64 = arith.constant 64 : index
    %c0_320 = arith.constant 0 : index
    %439 = vector.load %arg13[%c64, %c0_320] : memref<128x256xf32, #tpu.memory_space<vmem>>, vector<5x256xf32>
    %c16_321 = arith.constant 16 : index
    %c0_322 = arith.constant 0 : index
    %440 = vector.load %arg12[%c16_321, %c0_322] : memref<32x256xf32, #tpu.memory_space<vmem>>, vector<1x256xf32>
    %441 = vector.broadcast %440 : vector<1x256xf32> to vector<5x256xf32>
    %442 = arith.mulf %439, %441 : vector<5x256xf32>
    %443 = arith.addf %438, %442 : vector<5x256xf32>
    %c65 = arith.constant 65 : index
    %c0_323 = arith.constant 0 : index
    %444 = vector.load %arg13[%c65, %c0_323] : memref<128x256xf32, #tpu.memory_space<vmem>>, vector<5x256xf32>
    %c17_324 = arith.constant 17 : index
    %c0_325 = arith.constant 0 : index
    %445 = vector.load %arg12[%c17_324, %c0_325] : memref<32x256xf32, #tpu.memory_space<vmem>>, vector<1x256xf32>
    %446 = vector.broadcast %445 : vector<1x256xf32> to vector<5x256xf32>
    %447 = arith.mulf %444, %446 : vector<5x256xf32>
    %448 = arith.addf %443, %447 : vector<5x256xf32>
    %c66 = arith.constant 66 : index
    %c0_326 = arith.constant 0 : index
    %449 = vector.load %arg13[%c66, %c0_326] : memref<128x256xf32, #tpu.memory_space<vmem>>, vector<5x256xf32>
    %c18_327 = arith.constant 18 : index
    %c0_328 = arith.constant 0 : index
    %450 = vector.load %arg12[%c18_327, %c0_328] : memref<32x256xf32, #tpu.memory_space<vmem>>, vector<1x256xf32>
    %451 = vector.broadcast %450 : vector<1x256xf32> to vector<5x256xf32>
    %452 = arith.mulf %449, %451 : vector<5x256xf32>
    %453 = arith.addf %448, %452 : vector<5x256xf32>
    %c67 = arith.constant 67 : index
    %c0_329 = arith.constant 0 : index
    %454 = vector.load %arg13[%c67, %c0_329] : memref<128x256xf32, #tpu.memory_space<vmem>>, vector<5x256xf32>
    %c19_330 = arith.constant 19 : index
    %c0_331 = arith.constant 0 : index
    %455 = vector.load %arg12[%c19_330, %c0_331] : memref<32x256xf32, #tpu.memory_space<vmem>>, vector<1x256xf32>
    %456 = vector.broadcast %455 : vector<1x256xf32> to vector<5x256xf32>
    %457 = arith.mulf %454, %456 : vector<5x256xf32>
    %458 = arith.addf %453, %457 : vector<5x256xf32>
    %c72 = arith.constant 72 : index
    %c0_332 = arith.constant 0 : index
    %459 = vector.load %arg13[%c72, %c0_332] : memref<128x256xf32, #tpu.memory_space<vmem>>, vector<5x256xf32>
    %c20 = arith.constant 20 : index
    %c0_333 = arith.constant 0 : index
    %460 = vector.load %arg12[%c20, %c0_333] : memref<32x256xf32, #tpu.memory_space<vmem>>, vector<1x256xf32>
    %461 = vector.broadcast %460 : vector<1x256xf32> to vector<5x256xf32>
    %462 = arith.mulf %459, %461 : vector<5x256xf32>
    %463 = arith.addf %458, %462 : vector<5x256xf32>
    %c73 = arith.constant 73 : index
    %c0_334 = arith.constant 0 : index
    %464 = vector.load %arg13[%c73, %c0_334] : memref<128x256xf32, #tpu.memory_space<vmem>>, vector<5x256xf32>
    %c21 = arith.constant 21 : index
    %c0_335 = arith.constant 0 : index
    %465 = vector.load %arg12[%c21, %c0_335] : memref<32x256xf32, #tpu.memory_space<vmem>>, vector<1x256xf32>
    %466 = vector.broadcast %465 : vector<1x256xf32> to vector<5x256xf32>
    %467 = arith.mulf %464, %466 : vector<5x256xf32>
    %468 = arith.addf %463, %467 : vector<5x256xf32>
    %c74 = arith.constant 74 : index
    %c0_336 = arith.constant 0 : index
    %469 = vector.load %arg13[%c74, %c0_336] : memref<128x256xf32, #tpu.memory_space<vmem>>, vector<5x256xf32>
    %c22 = arith.constant 22 : index
    %c0_337 = arith.constant 0 : index
    %470 = vector.load %arg12[%c22, %c0_337] : memref<32x256xf32, #tpu.memory_space<vmem>>, vector<1x256xf32>
    %471 = vector.broadcast %470 : vector<1x256xf32> to vector<5x256xf32>
    %472 = arith.mulf %469, %471 : vector<5x256xf32>
    %473 = arith.addf %468, %472 : vector<5x256xf32>
    %c75 = arith.constant 75 : index
    %c0_338 = arith.constant 0 : index
    %474 = vector.load %arg13[%c75, %c0_338] : memref<128x256xf32, #tpu.memory_space<vmem>>, vector<5x256xf32>
    %c23_339 = arith.constant 23 : index
    %c0_340 = arith.constant 0 : index
    %475 = vector.load %arg12[%c23_339, %c0_340] : memref<32x256xf32, #tpu.memory_space<vmem>>, vector<1x256xf32>
    %476 = vector.broadcast %475 : vector<1x256xf32> to vector<5x256xf32>
    %477 = arith.mulf %474, %476 : vector<5x256xf32>
    %478 = arith.addf %473, %477 : vector<5x256xf32>
    %c80 = arith.constant 80 : index
    %c0_341 = arith.constant 0 : index
    %479 = vector.load %arg13[%c80, %c0_341] : memref<128x256xf32, #tpu.memory_space<vmem>>, vector<5x256xf32>
    %c24_342 = arith.constant 24 : index
    %c0_343 = arith.constant 0 : index
    %480 = vector.load %arg12[%c24_342, %c0_343] : memref<32x256xf32, #tpu.memory_space<vmem>>, vector<1x256xf32>
    %481 = vector.broadcast %480 : vector<1x256xf32> to vector<5x256xf32>
    %482 = arith.mulf %479, %481 : vector<5x256xf32>
    %483 = arith.addf %478, %482 : vector<5x256xf32>
    %c81 = arith.constant 81 : index
    %c0_344 = arith.constant 0 : index
    %484 = vector.load %arg13[%c81, %c0_344] : memref<128x256xf32, #tpu.memory_space<vmem>>, vector<5x256xf32>
    %c25_345 = arith.constant 25 : index
    %c0_346 = arith.constant 0 : index
    %485 = vector.load %arg12[%c25_345, %c0_346] : memref<32x256xf32, #tpu.memory_space<vmem>>, vector<1x256xf32>
    %486 = vector.broadcast %485 : vector<1x256xf32> to vector<5x256xf32>
    %487 = arith.mulf %484, %486 : vector<5x256xf32>
    %488 = arith.addf %483, %487 : vector<5x256xf32>
    %c82 = arith.constant 82 : index
    %c0_347 = arith.constant 0 : index
    %489 = vector.load %arg13[%c82, %c0_347] : memref<128x256xf32, #tpu.memory_space<vmem>>, vector<5x256xf32>
    %c26_348 = arith.constant 26 : index
    %c0_349 = arith.constant 0 : index
    %490 = vector.load %arg12[%c26_348, %c0_349] : memref<32x256xf32, #tpu.memory_space<vmem>>, vector<1x256xf32>
    %491 = vector.broadcast %490 : vector<1x256xf32> to vector<5x256xf32>
    %492 = arith.mulf %489, %491 : vector<5x256xf32>
    %493 = arith.addf %488, %492 : vector<5x256xf32>
    %c83 = arith.constant 83 : index
    %c0_350 = arith.constant 0 : index
    %494 = vector.load %arg13[%c83, %c0_350] : memref<128x256xf32, #tpu.memory_space<vmem>>, vector<5x256xf32>
    %c27_351 = arith.constant 27 : index
    %c0_352 = arith.constant 0 : index
    %495 = vector.load %arg12[%c27_351, %c0_352] : memref<32x256xf32, #tpu.memory_space<vmem>>, vector<1x256xf32>
    %496 = vector.broadcast %495 : vector<1x256xf32> to vector<5x256xf32>
    %497 = arith.mulf %494, %496 : vector<5x256xf32>
    %498 = arith.addf %493, %497 : vector<5x256xf32>
    %c88 = arith.constant 88 : index
    %c0_353 = arith.constant 0 : index
    %499 = vector.load %arg13[%c88, %c0_353] : memref<128x256xf32, #tpu.memory_space<vmem>>, vector<5x256xf32>
    %c28 = arith.constant 28 : index
    %c0_354 = arith.constant 0 : index
    %500 = vector.load %arg12[%c28, %c0_354] : memref<32x256xf32, #tpu.memory_space<vmem>>, vector<1x256xf32>
    %501 = vector.broadcast %500 : vector<1x256xf32> to vector<5x256xf32>
    %502 = arith.mulf %499, %501 : vector<5x256xf32>
    %503 = arith.addf %498, %502 : vector<5x256xf32>
    %c89 = arith.constant 89 : index
    %c0_355 = arith.constant 0 : index
    %504 = vector.load %arg13[%c89, %c0_355] : memref<128x256xf32, #tpu.memory_space<vmem>>, vector<5x256xf32>
    %c29 = arith.constant 29 : index
    %c0_356 = arith.constant 0 : index
    %505 = vector.load %arg12[%c29, %c0_356] : memref<32x256xf32, #tpu.memory_space<vmem>>, vector<1x256xf32>
    %506 = vector.broadcast %505 : vector<1x256xf32> to vector<5x256xf32>
    %507 = arith.mulf %504, %506 : vector<5x256xf32>
    %508 = arith.addf %503, %507 : vector<5x256xf32>
    %c90 = arith.constant 90 : index
    %c0_357 = arith.constant 0 : index
    %509 = vector.load %arg13[%c90, %c0_357] : memref<128x256xf32, #tpu.memory_space<vmem>>, vector<5x256xf32>
    %c30_358 = arith.constant 30 : index
    %c0_359 = arith.constant 0 : index
    %510 = vector.load %arg12[%c30_358, %c0_359] : memref<32x256xf32, #tpu.memory_space<vmem>>, vector<1x256xf32>
    %511 = vector.broadcast %510 : vector<1x256xf32> to vector<5x256xf32>
    %512 = arith.mulf %509, %511 : vector<5x256xf32>
    %513 = arith.addf %508, %512 : vector<5x256xf32>
    %c91 = arith.constant 91 : index
    %c0_360 = arith.constant 0 : index
    %514 = vector.load %arg13[%c91, %c0_360] : memref<128x256xf32, #tpu.memory_space<vmem>>, vector<5x256xf32>
    %c31 = arith.constant 31 : index
    %c0_361 = arith.constant 0 : index
    %515 = vector.load %arg12[%c31, %c0_361] : memref<32x256xf32, #tpu.memory_space<vmem>>, vector<1x256xf32>
    %516 = vector.broadcast %515 : vector<1x256xf32> to vector<5x256xf32>
    %517 = arith.mulf %514, %516 : vector<5x256xf32>
    %518 = arith.addf %513, %517 : vector<5x256xf32>
    %c65_362 = arith.constant 65 : index
    %c0_363 = arith.constant 0 : index
    %519 = vector.load %arg14[%c65_362, %c0_363] : memref<114x256xf32, #tpu.memory_space<vmem>>, vector<5x256xf32>
    tpu.vector_store %arg14[%c65_362, %c0_363], %518 {strides = array<i32>} : memref<114x256xf32, #tpu.memory_space<vmem>>, vector<5x256xf32>,
    %cst_364 = arith.constant 0.000000e+00 : f32
    %520 = vector.broadcast %cst_364 : f32 to vector<5x256xf32>
    %c72_365 = arith.constant 72 : index
    %c0_366 = arith.constant 0 : index
    %521 = vector.load %arg13[%c72_365, %c0_366] : memref<128x256xf32, #tpu.memory_space<vmem>>, vector<5x256xf32>
    %c16_367 = arith.constant 16 : index
    %c0_368 = arith.constant 0 : index
    %522 = vector.load %arg12[%c16_367, %c0_368] : memref<32x256xf32, #tpu.memory_space<vmem>>, vector<1x256xf32>
    %523 = vector.broadcast %522 : vector<1x256xf32> to vector<5x256xf32>
    %524 = arith.mulf %521, %523 : vector<5x256xf32>
    %525 = arith.addf %520, %524 : vector<5x256xf32>
    %c73_369 = arith.constant 73 : index
    %c0_370 = arith.constant 0 : index
    %526 = vector.load %arg13[%c73_369, %c0_370] : memref<128x256xf32, #tpu.memory_space<vmem>>, vector<5x256xf32>
    %c17_371 = arith.constant 17 : index
    %c0_372 = arith.constant 0 : index
    %527 = vector.load %arg12[%c17_371, %c0_372] : memref<32x256xf32, #tpu.memory_space<vmem>>, vector<1x256xf32>
    %528 = vector.broadcast %527 : vector<1x256xf32> to vector<5x256xf32>
    %529 = arith.mulf %526, %528 : vector<5x256xf32>
    %530 = arith.addf %525, %529 : vector<5x256xf32>
    %c74_373 = arith.constant 74 : index
    %c0_374 = arith.constant 0 : index
    %531 = vector.load %arg13[%c74_373, %c0_374] : memref<128x256xf32, #tpu.memory_space<vmem>>, vector<5x256xf32>
    %c18_375 = arith.constant 18 : index
    %c0_376 = arith.constant 0 : index
    %532 = vector.load %arg12[%c18_375, %c0_376] : memref<32x256xf32, #tpu.memory_space<vmem>>, vector<1x256xf32>
    %533 = vector.broadcast %532 : vector<1x256xf32> to vector<5x256xf32>
    %534 = arith.mulf %531, %533 : vector<5x256xf32>
    %535 = arith.addf %530, %534 : vector<5x256xf32>
    %c75_377 = arith.constant 75 : index
    %c0_378 = arith.constant 0 : index
    %536 = vector.load %arg13[%c75_377, %c0_378] : memref<128x256xf32, #tpu.memory_space<vmem>>, vector<5x256xf32>
    %c19_379 = arith.constant 19 : index
    %c0_380 = arith.constant 0 : index
    %537 = vector.load %arg12[%c19_379, %c0_380] : memref<32x256xf32, #tpu.memory_space<vmem>>, vector<1x256xf32>
    %538 = vector.broadcast %537 : vector<1x256xf32> to vector<5x256xf32>
    %539 = arith.mulf %536, %538 : vector<5x256xf32>
    %540 = arith.addf %535, %539 : vector<5x256xf32>
    %c80_381 = arith.constant 80 : index
    %c0_382 = arith.constant 0 : index
    %541 = vector.load %arg13[%c80_381, %c0_382] : memref<128x256xf32, #tpu.memory_space<vmem>>, vector<5x256xf32>
    %c20_383 = arith.constant 20 : index
    %c0_384 = arith.constant 0 : index
    %542 = vector.load %arg12[%c20_383, %c0_384] : memref<32x256xf32, #tpu.memory_space<vmem>>, vector<1x256xf32>
    %543 = vector.broadcast %542 : vector<1x256xf32> to vector<5x256xf32>
    %544 = arith.mulf %541, %543 : vector<5x256xf32>
    %545 = arith.addf %540, %544 : vector<5x256xf32>
    %c81_385 = arith.constant 81 : index
    %c0_386 = arith.constant 0 : index
    %546 = vector.load %arg13[%c81_385, %c0_386] : memref<128x256xf32, #tpu.memory_space<vmem>>, vector<5x256xf32>
    %c21_387 = arith.constant 21 : index
    %c0_388 = arith.constant 0 : index
    %547 = vector.load %arg12[%c21_387, %c0_388] : memref<32x256xf32, #tpu.memory_space<vmem>>, vector<1x256xf32>
    %548 = vector.broadcast %547 : vector<1x256xf32> to vector<5x256xf32>
    %549 = arith.mulf %546, %548 : vector<5x256xf32>
    %550 = arith.addf %545, %549 : vector<5x256xf32>
    %c82_389 = arith.constant 82 : index
    %c0_390 = arith.constant 0 : index
    %551 = vector.load %arg13[%c82_389, %c0_390] : memref<128x256xf32, #tpu.memory_space<vmem>>, vector<5x256xf32>
    %c22_391 = arith.constant 22 : index
    %c0_392 = arith.constant 0 : index
    %552 = vector.load %arg12[%c22_391, %c0_392] : memref<32x256xf32, #tpu.memory_space<vmem>>, vector<1x256xf32>
    %553 = vector.broadcast %552 : vector<1x256xf32> to vector<5x256xf32>
    %554 = arith.mulf %551, %553 : vector<5x256xf32>
    %555 = arith.addf %550, %554 : vector<5x256xf32>
    %c83_393 = arith.constant 83 : index
    %c0_394 = arith.constant 0 : index
    %556 = vector.load %arg13[%c83_393, %c0_394] : memref<128x256xf32, #tpu.memory_space<vmem>>, vector<5x256xf32>
    %c23_395 = arith.constant 23 : index
    %c0_396 = arith.constant 0 : index
    %557 = vector.load %arg12[%c23_395, %c0_396] : memref<32x256xf32, #tpu.memory_space<vmem>>, vector<1x256xf32>
    %558 = vector.broadcast %557 : vector<1x256xf32> to vector<5x256xf32>
    %559 = arith.mulf %556, %558 : vector<5x256xf32>
    %560 = arith.addf %555, %559 : vector<5x256xf32>
    %c88_397 = arith.constant 88 : index
    %c0_398 = arith.constant 0 : index
    %561 = vector.load %arg13[%c88_397, %c0_398] : memref<128x256xf32, #tpu.memory_space<vmem>>, vector<5x256xf32>
    %c24_399 = arith.constant 24 : index
    %c0_400 = arith.constant 0 : index
    %562 = vector.load %arg12[%c24_399, %c0_400] : memref<32x256xf32, #tpu.memory_space<vmem>>, vector<1x256xf32>
    %563 = vector.broadcast %562 : vector<1x256xf32> to vector<5x256xf32>
    %564 = arith.mulf %561, %563 : vector<5x256xf32>
    %565 = arith.addf %560, %564 : vector<5x256xf32>
    %c89_401 = arith.constant 89 : index
    %c0_402 = arith.constant 0 : index
    %566 = vector.load %arg13[%c89_401, %c0_402] : memref<128x256xf32, #tpu.memory_space<vmem>>, vector<5x256xf32>
    %c25_403 = arith.constant 25 : index
    %c0_404 = arith.constant 0 : index
    %567 = vector.load %arg12[%c25_403, %c0_404] : memref<32x256xf32, #tpu.memory_space<vmem>>, vector<1x256xf32>
    %568 = vector.broadcast %567 : vector<1x256xf32> to vector<5x256xf32>
    %569 = arith.mulf %566, %568 : vector<5x256xf32>
    %570 = arith.addf %565, %569 : vector<5x256xf32>
    %c90_405 = arith.constant 90 : index
    %c0_406 = arith.constant 0 : index
    %571 = vector.load %arg13[%c90_405, %c0_406] : memref<128x256xf32, #tpu.memory_space<vmem>>, vector<5x256xf32>
    %c26_407 = arith.constant 26 : index
    %c0_408 = arith.constant 0 : index
    %572 = vector.load %arg12[%c26_407, %c0_408] : memref<32x256xf32, #tpu.memory_space<vmem>>, vector<1x256xf32>
    %573 = vector.broadcast %572 : vector<1x256xf32> to vector<5x256xf32>
    %574 = arith.mulf %571, %573 : vector<5x256xf32>
    %575 = arith.addf %570, %574 : vector<5x256xf32>
    %c91_409 = arith.constant 91 : index
    %c0_410 = arith.constant 0 : index
    %576 = vector.load %arg13[%c91_409, %c0_410] : memref<128x256xf32, #tpu.memory_space<vmem>>, vector<5x256xf32>
    %c27_411 = arith.constant 27 : index
    %c0_412 = arith.constant 0 : index
    %577 = vector.load %arg12[%c27_411, %c0_412] : memref<32x256xf32, #tpu.memory_space<vmem>>, vector<1x256xf32>
    %578 = vector.broadcast %577 : vector<1x256xf32> to vector<5x256xf32>
    %579 = arith.mulf %576, %578 : vector<5x256xf32>
    %580 = arith.addf %575, %579 : vector<5x256xf32>
    %c96 = arith.constant 96 : index
    %c0_413 = arith.constant 0 : index
    %581 = vector.load %arg13[%c96, %c0_413] : memref<128x256xf32, #tpu.memory_space<vmem>>, vector<5x256xf32>
    %c28_414 = arith.constant 28 : index
    %c0_415 = arith.constant 0 : index
    %582 = vector.load %arg12[%c28_414, %c0_415] : memref<32x256xf32, #tpu.memory_space<vmem>>, vector<1x256xf32>
    %583 = vector.broadcast %582 : vector<1x256xf32> to vector<5x256xf32>
    %584 = arith.mulf %581, %583 : vector<5x256xf32>
    %585 = arith.addf %580, %584 : vector<5x256xf32>
    %c97 = arith.constant 97 : index
    %c0_416 = arith.constant 0 : index
    %586 = vector.load %arg13[%c97, %c0_416] : memref<128x256xf32, #tpu.memory_space<vmem>>, vector<5x256xf32>
    %c29_417 = arith.constant 29 : index
    %c0_418 = arith.constant 0 : index
    %587 = vector.load %arg12[%c29_417, %c0_418] : memref<32x256xf32, #tpu.memory_space<vmem>>, vector<1x256xf32>
    %588 = vector.broadcast %587 : vector<1x256xf32> to vector<5x256xf32>
    %589 = arith.mulf %586, %588 : vector<5x256xf32>
    %590 = arith.addf %585, %589 : vector<5x256xf32>
    %c98 = arith.constant 98 : index
    %c0_419 = arith.constant 0 : index
    %591 = vector.load %arg13[%c98, %c0_419] : memref<128x256xf32, #tpu.memory_space<vmem>>, vector<5x256xf32>
    %c30_420 = arith.constant 30 : index
    %c0_421 = arith.constant 0 : index
    %592 = vector.load %arg12[%c30_420, %c0_421] : memref<32x256xf32, #tpu.memory_space<vmem>>, vector<1x256xf32>
    %593 = vector.broadcast %592 : vector<1x256xf32> to vector<5x256xf32>
    %594 = arith.mulf %591, %593 : vector<5x256xf32>
    %595 = arith.addf %590, %594 : vector<5x256xf32>
    %c99 = arith.constant 99 : index
    %c0_422 = arith.constant 0 : index
    %596 = vector.load %arg13[%c99, %c0_422] : memref<128x256xf32, #tpu.memory_space<vmem>>, vector<5x256xf32>
    %c31_423 = arith.constant 31 : index
    %c0_424 = arith.constant 0 : index
    %597 = vector.load %arg12[%c31_423, %c0_424] : memref<32x256xf32, #tpu.memory_space<vmem>>, vector<1x256xf32>
    %598 = vector.broadcast %597 : vector<1x256xf32> to vector<5x256xf32>
    %599 = arith.mulf %596, %598 : vector<5x256xf32>
    %600 = arith.addf %595, %599 : vector<5x256xf32>
    %c72_425 = arith.constant 72 : index
    %c0_426 = arith.constant 0 : index
    %601 = vector.load %arg14[%c72_425, %c0_426] : memref<114x256xf32, #tpu.memory_space<vmem>>, vector<5x256xf32>
    tpu.vector_store %arg14[%c72_425, %c0_426], %600 {strides = array<i32>} : memref<114x256xf32, #tpu.memory_space<vmem>>, vector<5x256xf32>,
    %cst_427 = arith.constant 0.000000e+00 : f32
    %602 = vector.broadcast %cst_427 : f32 to vector<5x256xf32>
    %c80_428 = arith.constant 80 : index
    %c0_429 = arith.constant 0 : index
    %603 = vector.load %arg13[%c80_428, %c0_429] : memref<128x256xf32, #tpu.memory_space<vmem>>, vector<5x256xf32>
    %c16_430 = arith.constant 16 : index
    %c0_431 = arith.constant 0 : index
    %604 = vector.load %arg12[%c16_430, %c0_431] : memref<32x256xf32, #tpu.memory_space<vmem>>, vector<1x256xf32>
    %605 = vector.broadcast %604 : vector<1x256xf32> to vector<5x256xf32>
    %606 = arith.mulf %603, %605 : vector<5x256xf32>
    %607 = arith.addf %602, %606 : vector<5x256xf32>
    %c81_432 = arith.constant 81 : index
    %c0_433 = arith.constant 0 : index
    %608 = vector.load %arg13[%c81_432, %c0_433] : memref<128x256xf32, #tpu.memory_space<vmem>>, vector<5x256xf32>
    %c17_434 = arith.constant 17 : index
    %c0_435 = arith.constant 0 : index
    %609 = vector.load %arg12[%c17_434, %c0_435] : memref<32x256xf32, #tpu.memory_space<vmem>>, vector<1x256xf32>
    %610 = vector.broadcast %609 : vector<1x256xf32> to vector<5x256xf32>
    %611 = arith.mulf %608, %610 : vector<5x256xf32>
    %612 = arith.addf %607, %611 : vector<5x256xf32>
    %c82_436 = arith.constant 82 : index
    %c0_437 = arith.constant 0 : index
    %613 = vector.load %arg13[%c82_436, %c0_437] : memref<128x256xf32, #tpu.memory_space<vmem>>, vector<5x256xf32>
    %c18_438 = arith.constant 18 : index
    %c0_439 = arith.constant 0 : index
    %614 = vector.load %arg12[%c18_438, %c0_439] : memref<32x256xf32, #tpu.memory_space<vmem>>, vector<1x256xf32>
    %615 = vector.broadcast %614 : vector<1x256xf32> to vector<5x256xf32>
    %616 = arith.mulf %613, %615 : vector<5x256xf32>
    %617 = arith.addf %612, %616 : vector<5x256xf32>
    %c83_440 = arith.constant 83 : index
    %c0_441 = arith.constant 0 : index
    %618 = vector.load %arg13[%c83_440, %c0_441] : memref<128x256xf32, #tpu.memory_space<vmem>>, vector<5x256xf32>
    %c19_442 = arith.constant 19 : index
    %c0_443 = arith.constant 0 : index
    %619 = vector.load %arg12[%c19_442, %c0_443] : memref<32x256xf32, #tpu.memory_space<vmem>>, vector<1x256xf32>
    %620 = vector.broadcast %619 : vector<1x256xf32> to vector<5x256xf32>
    %621 = arith.mulf %618, %620 : vector<5x256xf32>
    %622 = arith.addf %617, %621 : vector<5x256xf32>
    %c88_444 = arith.constant 88 : index
    %c0_445 = arith.constant 0 : index
    %623 = vector.load %arg13[%c88_444, %c0_445] : memref<128x256xf32, #tpu.memory_space<vmem>>, vector<5x256xf32>
    %c20_446 = arith.constant 20 : index
    %c0_447 = arith.constant 0 : index
    %624 = vector.load %arg12[%c20_446, %c0_447] : memref<32x256xf32, #tpu.memory_space<vmem>>, vector<1x256xf32>
    %625 = vector.broadcast %624 : vector<1x256xf32> to vector<5x256xf32>
    %626 = arith.mulf %623, %625 : vector<5x256xf32>
    %627 = arith.addf %622, %626 : vector<5x256xf32>
    %c89_448 = arith.constant 89 : index
    %c0_449 = arith.constant 0 : index
    %628 = vector.load %arg13[%c89_448, %c0_449] : memref<128x256xf32, #tpu.memory_space<vmem>>, vector<5x256xf32>
    %c21_450 = arith.constant 21 : index
    %c0_451 = arith.constant 0 : index
    %629 = vector.load %arg12[%c21_450, %c0_451] : memref<32x256xf32, #tpu.memory_space<vmem>>, vector<1x256xf32>
    %630 = vector.broadcast %629 : vector<1x256xf32> to vector<5x256xf32>
    %631 = arith.mulf %628, %630 : vector<5x256xf32>
    %632 = arith.addf %627, %631 : vector<5x256xf32>
    %c90_452 = arith.constant 90 : index
    %c0_453 = arith.constant 0 : index
    %633 = vector.load %arg13[%c90_452, %c0_453] : memref<128x256xf32, #tpu.memory_space<vmem>>, vector<5x256xf32>
    %c22_454 = arith.constant 22 : index
    %c0_455 = arith.constant 0 : index
    %634 = vector.load %arg12[%c22_454, %c0_455] : memref<32x256xf32, #tpu.memory_space<vmem>>, vector<1x256xf32>
    %635 = vector.broadcast %634 : vector<1x256xf32> to vector<5x256xf32>
    %636 = arith.mulf %633, %635 : vector<5x256xf32>
    %637 = arith.addf %632, %636 : vector<5x256xf32>
    %c91_456 = arith.constant 91 : index
    %c0_457 = arith.constant 0 : index
    %638 = vector.load %arg13[%c91_456, %c0_457] : memref<128x256xf32, #tpu.memory_space<vmem>>, vector<5x256xf32>
    %c23_458 = arith.constant 23 : index
    %c0_459 = arith.constant 0 : index
    %639 = vector.load %arg12[%c23_458, %c0_459] : memref<32x256xf32, #tpu.memory_space<vmem>>, vector<1x256xf32>
    %640 = vector.broadcast %639 : vector<1x256xf32> to vector<5x256xf32>
    %641 = arith.mulf %638, %640 : vector<5x256xf32>
    %642 = arith.addf %637, %641 : vector<5x256xf32>
    %c96_460 = arith.constant 96 : index
    %c0_461 = arith.constant 0 : index
    %643 = vector.load %arg13[%c96_460, %c0_461] : memref<128x256xf32, #tpu.memory_space<vmem>>, vector<5x256xf32>
    %c24_462 = arith.constant 24 : index
    %c0_463 = arith.constant 0 : index
    %644 = vector.load %arg12[%c24_462, %c0_463] : memref<32x256xf32, #tpu.memory_space<vmem>>, vector<1x256xf32>
    %645 = vector.broadcast %644 : vector<1x256xf32> to vector<5x256xf32>
    %646 = arith.mulf %643, %645 : vector<5x256xf32>
    %647 = arith.addf %642, %646 : vector<5x256xf32>
    %c97_464 = arith.constant 97 : index
    %c0_465 = arith.constant 0 : index
    %648 = vector.load %arg13[%c97_464, %c0_465] : memref<128x256xf32, #tpu.memory_space<vmem>>, vector<5x256xf32>
    %c25_466 = arith.constant 25 : index
    %c0_467 = arith.constant 0 : index
    %649 = vector.load %arg12[%c25_466, %c0_467] : memref<32x256xf32, #tpu.memory_space<vmem>>, vector<1x256xf32>
    %650 = vector.broadcast %649 : vector<1x256xf32> to vector<5x256xf32>
    %651 = arith.mulf %648, %650 : vector<5x256xf32>
    %652 = arith.addf %647, %651 : vector<5x256xf32>
    %c98_468 = arith.constant 98 : index
    %c0_469 = arith.constant 0 : index
    %653 = vector.load %arg13[%c98_468, %c0_469] : memref<128x256xf32, #tpu.memory_space<vmem>>, vector<5x256xf32>
    %c26_470 = arith.constant 26 : index
    %c0_471 = arith.constant 0 : index
    %654 = vector.load %arg12[%c26_470, %c0_471] : memref<32x256xf32, #tpu.memory_space<vmem>>, vector<1x256xf32>
    %655 = vector.broadcast %654 : vector<1x256xf32> to vector<5x256xf32>
    %656 = arith.mulf %653, %655 : vector<5x256xf32>
    %657 = arith.addf %652, %656 : vector<5x256xf32>
    %c99_472 = arith.constant 99 : index
    %c0_473 = arith.constant 0 : index
    %658 = vector.load %arg13[%c99_472, %c0_473] : memref<128x256xf32, #tpu.memory_space<vmem>>, vector<5x256xf32>
    %c27_474 = arith.constant 27 : index
    %c0_475 = arith.constant 0 : index
    %659 = vector.load %arg12[%c27_474, %c0_475] : memref<32x256xf32, #tpu.memory_space<vmem>>, vector<1x256xf32>
    %660 = vector.broadcast %659 : vector<1x256xf32> to vector<5x256xf32>
    %661 = arith.mulf %658, %660 : vector<5x256xf32>
    %662 = arith.addf %657, %661 : vector<5x256xf32>
    %c104 = arith.constant 104 : index
    %c0_476 = arith.constant 0 : index
    %663 = vector.load %arg13[%c104, %c0_476] : memref<128x256xf32, #tpu.memory_space<vmem>>, vector<5x256xf32>
    %c28_477 = arith.constant 28 : index
    %c0_478 = arith.constant 0 : index
    %664 = vector.load %arg12[%c28_477, %c0_478] : memref<32x256xf32, #tpu.memory_space<vmem>>, vector<1x256xf32>
    %665 = vector.broadcast %664 : vector<1x256xf32> to vector<5x256xf32>
    %666 = arith.mulf %663, %665 : vector<5x256xf32>
    %667 = arith.addf %662, %666 : vector<5x256xf32>
    %c105 = arith.constant 105 : index
    %c0_479 = arith.constant 0 : index
    %668 = vector.load %arg13[%c105, %c0_479] : memref<128x256xf32, #tpu.memory_space<vmem>>, vector<5x256xf32>
    %c29_480 = arith.constant 29 : index
    %c0_481 = arith.constant 0 : index
    %669 = vector.load %arg12[%c29_480, %c0_481] : memref<32x256xf32, #tpu.memory_space<vmem>>, vector<1x256xf32>
    %670 = vector.broadcast %669 : vector<1x256xf32> to vector<5x256xf32>
    %671 = arith.mulf %668, %670 : vector<5x256xf32>
    %672 = arith.addf %667, %671 : vector<5x256xf32>
    %c106 = arith.constant 106 : index
    %c0_482 = arith.constant 0 : index
    %673 = vector.load %arg13[%c106, %c0_482] : memref<128x256xf32, #tpu.memory_space<vmem>>, vector<5x256xf32>
    %c30_483 = arith.constant 30 : index
    %c0_484 = arith.constant 0 : index
    %674 = vector.load %arg12[%c30_483, %c0_484] : memref<32x256xf32, #tpu.memory_space<vmem>>, vector<1x256xf32>
    %675 = vector.broadcast %674 : vector<1x256xf32> to vector<5x256xf32>
    %676 = arith.mulf %673, %675 : vector<5x256xf32>
    %677 = arith.addf %672, %676 : vector<5x256xf32>
    %c107 = arith.constant 107 : index
    %c0_485 = arith.constant 0 : index
    %678 = vector.load %arg13[%c107, %c0_485] : memref<128x256xf32, #tpu.memory_space<vmem>>, vector<5x256xf32>
    %c31_486 = arith.constant 31 : index
    %c0_487 = arith.constant 0 : index
    %679 = vector.load %arg12[%c31_486, %c0_487] : memref<32x256xf32, #tpu.memory_space<vmem>>, vector<1x256xf32>
    %680 = vector.broadcast %679 : vector<1x256xf32> to vector<5x256xf32>
    %681 = arith.mulf %678, %680 : vector<5x256xf32>
    %682 = arith.addf %677, %681 : vector<5x256xf32>
    %c79 = arith.constant 79 : index
    %c0_488 = arith.constant 0 : index
    %683 = vector.load %arg14[%c79, %c0_488] : memref<114x256xf32, #tpu.memory_space<vmem>>, vector<5x256xf32>
    tpu.vector_store %arg14[%c79, %c0_488], %682 {strides = array<i32>} : memref<114x256xf32, #tpu.memory_space<vmem>>, vector<5x256xf32>,
    %cst_489 = arith.constant 0.000000e+00 : f32
    %684 = vector.broadcast %cst_489 : f32 to vector<5x256xf32>
    %c88_490 = arith.constant 88 : index
    %c0_491 = arith.constant 0 : index
    %685 = vector.load %arg13[%c88_490, %c0_491] : memref<128x256xf32, #tpu.memory_space<vmem>>, vector<5x256xf32>
    %c16_492 = arith.constant 16 : index
    %c0_493 = arith.constant 0 : index
    %686 = vector.load %arg12[%c16_492, %c0_493] : memref<32x256xf32, #tpu.memory_space<vmem>>, vector<1x256xf32>
    %687 = vector.broadcast %686 : vector<1x256xf32> to vector<5x256xf32>
    %688 = arith.mulf %685, %687 : vector<5x256xf32>
    %689 = arith.addf %684, %688 : vector<5x256xf32>
    %c89_494 = arith.constant 89 : index
    %c0_495 = arith.constant 0 : index
    %690 = vector.load %arg13[%c89_494, %c0_495] : memref<128x256xf32, #tpu.memory_space<vmem>>, vector<5x256xf32>
    %c17_496 = arith.constant 17 : index
    %c0_497 = arith.constant 0 : index
    %691 = vector.load %arg12[%c17_496, %c0_497] : memref<32x256xf32, #tpu.memory_space<vmem>>, vector<1x256xf32>
    %692 = vector.broadcast %691 : vector<1x256xf32> to vector<5x256xf32>
    %693 = arith.mulf %690, %692 : vector<5x256xf32>
    %694 = arith.addf %689, %693 : vector<5x256xf32>
    %c90_498 = arith.constant 90 : index
    %c0_499 = arith.constant 0 : index
    %695 = vector.load %arg13[%c90_498, %c0_499] : memref<128x256xf32, #tpu.memory_space<vmem>>, vector<5x256xf32>
    %c18_500 = arith.constant 18 : index
    %c0_501 = arith.constant 0 : index
    %696 = vector.load %arg12[%c18_500, %c0_501] : memref<32x256xf32, #tpu.memory_space<vmem>>, vector<1x256xf32>
    %697 = vector.broadcast %696 : vector<1x256xf32> to vector<5x256xf32>
    %698 = arith.mulf %695, %697 : vector<5x256xf32>
    %699 = arith.addf %694, %698 : vector<5x256xf32>
    %c91_502 = arith.constant 91 : index
    %c0_503 = arith.constant 0 : index
    %700 = vector.load %arg13[%c91_502, %c0_503] : memref<128x256xf32, #tpu.memory_space<vmem>>, vector<5x256xf32>
    %c19_504 = arith.constant 19 : index
    %c0_505 = arith.constant 0 : index
    %701 = vector.load %arg12[%c19_504, %c0_505] : memref<32x256xf32, #tpu.memory_space<vmem>>, vector<1x256xf32>
    %702 = vector.broadcast %701 : vector<1x256xf32> to vector<5x256xf32>
    %703 = arith.mulf %700, %702 : vector<5x256xf32>
    %704 = arith.addf %699, %703 : vector<5x256xf32>
    %c96_506 = arith.constant 96 : index
    %c0_507 = arith.constant 0 : index
    %705 = vector.load %arg13[%c96_506, %c0_507] : memref<128x256xf32, #tpu.memory_space<vmem>>, vector<5x256xf32>
    %c20_508 = arith.constant 20 : index
    %c0_509 = arith.constant 0 : index
    %706 = vector.load %arg12[%c20_508, %c0_509] : memref<32x256xf32, #tpu.memory_space<vmem>>, vector<1x256xf32>
    %707 = vector.broadcast %706 : vector<1x256xf32> to vector<5x256xf32>
    %708 = arith.mulf %705, %707 : vector<5x256xf32>
    %709 = arith.addf %704, %708 : vector<5x256xf32>
    %c97_510 = arith.constant 97 : index
    %c0_511 = arith.constant 0 : index
    %710 = vector.load %arg13[%c97_510, %c0_511] : memref<128x256xf32, #tpu.memory_space<vmem>>, vector<5x256xf32>
    %c21_512 = arith.constant 21 : index
    %c0_513 = arith.constant 0 : index
    %711 = vector.load %arg12[%c21_512, %c0_513] : memref<32x256xf32, #tpu.memory_space<vmem>>, vector<1x256xf32>
    %712 = vector.broadcast %711 : vector<1x256xf32> to vector<5x256xf32>
    %713 = arith.mulf %710, %712 : vector<5x256xf32>
    %714 = arith.addf %709, %713 : vector<5x256xf32>
    %c98_514 = arith.constant 98 : index
    %c0_515 = arith.constant 0 : index
    %715 = vector.load %arg13[%c98_514, %c0_515] : memref<128x256xf32, #tpu.memory_space<vmem>>, vector<5x256xf32>
    %c22_516 = arith.constant 22 : index
    %c0_517 = arith.constant 0 : index
    %716 = vector.load %arg12[%c22_516, %c0_517] : memref<32x256xf32, #tpu.memory_space<vmem>>, vector<1x256xf32>
    %717 = vector.broadcast %716 : vector<1x256xf32> to vector<5x256xf32>
    %718 = arith.mulf %715, %717 : vector<5x256xf32>
    %719 = arith.addf %714, %718 : vector<5x256xf32>
    %c99_518 = arith.constant 99 : index
    %c0_519 = arith.constant 0 : index
    %720 = vector.load %arg13[%c99_518, %c0_519] : memref<128x256xf32, #tpu.memory_space<vmem>>, vector<5x256xf32>
    %c23_520 = arith.constant 23 : index
    %c0_521 = arith.constant 0 : index
    %721 = vector.load %arg12[%c23_520, %c0_521] : memref<32x256xf32, #tpu.memory_space<vmem>>, vector<1x256xf32>
    %722 = vector.broadcast %721 : vector<1x256xf32> to vector<5x256xf32>
    %723 = arith.mulf %720, %722 : vector<5x256xf32>
    %724 = arith.addf %719, %723 : vector<5x256xf32>
    %c104_522 = arith.constant 104 : index
    %c0_523 = arith.constant 0 : index
    %725 = vector.load %arg13[%c104_522, %c0_523] : memref<128x256xf32, #tpu.memory_space<vmem>>, vector<5x256xf32>
    %c24_524 = arith.constant 24 : index
    %c0_525 = arith.constant 0 : index
    %726 = vector.load %arg12[%c24_524, %c0_525] : memref<32x256xf32, #tpu.memory_space<vmem>>, vector<1x256xf32>
    %727 = vector.broadcast %726 : vector<1x256xf32> to vector<5x256xf32>
    %728 = arith.mulf %725, %727 : vector<5x256xf32>
    %729 = arith.addf %724, %728 : vector<5x256xf32>
    %c105_526 = arith.constant 105 : index
    %c0_527 = arith.constant 0 : index
    %730 = vector.load %arg13[%c105_526, %c0_527] : memref<128x256xf32, #tpu.memory_space<vmem>>, vector<5x256xf32>
    %c25_528 = arith.constant 25 : index
    %c0_529 = arith.constant 0 : index
    %731 = vector.load %arg12[%c25_528, %c0_529] : memref<32x256xf32, #tpu.memory_space<vmem>>, vector<1x256xf32>
    %732 = vector.broadcast %731 : vector<1x256xf32> to vector<5x256xf32>
    %733 = arith.mulf %730, %732 : vector<5x256xf32>
    %734 = arith.addf %729, %733 : vector<5x256xf32>
    %c106_530 = arith.constant 106 : index
    %c0_531 = arith.constant 0 : index
    %735 = vector.load %arg13[%c106_530, %c0_531] : memref<128x256xf32, #tpu.memory_space<vmem>>, vector<5x256xf32>
    %c26_532 = arith.constant 26 : index
    %c0_533 = arith.constant 0 : index
    %736 = vector.load %arg12[%c26_532, %c0_533] : memref<32x256xf32, #tpu.memory_space<vmem>>, vector<1x256xf32>
    %737 = vector.broadcast %736 : vector<1x256xf32> to vector<5x256xf32>
    %738 = arith.mulf %735, %737 : vector<5x256xf32>
    %739 = arith.addf %734, %738 : vector<5x256xf32>
    %c107_534 = arith.constant 107 : index
    %c0_535 = arith.constant 0 : index
    %740 = vector.load %arg13[%c107_534, %c0_535] : memref<128x256xf32, #tpu.memory_space<vmem>>, vector<5x256xf32>
    %c27_536 = arith.constant 27 : index
    %c0_537 = arith.constant 0 : index
    %741 = vector.load %arg12[%c27_536, %c0_537] : memref<32x256xf32, #tpu.memory_space<vmem>>, vector<1x256xf32>
    %742 = vector.broadcast %741 : vector<1x256xf32> to vector<5x256xf32>
    %743 = arith.mulf %740, %742 : vector<5x256xf32>
    %744 = arith.addf %739, %743 : vector<5x256xf32>
    %c112 = arith.constant 112 : index
    %c0_538 = arith.constant 0 : index
    %745 = vector.load %arg13[%c112, %c0_538] : memref<128x256xf32, #tpu.memory_space<vmem>>, vector<5x256xf32>
    %c28_539 = arith.constant 28 : index
    %c0_540 = arith.constant 0 : index
    %746 = vector.load %arg12[%c28_539, %c0_540] : memref<32x256xf32, #tpu.memory_space<vmem>>, vector<1x256xf32>
    %747 = vector.broadcast %746 : vector<1x256xf32> to vector<5x256xf32>
    %748 = arith.mulf %745, %747 : vector<5x256xf32>
    %749 = arith.addf %744, %748 : vector<5x256xf32>
    %c113 = arith.constant 113 : index
    %c0_541 = arith.constant 0 : index
    %750 = vector.load %arg13[%c113, %c0_541] : memref<128x256xf32, #tpu.memory_space<vmem>>, vector<5x256xf32>
    %c29_542 = arith.constant 29 : index
    %c0_543 = arith.constant 0 : index
    %751 = vector.load %arg12[%c29_542, %c0_543] : memref<32x256xf32, #tpu.memory_space<vmem>>, vector<1x256xf32>
    %752 = vector.broadcast %751 : vector<1x256xf32> to vector<5x256xf32>
    %753 = arith.mulf %750, %752 : vector<5x256xf32>
    %754 = arith.addf %749, %753 : vector<5x256xf32>
    %c114 = arith.constant 114 : index
    %c0_544 = arith.constant 0 : index
    %755 = vector.load %arg13[%c114, %c0_544] : memref<128x256xf32, #tpu.memory_space<vmem>>, vector<5x256xf32>
    %c30_545 = arith.constant 30 : index
    %c0_546 = arith.constant 0 : index
    %756 = vector.load %arg12[%c30_545, %c0_546] : memref<32x256xf32, #tpu.memory_space<vmem>>, vector<1x256xf32>
    %757 = vector.broadcast %756 : vector<1x256xf32> to vector<5x256xf32>
    %758 = arith.mulf %755, %757 : vector<5x256xf32>
    %759 = arith.addf %754, %758 : vector<5x256xf32>
    %c115 = arith.constant 115 : index
    %c0_547 = arith.constant 0 : index
    %760 = vector.load %arg13[%c115, %c0_547] : memref<128x256xf32, #tpu.memory_space<vmem>>, vector<5x256xf32>
    %c31_548 = arith.constant 31 : index
    %c0_549 = arith.constant 0 : index
    %761 = vector.load %arg12[%c31_548, %c0_549] : memref<32x256xf32, #tpu.memory_space<vmem>>, vector<1x256xf32>
    %762 = vector.broadcast %761 : vector<1x256xf32> to vector<5x256xf32>
    %763 = arith.mulf %760, %762 : vector<5x256xf32>
    %764 = arith.addf %759, %763 : vector<5x256xf32>
    %c86 = arith.constant 86 : index
    %c0_550 = arith.constant 0 : index
    %765 = vector.load %arg14[%c86, %c0_550] : memref<114x256xf32, #tpu.memory_space<vmem>>, vector<5x256xf32>
    tpu.vector_store %arg14[%c86, %c0_550], %764 {strides = array<i32>} : memref<114x256xf32, #tpu.memory_space<vmem>>, vector<5x256xf32>,
    %cst_551 = arith.constant 0.000000e+00 : f32
    %766 = vector.broadcast %cst_551 : f32 to vector<5x256xf32>
    %c96_552 = arith.constant 96 : index
    %c0_553 = arith.constant 0 : index
    %767 = vector.load %arg13[%c96_552, %c0_553] : memref<128x256xf32, #tpu.memory_space<vmem>>, vector<5x256xf32>
    %c16_554 = arith.constant 16 : index
    %c0_555 = arith.constant 0 : index
    %768 = vector.load %arg12[%c16_554, %c0_555] : memref<32x256xf32, #tpu.memory_space<vmem>>, vector<1x256xf32>
    %769 = vector.broadcast %768 : vector<1x256xf32> to vector<5x256xf32>
    %770 = arith.mulf %767, %769 : vector<5x256xf32>
    %771 = arith.addf %766, %770 : vector<5x256xf32>
    %c97_556 = arith.constant 97 : index
    %c0_557 = arith.constant 0 : index
    %772 = vector.load %arg13[%c97_556, %c0_557] : memref<128x256xf32, #tpu.memory_space<vmem>>, vector<5x256xf32>
    %c17_558 = arith.constant 17 : index
    %c0_559 = arith.constant 0 : index
    %773 = vector.load %arg12[%c17_558, %c0_559] : memref<32x256xf32, #tpu.memory_space<vmem>>, vector<1x256xf32>
    %774 = vector.broadcast %773 : vector<1x256xf32> to vector<5x256xf32>
    %775 = arith.mulf %772, %774 : vector<5x256xf32>
    %776 = arith.addf %771, %775 : vector<5x256xf32>
    %c98_560 = arith.constant 98 : index
    %c0_561 = arith.constant 0 : index
    %777 = vector.load %arg13[%c98_560, %c0_561] : memref<128x256xf32, #tpu.memory_space<vmem>>, vector<5x256xf32>
    %c18_562 = arith.constant 18 : index
    %c0_563 = arith.constant 0 : index
    %778 = vector.load %arg12[%c18_562, %c0_563] : memref<32x256xf32, #tpu.memory_space<vmem>>, vector<1x256xf32>
    %779 = vector.broadcast %778 : vector<1x256xf32> to vector<5x256xf32>
    %780 = arith.mulf %777, %779 : vector<5x256xf32>
    %781 = arith.addf %776, %780 : vector<5x256xf32>
    %c99_564 = arith.constant 99 : index
    %c0_565 = arith.constant 0 : index
    %782 = vector.load %arg13[%c99_564, %c0_565] : memref<128x256xf32, #tpu.memory_space<vmem>>, vector<5x256xf32>
    %c19_566 = arith.constant 19 : index
    %c0_567 = arith.constant 0 : index
    %783 = vector.load %arg12[%c19_566, %c0_567] : memref<32x256xf32, #tpu.memory_space<vmem>>, vector<1x256xf32>
    %784 = vector.broadcast %783 : vector<1x256xf32> to vector<5x256xf32>
    %785 = arith.mulf %782, %784 : vector<5x256xf32>
    %786 = arith.addf %781, %785 : vector<5x256xf32>
    %c104_568 = arith.constant 104 : index
    %c0_569 = arith.constant 0 : index
    %787 = vector.load %arg13[%c104_568, %c0_569] : memref<128x256xf32, #tpu.memory_space<vmem>>, vector<5x256xf32>
    %c20_570 = arith.constant 20 : index
    %c0_571 = arith.constant 0 : index
    %788 = vector.load %arg12[%c20_570, %c0_571] : memref<32x256xf32, #tpu.memory_space<vmem>>, vector<1x256xf32>
    %789 = vector.broadcast %788 : vector<1x256xf32> to vector<5x256xf32>
    %790 = arith.mulf %787, %789 : vector<5x256xf32>
    %791 = arith.addf %786, %790 : vector<5x256xf32>
    %c105_572 = arith.constant 105 : index
    %c0_573 = arith.constant 0 : index
    %792 = vector.load %arg13[%c105_572, %c0_573] : memref<128x256xf32, #tpu.memory_space<vmem>>, vector<5x256xf32>
    %c21_574 = arith.constant 21 : index
    %c0_575 = arith.constant 0 : index
    %793 = vector.load %arg12[%c21_574, %c0_575] : memref<32x256xf32, #tpu.memory_space<vmem>>, vector<1x256xf32>
    %794 = vector.broadcast %793 : vector<1x256xf32> to vector<5x256xf32>
    %795 = arith.mulf %792, %794 : vector<5x256xf32>
    %796 = arith.addf %791, %795 : vector<5x256xf32>
    %c106_576 = arith.constant 106 : index
    %c0_577 = arith.constant 0 : index
    %797 = vector.load %arg13[%c106_576, %c0_577] : memref<128x256xf32, #tpu.memory_space<vmem>>, vector<5x256xf32>
    %c22_578 = arith.constant 22 : index
    %c0_579 = arith.constant 0 : index
    %798 = vector.load %arg12[%c22_578, %c0_579] : memref<32x256xf32, #tpu.memory_space<vmem>>, vector<1x256xf32>
    %799 = vector.broadcast %798 : vector<1x256xf32> to vector<5x256xf32>
    %800 = arith.mulf %797, %799 : vector<5x256xf32>
    %801 = arith.addf %796, %800 : vector<5x256xf32>
    %c107_580 = arith.constant 107 : index
    %c0_581 = arith.constant 0 : index
    %802 = vector.load %arg13[%c107_580, %c0_581] : memref<128x256xf32, #tpu.memory_space<vmem>>, vector<5x256xf32>
    %c23_582 = arith.constant 23 : index
    %c0_583 = arith.constant 0 : index
    %803 = vector.load %arg12[%c23_582, %c0_583] : memref<32x256xf32, #tpu.memory_space<vmem>>, vector<1x256xf32>
    %804 = vector.broadcast %803 : vector<1x256xf32> to vector<5x256xf32>
    %805 = arith.mulf %802, %804 : vector<5x256xf32>
    %806 = arith.addf %801, %805 : vector<5x256xf32>
    %c112_584 = arith.constant 112 : index
    %c0_585 = arith.constant 0 : index
    %807 = vector.load %arg13[%c112_584, %c0_585] : memref<128x256xf32, #tpu.memory_space<vmem>>, vector<5x256xf32>
    %c24_586 = arith.constant 24 : index
    %c0_587 = arith.constant 0 : index
    %808 = vector.load %arg12[%c24_586, %c0_587] : memref<32x256xf32, #tpu.memory_space<vmem>>, vector<1x256xf32>
    %809 = vector.broadcast %808 : vector<1x256xf32> to vector<5x256xf32>
    %810 = arith.mulf %807, %809 : vector<5x256xf32>
    %811 = arith.addf %806, %810 : vector<5x256xf32>
    %c113_588 = arith.constant 113 : index
    %c0_589 = arith.constant 0 : index
    %812 = vector.load %arg13[%c113_588, %c0_589] : memref<128x256xf32, #tpu.memory_space<vmem>>, vector<5x256xf32>
    %c25_590 = arith.constant 25 : index
    %c0_591 = arith.constant 0 : index
    %813 = vector.load %arg12[%c25_590, %c0_591] : memref<32x256xf32, #tpu.memory_space<vmem>>, vector<1x256xf32>
    %814 = vector.broadcast %813 : vector<1x256xf32> to vector<5x256xf32>
    %815 = arith.mulf %812, %814 : vector<5x256xf32>
    %816 = arith.addf %811, %815 : vector<5x256xf32>
    %c114_592 = arith.constant 114 : index
    %c0_593 = arith.constant 0 : index
    %817 = vector.load %arg13[%c114_592, %c0_593] : memref<128x256xf32, #tpu.memory_space<vmem>>, vector<5x256xf32>
    %c26_594 = arith.constant 26 : index
    %c0_595 = arith.constant 0 : index
    %818 = vector.load %arg12[%c26_594, %c0_595] : memref<32x256xf32, #tpu.memory_space<vmem>>, vector<1x256xf32>
    %819 = vector.broadcast %818 : vector<1x256xf32> to vector<5x256xf32>
    %820 = arith.mulf %817, %819 : vector<5x256xf32>
    %821 = arith.addf %816, %820 : vector<5x256xf32>
    %c115_596 = arith.constant 115 : index
    %c0_597 = arith.constant 0 : index
    %822 = vector.load %arg13[%c115_596, %c0_597] : memref<128x256xf32, #tpu.memory_space<vmem>>, vector<5x256xf32>
    %c27_598 = arith.constant 27 : index
    %c0_599 = arith.constant 0 : index
    %823 = vector.load %arg12[%c27_598, %c0_599] : memref<32x256xf32, #tpu.memory_space<vmem>>, vector<1x256xf32>
    %824 = vector.broadcast %823 : vector<1x256xf32> to vector<5x256xf32>
    %825 = arith.mulf %822, %824 : vector<5x256xf32>
    %826 = arith.addf %821, %825 : vector<5x256xf32>
    %c120 = arith.constant 120 : index
    %c0_600 = arith.constant 0 : index
    %827 = vector.load %arg13[%c120, %c0_600] : memref<128x256xf32, #tpu.memory_space<vmem>>, vector<5x256xf32>
    %c28_601 = arith.constant 28 : index
    %c0_602 = arith.constant 0 : index
    %828 = vector.load %arg12[%c28_601, %c0_602] : memref<32x256xf32, #tpu.memory_space<vmem>>, vector<1x256xf32>
    %829 = vector.broadcast %828 : vector<1x256xf32> to vector<5x256xf32>
    %830 = arith.mulf %827, %829 : vector<5x256xf32>
    %831 = arith.addf %826, %830 : vector<5x256xf32>
    %c121 = arith.constant 121 : index
    %c0_603 = arith.constant 0 : index
    %832 = vector.load %arg13[%c121, %c0_603] : memref<128x256xf32, #tpu.memory_space<vmem>>, vector<5x256xf32>
    %c29_604 = arith.constant 29 : index
    %c0_605 = arith.constant 0 : index
    %833 = vector.load %arg12[%c29_604, %c0_605] : memref<32x256xf32, #tpu.memory_space<vmem>>, vector<1x256xf32>
    %834 = vector.broadcast %833 : vector<1x256xf32> to vector<5x256xf32>
    %835 = arith.mulf %832, %834 : vector<5x256xf32>
    %836 = arith.addf %831, %835 : vector<5x256xf32>
    %c122 = arith.constant 122 : index
    %c0_606 = arith.constant 0 : index
    %837 = vector.load %arg13[%c122, %c0_606] : memref<128x256xf32, #tpu.memory_space<vmem>>, vector<5x256xf32>
    %c30_607 = arith.constant 30 : index
    %c0_608 = arith.constant 0 : index
    %838 = vector.load %arg12[%c30_607, %c0_608] : memref<32x256xf32, #tpu.memory_space<vmem>>, vector<1x256xf32>
    %839 = vector.broadcast %838 : vector<1x256xf32> to vector<5x256xf32>
    %840 = arith.mulf %837, %839 : vector<5x256xf32>
    %841 = arith.addf %836, %840 : vector<5x256xf32>
    %c123 = arith.constant 123 : index
    %c0_609 = arith.constant 0 : index
    %842 = vector.load %arg13[%c123, %c0_609] : memref<128x256xf32, #tpu.memory_space<vmem>>, vector<5x256xf32>
    %c31_610 = arith.constant 31 : index
    %c0_611 = arith.constant 0 : index
    %843 = vector.load %arg12[%c31_610, %c0_611] : memref<32x256xf32, #tpu.memory_space<vmem>>, vector<1x256xf32>
    %844 = vector.broadcast %843 : vector<1x256xf32> to vector<5x256xf32>
    %845 = arith.mulf %842, %844 : vector<5x256xf32>
    %846 = arith.addf %841, %845 : vector<5x256xf32>
    %c93 = arith.constant 93 : index
    %c0_612 = arith.constant 0 : index
    %847 = vector.load %arg14[%c93, %c0_612] : memref<114x256xf32, #tpu.memory_space<vmem>>, vector<5x256xf32>
    tpu.vector_store %arg14[%c93, %c0_612], %846 {strides = array<i32>} : memref<114x256xf32, #tpu.memory_space<vmem>>, vector<5x256xf32>,
    %cst_613 = arith.constant 0.000000e+00 : f32
    %848 = vector.broadcast %cst_613 : f32 to vector<98x256xf32>
    %c0_614 = arith.constant 0 : index
    %c0_615 = arith.constant 0 : index
    %849 = vector.load %arg14[%c0_614, %c0_615] : memref<114x256xf32, #tpu.memory_space<vmem>>, vector<98x256xf32>
    %850 = arith.truncf %849 : vector<98x256xf32> to vector<98x256xbf16>
    %c0_616 = arith.constant 0 : index
    %c0_617 = arith.constant 0 : index
    %c0_618 = arith.constant 0 : index
    %c0_619 = arith.constant 0 : index
    %851 = vector.load %arg7[%c0_616, %c0_617, %c0_618, %c0_619] : memref<1x9x256x256xbf16, #tpu.memory_space<vmem>>, vector<1x1x256x256xbf16>
    %852 = vector.shape_cast %851 : vector<1x1x256x256xbf16> to vector<256x256xbf16>
    %cst_620 = arith.constant dense<0.000000e+00> : vector<98x256xf32>
    %853 = tpu.matmul %850, %852, %cst_620 {dimension_numbers = #tpu.dot_dimension_numbers<[1], [0], [0], [1], [0, 0, 1, 1], [], []>} : vector<98x256xbf16>, vector<256x256xbf16>, vector<98x256xf32> -> vector<98x256xf32>
    %854 = arith.addf %848, %853 : vector<98x256xf32>
    %c1_621 = arith.constant 1 : index
    %c0_622 = arith.constant 0 : index
    %855 = vector.load %arg14[%c1_621, %c0_622] : memref<114x256xf32, #tpu.memory_space<vmem>>, vector<98x256xf32>
    %856 = arith.truncf %855 : vector<98x256xf32> to vector<98x256xbf16>
    %c0_623 = arith.constant 0 : index
    %c1_624 = arith.constant 1 : index
    %c0_625 = arith.constant 0 : index
    %c0_626 = arith.constant 0 : index
    %857 = vector.load %arg7[%c0_623, %c1_624, %c0_625, %c0_626] : memref<1x9x256x256xbf16, #tpu.memory_space<vmem>>, vector<1x1x256x256xbf16>
    %858 = vector.shape_cast %857 : vector<1x1x256x256xbf16> to vector<256x256xbf16>
    %cst_627 = arith.constant dense<0.000000e+00> : vector<98x256xf32>
    %859 = tpu.matmul %856, %858, %cst_627 {dimension_numbers = #tpu.dot_dimension_numbers<[1], [0], [0], [1], [0, 0, 1, 1], [], []>} : vector<98x256xbf16>, vector<256x256xbf16>, vector<98x256xf32> -> vector<98x256xf32>
    %860 = arith.addf %854, %859 : vector<98x256xf32>
    %c2_628 = arith.constant 2 : index
    %c0_629 = arith.constant 0 : index
    %861 = vector.load %arg14[%c2_628, %c0_629] : memref<114x256xf32, #tpu.memory_space<vmem>>, vector<98x256xf32>
    %862 = arith.truncf %861 : vector<98x256xf32> to vector<98x256xbf16>
    %c0_630 = arith.constant 0 : index
    %c2_631 = arith.constant 2 : index
    %c0_632 = arith.constant 0 : index
    %c0_633 = arith.constant 0 : index
    %863 = vector.load %arg7[%c0_630, %c2_631, %c0_632, %c0_633] : memref<1x9x256x256xbf16, #tpu.memory_space<vmem>>, vector<1x1x256x256xbf16>
    %864 = vector.shape_cast %863 : vector<1x1x256x256xbf16> to vector<256x256xbf16>
    %cst_634 = arith.constant dense<0.000000e+00> : vector<98x256xf32>
    %865 = tpu.matmul %862, %864, %cst_634 {dimension_numbers = #tpu.dot_dimension_numbers<[1], [0], [0], [1], [0, 0, 1, 1], [], []>} : vector<98x256xbf16>, vector<256x256xbf16>, vector<98x256xf32> -> vector<98x256xf32>
    %866 = arith.addf %860, %865 : vector<98x256xf32>
    %c7_635 = arith.constant 7 : index
    %c0_636 = arith.constant 0 : index
    %867 = vector.load %arg14[%c7_635, %c0_636] : memref<114x256xf32, #tpu.memory_space<vmem>>, vector<98x256xf32>
    %868 = arith.truncf %867 : vector<98x256xf32> to vector<98x256xbf16>
    %c0_637 = arith.constant 0 : index
    %c3_638 = arith.constant 3 : index
    %c0_639 = arith.constant 0 : index
    %c0_640 = arith.constant 0 : index
    %869 = vector.load %arg7[%c0_637, %c3_638, %c0_639, %c0_640] : memref<1x9x256x256xbf16, #tpu.memory_space<vmem>>, vector<1x1x256x256xbf16>
    %870 = vector.shape_cast %869 : vector<1x1x256x256xbf16> to vector<256x256xbf16>
    %cst_641 = arith.constant dense<0.000000e+00> : vector<98x256xf32>
    %871 = tpu.matmul %868, %870, %cst_641 {dimension_numbers = #tpu.dot_dimension_numbers<[1], [0], [0], [1], [0, 0, 1, 1], [], []>} : vector<98x256xbf16>, vector<256x256xbf16>, vector<98x256xf32> -> vector<98x256xf32>
    %872 = arith.addf %866, %871 : vector<98x256xf32>
    %c8_642 = arith.constant 8 : index
    %c0_643 = arith.constant 0 : index
    %873 = vector.load %arg14[%c8_642, %c0_643] : memref<114x256xf32, #tpu.memory_space<vmem>>, vector<98x256xf32>
    %874 = arith.truncf %873 : vector<98x256xf32> to vector<98x256xbf16>
    %c0_644 = arith.constant 0 : index
    %c4_645 = arith.constant 4 : index
    %c0_646 = arith.constant 0 : index
    %c0_647 = arith.constant 0 : index
    %875 = vector.load %arg7[%c0_644, %c4_645, %c0_646, %c0_647] : memref<1x9x256x256xbf16, #tpu.memory_space<vmem>>, vector<1x1x256x256xbf16>
    %876 = vector.shape_cast %875 : vector<1x1x256x256xbf16> to vector<256x256xbf16>
    %cst_648 = arith.constant dense<0.000000e+00> : vector<98x256xf32>
    %877 = tpu.matmul %874, %876, %cst_648 {dimension_numbers = #tpu.dot_dimension_numbers<[1], [0], [0], [1], [0, 0, 1, 1], [], []>} : vector<98x256xbf16>, vector<256x256xbf16>, vector<98x256xf32> -> vector<98x256xf32>
    %878 = arith.addf %872, %877 : vector<98x256xf32>
    %c9_649 = arith.constant 9 : index
    %c0_650 = arith.constant 0 : index
    %879 = vector.load %arg14[%c9_649, %c0_650] : memref<114x256xf32, #tpu.memory_space<vmem>>, vector<98x256xf32>
    %880 = arith.truncf %879 : vector<98x256xf32> to vector<98x256xbf16>
    %c0_651 = arith.constant 0 : index
    %c5_652 = arith.constant 5 : index
    %c0_653 = arith.constant 0 : index
    %c0_654 = arith.constant 0 : index
    %881 = vector.load %arg7[%c0_651, %c5_652, %c0_653, %c0_654] : memref<1x9x256x256xbf16, #tpu.memory_space<vmem>>, vector<1x1x256x256xbf16>
    %882 = vector.shape_cast %881 : vector<1x1x256x256xbf16> to vector<256x256xbf16>
    %cst_655 = arith.constant dense<0.000000e+00> : vector<98x256xf32>
    %883 = tpu.matmul %880, %882, %cst_655 {dimension_numbers = #tpu.dot_dimension_numbers<[1], [0], [0], [1], [0, 0, 1, 1], [], []>} : vector<98x256xbf16>, vector<256x256xbf16>, vector<98x256xf32> -> vector<98x256xf32>
    %884 = arith.addf %878, %883 : vector<98x256xf32>
    %c14_656 = arith.constant 14 : index
    %c0_657 = arith.constant 0 : index
    %885 = vector.load %arg14[%c14_656, %c0_657] : memref<114x256xf32, #tpu.memory_space<vmem>>, vector<98x256xf32>
    %886 = arith.truncf %885 : vector<98x256xf32> to vector<98x256xbf16>
    %c0_658 = arith.constant 0 : index
    %c6_659 = arith.constant 6 : index
    %c0_660 = arith.constant 0 : index
    %c0_661 = arith.constant 0 : index
    %887 = vector.load %arg7[%c0_658, %c6_659, %c0_660, %c0_661] : memref<1x9x256x256xbf16, #tpu.memory_space<vmem>>, vector<1x1x256x256xbf16>
    %888 = vector.shape_cast %887 : vector<1x1x256x256xbf16> to vector<256x256xbf16>
    %cst_662 = arith.constant dense<0.000000e+00> : vector<98x256xf32>
    %889 = tpu.matmul %886, %888, %cst_662 {dimension_numbers = #tpu.dot_dimension_numbers<[1], [0], [0], [1], [0, 0, 1, 1], [], []>} : vector<98x256xbf16>, vector<256x256xbf16>, vector<98x256xf32> -> vector<98x256xf32>
    %890 = arith.addf %884, %889 : vector<98x256xf32>
    %c15_663 = arith.constant 15 : index
    %c0_664 = arith.constant 0 : index
    %891 = vector.load %arg14[%c15_663, %c0_664] : memref<114x256xf32, #tpu.memory_space<vmem>>, vector<98x256xf32>
    %892 = arith.truncf %891 : vector<98x256xf32> to vector<98x256xbf16>
    %c0_665 = arith.constant 0 : index
    %c7_666 = arith.constant 7 : index
    %c0_667 = arith.constant 0 : index
    %c0_668 = arith.constant 0 : index
    %893 = vector.load %arg7[%c0_665, %c7_666, %c0_667, %c0_668] : memref<1x9x256x256xbf16, #tpu.memory_space<vmem>>, vector<1x1x256x256xbf16>
    %894 = vector.shape_cast %893 : vector<1x1x256x256xbf16> to vector<256x256xbf16>
    %cst_669 = arith.constant dense<0.000000e+00> : vector<98x256xf32>
    %895 = tpu.matmul %892, %894, %cst_669 {dimension_numbers = #tpu.dot_dimension_numbers<[1], [0], [0], [1], [0, 0, 1, 1], [], []>} : vector<98x256xbf16>, vector<256x256xbf16>, vector<98x256xf32> -> vector<98x256xf32>
    %896 = arith.addf %890, %895 : vector<98x256xf32>
    %c16_670 = arith.constant 16 : index
    %c0_671 = arith.constant 0 : index
    %897 = vector.load %arg14[%c16_670, %c0_671] : memref<114x256xf32, #tpu.memory_space<vmem>>, vector<98x256xf32>
    %898 = arith.truncf %897 : vector<98x256xf32> to vector<98x256xbf16>
    %c0_672 = arith.constant 0 : index
    %c8_673 = arith.constant 8 : index
    %c0_674 = arith.constant 0 : index
    %c0_675 = arith.constant 0 : index
    %899 = vector.load %arg7[%c0_672, %c8_673, %c0_674, %c0_675] : memref<1x9x256x256xbf16, #tpu.memory_space<vmem>>, vector<1x1x256x256xbf16>
    %900 = vector.shape_cast %899 : vector<1x1x256x256xbf16> to vector<256x256xbf16>
    %cst_676 = arith.constant dense<0.000000e+00> : vector<98x256xf32>
    %901 = tpu.matmul %898, %900, %cst_676 {dimension_numbers = #tpu.dot_dimension_numbers<[1], [0], [0], [1], [0, 0, 1, 1], [], []>} : vector<98x256xbf16>, vector<256x256xbf16>, vector<98x256xf32> -> vector<98x256xf32>
    %902 = arith.addf %896, %901 : vector<98x256xf32>
    %c0_677 = arith.constant 0 : index
    %c0_678 = arith.constant 0 : index
    %c0_679 = arith.constant 0 : index
    %903 = vector.load %arg8[%c0_677, %c0_678, %c0_679] : memref<1x1x256xf32, #tpu.memory_space<vmem>>, vector<1x1x256xf32>
    %904 = vector.shape_cast %903 : vector<1x1x256xf32> to vector<1x256xf32>
    %905 = vector.broadcast %904 : vector<1x256xf32> to vector<98x256xf32>
    %906 = arith.addf %902, %905 : vector<98x256xf32>
    %cst_680 = arith.constant 0.000000e+00 : f32
    %907 = vector.broadcast %cst_680 : f32 to vector<98x256xf32>
    %908 = arith.maximumf %906, %907 : vector<98x256xf32>
    %c0_681 = arith.constant 0 : index
    %c0_682 = arith.constant 0 : index
    %c0_683 = arith.constant 0 : index
    %909 = vector.load %arg9[%c0_681, %c0_682, %c0_683] : memref<1x1x256xf32, #tpu.memory_space<vmem>>, vector<1x1x256xf32>
    %910 = vector.shape_cast %909 : vector<1x1x256xf32> to vector<1x256xf32>
    %911 = vector.broadcast %910 : vector<1x256xf32> to vector<98x256xf32>
    %912 = arith.mulf %908, %911 : vector<98x256xf32>
    %cst_684 = arith.constant dense<0.000000e+00> : vector<98xf32>
    %913 = vector.multi_reduction <add>, %912, %cst_684 [1] : vector<98x256xf32> to vector<98xf32>
    %914 = vector.shape_cast %913 : vector<98xf32> to vector<98x1xf32>
    %915 = arith.index_cast %arg0 : i32 to index
    %916 = memref.load %arg10[%915] : memref<3xf32, #tpu.memory_space<smem>>
    %917 = vector.broadcast %916 : f32 to vector<98x1xf32>
    %918 = arith.addf %914, %917 : vector<98x1xf32>
    %c0_685 = arith.constant 0 : index
    %c0_686 = arith.constant 0 : index
    %c0_687 = arith.constant 0 : index
    %919 = vector.load %arg11[%c0_685, %c0_686, %c0_687] : memref<1x98x1xf32, #tpu.memory_space<vmem>>, vector<1x98x1xf32>
    %920 = vector.shape_cast %919 : vector<1x98x1xf32> to vector<98x1xf32>
    %921 = vector.shape_cast %918 : vector<98x1xf32> to vector<1x98x1xf32>
    tpu.vector_store %arg11[%c0_685, %c0_686, %c0_687], %921 {strides = array<i32>} : memref<1x98x1xf32, #tpu.memory_space<vmem>>, vector<1x98x1xf32>,
    return
  }
  func.func @transform_0(%arg0: i32) -> (i32, i32, i32) {
    %c0_i32 = arith.constant 0 : i32
    %c0_i32_0 = arith.constant 0 : i32
    %c0_i32_1 = arith.constant 0 : i32
    return %arg0, %c0_i32, %c0_i32_0 : i32, i32, i32
  }
  func.func @transform_1(%arg0: i32) -> (i32, i32, i32) {
    %c0_i32 = arith.constant 0 : i32
    %c0_i32_0 = arith.constant 0 : i32
    %c0_i32_1 = arith.constant 0 : i32
    return %arg0, %c0_i32, %c0_i32_0 : i32, i32, i32
  }
  func.func @transform_2(%arg0: i32) -> (i32, i32, i32) {
    %c0_i32 = arith.constant 0 : i32
    %c0_i32_0 = arith.constant 0 : i32
    %c0_i32_1 = arith.constant 0 : i32
    return %arg0, %c0_i32, %c0_i32_0 : i32, i32, i32
  }
  func.func @transform_3(%arg0: i32) -> (i32, i32, i32) {
    %c0_i32 = arith.constant 0 : i32
    %c0_i32_0 = arith.constant 0 : i32
    %c0_i32_1 = arith.constant 0 : i32
    return %arg0, %c0_i32, %c0_i32_0 : i32, i32, i32
  }
  func.func @transform_4(%arg0: i32) -> (i32, i32, i32) {
    %c0_i32 = arith.constant 0 : i32
    %c0_i32_0 = arith.constant 0 : i32
    %c0_i32_1 = arith.constant 0 : i32
    return %arg0, %c0_i32, %c0_i32_0 : i32, i32, i32
  }
  func.func @transform_5(%arg0: i32) -> (i32, i32, i32) {
    %c0_i32 = arith.constant 0 : i32
    %c0_i32_0 = arith.constant 0 : i32
    %c0_i32_1 = arith.constant 0 : i32
    return %arg0, %c0_i32, %c0_i32_0 : i32, i32, i32
  }
  func.func @transform_6(%arg0: i32) -> (i32, i32, i32, i32) {
    %c0_i32 = arith.constant 0 : i32
    %c0_i32_0 = arith.constant 0 : i32
    %c0_i32_1 = arith.constant 0 : i32
    %c0_i32_2 = arith.constant 0 : i32
    return %arg0, %c0_i32, %c0_i32_0, %c0_i32_1 : i32, i32, i32, i32
  }
  func.func @transform_7(%arg0: i32) -> (i32, i32, i32) {
    %c0_i32 = arith.constant 0 : i32
    %c0_i32_0 = arith.constant 0 : i32
    %c0_i32_1 = arith.constant 0 : i32
    return %arg0, %c0_i32, %c0_i32_0 : i32, i32, i32
  }
  func.func @transform_8(%arg0: i32) -> (i32, i32, i32) {
    %c0_i32 = arith.constant 0 : i32
    %c0_i32_0 = arith.constant 0 : i32
    %c0_i32_1 = arith.constant 0 : i32
    return %arg0, %c0_i32, %c0_i32_0 : i32, i32, i32
  }
  func.func @transform_9(%arg0: i32) -> i32 {
    %c0_i32 = arith.constant 0 : i32
    %c0_i32_0 = arith.constant 0 : i32
    return %c0_i32 : i32
  }
  func.func @transform_10(%arg0: i32) -> (i32, i32, i32) {
    %c0_i32 = arith.constant 0 : i32
    %c0_i32_0 = arith.constant 0 : i32
    %c0_i32_1 = arith.constant 0 : i32
    return %arg0, %c0_i32, %c0_i32_0 : i32, i32, i32
  }
}

</mosaic_0001>

<llo_original>
// kernel: atts_head_fused.1
$region0: #{atts_head_fused.1}
  #allocation0 [shape = 'u32[]', space=smem, size = 0x4, offset = 0x4, fixed_abs, tag = 'smem constant byte address 0x4 - core index']
  #allocation1 [shape = 'u32[144,128]{1,0:T(1,128)}', space=vmem, size = 0x12000, scoped, tag = 'internal scratch']
  #allocation2 [shape = 'f32[32,256]{1,0:T(8,128)}', space=vmem, size = 0x8000, scoped, tag = 'scratch operand']
  #allocation3 [shape = 'f32[128,256]{1,0:T(8,128)}', space=vmem, size = 0x20000, scoped, tag = 'scratch operand']
  #allocation4 [shape = 'f32[114,256]{1,0:T(8,128)}', space=vmem, size = 0x1e000, scoped, tag = 'scratch operand']
  %s0 = inlined_call_operand.hbm [shape: f32[3,32,256], index: 0, kind: input, shape index: {}]
  %s1 = inlined_call_operand.hbm [shape: f32[3,128,256], index: 1, kind: input, shape index: {}]
  %s2 = inlined_call_operand.hbm [shape: bf16[3,256,256], index: 2, kind: input, shape index: {}]
  %s3 = inlined_call_operand.hbm [shape: f32[3,1,256], index: 3, kind: input, shape index: {}]
  %s4 = inlined_call_operand.hbm [shape: bf16[3,256,256], index: 4, kind: input, shape index: {}]
  %s5 = inlined_call_operand.hbm [shape: f32[3,1,256], index: 5, kind: input, shape index: {}]
  %s6 = inlined_call_operand.hbm [shape: bf16[3,9,256,256], index: 6, kind: input, shape index: {}]
  %s7 = inlined_call_operand.hbm [shape: f32[3,1,256], index: 7, kind: input, shape index: {}]
  %s8 = inlined_call_operand.hbm [shape: f32[3,1,256], index: 8, kind: input, shape index: {}]
  %s9 = inlined_call_operand.hbm [shape: f32[3], index: 9, kind: input, shape index: {}]
  %s10 = inlined_call_operand.vmem [shape: f32[3,98,1], index: 10, kind: output, shape index: {}]
  %s11 = sld [smem:[#allocation0]]
  $region113: #{atts_head_fused.1} parent=0
    _
  %s13 = ssub.s32 1, %s11
  %s14 = scalar_select 0, %s13, %s11
  $region1: #{atts_head_fused.1} parent=0
    #allocation5 [shape = 'u8[65536]{0}', space=vmem, size = 0x10000, scoped, tag = 'input window, operand 0']
    #allocation6 [shape = 's32[2]{0}', space=sflag, size = 0x8, scoped, tag = 'scoped memory for atts_head_fused.1']
    #allocation7 [shape = 's32[2]{0}', space=sflag, size = 0x8, scoped, tag = 'scoped memory for atts_head_fused.1']
    #allocation8 [shape = 'u8[262144]{0}', space=vmem, size = 0x40000, scoped, tag = 'input window, operand 1']
    #allocation9 [shape = 's32[2]{0}', space=sflag, size = 0x8, scoped, tag = 'scoped memory for atts_head_fused.1']
    #allocation10 [shape = 'u8[262144]{0}', space=vmem, size = 0x40000, scoped, tag = 'input window, operand 2']
    #allocation11 [shape = 'u8[2048]{0}', space=vmem, size = 0x800, scoped, tag = 'input window, operand 3']
    #allocation12 [shape = 's32[2]{0}', space=sflag, size = 0x8, scoped, tag = 'scoped memory for atts_head_fused.1']
    #allocation13 [shape = 'u8[262144]{0}', space=vmem, size = 0x40000, scoped, tag = 'input window, operand 4']
    #allocation14 [shape = 'u8[2048]{0}', space=vmem, size = 0x800, scoped, tag = 'input window, operand 5']
    #allocation15 [shape = 's32[2]{0}', space=sflag, size = 0x8, scoped, tag = 'scoped memory for atts_head_fused.1']
    #allocation16 [shape = 'u8[2359296]{0}', space=vmem, size = 0x240000, scoped, tag = 'input window, operand 6']
    #allocation17 [shape = 'u8[2048]{0}', space=vmem, size = 0x800, scoped, tag = 'input window, operand 7']
    #allocation18 [shape = 's32[2]{0}', space=sflag, size = 0x8, scoped, tag = 'scoped memory for atts_head_fused.1']
    #allocation19 [shape = 'u8[2048]{0}', space=vmem, size = 0x800, scoped, tag = 'input window, operand 8']
    #allocation20 [shape = 'u8[512]{0}', space=smem, size = 0x200, scoped, tag = 'input window, operand 9, single buffered']
    %15 = vsyncpa [#allocation6], 0
    %s16 = scalar_lea.sflag [#allocation6], 1
    %17 = vsyncpa %s16, 0
    %18 = vsyncpa [#allocation9], 0
    %s19 = scalar_lea.sflag [#allocation9], 1
    %20 = vsyncpa %s19, 0
    %21 = vsyncpa [#allocation12], 0
    %s22 = scalar_lea.sflag [#allocation12], 1
    %23 = vsyncpa %s22, 0
    %24 = vsyncpa [#allocation15], 0
    %s25 = scalar_lea.sflag [#allocation15], 1
    %26 = vsyncpa %s25, 0
    %27 = vsyncpa [#allocation18], 0
    %s28 = scalar_lea.sflag [#allocation18], 1
    %29 = vsyncpa %s28, 0
    %30 = vsyncpa [#allocation7], 0
    loop: start=0, step=1, limit=5
    $region2: #{atts_head_fused.1} parent=1 // loop_pre_header
      _
    $region3: #{atts_head_fused.1} parent=1 // loop_header
      %s32 = sphi 0, %s36
      %p33 = scmp.ge.s32.totalorder %s32, 5
      %s42 = sphi 0, %s44
      %s45 = sphi 0, %s42
      %s46 = sphi 0, %s45
      %s62 = sphi 0, %s46
      %s68 = sphi 0, %s70
      %s71 = sphi 0, %s68
      %s72 = sphi 0, %s71
      %s88 = sphi 0, %s72
      %s94 = sphi 0, %s96
      %s97 = sphi 0, %s94
      %s98 = sphi 0, %s97
      %s114 = sphi 0, %s98
      %s120 = sphi 0, %s122
      %s123 = sphi 0, %s120
      %s124 = sphi 0, %s123
      %s140 = sphi 0, %s124
      %s146 = sphi 0, %s148
      %s149 = sphi 0, %s146
      %s150 = sphi 0, %s149
      %s166 = sphi 0, %s150
      %s172 = sphi 0, %s174
      %s175 = sphi 0, %s172
      %s176 = sphi 0, %s175
      %s192 = sphi 0, %s176
      %s198 = sphi 0, %s200
      %s201 = sphi 0, %s198
      %s202 = sphi 0, %s201
      %s218 = sphi 0, %s202
      %s224 = sphi 0, %s226
      %s227 = sphi 0, %s224
      %s228 = sphi 0, %s227
      %s244 = sphi 0, %s228
      %s250 = sphi 0, %s252
      %s253 = sphi 0, %s250
      %s254 = sphi 0, %s253
      %s270 = sphi 0, %s254
      %s274 = sphi 0, %s274
      %s276 = sphi 0, %s274
      %s277 = sphi 0, %s276
      %s291 = sphi 0, %s277
      %s297 = sphi 0, %s299
      %s300 = sphi 0, %s297
      %s301 = sphi 0, %s300
      %s317 = sphi 0, %s301
    $region4: #{atts_head_fused.1} parent=1 // loop_header_branch
      %35 = sbr.rel (%p33) target = $region8
    $region5: #{atts_head_fused.1} parent=1 // loop_body
      %s37 = ssub.s32 %s32, 1
      %s38 = ssub.s32 %s32, 2
      %s39 = sadd.s32 %s32, 1
      %s40 = ssub.s32 %s32, %s39
      %p41 = scmp.eq.s32.totalorder %s40, 0
      %s43 = sadd.s32 %s42, 1
      %s44 = scalar_select %p41, %s42, %s43
      %p47 = pneg %p41
      %p48 = scmp.eq.s32.totalorder %s32, 2
      %p49 = por %p47, %p48
      %p50 = scmp.ne.s32.totalorder %s42, %s45
      %p51 = scmp.eq.s32.totalorder %s32, 0
      %p52 = por %p50, %p51
      %p53 = scmp.ne.s32.totalorder %s42, %s45
      %p54 = scmp.eq.s32.totalorder %s37, 2
      %p55 = por %p53, %p54
      %p56 = scmp.ne.s32.totalorder %s45, %s46
      %p57 = scmp.eq.s32.totalorder %s37, 0
      %p58 = por %p56, %p57
      %p59 = scmp.ne.s32.totalorder %s45, %s46
      %p60 = scmp.eq.s32.totalorder %s38, 2
      %p61 = por %p59, %p60
      %p63 = scmp.ne.s32.totalorder %s46, %s62
      %p64 = scmp.eq.s32.totalorder %s38, 0
      %p65 = por %p63, %p64
      %s66 = ssub.s32 %s32, %s39
      %p67 = scmp.eq.s32.totalorder %s66, 0
      %s69 = sadd.s32 %s68, 1
      %s70 = scalar_select %p67, %s68, %s69
      %p73 = pneg %p67
      %p74 = scmp.eq.s32.totalorder %s32, 2
      %p75 = por %p73, %p74
      %p76 = scmp.ne.s32.totalorder %s68, %s71
      %p77 = scmp.eq.s32.totalorder %s32, 0
      %p78 = por %p76, %p77
      %p79 = scmp.ne.s32.totalorder %s68, %s71
      %p80 = scmp.eq.s32.totalorder %s37, 2
      %p81 = por %p79, %p80
      %p82 = scmp.ne.s32.totalorder %s71, %s72
      %p83 = scmp.eq.s32.totalorder %s37, 0
      %p84 = por %p82, %p83
      %p85 = scmp.ne.s32.totalorder %s71, %s72
      %p86 = scmp.eq.s32.totalorder %s38, 2
      %p87 = por %p85, %p86
      %p89 = scmp.ne.s32.totalorder %s72, %s88
      %p90 = scmp.eq.s32.totalorder %s38, 0
      %p91 = por %p89, %p90
      %s92 = ssub.s32 %s32, %s39
      %p93 = scmp.eq.s32.totalorder %s92, 0
      %s95 = sadd.s32 %s94, 1
      %s96 = scalar_select %p93, %s94, %s95
      %p99 = pneg %p93
      %p100 = scmp.eq.s32.totalorder %s32, 2
      %p101 = por %p99, %p100
      %p102 = scmp.ne.s32.totalorder %s94, %s97
      %p103 = scmp.eq.s32.totalorder %s32, 0
      %p104 = por %p102, %p103
      %p105 = scmp.ne.s32.totalorder %s94, %s97
      %p106 = scmp.eq.s32.totalorder %s37, 2
      %p107 = por %p105, %p106
      %p108 = scmp.ne.s32.totalorder %s97, %s98
      %p109 = scmp.eq.s32.totalorder %s37, 0
      %p110 = por %p108, %p109
      %p111 = scmp.ne.s32.totalorder %s97, %s98
      %p112 = scmp.eq.s32.totalorder %s38, 2
      %p113 = por %p111, %p112
      %p115 = scmp.ne.s32.totalorder %s98, %s114
      %p116 = scmp.eq.s32.totalorder %s38, 0
      %p117 = por %p115, %p116
      %s118 = ssub.s32 %s32, %s39
      %p119 = scmp.eq.s32.totalorder %s118, 0
      %s121 = sadd.s32 %s120, 1
      %s122 = scalar_select %p119, %s120, %s121
      %p125 = pneg %p119
      %p126 = scmp.eq.s32.totalorder %s32, 2
      %p127 = por %p125, %p126
      %p128 = scmp.ne.s32.totalorder %s120, %s123
      %p129 = scmp.eq.s32.totalorder %s32, 0
      %p130 = por %p128, %p129
      %p131 = scmp.ne.s32.totalorder %s120, %s123
      %p132 = scmp.eq.s32.totalorder %s37, 2
      %p133 = por %p131, %p132
      %p134 = scmp.ne.s32.totalorder %s123, %s124
      %p135 = scmp.eq.s32.totalorder %s37, 0
      %p136 = por %p134, %p135
      %p137 = scmp.ne.s32.totalorder %s123, %s124
      %p138 = scmp.eq.s32.totalorder %s38, 2
      %p139 = por %p137, %p138
      %p141 = scmp.ne.s32.totalorder %s124, %s140
      %p142 = scmp.eq.s32.totalorder %s38, 0
      %p143 = por %p141, %p142
      %s144 = ssub.s32 %s32, %s39
      %p145 = scmp.eq.s32.totalorder %s144, 0
      %s147 = sadd.s32 %s146, 1
      %s148 = scalar_select %p145, %s146, %s147
      %p151 = pneg %p145
      %p152 = scmp.eq.s32.totalorder %s32, 2
      %p153 = por %p151, %p152
      %p154 = scmp.ne.s32.totalorder %s146, %s149
      %p155 = scmp.eq.s32.totalorder %s32, 0
      %p156 = por %p154, %p155
      %p157 = scmp.ne.s32.totalorder %s146, %s149
      %p158 = scmp.eq.s32.totalorder %s37, 2
      %p159 = por %p157, %p158
      %p160 = scmp.ne.s32.totalorder %s149, %s150
      %p161 = scmp.eq.s32.totalorder %s37, 0
      %p162 = por %p160, %p161
      %p163 = scmp.ne.s32.totalorder %s149, %s150
      %p164 = scmp.eq.s32.totalorder %s38, 2
      %p165 = por %p163, %p164
      %p167 = scmp.ne.s32.totalorder %s150, %s166
      %p168 = scmp.eq.s32.totalorder %s38, 0
      %p169 = por %p167, %p168
      %s170 = ssub.s32 %s32, %s39
      %p171 = scmp.eq.s32.totalorder %s170, 0
      %s173 = sadd.s32 %s172, 1
      %s174 = scalar_select %p171, %s172, %s173
      %p177 = pneg %p171
      %p178 = scmp.eq.s32.totalorder %s32, 2
      %p179 = por %p177, %p178
      %p180 = scmp.ne.s32.totalorder %s172, %s175
      %p181 = scmp.eq.s32.totalorder %s32, 0
      %p182 = por %p180, %p181
      %p183 = scmp.ne.s32.totalorder %s172, %s175
      %p184 = scmp.eq.s32.totalorder %s37, 2
      %p185 = por %p183, %p184
      %p186 = scmp.ne.s32.totalorder %s175, %s176
      %p187 = scmp.eq.s32.totalorder %s37, 0
      %p188 = por %p186, %p187
      %p189 = scmp.ne.s32.totalorder %s175, %s176
      %p190 = scmp.eq.s32.totalorder %s38, 2
      %p191 = por %p189, %p190
      %p193 = scmp.ne.s32.totalorder %s176, %s192
      %p194 = scmp.eq.s32.totalorder %s38, 0
      %p195 = por %p193, %p194
      %s196 = ssub.s32 %s32, %s39
      %p197 = scmp.eq.s32.totalorder %s196, 0
      %s199 = sadd.s32 %s198, 1
      %s200 = scalar_select %p197, %s198, %s199
      %p203 = pneg %p197
      %p204 = scmp.eq.s32.totalorder %s32, 2
      %p205 = por %p203, %p204
      %p206 = scmp.ne.s32.totalorder %s198, %s201
      %p207 = scmp.eq.s32.totalorder %s32, 0
      %p208 = por %p206, %p207
      %p209 = scmp.ne.s32.totalorder %s198, %s201
      %p210 = scmp.eq.s32.totalorder %s37, 2
      %p211 = por %p209, %p210
      %p212 = scmp.ne.s32.totalorder %s201, %s202
      %p213 = scmp.eq.s32.totalorder %s37, 0
      %p214 = por %p212, %p213
      %p215 = scmp.ne.s32.totalorder %s201, %s202
      %p216 = scmp.eq.s32.totalorder %s38, 2
      %p217 = por %p215, %p216
      %p219 = scmp.ne.s32.totalorder %s202, %s218
      %p220 = scmp.eq.s32.totalorder %s38, 0
      %p221 = por %p219, %p220
      %s222 = ssub.s32 %s32, %s39
      %p223 = scmp.eq.s32.totalorder %s222, 0
      %s225 = sadd.s32 %s224, 1
      %s226 = scalar_select %p223, %s224, %s225
      %p229 = pneg %p223
      %p230 = scmp.eq.s32.totalorder %s32, 2
      %p231 = por %p229, %p230
      %p232 = scmp.ne.s32.totalorder %s224, %s227
      %p233 = scmp.eq.s32.totalorder %s32, 0
      %p234 = por %p232, %p233
      %p235 = scmp.ne.s32.totalorder %s224, %s227
      %p236 = scmp.eq.s32.totalorder %s37, 2
      %p237 = por %p235, %p236
      %p238 = scmp.ne.s32.totalorder %s227, %s228
      %p239 = scmp.eq.s32.totalorder %s37, 0
      %p240 = por %p238, %p239
      %p241 = scmp.ne.s32.totalorder %s227, %s228
      %p242 = scmp.eq.s32.totalorder %s38, 2
      %p243 = por %p241, %p242
      %p245 = scmp.ne.s32.totalorder %s228, %s244
      %p246 = scmp.eq.s32.totalorder %s38, 0
      %p247 = por %p245, %p246
      %s248 = ssub.s32 %s32, %s39
      %p249 = scmp.eq.s32.totalorder %s248, 0
      %s251 = sadd.s32 %s250, 1
      %s252 = scalar_select %p249, %s250, %s251
      %p255 = pneg %p249
      %p256 = scmp.eq.s32.totalorder %s32, 2
      %p257 = por %p255, %p256
      %p258 = scmp.ne.s32.totalorder %s250, %s253
      %p259 = scmp.eq.s32.totalorder %s32, 0
      %p260 = por %p258, %p259
      %p261 = scmp.ne.s32.totalorder %s250, %s253
      %p262 = scmp.eq.s32.totalorder %s37, 2
      %p263 = por %p261, %p262
      %p264 = scmp.ne.s32.totalorder %s253, %s254
      %p265 = scmp.eq.s32.totalorder %s37, 0
      %p266 = por %p264, %p265
      %p267 = scmp.ne.s32.totalorder %s253, %s254
      %p268 = scmp.eq.s32.totalorder %s38, 2
      %p269 = por %p267, %p268
      %p271 = scmp.ne.s32.totalorder %s254, %s270
      %p272 = scmp.eq.s32.totalorder %s38, 0
      %p273 = por %p271, %p272
      %s275 = sadd.s32 %s274, 1
      %p278 = scmp.eq.s32.totalorder %s32, 2
      %p279 = scmp.ne.s32.totalorder %s274, %s276
      %p280 = scmp.eq.s32.totalorder %s32, 0
      %p281 = por %p279, %p280
      %p282 = scmp.ne.s32.totalorder %s274, %s276
      %p283 = scmp.eq.s32.totalorder %s37, 2
      %p284 = por %p282, %p283
      %p285 = scmp.ne.s32.totalorder %s276, %s277
      %p286 = scmp.eq.s32.totalorder %s37, 0
      %p287 = por %p285, %p286
      %p288 = scmp.ne.s32.totalorder %s276, %s277
      %p289 = scmp.eq.s32.totalorder %s38, 2
      %p290 = por %p288, %p289
      %p292 = scmp.ne.s32.totalorder %s277, %s291
      %p293 = scmp.eq.s32.totalorder %s38, 0
      %p294 = por %p292, %p293
      %s295 = ssub.s32 %s32, %s39
      %p296 = scmp.eq.s32.totalorder %s295, 0
      %s298 = sadd.s32 %s297, 1
      %s299 = scalar_select %p296, %s297, %s298
      %p302 = pneg %p296
      %p303 = scmp.eq.s32.totalorder %s32, 2
      %p304 = por %p302, %p303
      %p305 = scmp.ne.s32.totalorder %s297, %s300
      %p306 = scmp.eq.s32.totalorder %s32, 0
      %p307 = por %p305, %p306
      %p308 = scmp.ne.s32.totalorder %s297, %s300
      %p309 = scmp.eq.s32.totalorder %s37, 2
      %p310 = por %p308, %p309
      %p311 = scmp.ne.s32.totalorder %s300, %s301
      %p312 = scmp.eq.s32.totalorder %s37, 0
      %p313 = por %p311, %p312
      %p314 = scmp.ne.s32.totalorder %s300, %s301
      %p315 = scmp.eq.s32.totalorder %s38, 2
      %p316 = por %p314, %p315
      %p318 = scmp.ne.s32.totalorder %s301, %s317
      %p319 = scmp.eq.s32.totalorder %s38, 0
      %p320 = por %p318, %p319
      %p321 = scmp.le.s32.totalorder 1, %s32
      %p322 = scmp.lt.s32.totalorder %s32, 4
      %p323 = pnand %p321, %p322
      %p324 = pneg %p323
      // Predicated region
      $region9: #{atts_head_fused.1} parent=5 // pred_check
        _
      $region10: #{atts_head_fused.1} parent=5 // pred_check_branch
        %326 = sbr.rel (%p323) target = $region12
      $region11: #{atts_head_fused.1} parent=5 // pred_region
        %s327 = ssub.s32 %s32, 1
        // Predicated region
        $region13: #{atts_head_fused.1} parent=11 // pred_check
          %p328 = pneg %p287
        $region14: #{atts_head_fused.1} parent=11 // pred_check_branch
          %330 = sbr.rel (%p328) target = $region16
        $region15: #{atts_head_fused.1} parent=11 // pred_region
          %s332 = ssub.s32 16, 16
          %333 = vsyncadd [#allocation7], %s332
          %336 = dma.hbm_to_smem %s9, 16, [#allocation20], [#allocation7]
        $region16: #{atts_head_fused.1} parent=11 // pred_fallthru
          _
      $region12: #{atts_head_fused.1} parent=5 // pred_fallthru
        _
      %p337 = scmp.lt.s32.totalorder %s32, 3
      // Predicated region
      $region17: #{atts_head_fused.1} parent=5 // pred_check
        %p338 = pneg %p337
      $region18: #{atts_head_fused.1} parent=5 // pred_check_branch
        %340 = sbr.rel (%p338) target = $region20
      $region19: #{atts_head_fused.1} parent=5 // pred_region
        // Predicated region
        $region21: #{atts_head_fused.1} parent=19 // pred_check
          %p341 = pneg %p52
        $region22: #{atts_head_fused.1} parent=19 // pred_check_branch
          %343 = sbr.rel (%p341) target = $region24
        $region23: #{atts_head_fused.1} parent=19 // pred_region
          %s344 = sand.u32 %s42, 1
          %s345 = scalar_lea.sflag [#allocation6], %s344
          %s346 = sand.u32 %s42, 1
          %s347 = smul.addr %s346, 64
          %s348 = scalar_lea.vmem [#allocation5], %s347
          %s350 = ssub.s32 1024, 1024
          %351 = vsyncadd %s345, %s350
          %s352 = smul.addr %s32, 8
          %s353 = smul.addr %s352, 128
          %s354 = scalar_lea.hbm %s0, %s353
          %s355 = sshll.u32 %s348, 4
          %s356 = int_to_ptr.vmem [resolvable:$true] %s355
          %361 = dma.hbm_to_vmem [thread:$0]  %s354, 1024, %s356, %s345, 256, 256, 16
        $region24: #{atts_head_fused.1} parent=19 // pred_fallthru
          _
        // Predicated region
        $region25: #{atts_head_fused.1} parent=19 // pred_check
          %p362 = pneg %p78
        $region26: #{atts_head_fused.1} parent=19 // pred_check_branch
          %364 = sbr.rel (%p362) target = $region28
        $region27: #{atts_head_fused.1} parent=19 // pred_region
          %s365 = sand.u32 %s32, 1
          %s366 = scalar_lea.sflag [#allocation9], %s365
          %s367 = sand.u32 %s68, 1
          %s368 = smul.addr %s367, 256
          %s369 = scalar_lea.vmem [#allocation8], %s368
          %s371 = ssub.s32 4096, 4096
          %372 = vsyncadd %s366, %s371
          %s373 = smul.addr %s32, 32
          %s374 = smul.addr %s373, 128
          %s375 = scalar_lea.hbm %s1, %s374
          %s376 = sshll.u32 %s369, 4
          %s377 = int_to_ptr.vmem [resolvable:$true] %s376
          %382 = dma.hbm_to_vmem [thread:$0]  %s375, 4096, %s377, %s366, 256, 256, 16
        $region28: #{atts_head_fused.1} parent=19 // pred_fallthru
          _
        // Predicated region
        $region29: #{atts_head_fused.1} parent=19 // pred_check
          %p383 = pneg %p104
        $region30: #{atts_head_fused.1} parent=19 // pred_check_branch
          %385 = sbr.rel (%p383) target = $region32
        $region31: #{atts_head_fused.1} parent=19 // pred_region
          %s386 = sand.u32 %s32, 1
          %s387 = scalar_lea.sflag [#allocation9], %s386
          %s388 = sand.u32 %s94, 1
          %s389 = smul.addr %s388, 256
          %s390 = scalar_lea.vmem [#allocation10], %s389
          %s392 = ssub.s32 4096, 4096
          %393 = vsyncadd %s387, %s392
          %s394 = smul.addr %s32, 64
          %s395 = smul.addr %s394, 64
          %s396 = scalar_lea.hbm %s2, %s395
          %s397 = sshll.u32 %s390, 4
          %s398 = int_to_ptr.vmem [resolvable:$true] %s397
          %403 = dma.hbm_to_vmem [thread:$0]  %s396, 4096, %s398, %s387, 128, 128, 8
        $region32: #{atts_head_fused.1} parent=19 // pred_fallthru
          _
        // Predicated region
        $region33: #{atts_head_fused.1} parent=19 // pred_check
          %p404 = pneg %p130
        $region34: #{atts_head_fused.1} parent=19 // pred_check_branch
          %406 = sbr.rel (%p404) target = $region36
        $region35: #{atts_head_fused.1} parent=19 // pred_region
          %s407 = sand.u32 %s32, 1
          %s408 = scalar_lea.sflag [#allocation12], %s407
          %s409 = sand.u32 %s120, 1
          %s410 = smul.addr %s409, 2
          %s411 = scalar_lea.vmem [#allocation11], %s410
          %s413 = ssub.s32 32, 32
          %414 = vsyncadd %s408, %s413
          %s415 = smul.addr %s32, 2
          %s416 = smul.addr %s415, 16
          %s417 = scalar_lea.hbm %s3, %s416
          %s419 = sshll.u32 %s411, 4
          %s420 = int_to_ptr.vmem [resolvable:$true] %s419
          %422 = dma.hbm_to_vmem [thread:$0]  %s417, 32, %s420, %s408
        $region36: #{atts_head_fused.1} parent=19 // pred_fallthru
          _
        // Predicated region
        $region37: #{atts_head_fused.1} parent=19 // pred_check
          %p423 = pneg %p156
        $region38: #{atts_head_fused.1} parent=19 // pred_check_branch
          %425 = sbr.rel (%p423) target = $region40
        $region39: #{atts_head_fused.1} parent=19 // pred_region
          %s426 = sand.u32 %s32, 1
          %s427 = scalar_lea.sflag [#allocation12], %s426
          %s428 = sand.u32 %s146, 1
          %s429 = smul.addr %s428, 256
          %s430 = scalar_lea.vmem [#allocation13], %s429
          %s432 = ssub.s32 4096, 4096
          %433 = vsyncadd %s427, %s432
          %s434 = smul.addr %s32, 64
          %s435 = smul.addr %s434, 64
          %s436 = scalar_lea.hbm %s4, %s435
          %s437 = sshll.u32 %s430, 4
          %s438 = int_to_ptr.vmem [resolvable:$true] %s437
          %443 = dma.hbm_to_vmem [thread:$0]  %s436, 4096, %s438, %s427, 128, 128, 8
        $region40: #{atts_head_fused.1} parent=19 // pred_fallthru
          _
        // Predicated region
        $region41: #{atts_head_fused.1} parent=19 // pred_check
          %p444 = pneg %p182
        $region42: #{atts_head_fused.1} parent=19 // pred_check_branch
          %446 = sbr.rel (%p444) target = $region44
        $region43: #{atts_head_fused.1} parent=19 // pred_region
          %s447 = sand.u32 %s32, 1
          %s448 = scalar_lea.sflag [#allocation15], %s447
          %s449 = sand.u32 %s172, 1
          %s450 = smul.addr %s449, 2
          %s451 = scalar_lea.vmem [#allocation14], %s450
          %s453 = ssub.s32 32, 32
          %454 = vsyncadd %s448, %s453
          %s455 = smul.addr %s32, 2
          %s456 = smul.addr %s455, 16
          %s457 = scalar_lea.hbm %s5, %s456
          %s459 = sshll.u32 %s451, 4
          %s460 = int_to_ptr.vmem [resolvable:$true] %s459
          %462 = dma.hbm_to_vmem [thread:$0]  %s457, 32, %s460, %s448
        $region44: #{atts_head_fused.1} parent=19 // pred_fallthru
          _
        // Predicated region
        $region45: #{atts_head_fused.1} parent=19 // pred_check
          %p463 = pneg %p208
        $region46: #{atts_head_fused.1} parent=19 // pred_check_branch
          %465 = sbr.rel (%p463) target = $region48
        $region47: #{atts_head_fused.1} parent=19 // pred_region
          %s466 = sand.u32 %s32, 1
          %s467 = scalar_lea.sflag [#allocation15], %s466
          %s468 = sand.u32 %s198, 1
          %s469 = smul.addr %s468, 2304
          %s470 = scalar_lea.vmem [#allocation16], %s469
          %s472 = ssub.s32 36864, 36864
          %473 = vsyncadd %s467, %s472
          %s474 = smul.addr %s32, 576
          %s475 = smul.addr %s474, 64
          %s476 = scalar_lea.hbm %s6, %s475
          %s477 = sshll.u32 %s470, 4
          %s478 = int_to_ptr.vmem [resolvable:$true] %s477
          %483 = dma.hbm_to_vmem [thread:$0]  %s476, 36864, %s478, %s467, 128, 128, 8
        $region48: #{atts_head_fused.1} parent=19 // pred_fallthru
          _
        // Predicated region
        $region49: #{atts_head_fused.1} parent=19 // pred_check
          %p484 = pneg %p234
        $region50: #{atts_head_fused.1} parent=19 // pred_check_branch
          %486 = sbr.rel (%p484) target = $region52
        $region51: #{atts_head_fused.1} parent=19 // pred_region
          %s487 = sand.u32 %s32, 1
          %s488 = scalar_lea.sflag [#allocation18], %s487
          %s489 = sand.u32 %s224, 1
          %s490 = smul.addr %s489, 2
          %s491 = scalar_lea.vmem [#allocation17], %s490
          %s493 = ssub.s32 32, 32
          %494 = vsyncadd %s488, %s493
          %s495 = smul.addr %s32, 2
          %s496 = smul.addr %s495, 16
          %s497 = scalar_lea.hbm %s7, %s496
          %s499 = sshll.u32 %s491, 4
          %s500 = int_to_ptr.vmem [resolvable:$true] %s499
          %502 = dma.hbm_to_vmem [thread:$0]  %s497, 32, %s500, %s488
        $region52: #{atts_head_fused.1} parent=19 // pred_fallthru
          _
        // Predicated region
        $region53: #{atts_head_fused.1} parent=19 // pred_check
          %p503 = pneg %p260
        $region54: #{atts_head_fused.1} parent=19 // pred_check_branch
          %505 = sbr.rel (%p503) target = $region56
        $region55: #{atts_head_fused.1} parent=19 // pred_region
          %s506 = sand.u32 %s32, 1
          %s507 = scalar_lea.sflag [#allocation18], %s506
          %s508 = sand.u32 %s250, 1
          %s509 = smul.addr %s508, 2
          %s510 = scalar_lea.vmem [#allocation19], %s509
          %s512 = ssub.s32 32, 32
          %513 = vsyncadd %s507, %s512
          %s514 = smul.addr %s32, 2
          %s515 = smul.addr %s514, 16
          %s516 = scalar_lea.hbm %s8, %s515
          %s518 = sshll.u32 %s510, 4
          %s519 = int_to_ptr.vmem [resolvable:$true] %s518
          %521 = dma.hbm_to_vmem [thread:$0]  %s516, 32, %s519, %s507
        $region56: #{atts_head_fused.1} parent=19 // pred_fallthru
          _
      $region20: #{atts_head_fused.1} parent=5 // pred_fallthru
        _
      %p522 = scmp.le.s32.totalorder 1, %s32
      %p523 = scmp.lt.s32.totalorder %s32, 4
      %p524 = pnand %p522, %p523
      %p525 = pneg %p524
      // Predicated region
      $region57: #{atts_head_fused.1} parent=5 // pred_check
        _
      $region58: #{atts_head_fused.1} parent=5 // pred_check_branch
        %527 = sbr.rel (%p524) target = $region60
      $region59: #{atts_head_fused.1} parent=5 // pred_region
        %s528 = ssub.s32 %s32, 1
        %s529 = sand.u32 %s45, 1
        %s530 = scalar_lea.sflag [#allocation6], %s529
        %s531 = sand.u32 %s45, 1
        %s532 = smul.addr %s531, 64
        %s533 = scalar_lea.vmem [#allocation5], %s532
        // Predicated region
        $region61: #{atts_head_fused.1} parent=59 // pred_check
          %p534 = pneg %p58
        $region62: #{atts_head_fused.1} parent=59 // pred_check_branch
          %536 = sbr.rel (%p534) target = $region64
        $region63: #{atts_head_fused.1} parent=59 // pred_region
          %537 = dma.done %s530, 1024
        $region64: #{atts_head_fused.1} parent=59 // pred_fallthru
          _
        %s538 = sand.u32 %s37, 1
        %s539 = scalar_lea.sflag [#allocation9], %s538
        %s540 = sand.u32 %s71, 1
        %s541 = smul.addr %s540, 256
        %s542 = scalar_lea.vmem [#allocation8], %s541
        // Predicated region
        $region65: #{atts_head_fused.1} parent=59 // pred_check
          %p543 = pneg %p84
        $region66: #{atts_head_fused.1} parent=59 // pred_check_branch
          %545 = sbr.rel (%p543) target = $region68
        $region67: #{atts_head_fused.1} parent=59 // pred_region
          %546 = dma.done %s539, 4096
        $region68: #{atts_head_fused.1} parent=59 // pred_fallthru
          _
        %s547 = sand.u32 %s37, 1
        %s548 = scalar_lea.sflag [#allocation9], %s547
        %s549 = sand.u32 %s97, 1
        %s550 = smul.addr %s549, 256
        %s551 = scalar_lea.vmem [#allocation10], %s550
        // Predicated region
        $region69: #{atts_head_fused.1} parent=59 // pred_check
          %p552 = pneg %p110
        $region70: #{atts_head_fused.1} parent=59 // pred_check_branch
          %554 = sbr.rel (%p552) target = $region72
        $region71: #{atts_head_fused.1} parent=59 // pred_region
          %555 = dma.done %s548, 4096
        $region72: #{atts_head_fused.1} parent=59 // pred_fallthru
          _
        %s556 = sand.u32 %s37, 1
        %s557 = scalar_lea.sflag [#allocation12], %s556
        %s558 = sand.u32 %s123, 1
        %s559 = smul.addr %s558, 2
        %s560 = scalar_lea.vmem [#allocation11], %s559
        // Predicated region
        $region73: #{atts_head_fused.1} parent=59 // pred_check
          %p561 = pneg %p136
        $region74: #{atts_head_fused.1} parent=59 // pred_check_branch
          %563 = sbr.rel (%p561) target = $region76
        $region75: #{atts_head_fused.1} parent=59 // pred_region
          %564 = dma.done %s557, 32
        $region76: #{atts_head_fused.1} parent=59 // pred_fallthru
          _
        %s565 = sand.u32 %s37, 1
        %s566 = scalar_lea.sflag [#allocation12], %s565
        %s567 = sand.u32 %s149, 1
        %s568 = smul.addr %s567, 256
        %s569 = scalar_lea.vmem [#allocation13], %s568
        // Predicated region
        $region77: #{atts_head_fused.1} parent=59 // pred_check
          %p570 = pneg %p162
        $region78: #{atts_head_fused.1} parent=59 // pred_check_branch
          %572 = sbr.rel (%p570) target = $region80
        $region79: #{atts_head_fused.1} parent=59 // pred_region
          %573 = dma.done %s566, 4096
        $region80: #{atts_head_fused.1} parent=59 // pred_fallthru
          _
        %s574 = sand.u32 %s37, 1
        %s575 = scalar_lea.sflag [#allocation15], %s574
        %s576 = sand.u32 %s175, 1
        %s577 = smul.addr %s576, 2
        %s578 = scalar_lea.vmem [#allocation14], %s577
        // Predicated region
        $region81: #{atts_head_fused.1} parent=59 // pred_check
          %p579 = pneg %p188
        $region82: #{atts_head_fused.1} parent=59 // pred_check_branch
          %581 = sbr.rel (%p579) target = $region84
        $region83: #{atts_head_fused.1} parent=59 // pred_region
          %582 = dma.done %s575, 32
        $region84: #{atts_head_fused.1} parent=59 // pred_fallthru
          _
        %s583 = sand.u32 %s37, 1
        %s584 = scalar_lea.sflag [#allocation15], %s583
        %s585 = sand.u32 %s201, 1
        %s586 = smul.addr %s585, 2304
        %s587 = scalar_lea.vmem [#allocation16], %s586
        // Predicated region
        $region85: #{atts_head_fused.1} parent=59 // pred_check
          %p588 = pneg %p214
        $region86: #{atts_head_fused.1} parent=59 // pred_check_branch
          %590 = sbr.rel (%p588) target = $region88
        $region87: #{atts_head_fused.1} parent=59 // pred_region
          %591 = dma.done %s584, 36864
        $region88: #{atts_head_fused.1} parent=59 // pred_fallthru
          _
        %s592 = sand.u32 %s37, 1
        %s593 = scalar_lea.sflag [#allocation18], %s592
        %s594 = sand.u32 %s227, 1
        %s595 = smul.addr %s594, 2
        %s596 = scalar_lea.vmem [#allocation17], %s595
        // Predicated region
        $region89: #{atts_head_fused.1} parent=59 // pred_check
          %p597 = pneg %p240
        $region90: #{atts_head_fused.1} parent=59 // pred_check_branch
          %599 = sbr.rel (%p597) target = $region92
        $region91: #{atts_head_fused.1} parent=59 // pred_region
          %600 = dma.done %s593, 32
        $region92: #{atts_head_fused.1} parent=59 // pred_fallthru
          _
        %s601 = sand.u32 %s37, 1
        %s602 = scalar_lea.sflag [#allocation18], %s601
        %s603 = sand.u32 %s253, 1
        %s604 = smul.addr %s603, 2
        %s605 = scalar_lea.vmem [#allocation19], %s604
        // Predicated region
        $region93: #{atts_head_fused.1} parent=59 // pred_check
          %p606 = pneg %p266
        $region94: #{atts_head_fused.1} parent=59 // pred_check_branch
          %608 = sbr.rel (%p606) target = $region96
        $region95: #{atts_head_fused.1} parent=59 // pred_region
          %609 = dma.done %s602, 32
        $region96: #{atts_head_fused.1} parent=59 // pred_fallthru
          _
        // Predicated region
        $region97: #{atts_head_fused.1} parent=59 // pred_check
          %p610 = pneg %p287
        $region98: #{atts_head_fused.1} parent=59 // pred_check_branch
          %612 = sbr.rel (%p610) target = $region100
        $region99: #{atts_head_fused.1} parent=59 // pred_region
          %613 = dma.done [#allocation7], 16
        $region100: #{atts_head_fused.1} parent=59 // pred_fallthru
          _
        %614 = sfence
        %s615 = sand.u32 %s45, 1
        %s616 = scalar_lea.sflag [#allocation6], %s615
        %s617 = sand.u32 %s45, 1
        %s618 = smul.addr %s617, 64
        %s619 = scalar_lea.vmem [#allocation5], %s618
        %p620 = pneg %p58
        %p621 = pneg %p55
        %s622 = sand.u32 %s37, 1
        %s623 = scalar_lea.sflag [#allocation9], %s622
        %s624 = sand.u32 %s71, 1
        %s625 = smul.addr %s624, 256
        %s626 = scalar_lea.vmem [#allocation8], %s625
        %p627 = pneg %p84
        %p628 = pneg %p81
        %s629 = sand.u32 %s37, 1
        %s630 = scalar_lea.sflag [#allocation9], %s629
        %s631 = sand.u32 %s97, 1
        %s632 = smul.addr %s631, 256
        %s633 = scalar_lea.vmem [#allocation10], %s632
        %p634 = pneg %p110
        %p635 = pneg %p107
        %s636 = sand.u32 %s37, 1
        %s637 = scalar_lea.sflag [#allocation12], %s636
        %s638 = sand.u32 %s123, 1
        %s639 = smul.addr %s638, 2
        %s640 = scalar_lea.vmem [#allocation11], %s639
        %p641 = pneg %p136
        %p642 = pneg %p133
        %s643 = sand.u32 %s37, 1
        %s644 = scalar_lea.sflag [#allocation12], %s643
        %s645 = sand.u32 %s149, 1
        %s646 = smul.addr %s645, 256
        %s647 = scalar_lea.vmem [#allocation13], %s646
        %p648 = pneg %p162
        %p649 = pneg %p159
        %s650 = sand.u32 %s37, 1
        %s651 = scalar_lea.sflag [#allocation15], %s650
        %s652 = sand.u32 %s175, 1
        %s653 = smul.addr %s652, 2
        %s654 = scalar_lea.vmem [#allocation14], %s653
        %p655 = pneg %p188
        %p656 = pneg %p185
        %s657 = sand.u32 %s37, 1
        %s658 = scalar_lea.sflag [#allocation15], %s657
        %s659 = sand.u32 %s201, 1
        %s660 = smul.addr %s659, 2304
        %s661 = scalar_lea.vmem [#allocation16], %s660
        %p662 = pneg %p214
        %p663 = pneg %p211
        %s664 = sand.u32 %s37, 1
        %s665 = scalar_lea.sflag [#allocation18], %s664
        %s666 = sand.u32 %s227, 1
        %s667 = smul.addr %s666, 2
        %s668 = scalar_lea.vmem [#allocation17], %s667
        %p669 = pneg %p240
        %p670 = pneg %p237
        %s671 = sand.u32 %s37, 1
        %s672 = scalar_lea.sflag [#allocation18], %s671
        %s673 = sand.u32 %s253, 1
        %s674 = smul.addr %s673, 2
        %s675 = scalar_lea.vmem [#allocation19], %s674
        %p676 = pneg %p266
        %p677 = pneg %p263
        %p678 = pneg %p287
        %p679 = pneg %p284
        %p680 = pneg %p313
        %p681 = pneg %p310
        %p682 = scmp.lt.s32.totalorder %s37, 2
        %s683 = scalar_select %p682, %s37, 2
        %s684 = smul.addr %s683, 13
        %s685 = smul.addr %s684, 8
        %s686 = scalar_lea.vmem %s10, %s685
        %p687 = scmp.lt.s32.totalorder %s37, 2
        %s688 = scalar_select %p687, %s37, 2
        %s689 = smul.addr %s688, 13
        %s690 = smul.addr %s689, 8
        %s691 = scalar_lea.vmem %s10, %s690
        %v692 = vld [vmem:[%s533] sm:$0xff]
        %v693 = vld [vmem:[%s533 + $0x8] sm:$0xff]
        %v694 = vld [vmem:[%s533 + $0x10] sm:$0xff]
        %v695 = vld [vmem:[%s533 + $0x18] sm:$0xff]
        %v696 = vld [vmem:[%s533 + $0x20] sm:$0xff]
        %v697 = vld [vmem:[%s533 + $0x28] sm:$0xff]
        %v698 = vld [vmem:[%s533 + $0x30] sm:$0xff]
        %v699 = vld [vmem:[%s533 + $0x38] sm:$0xff]
        %v700 = vpack.c.bf16 %v694, %v692
        %v701 = vpack.c.bf16 %v695, %v693
        %v702 = vpack.c.bf16 %v698, %v696
        %v703 = vpack.c.bf16 %v699, %v697
        %v704 = vld [vmem:[%s551] sm:$0xff]
        %v705 = vld [vmem:[%s551 + $0x8] sm:$0xff]
        %v706 = vld [vmem:[%s551 + $0x10] sm:$0xff]
        %v707 = vld [vmem:[%s551 + $0x18] sm:$0xff]
        %v708 = vld [vmem:[%s551 + $0x20] sm:$0xff]
        %v709 = vld [vmem:[%s551 + $0x28] sm:$0xff]
        %v710 = vld [vmem:[%s551 + $0x30] sm:$0xff]
        %v711 = vld [vmem:[%s551 + $0x38] sm:$0xff]
        %v712 = vld [vmem:[%s551 + $0x40] sm:$0xff]
        %v713 = vld [vmem:[%s551 + $0x48] sm:$0xff]
        %v714 = vld [vmem:[%s551 + $0x50] sm:$0xff]
        %v715 = vld [vmem:[%s551 + $0x58] sm:$0xff]
        %v716 = vld [vmem:[%s551 + $0x60] sm:$0xff]
        %v717 = vld [vmem:[%s551 + $0x68] sm:$0xff]
        %v718 = vld [vmem:[%s551 + $0x70] sm:$0xff]
        %v719 = vld [vmem:[%s551 + $0x78] sm:$0xff]
        %v720 = vld [vmem:[%s551 + $0x80] sm:$0xff]
        %v721 = vld [vmem:[%s551 + $0x88] sm:$0xff]
        %v722 = vld [vmem:[%s551 + $0x90] sm:$0xff]
        %v723 = vld [vmem:[%s551 + $0x98] sm:$0xff]
        %v724 = vld [vmem:[%s551 + $0xa0] sm:$0xff]
        %v725 = vld [vmem:[%s551 + $0xa8] sm:$0xff]
        %v726 = vld [vmem:[%s551 + $0xb0] sm:$0xff]
        %v727 = vld [vmem:[%s551 + $0xb8] sm:$0xff]
        %v728 = vld [vmem:[%s551 + $0xc0] sm:$0xff]
        %v729 = vld [vmem:[%s551 + $0xc8] sm:$0xff]
        %v730 = vld [vmem:[%s551 + $0xd0] sm:$0xff]
        %v731 = vld [vmem:[%s551 + $0xd8] sm:$0xff]
        %v732 = vld [vmem:[%s551 + $0xe0] sm:$0xff]
        %v733 = vld [vmem:[%s551 + $0xe8] sm:$0xff]
        %v734 = vld [vmem:[%s551 + $0xf0] sm:$0xff]
        %v735 = vld [vmem:[%s551 + $0xf8] sm:$0xff]
        %v736 = vld [vmem:[%s560] sm:$0x3]
        %v738 = vlaneseq
        %v739 = vshrl.u32 %v738, 7
        %v740 = vsub.s32 0, %v739
        %v741 = vrot.slane %v736, %v740
        %v742 = vlaneseq
        %v743 = vshrl.u32 %v742, 7
        %v744 = vsub.s32 1, %v743
        %v745 = vrot.slane %v736, %v744
        %v780 = vunpack.c.l.b16 %v704
        %v781 = vunpack.c.h.b16 %v704
        %v782 = vunpack.c.l.b16 %v705
        %v783 = vunpack.c.h.b16 %v705
        %v784 = vunpack.c.l.b16 %v706
        %v785 = vunpack.c.h.b16 %v706
        %v786 = vunpack.c.l.b16 %v707
        %v787 = vunpack.c.h.b16 %v707
        %v788 = vunpack.c.l.b16 %v708
        %v789 = vunpack.c.h.b16 %v708
        %v790 = vunpack.c.l.b16 %v709
        %v791 = vunpack.c.h.b16 %v709
        %v792 = vunpack.c.l.b16 %v710
        %v793 = vunpack.c.h.b16 %v710
        %v794 = vunpack.c.l.b16 %v711
        %v795 = vunpack.c.h.b16 %v711
        %v796 = vunpack.c.l.b16 %v712
        %v797 = vunpack.c.h.b16 %v712
        %v798 = vunpack.c.l.b16 %v713
        %v799 = vunpack.c.h.b16 %v713
        %v800 = vunpack.c.l.b16 %v714
        %v801 = vunpack.c.h.b16 %v714
        %v802 = vunpack.c.l.b16 %v715
        %v803 = vunpack.c.h.b16 %v715
        %v804 = vunpack.c.l.b16 %v716
        %v805 = vunpack.c.h.b16 %v716
        %v806 = vunpack.c.l.b16 %v717
        %v807 = vunpack.c.h.b16 %v717
        %v808 = vunpack.c.l.b16 %v718
        %v809 = vunpack.c.h.b16 %v718
        %v810 = vunpack.c.l.b16 %v719
        %v811 = vunpack.c.h.b16 %v719
        %v812 = vunpack.c.l.b16 %v720
        %v813 = vunpack.c.h.b16 %v720
        %v814 = vunpack.c.l.b16 %v721
        %v815 = vunpack.c.h.b16 %v721
        %v816 = vunpack.c.l.b16 %v722
        %v817 = vunpack.c.h.b16 %v722
        %v818 = vunpack.c.l.b16 %v723
        %v819 = vunpack.c.h.b16 %v723
        %v820 = vunpack.c.l.b16 %v724
        %v821 = vunpack.c.h.b16 %v724
        %v822 = vunpack.c.l.b16 %v725
        %v823 = vunpack.c.h.b16 %v725
        %v824 = vunpack.c.l.b16 %v726
        %v825 = vunpack.c.h.b16 %v726
        %v826 = vunpack.c.l.b16 %v727
        %v827 = vunpack.c.h.b16 %v727
        %v828 = vunpack.c.l.b16 %v728
        %v829 = vunpack.c.h.b16 %v728
        %v830 = vunpack.c.l.b16 %v729
        %v831 = vunpack.c.h.b16 %v729
        %v832 = vunpack.c.l.b16 %v730
        %v833 = vunpack.c.h.b16 %v730
        %v834 = vunpack.c.l.b16 %v731
        %v835 = vunpack.c.h.b16 %v731
        %v836 = vunpack.c.l.b16 %v732
        %v837 = vunpack.c.h.b16 %v732
        %v838 = vunpack.c.l.b16 %v733
        %v839 = vunpack.c.h.b16 %v733
        %v840 = vunpack.c.l.b16 %v734
        %v841 = vunpack.c.h.b16 %v734
        %v842 = vunpack.c.l.b16 %v735
        %v843 = vunpack.c.h.b16 %v735
        %v844 = vpack.c.b16 %v782, %v780
        %v845 = vpack.c.b16 %v783, %v781
        %v846 = vpack.c.b16 %v786, %v784
        %v847 = vpack.c.b16 %v787, %v785
        %v848 = vpack.c.b16 %v790, %v788
        %v849 = vpack.c.b16 %v791, %v789
        %v850 = vpack.c.b16 %v794, %v792
        %v851 = vpack.c.b16 %v795, %v793
        %v852 = vpack.c.b16 %v798, %v796
        %v853 = vpack.c.b16 %v799, %v797
        %v854 = vpack.c.b16 %v802, %v800
        %v855 = vpack.c.b16 %v803, %v801
        %v856 = vpack.c.b16 %v806, %v804
        %v857 = vpack.c.b16 %v807, %v805
        %v858 = vpack.c.b16 %v810, %v808
        %v859 = vpack.c.b16 %v811, %v809
        %v860 = vpack.c.b16 %v814, %v812
        %v861 = vpack.c.b16 %v815, %v813
        %v862 = vpack.c.b16 %v818, %v816
        %v863 = vpack.c.b16 %v819, %v817
        %v864 = vpack.c.b16 %v822, %v820
        %v865 = vpack.c.b16 %v823, %v821
        %v866 = vpack.c.b16 %v826, %v824
        %v867 = vpack.c.b16 %v827, %v825
        %v868 = vpack.c.b16 %v830, %v828
        %v869 = vpack.c.b16 %v831, %v829
        %v870 = vpack.c.b16 %v834, %v832
        %v871 = vpack.c.b16 %v835, %v833
        %v872 = vpack.c.b16 %v838, %v836
        %v873 = vpack.c.b16 %v839, %v837
        %v874 = vpack.c.b16 %v842, %v840
        %v875 = vpack.c.b16 %v843, %v841
        %908 = vmatprep.subr.bf16.mxu0 %v845
        %909 = vmatpush1.bf16.msra.mxu0 %v844
        %910 = vmatprep.subr.bf16.mxu0 %v847
        %911 = vmatpush1.bf16.msra.mxu0 %v846
        %912 = vmatprep.subr.bf16.mxu0 %v849
        %913 = vmatpush1.bf16.msra.mxu0 %v848
        %914 = vmatprep.subr.bf16.mxu0 %v851
        %915 = vmatpush1.bf16.msra.mxu0 %v850
        %916 = vmatprep.subr.bf16.mxu0 %v853
        %917 = vmatpush1.bf16.msra.mxu0 %v852
        %918 = vmatprep.subr.bf16.mxu0 %v855
        %919 = vmatpush1.bf16.msra.mxu0 %v854
        %920 = vmatprep.subr.bf16.mxu0 %v857
        %921 = vmatpush1.bf16.msra.mxu0 %v856
        %922 = vmatprep.subr.bf16.mxu0 %v859
        %923 = vmatpush1.bf16.msra.mxu0 %v858
        %924 = vmatprep.subr.bf16.mxu0 %v861
        %925 = vmatpush1.bf16.msra.mxu0 %v860
        %926 = vmatprep.subr.bf16.mxu0 %v863
        %927 = vmatpush1.bf16.msra.mxu0 %v862
        %928 = vmatprep.subr.bf16.mxu0 %v865
        %929 = vmatpush1.bf16.msra.mxu0 %v864
        %930 = vmatprep.subr.bf16.mxu0 %v867
        %931 = vmatpush1.bf16.msra.mxu0 %v866
        %932 = vmatprep.subr.bf16.mxu0 %v869
        %933 = vmatpush1.bf16.msra.mxu0 %v868
        %934 = vmatprep.subr.bf16.mxu0 %v871
        %935 = vmatpush1.bf16.msra.mxu0 %v870
        %936 = vmatprep.subr.bf16.mxu0 %v873
        %937 = vmatpush1.bf16.msra.mxu0 %v872
        %938 = vmatprep.subr.bf16.mxu0 %v875
        %939 = vmatpush1.bf16.msra.mxu0 %v874
        %940 = vmatprep.mubr.bf16.mxu0 %v701
        %941 = vmatmul.mubr.bf16.gmra.mrb[0].mxu0 %v700
        %v942 = vpop.f32.mrb[0].mxu0
        %v943 = vadd.f32 %v741, %v942
        %v944 = vpop.f32.mrb[0].mxu0
        %v945 = vadd.f32 %v745, %v944
        %v946 = vpop.f32.mrb[0].mxu0
        %v947 = vadd.f32 %v741, %v946
        %v948 = vpop.f32.mrb[0].mxu0
        %v949 = vadd.f32 %v745, %v948
        %950 = vmatprep.mubr.bf16.mxu0 %v703
        %951 = vmatmul.mubr.bf16.gmra.mrb[0].mxu0 %v702
        %v952 = vpop.f32.mrb[0].mxu0
        %v953 = vadd.f32 %v741, %v952
        %v954 = vpop.f32.mrb[0].mxu0
        %v955 = vadd.f32 %v745, %v954
        %v956 = vpop.f32.mrb[0].mxu0
        %v957 = vadd.f32 %v741, %v956
        %v958 = vpop.f32.mrb[0].mxu0
        %v959 = vadd.f32 %v745, %v958
        %960 = vdwg.mxu0
        %v961 = vmax.f32 %v943, 0.0
        %v962 = vmax.f32 %v945, 0.0
        %v963 = vmax.f32 %v947, 0.0
        %v964 = vmax.f32 %v949, 0.0
        %v965 = vmax.f32 %v953, 0.0
        %v966 = vmax.f32 %v955, 0.0
        %v967 = vmax.f32 %v957, 0.0
        %v968 = vmax.f32 %v959, 0.0
        %969 = vst [vmem:[#allocation2] sm:$0xff] %v961
        %970 = vst [vmem:[#allocation2 + $0x8] sm:$0xff] %v962
        %971 = vst [vmem:[#allocation2 + $0x10] sm:$0xff] %v963
        %972 = vst [vmem:[#allocation2 + $0x18] sm:$0xff] %v964
        %973 = vst [vmem:[#allocation2 + $0x20] sm:$0xff] %v965
        %974 = vst [vmem:[#allocation2 + $0x28] sm:$0xff] %v966
        %975 = vst [vmem:[#allocation2 + $0x30] sm:$0xff] %v967
        %976 = vst [vmem:[#allocation2 + $0x38] sm:$0xff] %v968
        %v977 = vld [vmem:[%s542] sm:$0xff]
        %v978 = vld [vmem:[%s542 + $0x8] sm:$0xff]
        %v979 = vld [vmem:[%s542 + $0x10] sm:$0xff]
        %v980 = vld [vmem:[%s542 + $0x18] sm:$0xff]
        %v981 = vld [vmem:[%s542 + $0x20] sm:$0xff]
        %v982 = vld [vmem:[%s542 + $0x28] sm:$0xff]
        %v983 = vld [vmem:[%s542 + $0x30] sm:$0xff]
        %v984 = vld [vmem:[%s542 + $0x38] sm:$0xff]
        %v985 = vld [vmem:[%s542 + $0x40] sm:$0xff]
        %v986 = vld [vmem:[%s542 + $0x48] sm:$0xff]
        %v987 = vld [vmem:[%s542 + $0x50] sm:$0xff]
        %v988 = vld [vmem:[%s542 + $0x58] sm:$0xff]
        %v989 = vld [vmem:[%s542 + $0x60] sm:$0xff]
        %v990 = vld [vmem:[%s542 + $0x68] sm:$0xff]
        %v991 = vld [vmem:[%s542 + $0x70] sm:$0xff]
        %v992 = vld [vmem:[%s542 + $0x78] sm:$0xff]
        %v993 = vld [vmem:[%s542 + $0x80] sm:$0xff]
        %v994 = vld [vmem:[%s542 + $0x88] sm:$0xff]
        %v995 = vld [vmem:[%s542 + $0x90] sm:$0xff]
        %v996 = vld [vmem:[%s542 + $0x98] sm:$0xff]
        %v997 = vld [vmem:[%s542 + $0xa0] sm:$0xff]
        %v998 = vld [vmem:[%s542 + $0xa8] sm:$0xff]
        %v999 = vld [vmem:[%s542 + $0xb0] sm:$0xff]
        %v1000 = vld [vmem:[%s542 + $0xb8] sm:$0xff]
        %v1001 = vld [vmem:[%s542 + $0xc0] sm:$0xff]
        %v1002 = vld [vmem:[%s542 + $0xc8] sm:$0xff]
        %v1003 = vld [vmem:[%s542 + $0xd0] sm:$0xff]
        %v1004 = vld [vmem:[%s542 + $0xd8] sm:$0xff]
        %v1005 = vld [vmem:[%s542 + $0xe0] sm:$0xff]
        %v1006 = vld [vmem:[%s542 + $0xe8] sm:$0xff]
        %v1007 = vld [vmem:[%s542 + $0xf0] sm:$0xff]
        %v1008 = vld [vmem:[%s542 + $0xf8] sm:$0xff]
        %v1009 = vpack.c.bf16 %v979, %v977
        %v1010 = vpack.c.bf16 %v980, %v978
        %v1011 = vpack.c.bf16 %v983, %v981
        %v1012 = vpack.c.bf16 %v984, %v982
        %v1013 = vpack.c.bf16 %v987, %v985
        %v1014 = vpack.c.bf16 %v988, %v986
        %v1015 = vpack.c.bf16 %v991, %v989
        %v1016 = vpack.c.bf16 %v992, %v990
        %v1017 = vpack.c.bf16 %v995, %v993
        %v1018 = vpack.c.bf16 %v996, %v994
        %v1019 = vpack.c.bf16 %v999, %v997
        %v1020 = vpack.c.bf16 %v1000, %v998
        %v1021 = vpack.c.bf16 %v1003, %v1001
        %v1022 = vpack.c.bf16 %v1004, %v1002
        %v1023 = vpack.c.bf16 %v1007, %v1005
        %v1024 = vpack.c.bf16 %v1008, %v1006
        %v1025 = vld [vmem:[%s569] sm:$0xff]
        %v1026 = vld [vmem:[%s569 + $0x8] sm:$0xff]
        %v1027 = vld [vmem:[%s569 + $0x10] sm:$0xff]
        %v1028 = vld [vmem:[%s569 + $0x18] sm:$0xff]
        %v1029 = vld [vmem:[%s569 + $0x20] sm:$0xff]
        %v1030 = vld [vmem:[%s569 + $0x28] sm:$0xff]
        %v1031 = vld [vmem:[%s569 + $0x30] sm:$0xff]
        %v1032 = vld [vmem:[%s569 + $0x38] sm:$0xff]
        %v1033 = vld [vmem:[%s569 + $0x40] sm:$0xff]
        %v1034 = vld [vmem:[%s569 + $0x48] sm:$0xff]
        %v1035 = vld [vmem:[%s569 + $0x50] sm:$0xff]
        %v1036 = vld [vmem:[%s569 + $0x58] sm:$0xff]
        %v1037 = vld [vmem:[%s569 + $0x60] sm:$0xff]
        %v1038 = vld [vmem:[%s569 + $0x68] sm:$0xff]
        %v1039 = vld [vmem:[%s569 + $0x70] sm:$0xff]
        %v1040 = vld [vmem:[%s569 + $0x78] sm:$0xff]
        %v1041 = vld [vmem:[%s569 + $0x80] sm:$0xff]
        %v1042 = vld [vmem:[%s569 + $0x88] sm:$0xff]
        %v1043 = vld [vmem:[%s569 + $0x90] sm:$0xff]
        %v1044 = vld [vmem:[%s569 + $0x98] sm:$0xff]
        %v1045 = vld [vmem:[%s569 + $0xa0] sm:$0xff]
        %v1046 = vld [vmem:[%s569 + $0xa8] sm:$0xff]
        %v1047 = vld [vmem:[%s569 + $0xb0] sm:$0xff]
        %v1048 = vld [vmem:[%s569 + $0xb8] sm:$0xff]
        %v1049 = vld [vmem:[%s569 + $0xc0] sm:$0xff]
        %v1050 = vld [vmem:[%s569 + $0xc8] sm:$0xff]
        %v1051 = vld [vmem:[%s569 + $0xd0] sm:$0xff]
        %v1052 = vld [vmem:[%s569 + $0xd8] sm:$0xff]
        %v1053 = vld [vmem:[%s569 + $0xe0] sm:$0xff]
        %v1054 = vld [vmem:[%s569 + $0xe8] sm:$0xff]
        %v1055 = vld [vmem:[%s569 + $0xf0] sm:$0xff]
        %v1056 = vld [vmem:[%s569 + $0xf8] sm:$0xff]
        %v1057 = vld [vmem:[%s578] sm:$0x3]
        %v1059 = vlaneseq
        %v1060 = vshrl.u32 %v1059, 7
        %v1061 = vsub.s32 0, %v1060
        %v1062 = vrot.slane %v1057, %v1061
        %v1063 = vlaneseq
        %v1064 = vshrl.u32 %v1063, 7
        %v1065 = vsub.s32 1, %v1064
        %v1066 = vrot.slane %v1057, %v1065
        %v1101 = vunpack.c.l.b16 %v1025
        %v1102 = vunpack.c.h.b16 %v1025
        %v1103 = vunpack.c.l.b16 %v1026
        %v1104 = vunpack.c.h.b16 %v1026
        %v1105 = vunpack.c.l.b16 %v1027
        %v1106 = vunpack.c.h.b16 %v1027
        %v1107 = vunpack.c.l.b16 %v1028
        %v1108 = vunpack.c.h.b16 %v1028
        %v1109 = vunpack.c.l.b16 %v1029
        %v1110 = vunpack.c.h.b16 %v1029
        %v1111 = vunpack.c.l.b16 %v1030
        %v1112 = vunpack.c.h.b16 %v1030
        %v1113 = vunpack.c.l.b16 %v1031
        %v1114 = vunpack.c.h.b16 %v1031
        %v1115 = vunpack.c.l.b16 %v1032
        %v1116 = vunpack.c.h.b16 %v1032
        %v1117 = vunpack.c.l.b16 %v1033
        %v1118 = vunpack.c.h.b16 %v1033
        %v1119 = vunpack.c.l.b16 %v1034
        %v1120 = vunpack.c.h.b16 %v1034
        %v1121 = vunpack.c.l.b16 %v1035
        %v1122 = vunpack.c.h.b16 %v1035
        %v1123 = vunpack.c.l.b16 %v1036
        %v1124 = vunpack.c.h.b16 %v1036
        %v1125 = vunpack.c.l.b16 %v1037
        %v1126 = vunpack.c.h.b16 %v1037
        %v1127 = vunpack.c.l.b16 %v1038
        %v1128 = vunpack.c.h.b16 %v1038
        %v1129 = vunpack.c.l.b16 %v1039
        %v1130 = vunpack.c.h.b16 %v1039
        %v1131 = vunpack.c.l.b16 %v1040
        %v1132 = vunpack.c.h.b16 %v1040
        %v1133 = vunpack.c.l.b16 %v1041
        %v1134 = vunpack.c.h.b16 %v1041
        %v1135 = vunpack.c.l.b16 %v1042
        %v1136 = vunpack.c.h.b16 %v1042
        %v1137 = vunpack.c.l.b16 %v1043
        %v1138 = vunpack.c.h.b16 %v1043
        %v1139 = vunpack.c.l.b16 %v1044
        %v1140 = vunpack.c.h.b16 %v1044
        %v1141 = vunpack.c.l.b16 %v1045
        %v1142 = vunpack.c.h.b16 %v1045
        %v1143 = vunpack.c.l.b16 %v1046
        %v1144 = vunpack.c.h.b16 %v1046
        %v1145 = vunpack.c.l.b16 %v1047
        %v1146 = vunpack.c.h.b16 %v1047
        %v1147 = vunpack.c.l.b16 %v1048
        %v1148 = vunpack.c.h.b16 %v1048
        %v1149 = vunpack.c.l.b16 %v1049
        %v1150 = vunpack.c.h.b16 %v1049
        %v1151 = vunpack.c.l.b16 %v1050
        %v1152 = vunpack.c.h.b16 %v1050
        %v1153 = vunpack.c.l.b16 %v1051
        %v1154 = vunpack.c.h.b16 %v1051
        %v1155 = vunpack.c.l.b16 %v1052
        %v1156 = vunpack.c.h.b16 %v1052
        %v1157 = vunpack.c.l.b16 %v1053
        %v1158 = vunpack.c.h.b16 %v1053
        %v1159 = vunpack.c.l.b16 %v1054
        %v1160 = vunpack.c.h.b16 %v1054
        %v1161 = vunpack.c.l.b16 %v1055
        %v1162 = vunpack.c.h.b16 %v1055
        %v1163 = vunpack.c.l.b16 %v1056
        %v1164 = vunpack.c.h.b16 %v1056
        %v1165 = vpack.c.b16 %v1103, %v1101
        %v1166 = vpack.c.b16 %v1104, %v1102
        %v1167 = vpack.c.b16 %v1107, %v1105
        %v1168 = vpack.c.b16 %v1108, %v1106
        %v1169 = vpack.c.b16 %v1111, %v1109
        %v1170 = vpack.c.b16 %v1112, %v1110
        %v1171 = vpack.c.b16 %v1115, %v1113
        %v1172 = vpack.c.b16 %v1116, %v1114
        %v1173 = vpack.c.b16 %v1119, %v1117
        %v1174 = vpack.c.b16 %v1120, %v1118
        %v1175 = vpack.c.b16 %v1123, %v1121
        %v1176 = vpack.c.b16 %v1124, %v1122
        %v1177 = vpack.c.b16 %v1127, %v1125
        %v1178 = vpack.c.b16 %v1128, %v1126
        %v1179 = vpack.c.b16 %v1131, %v1129
        %v1180 = vpack.c.b16 %v1132, %v1130
        %v1181 = vpack.c.b16 %v1135, %v1133
        %v1182 = vpack.c.b16 %v1136, %v1134
        %v1183 = vpack.c.b16 %v1139, %v1137
        %v1184 = vpack.c.b16 %v1140, %v1138
        %v1185 = vpack.c.b16 %v1143, %v1141
        %v1186 = vpack.c.b16 %v1144, %v1142
        %v1187 = vpack.c.b16 %v1147, %v1145
        %v1188 = vpack.c.b16 %v1148, %v1146
        %v1189 = vpack.c.b16 %v1151, %v1149
        %v1190 = vpack.c.b16 %v1152, %v1150
        %v1191 = vpack.c.b16 %v1155, %v1153
        %v1192 = vpack.c.b16 %v1156, %v1154
        %v1193 = vpack.c.b16 %v1159, %v1157
        %v1194 = vpack.c.b16 %v1160, %v1158
        %v1195 = vpack.c.b16 %v1163, %v1161
        %v1196 = vpack.c.b16 %v1164, %v1162
        %1229 = vmatprep.subr.bf16.mxu0 %v1166
        %1230 = vmatpush1.bf16.msra.mxu0 %v1165
        %1231 = vmatprep.subr.bf16.mxu0 %v1168
        %1232 = vmatpush1.bf16.msra.mxu0 %v1167
        %1233 = vmatprep.subr.bf16.mxu0 %v1170
        %1234 = vmatpush1.bf16.msra.mxu0 %v1169
        %1235 = vmatprep.subr.bf16.mxu0 %v1172
        %1236 = vmatpush1.bf16.msra.mxu0 %v1171
        %1237 = vmatprep.subr.bf16.mxu0 %v1174
        %1238 = vmatpush1.bf16.msra.mxu0 %v1173
        %1239 = vmatprep.subr.bf16.mxu0 %v1176
        %1240 = vmatpush1.bf16.msra.mxu0 %v1175
        %1241 = vmatprep.subr.bf16.mxu0 %v1178
        %1242 = vmatpush1.bf16.msra.mxu0 %v1177
        %1243 = vmatprep.subr.bf16.mxu0 %v1180
        %1244 = vmatpush1.bf16.msra.mxu0 %v1179
        %1245 = vmatprep.subr.bf16.mxu0 %v1182
        %1246 = vmatpush1.bf16.msra.mxu0 %v1181
        %1247 = vmatprep.subr.bf16.mxu0 %v1184
        %1248 = vmatpush1.bf16.msra.mxu0 %v1183
        %1249 = vmatprep.subr.bf16.mxu0 %v1186
        %1250 = vmatpush1.bf16.msra.mxu0 %v1185
        %1251 = vmatprep.subr.bf16.mxu0 %v1188
        %1252 = vmatpush1.bf16.msra.mxu0 %v1187
        %1253 = vmatprep.subr.bf16.mxu0 %v1190
        %1254 = vmatpush1.bf16.msra.mxu0 %v1189
        %1255 = vmatprep.subr.bf16.mxu0 %v1192
        %1256 = vmatpush1.bf16.msra.mxu0 %v1191
        %1257 = vmatprep.subr.bf16.mxu0 %v1194
        %1258 = vmatpush1.bf16.msra.mxu0 %v1193
        %1259 = vmatprep.subr.bf16.mxu0 %v1196
        %1260 = vmatpush1.bf16.msra.mxu0 %v1195
        %1261 = vmatprep.mubr.bf16.mxu0 %v1010
        %1262 = vmatmul.mubr.bf16.gmra.mrb[0].mxu0 %v1009
        %v1263 = vpop.f32.mrb[0].mxu0
        %v1264 = vadd.f32 %v1062, %v1263
        %v1265 = vpop.f32.mrb[0].mxu0
        %v1266 = vadd.f32 %v1066, %v1265
        %v1267 = vpop.f32.mrb[0].mxu0
        %v1268 = vadd.f32 %v1062, %v1267
        %v1269 = vpop.f32.mrb[0].mxu0
        %v1270 = vadd.f32 %v1066, %v1269
        %1271 = vmatprep.mubr.bf16.mxu0 %v1012
        %1272 = vmatmul.mubr.bf16.gmra.mrb[0].mxu0 %v1011
        %v1273 = vpop.f32.mrb[0].mxu0
        %v1274 = vadd.f32 %v1062, %v1273
        %v1275 = vpop.f32.mrb[0].mxu0
        %v1276 = vadd.f32 %v1066, %v1275
        %v1277 = vpop.f32.mrb[0].mxu0
        %v1278 = vadd.f32 %v1062, %v1277
        %v1279 = vpop.f32.mrb[0].mxu0
        %v1280 = vadd.f32 %v1066, %v1279
        %1281 = vmatprep.mubr.bf16.mxu0 %v1014
        %1282 = vmatmul.mubr.bf16.gmra.mrb[0].mxu0 %v1013
        %v1283 = vpop.f32.mrb[0].mxu0
        %v1284 = vadd.f32 %v1062, %v1283
        %v1285 = vpop.f32.mrb[0].mxu0
        %v1286 = vadd.f32 %v1066, %v1285
        %v1287 = vpop.f32.mrb[0].mxu0
        %v1288 = vadd.f32 %v1062, %v1287
        %v1289 = vpop.f32.mrb[0].mxu0
        %v1290 = vadd.f32 %v1066, %v1289
        %1291 = vmatprep.mubr.bf16.mxu0 %v1016
        %1292 = vmatmul.mubr.bf16.gmra.mrb[0].mxu0 %v1015
        %v1293 = vpop.f32.mrb[0].mxu0
        %v1294 = vadd.f32 %v1062, %v1293
        %v1295 = vpop.f32.mrb[0].mxu0
        %v1296 = vadd.f32 %v1066, %v1295
        %v1297 = vpop.f32.mrb[0].mxu0
        %v1298 = vadd.f32 %v1062, %v1297
        %v1299 = vpop.f32.mrb[0].mxu0
        %v1300 = vadd.f32 %v1066, %v1299
        %1301 = vmatprep.mubr.bf16.mxu0 %v1018
        %1302 = vmatmul.mubr.bf16.gmra.mrb[0].mxu0 %v1017
        %v1303 = vpop.f32.mrb[0].mxu0
        %v1304 = vadd.f32 %v1062, %v1303
        %v1305 = vpop.f32.mrb[0].mxu0
        %v1306 = vadd.f32 %v1066, %v1305
        %v1307 = vpop.f32.mrb[0].mxu0
        %v1308 = vadd.f32 %v1062, %v1307
        %v1309 = vpop.f32.mrb[0].mxu0
        %v1310 = vadd.f32 %v1066, %v1309
        %1311 = vmatprep.mubr.bf16.mxu0 %v1020
        %1312 = vmatmul.mubr.bf16.gmra.mrb[0].mxu0 %v1019
        %v1313 = vpop.f32.mrb[0].mxu0
        %v1314 = vadd.f32 %v1062, %v1313
        %v1315 = vpop.f32.mrb[0].mxu0
        %v1316 = vadd.f32 %v1066, %v1315
        %v1317 = vpop.f32.mrb[0].mxu0
        %v1318 = vadd.f32 %v1062, %v1317
        %v1319 = vpop.f32.mrb[0].mxu0
        %v1320 = vadd.f32 %v1066, %v1319
        %1321 = vmatprep.mubr.bf16.mxu0 %v1022
        %1322 = vmatmul.mubr.bf16.gmra.mrb[0].mxu0 %v1021
        %v1323 = vpop.f32.mrb[0].mxu0
        %v1324 = vadd.f32 %v1062, %v1323
        %v1325 = vpop.f32.mrb[0].mxu0
        %v1326 = vadd.f32 %v1066, %v1325
        %v1327 = vpop.f32.mrb[0].mxu0
        %v1328 = vadd.f32 %v1062, %v1327
        %v1329 = vpop.f32.mrb[0].mxu0
        %v1330 = vadd.f32 %v1066, %v1329
        %1331 = vmatprep.mubr.bf16.mxu0 %v1024
        %1332 = vmatmul.mubr.bf16.gmra.mrb[0].mxu0 %v1023
        %v1333 = vpop.f32.mrb[0].mxu0
        %v1334 = vadd.f32 %v1062, %v1333
        %v1335 = vpop.f32.mrb[0].mxu0
        %v1336 = vadd.f32 %v1066, %v1335
        %v1337 = vpop.f32.mrb[0].mxu0
        %v1338 = vadd.f32 %v1062, %v1337
        %v1339 = vpop.f32.mrb[0].mxu0
        %v1340 = vadd.f32 %v1066, %v1339
        %1341 = vdwg.mxu0
        %v1342 = vmax.f32 %v1264, 0.0
        %v1343 = vmax.f32 %v1266, 0.0
        %v1344 = vmax.f32 %v1268, 0.0
        %v1345 = vmax.f32 %v1270, 0.0
        %v1346 = vmax.f32 %v1274, 0.0
        %v1347 = vmax.f32 %v1276, 0.0
        %v1348 = vmax.f32 %v1278, 0.0
        %v1349 = vmax.f32 %v1280, 0.0
        %v1350 = vmax.f32 %v1284, 0.0
        %v1351 = vmax.f32 %v1286, 0.0
        %v1352 = vmax.f32 %v1288, 0.0
        %v1353 = vmax.f32 %v1290, 0.0
        %v1354 = vmax.f32 %v1294, 0.0
        %v1355 = vmax.f32 %v1296, 0.0
        %v1356 = vmax.f32 %v1298, 0.0
        %v1357 = vmax.f32 %v1300, 0.0
        %v1358 = vmax.f32 %v1304, 0.0
        %v1359 = vmax.f32 %v1306, 0.0
        %v1360 = vmax.f32 %v1308, 0.0
        %v1361 = vmax.f32 %v1310, 0.0
        %v1362 = vmax.f32 %v1314, 0.0
        %v1363 = vmax.f32 %v1316, 0.0
        %v1364 = vmax.f32 %v1318, 0.0
        %v1365 = vmax.f32 %v1320, 0.0
        %v1366 = vmax.f32 %v1324, 0.0
        %v1367 = vmax.f32 %v1326, 0.0
        %v1368 = vmax.f32 %v1328, 0.0
        %v1369 = vmax.f32 %v1330, 0.0
        %v1370 = vmax.f32 %v1334, 0.0
        %v1371 = vmax.f32 %v1336, 0.0
        %v1372 = vmax.f32 %v1338, 0.0
        %v1373 = vmax.f32 %v1340, 0.0
        %1374 = vst [vmem:[#allocation3] sm:$0xff] %v1342
        %1375 = vst [vmem:[#allocation3 + $0x8] sm:$0xff] %v1343
        %1376 = vst [vmem:[#allocation3 + $0x10] sm:$0xff] %v1344
        %1377 = vst [vmem:[#allocation3 + $0x18] sm:$0xff] %v1345
        %1378 = vst [vmem:[#allocation3 + $0x20] sm:$0xff] %v1346
        %1379 = vst [vmem:[#allocation3 + $0x28] sm:$0xff] %v1347
        %1380 = vst [vmem:[#allocation3 + $0x30] sm:$0xff] %v1348
        %1381 = vst [vmem:[#allocation3 + $0x38] sm:$0xff] %v1349
        %1382 = vst [vmem:[#allocation3 + $0x40] sm:$0xff] %v1350
        %1383 = vst [vmem:[#allocation3 + $0x48] sm:$0xff] %v1351
        %1384 = vst [vmem:[#allocation3 + $0x50] sm:$0xff] %v1352
        %1385 = vst [vmem:[#allocation3 + $0x58] sm:$0xff] %v1353
        %1386 = vst [vmem:[#allocation3 + $0x60] sm:$0xff] %v1354
        %1387 = vst [vmem:[#allocation3 + $0x68] sm:$0xff] %v1355
        %1388 = vst [vmem:[#allocation3 + $0x70] sm:$0xff] %v1356
        %1389 = vst [vmem:[#allocation3 + $0x78] sm:$0xff] %v1357
        %1390 = vst [vmem:[#allocation3 + $0x80] sm:$0xff] %v1358
        %1391 = vst [vmem:[#allocation3 + $0x88] sm:$0xff] %v1359
        %1392 = vst [vmem:[#allocation3 + $0x90] sm:$0xff] %v1360
        %1393 = vst [vmem:[#allocation3 + $0x98] sm:$0xff] %v1361
        %1394 = vst [vmem:[#allocation3 + $0xa0] sm:$0xff] %v1362
        %1395 = vst [vmem:[#allocation3 + $0xa8] sm:$0xff] %v1363
        %1396 = vst [vmem:[#allocation3 + $0xb0] sm:$0xff] %v1364
        %1397 = vst [vmem:[#allocation3 + $0xb8] sm:$0xff] %v1365
        %1398 = vst [vmem:[#allocation3 + $0xc0] sm:$0xff] %v1366
        %1399 = vst [vmem:[#allocation3 + $0xc8] sm:$0xff] %v1367
        %1400 = vst [vmem:[#allocation3 + $0xd0] sm:$0xff] %v1368
        %1401 = vst [vmem:[#allocation3 + $0xd8] sm:$0xff] %v1369
        %1402 = vst [vmem:[#allocation3 + $0xe0] sm:$0xff] %v1370
        %1403 = vst [vmem:[#allocation3 + $0xe8] sm:$0xff] %v1371
        %1404 = vst [vmem:[#allocation3 + $0xf0] sm:$0xff] %v1372
        %1405 = vst [vmem:[#allocation3 + $0xf8] sm:$0xff] %v1373
        %1406 = vst [vmem:[#allocation4] sm:$0xff] 0.0
        %1407 = vst [vmem:[#allocation4 + $0x8] sm:$0xff] 0.0
        %1408 = vst [vmem:[#allocation4 + $0x10] sm:$0xff] 0.0
        %1409 = vst [vmem:[#allocation4 + $0x18] sm:$0xff] 0.0
        %1410 = vst [vmem:[#allocation4 + $0x20] sm:$0xff] 0.0
        %1411 = vst [vmem:[#allocation4 + $0x28] sm:$0xff] 0.0
        %1412 = vst [vmem:[#allocation4 + $0x30] sm:$0xff] 0.0
        %1413 = vst [vmem:[#allocation4 + $0x38] sm:$0xff] 0.0
        %1414 = vst [vmem:[#allocation4 + $0x40] sm:$0xff] 0.0
        %1415 = vst [vmem:[#allocation4 + $0x48] sm:$0xff] 0.0
        %1416 = vst [vmem:[#allocation4 + $0x50] sm:$0xff] 0.0
        %1417 = vst [vmem:[#allocation4 + $0x58] sm:$0xff] 0.0
        %1418 = vst [vmem:[#allocation4 + $0x60] sm:$0xff] 0.0
        %1419 = vst [vmem:[#allocation4 + $0x68] sm:$0xff] 0.0
        %1420 = vst [vmem:[#allocation4 + $0x70] sm:$0xff] 0.0
        %1421 = vst [vmem:[#allocation4 + $0x78] sm:$0xff] 0.0
        %1422 = vst [vmem:[#allocation4 + $0x80] sm:$0xff] 0.0
        %1423 = vst [vmem:[#allocation4 + $0x88] sm:$0xff] 0.0
        %1424 = vst [vmem:[#allocation4 + $0x90] sm:$0xff] 0.0
        %1425 = vst [vmem:[#allocation4 + $0x98] sm:$0xff] 0.0
        %1426 = vst [vmem:[#allocation4 + $0xa0] sm:$0xff] 0.0
        %1427 = vst [vmem:[#allocation4 + $0xa8] sm:$0xff] 0.0
        %1428 = vst [vmem:[#allocation4 + $0xb0] sm:$0xff] 0.0
        %1429 = vst [vmem:[#allocation4 + $0xb8] sm:$0xff] 0.0
        %1430 = vst [vmem:[#allocation4 + $0xc0] sm:$0xff] 0.0
        %1431 = vst [vmem:[#allocation4 + $0xc8] sm:$0xff] 0.0
        %1432 = vst [vmem:[#allocation4 + $0xd0] sm:$0xff] 0.0
        %1433 = vst [vmem:[#allocation4 + $0xd8] sm:$0xff] 0.0
        %1434 = vst [vmem:[#allocation4 + $0xe0] sm:$0x3] 0.0
        %1435 = vst [vmem:[#allocation4 + $0xe8] sm:$0x3] 0.0
        %v1436 = vld [vmem:[#allocation3] sm:$0x1f]
        %v1437 = vld [vmem:[#allocation3 + $0x8] sm:$0x1f]
        %v1438 = vld [vmem:[#allocation2] ss:$8 sm:$0x3]
        %v1440 = vlaneseq
        %v1441 = vshrl.u32 %v1440, 7
        %v1442 = vsub.s32 0, %v1441
        %v1443 = vrot.slane %v1438, %v1442
        %v1444 = vlaneseq
        %v1445 = vshrl.u32 %v1444, 7
        %v1446 = vsub.s32 1, %v1445
        %v1447 = vrot.slane %v1438, %v1446
        %v1450 = vmul.f32 %v1436, %v1443
        %v1451 = vmul.f32 %v1437, %v1447
        %v1452 = vadd.f32 %v1450, 0.0
        %v1453 = vadd.f32 %v1451, 0.0
        %v1454 = vld [vmem:[#allocation3] sm:$0x3e]
        %v1455 = vld [vmem:[#allocation3 + $0x8] sm:$0x3e]
        %s1456 = scalar_lea.vmem [#allocation2], 1
        %v1457 = vld [vmem:[%s1456] ss:$8 sm:$0x3]
        %v1459 = vlaneseq
        %v1460 = vshrl.u32 %v1459, 7
        %v1461 = vsub.s32 0, %v1460
        %v1462 = vrot.slane %v1457, %v1461
        %v1463 = vlaneseq
        %v1464 = vshrl.u32 %v1463, 7
        %v1465 = vsub.s32 1, %v1464
        %v1466 = vrot.slane %v1457, %v1465
        %v1469 = vmul.f32 %v1454, %v1462
        %v1470 = vmul.f32 %v1455, %v1466
        %v1473 = vrot.slane %v1469, 1
        %v1474 = vrot.slane %v1470, 1
        %v1477 = vadd.f32 %v1452, %v1473
        %v1478 = vadd.f32 %v1453, %v1474
        %v1479 = vld [vmem:[#allocation3] sm:$0x7c]
        %v1480 = vld [vmem:[#allocation3 + $0x8] sm:$0x7c]
        %s1481 = scalar_lea.vmem [#allocation2], 2
        %v1482 = vld [vmem:[%s1481] ss:$8 sm:$0x3]
        %v1484 = vlaneseq
        %v1485 = vshrl.u32 %v1484, 7
        %v1486 = vsub.s32 0, %v1485
        %v1487 = vrot.slane %v1482, %v1486
        %v1488 = vlaneseq
        %v1489 = vshrl.u32 %v1488, 7
        %v1490 = vsub.s32 1, %v1489
        %v1491 = vrot.slane %v1482, %v1490
        %v1494 = vmul.f32 %v1479, %v1487
        %v1495 = vmul.f32 %v1480, %v1491
        %v1498 = vrot.slane %v1494, 2
        %v1499 = vrot.slane %v1495, 2
        %v1502 = vadd.f32 %v1477, %v1498
        %v1503 = vadd.f32 %v1478, %v1499
        %v1504 = vld [vmem:[#allocation3] sm:$0xf8]
        %v1505 = vld [vmem:[#allocation3 + $0x8] sm:$0xf8]
        %s1506 = scalar_lea.vmem [#allocation2], 3
        %v1507 = vld [vmem:[%s1506] ss:$8 sm:$0x3]
        %v1509 = vlaneseq
        %v1510 = vshrl.u32 %v1509, 7
        %v1511 = vsub.s32 0, %v1510
        %v1512 = vrot.slane %v1507, %v1511
        %v1513 = vlaneseq
        %v1514 = vshrl.u32 %v1513, 7
        %v1515 = vsub.s32 1, %v1514
        %v1516 = vrot.slane %v1507, %v1515
        %v1519 = vmul.f32 %v1504, %v1512
        %v1520 = vmul.f32 %v1505, %v1516
        %v1523 = vrot.slane %v1519, 3
        %v1524 = vrot.slane %v1520, 3
        %v1527 = vadd.f32 %v1502, %v1523
        %v1528 = vadd.f32 %v1503, %v1524
        %v1529 = vld [vmem:[#allocation3 + $0x10] sm:$0x1f]
        %v1530 = vld [vmem:[#allocation3 + $0x18] sm:$0x1f]
        %s1531 = scalar_lea.vmem [#allocation2], 4
        %v1532 = vld [vmem:[%s1531] ss:$8 sm:$0x3]
        %v1534 = vlaneseq
        %v1535 = vshrl.u32 %v1534, 7
        %v1536 = vsub.s32 0, %v1535
        %v1537 = vrot.slane %v1532, %v1536
        %v1538 = vlaneseq
        %v1539 = vshrl.u32 %v1538, 7
        %v1540 = vsub.s32 1, %v1539
        %v1541 = vrot.slane %v1532, %v1540
        %v1544 = vmul.f32 %v1529, %v1537
        %v1545 = vmul.f32 %v1530, %v1541
        %v1546 = vadd.f32 %v1527, %v1544
        %v1547 = vadd.f32 %v1528, %v1545
        %v1548 = vld [vmem:[#allocation3 + $0x10] sm:$0x3e]
        %v1549 = vld [vmem:[#allocation3 + $0x18] sm:$0x3e]
        %s1550 = scalar_lea.vmem [#allocation2], 5
        %v1551 = vld [vmem:[%s1550] ss:$8 sm:$0x3]
        %v1553 = vlaneseq
        %v1554 = vshrl.u32 %v1553, 7
        %v1555 = vsub.s32 0, %v1554
        %v1556 = vrot.slane %v1551, %v1555
        %v1557 = vlaneseq
        %v1558 = vshrl.u32 %v1557, 7
        %v1559 = vsub.s32 1, %v1558
        %v1560 = vrot.slane %v1551, %v1559
        %v1563 = vmul.f32 %v1548, %v1556
        %v1564 = vmul.f32 %v1549, %v1560
        %v1567 = vrot.slane %v1563, 1
        %v1568 = vrot.slane %v1564, 1
        %v1571 = vadd.f32 %v1546, %v1567
        %v1572 = vadd.f32 %v1547, %v1568
        %v1573 = vld [vmem:[#allocation3 + $0x10] sm:$0x7c]
        %v1574 = vld [vmem:[#allocation3 + $0x18] sm:$0x7c]
        %s1575 = scalar_lea.vmem [#allocation2], 6
        %v1576 = vld [vmem:[%s1575] ss:$8 sm:$0x3]
        %v1578 = vlaneseq
        %v1579 = vshrl.u32 %v1578, 7
        %v1580 = vsub.s32 0, %v1579
        %v1581 = vrot.slane %v1576, %v1580
        %v1582 = vlaneseq
        %v1583 = vshrl.u32 %v1582, 7
        %v1584 = vsub.s32 1, %v1583
        %v1585 = vrot.slane %v1576, %v1584
        %v1588 = vmul.f32 %v1573, %v1581
        %v1589 = vmul.f32 %v1574, %v1585
        %v1592 = vrot.slane %v1588, 2
        %v1593 = vrot.slane %v1589, 2
        %v1596 = vadd.f32 %v1571, %v1592
        %v1597 = vadd.f32 %v1572, %v1593
        %v1598 = vld [vmem:[#allocation3 + $0x10] sm:$0xf8]
        %v1599 = vld [vmem:[#allocation3 + $0x18] sm:$0xf8]
        %s1600 = scalar_lea.vmem [#allocation2], 7
        %v1601 = vld [vmem:[%s1600] ss:$8 sm:$0x3]
        %v1603 = vlaneseq
        %v1604 = vshrl.u32 %v1603, 7
        %v1605 = vsub.s32 0, %v1604
        %v1606 = vrot.slane %v1601, %v1605
        %v1607 = vlaneseq
        %v1608 = vshrl.u32 %v1607, 7
        %v1609 = vsub.s32 1, %v1608
        %v1610 = vrot.slane %v1601, %v1609
        %v1613 = vmul.f32 %v1598, %v1606
        %v1614 = vmul.f32 %v1599, %v1610
        %v1617 = vrot.slane %v1613, 3
        %v1618 = vrot.slane %v1614, 3
        %v1621 = vadd.f32 %v1596, %v1617
        %v1622 = vadd.f32 %v1597, %v1618
        %v1623 = vld [vmem:[#allocation3 + $0x20] sm:$0x1f]
        %v1624 = vld [vmem:[#allocation3 + $0x28] sm:$0x1f]
        %s1625 = scalar_lea.vmem [#allocation2], 16
        %v1626 = vld [vmem:[%s1625] ss:$8 sm:$0x3]
        %v1628 = vlaneseq
        %v1629 = vshrl.u32 %v1628, 7
        %v1630 = vsub.s32 0, %v1629
        %v1631 = vrot.slane %v1626, %v1630
        %v1632 = vlaneseq
        %v1633 = vshrl.u32 %v1632, 7
        %v1634 = vsub.s32 1, %v1633
        %v1635 = vrot.slane %v1626, %v1634
        %v1638 = vmul.f32 %v1623, %v1631
        %v1639 = vmul.f32 %v1624, %v1635
        %v1640 = vadd.f32 %v1621, %v1638
        %v1641 = vadd.f32 %v1622, %v1639
        %v1642 = vld [vmem:[#allocation3 + $0x20] sm:$0x3e]
        %v1643 = vld [vmem:[#allocation3 + $0x28] sm:$0x3e]
        %s1644 = scalar_lea.vmem [#allocation2], 17
        %v1645 = vld [vmem:[%s1644] ss:$8 sm:$0x3]
        %v1647 = vlaneseq
        %v1648 = vshrl.u32 %v1647, 7
        %v1649 = vsub.s32 0, %v1648
        %v1650 = vrot.slane %v1645, %v1649
        %v1651 = vlaneseq
        %v1652 = vshrl.u32 %v1651, 7
        %v1653 = vsub.s32 1, %v1652
        %v1654 = vrot.slane %v1645, %v1653
        %v1657 = vmul.f32 %v1642, %v1650
        %v1658 = vmul.f32 %v1643, %v1654
        %v1661 = vrot.slane %v1657, 1
        %v1662 = vrot.slane %v1658, 1
        %v1665 = vadd.f32 %v1640, %v1661
        %v1666 = vadd.f32 %v1641, %v1662
        %v1667 = vld [vmem:[#allocation3 + $0x20] sm:$0x7c]
        %v1668 = vld [vmem:[#allocation3 + $0x28] sm:$0x7c]
        %s1669 = scalar_lea.vmem [#allocation2], 18
        %v1670 = vld [vmem:[%s1669] ss:$8 sm:$0x3]
        %v1672 = vlaneseq
        %v1673 = vshrl.u32 %v1672, 7
        %v1674 = vsub.s32 0, %v1673
        %v1675 = vrot.slane %v1670, %v1674
        %v1676 = vlaneseq
        %v1677 = vshrl.u32 %v1676, 7
        %v1678 = vsub.s32 1, %v1677
        %v1679 = vrot.slane %v1670, %v1678
        %v1682 = vmul.f32 %v1667, %v1675
        %v1683 = vmul.f32 %v1668, %v1679
        %v1686 = vrot.slane %v1682, 2
        %v1687 = vrot.slane %v1683, 2
        %v1690 = vadd.f32 %v1665, %v1686
        %v1691 = vadd.f32 %v1666, %v1687
        %v1692 = vld [vmem:[#allocation3 + $0x20] sm:$0xf8]
        %v1693 = vld [vmem:[#allocation3 + $0x28] sm:$0xf8]
        %s1694 = scalar_lea.vmem [#allocation2], 19
        %v1695 = vld [vmem:[%s1694] ss:$8 sm:$0x3]
        %v1697 = vlaneseq
        %v1698 = vshrl.u32 %v1697, 7
        %v1699 = vsub.s32 0, %v1698
        %v1700 = vrot.slane %v1695, %v1699
        %v1701 = vlaneseq
        %v1702 = vshrl.u32 %v1701, 7
        %v1703 = vsub.s32 1, %v1702
        %v1704 = vrot.slane %v1695, %v1703
        %v1707 = vmul.f32 %v1692, %v1700
        %v1708 = vmul.f32 %v1693, %v1704
        %v1711 = vrot.slane %v1707, 3
        %v1712 = vrot.slane %v1708, 3
        %v1715 = vadd.f32 %v1690, %v1711
        %v1716 = vadd.f32 %v1691, %v1712
        %v1717 = vld [vmem:[#allocation3 + $0x30] sm:$0x1f]
        %v1718 = vld [vmem:[#allocation3 + $0x38] sm:$0x1f]
        %s1719 = scalar_lea.vmem [#allocation2], 20
        %v1720 = vld [vmem:[%s1719] ss:$8 sm:$0x3]
        %v1722 = vlaneseq
        %v1723 = vshrl.u32 %v1722, 7
        %v1724 = vsub.s32 0, %v1723
        %v1725 = vrot.slane %v1720, %v1724
        %v1726 = vlaneseq
        %v1727 = vshrl.u32 %v1726, 7
        %v1728 = vsub.s32 1, %v1727
        %v1729 = vrot.slane %v1720, %v1728
        %v1732 = vmul.f32 %v1717, %v1725
        %v1733 = vmul.f32 %v1718, %v1729
        %v1734 = vadd.f32 %v1715, %v1732
        %v1735 = vadd.f32 %v1716, %v1733
        %v1736 = vld [vmem:[#allocation3 + $0x30] sm:$0x3e]
        %v1737 = vld [vmem:[#allocation3 + $0x38] sm:$0x3e]
        %s1738 = scalar_lea.vmem [#allocation2], 21
        %v1739 = vld [vmem:[%s1738] ss:$8 sm:$0x3]
        %v1741 = vlaneseq
        %v1742 = vshrl.u32 %v1741, 7
        %v1743 = vsub.s32 0, %v1742
        %v1744 = vrot.slane %v1739, %v1743
        %v1745 = vlaneseq
        %v1746 = vshrl.u32 %v1745, 7
        %v1747 = vsub.s32 1, %v1746
        %v1748 = vrot.slane %v1739, %v1747
        %v1751 = vmul.f32 %v1736, %v1744
        %v1752 = vmul.f32 %v1737, %v1748
        %v1755 = vrot.slane %v1751, 1
        %v1756 = vrot.slane %v1752, 1
        %v1759 = vadd.f32 %v1734, %v1755
        %v1760 = vadd.f32 %v1735, %v1756
        %v1761 = vld [vmem:[#allocation3 + $0x30] sm:$0x7c]
        %v1762 = vld [vmem:[#allocation3 + $0x38] sm:$0x7c]
        %s1763 = scalar_lea.vmem [#allocation2], 22
        %v1764 = vld [vmem:[%s1763] ss:$8 sm:$0x3]
        %v1766 = vlaneseq
        %v1767 = vshrl.u32 %v1766, 7
        %v1768 = vsub.s32 0, %v1767
        %v1769 = vrot.slane %v1764, %v1768
        %v1770 = vlaneseq
        %v1771 = vshrl.u32 %v1770, 7
        %v1772 = vsub.s32 1, %v1771
        %v1773 = vrot.slane %v1764, %v1772
        %v1776 = vmul.f32 %v1761, %v1769
        %v1777 = vmul.f32 %v1762, %v1773
        %v1780 = vrot.slane %v1776, 2
        %v1781 = vrot.slane %v1777, 2
        %v1784 = vadd.f32 %v1759, %v1780
        %v1785 = vadd.f32 %v1760, %v1781
        %v1786 = vld [vmem:[#allocation3 + $0x30] sm:$0xf8]
        %v1787 = vld [vmem:[#allocation3 + $0x38] sm:$0xf8]
        %s1788 = scalar_lea.vmem [#allocation2], 23
        %v1789 = vld [vmem:[%s1788] ss:$8 sm:$0x3]
        %v1791 = vlaneseq
        %v1792 = vshrl.u32 %v1791, 7
        %v1793 = vsub.s32 0, %v1792
        %v1794 = vrot.slane %v1789, %v1793
        %v1795 = vlaneseq
        %v1796 = vshrl.u32 %v1795, 7
        %v1797 = vsub.s32 1, %v1796
        %v1798 = vrot.slane %v1789, %v1797
        %v1801 = vmul.f32 %v1786, %v1794
        %v1802 = vmul.f32 %v1787, %v1798
        %v1805 = vrot.slane %v1801, 3
        %v1806 = vrot.slane %v1802, 3
        %v1809 = vadd.f32 %v1784, %v1805
        %v1810 = vadd.f32 %v1785, %v1806
        %1811 = vst [vmem:[#allocation4 + $0x20] sm:$0x1f] %v1809
        %1812 = vst [vmem:[#allocation4 + $0x28] sm:$0x1f] %v1810
        %v1813 = vld [vmem:[#allocation3 + $0x10] sm:$0x1f]
        %v1814 = vld [vmem:[#allocation3 + $0x18] sm:$0x1f]
        %v1815 = vld [vmem:[#allocation2] ss:$8 sm:$0x3]
        %v1817 = vlaneseq
        %v1818 = vshrl.u32 %v1817, 7
        %v1819 = vsub.s32 0, %v1818
        %v1820 = vrot.slane %v1815, %v1819
        %v1821 = vlaneseq
        %v1822 = vshrl.u32 %v1821, 7
        %v1823 = vsub.s32 1, %v1822
        %v1824 = vrot.slane %v1815, %v1823
        %v1827 = vmul.f32 %v1813, %v1820
        %v1828 = vmul.f32 %v1814, %v1824
        %v1829 = vadd.f32 %v1827, 0.0
        %v1830 = vadd.f32 %v1828, 0.0
        %v1831 = vld [vmem:[#allocation3 + $0x10] sm:$0x3e]
        %v1832 = vld [vmem:[#allocation3 + $0x18] sm:$0x3e]
        %v1833 = vld [vmem:[%s1456] ss:$8 sm:$0x3]
        %v1835 = vlaneseq
        %v1836 = vshrl.u32 %v1835, 7
        %v1837 = vsub.s32 0, %v1836
        %v1838 = vrot.slane %v1833, %v1837
        %v1839 = vlaneseq
        %v1840 = vshrl.u32 %v1839, 7
        %v1841 = vsub.s32 1, %v1840
        %v1842 = vrot.slane %v1833, %v1841
        %v1845 = vmul.f32 %v1831, %v1838
        %v1846 = vmul.f32 %v1832, %v1842
        %v1849 = vrot.slane %v1845, 1
        %v1850 = vrot.slane %v1846, 1
        %v1853 = vadd.f32 %v1829, %v1849
        %v1854 = vadd.f32 %v1830, %v1850
        %v1855 = vld [vmem:[#allocation3 + $0x10] sm:$0x7c]
        %v1856 = vld [vmem:[#allocation3 + $0x18] sm:$0x7c]
        %v1857 = vld [vmem:[%s1481] ss:$8 sm:$0x3]
        %v1859 = vlaneseq
        %v1860 = vshrl.u32 %v1859, 7
        %v1861 = vsub.s32 0, %v1860
        %v1862 = vrot.slane %v1857, %v1861
        %v1863 = vlaneseq
        %v1864 = vshrl.u32 %v1863, 7
        %v1865 = vsub.s32 1, %v1864
        %v1866 = vrot.slane %v1857, %v1865
        %v1869 = vmul.f32 %v1855, %v1862
        %v1870 = vmul.f32 %v1856, %v1866
        %v1873 = vrot.slane %v1869, 2
        %v1874 = vrot.slane %v1870, 2
        %v1877 = vadd.f32 %v1853, %v1873
        %v1878 = vadd.f32 %v1854, %v1874
        %v1879 = vld [vmem:[#allocation3 + $0x10] sm:$0xf8]
        %v1880 = vld [vmem:[#allocation3 + $0x18] sm:$0xf8]
        %v1881 = vld [vmem:[%s1506] ss:$8 sm:$0x3]
        %v1883 = vlaneseq
        %v1884 = vshrl.u32 %v1883, 7
        %v1885 = vsub.s32 0, %v1884
        %v1886 = vrot.slane %v1881, %v1885
        %v1887 = vlaneseq
        %v1888 = vshrl.u32 %v1887, 7
        %v1889 = vsub.s32 1, %v1888
        %v1890 = vrot.slane %v1881, %v1889
        %v1893 = vmul.f32 %v1879, %v1886
        %v1894 = vmul.f32 %v1880, %v1890
        %v1897 = vrot.slane %v1893, 3
        %v1898 = vrot.slane %v1894, 3
        %v1901 = vadd.f32 %v1877, %v1897
        %v1902 = vadd.f32 %v1878, %v1898
        %v1903 = vld [vmem:[#allocation3 + $0x20] sm:$0x1f]
        %v1904 = vld [vmem:[#allocation3 + $0x28] sm:$0x1f]
        %v1905 = vld [vmem:[%s1531] ss:$8 sm:$0x3]
        %v1907 = vlaneseq
        %v1908 = vshrl.u32 %v1907, 7
        %v1909 = vsub.s32 0, %v1908
        %v1910 = vrot.slane %v1905, %v1909
        %v1911 = vlaneseq
        %v1912 = vshrl.u32 %v1911, 7
        %v1913 = vsub.s32 1, %v1912
        %v1914 = vrot.slane %v1905, %v1913
        %v1917 = vmul.f32 %v1903, %v1910
        %v1918 = vmul.f32 %v1904, %v1914
        %v1919 = vadd.f32 %v1901, %v1917
        %v1920 = vadd.f32 %v1902, %v1918
        %v1921 = vld [vmem:[#allocation3 + $0x20] sm:$0x3e]
        %v1922 = vld [vmem:[#allocation3 + $0x28] sm:$0x3e]
        %v1923 = vld [vmem:[%s1550] ss:$8 sm:$0x3]
        %v1925 = vlaneseq
        %v1926 = vshrl.u32 %v1925, 7
        %v1927 = vsub.s32 0, %v1926
        %v1928 = vrot.slane %v1923, %v1927
        %v1929 = vlaneseq
        %v1930 = vshrl.u32 %v1929, 7
        %v1931 = vsub.s32 1, %v1930
        %v1932 = vrot.slane %v1923, %v1931
        %v1935 = vmul.f32 %v1921, %v1928
        %v1936 = vmul.f32 %v1922, %v1932
        %v1939 = vrot.slane %v1935, 1
        %v1940 = vrot.slane %v1936, 1
        %v1943 = vadd.f32 %v1919, %v1939
        %v1944 = vadd.f32 %v1920, %v1940
        %v1945 = vld [vmem:[#allocation3 + $0x20] sm:$0x7c]
        %v1946 = vld [vmem:[#allocation3 + $0x28] sm:$0x7c]
        %v1947 = vld [vmem:[%s1575] ss:$8 sm:$0x3]
        %v1949 = vlaneseq
        %v1950 = vshrl.u32 %v1949, 7
        %v1951 = vsub.s32 0, %v1950
        %v1952 = vrot.slane %v1947, %v1951
        %v1953 = vlaneseq
        %v1954 = vshrl.u32 %v1953, 7
        %v1955 = vsub.s32 1, %v1954
        %v1956 = vrot.slane %v1947, %v1955
        %v1959 = vmul.f32 %v1945, %v1952
        %v1960 = vmul.f32 %v1946, %v1956
        %v1963 = vrot.slane %v1959, 2
        %v1964 = vrot.slane %v1960, 2
        %v1967 = vadd.f32 %v1943, %v1963
        %v1968 = vadd.f32 %v1944, %v1964
        %v1969 = vld [vmem:[#allocation3 + $0x20] sm:$0xf8]
        %v1970 = vld [vmem:[#allocation3 + $0x28] sm:$0xf8]
        %v1971 = vld [vmem:[%s1600] ss:$8 sm:$0x3]
        %v1973 = vlaneseq
        %v1974 = vshrl.u32 %v1973, 7
        %v1975 = vsub.s32 0, %v1974
        %v1976 = vrot.slane %v1971, %v1975
        %v1977 = vlaneseq
        %v1978 = vshrl.u32 %v1977, 7
        %v1979 = vsub.s32 1, %v1978
        %v1980 = vrot.slane %v1971, %v1979
        %v1983 = vmul.f32 %v1969, %v1976
        %v1984 = vmul.f32 %v1970, %v1980
        %v1987 = vrot.slane %v1983, 3
        %v1988 = vrot.slane %v1984, 3
        %v1991 = vadd.f32 %v1967, %v1987
        %v1992 = vadd.f32 %v1968, %v1988
        %v1993 = vld [vmem:[#allocation3 + $0x30] sm:$0x1f]
        %v1994 = vld [vmem:[#allocation3 + $0x38] sm:$0x1f]
        %v1995 = vld [vmem:[%s1625] ss:$8 sm:$0x3]
        %v1997 = vlaneseq
        %v1998 = vshrl.u32 %v1997, 7
        %v1999 = vsub.s32 0, %v1998
        %v2000 = vrot.slane %v1995, %v1999
        %v2001 = vlaneseq
        %v2002 = vshrl.u32 %v2001, 7
        %v2003 = vsub.s32 1, %v2002
        %v2004 = vrot.slane %v1995, %v2003
        %v2007 = vmul.f32 %v1993, %v2000
        %v2008 = vmul.f32 %v1994, %v2004
        %v2009 = vadd.f32 %v1991, %v2007
        %v2010 = vadd.f32 %v1992, %v2008
        %v2011 = vld [vmem:[#allocation3 + $0x30] sm:$0x3e]
        %v2012 = vld [vmem:[#allocation3 + $0x38] sm:$0x3e]
        %v2013 = vld [vmem:[%s1644] ss:$8 sm:$0x3]
        %v2015 = vlaneseq
        %v2016 = vshrl.u32 %v2015, 7
        %v2017 = vsub.s32 0, %v2016
        %v2018 = vrot.slane %v2013, %v2017
        %v2019 = vlaneseq
        %v2020 = vshrl.u32 %v2019, 7
        %v2021 = vsub.s32 1, %v2020
        %v2022 = vrot.slane %v2013, %v2021
        %v2025 = vmul.f32 %v2011, %v2018
        %v2026 = vmul.f32 %v2012, %v2022
        %v2029 = vrot.slane %v2025, 1
        %v2030 = vrot.slane %v2026, 1
        %v2033 = vadd.f32 %v2009, %v2029
        %v2034 = vadd.f32 %v2010, %v2030
        %v2035 = vld [vmem:[#allocation3 + $0x30] sm:$0x7c]
        %v2036 = vld [vmem:[#allocation3 + $0x38] sm:$0x7c]
        %v2037 = vld [vmem:[%s1669] ss:$8 sm:$0x3]
        %v2039 = vlaneseq
        %v2040 = vshrl.u32 %v2039, 7
        %v2041 = vsub.s32 0, %v2040
        %v2042 = vrot.slane %v2037, %v2041
        %v2043 = vlaneseq
        %v2044 = vshrl.u32 %v2043, 7
        %v2045 = vsub.s32 1, %v2044
        %v2046 = vrot.slane %v2037, %v2045
        %v2049 = vmul.f32 %v2035, %v2042
        %v2050 = vmul.f32 %v2036, %v2046
        %v2053 = vrot.slane %v2049, 2
        %v2054 = vrot.slane %v2050, 2
        %v2057 = vadd.f32 %v2033, %v2053
        %v2058 = vadd.f32 %v2034, %v2054
        %v2059 = vld [vmem:[#allocation3 + $0x30] sm:$0xf8]
        %v2060 = vld [vmem:[#allocation3 + $0x38] sm:$0xf8]
        %v2061 = vld [vmem:[%s1694] ss:$8 sm:$0x3]
        %v2063 = vlaneseq
        %v2064 = vshrl.u32 %v2063, 7
        %v2065 = vsub.s32 0, %v2064
        %v2066 = vrot.slane %v2061, %v2065
        %v2067 = vlaneseq
        %v2068 = vshrl.u32 %v2067, 7
        %v2069 = vsub.s32 1, %v2068
        %v2070 = vrot.slane %v2061, %v2069
        %v2073 = vmul.f32 %v2059, %v2066
        %v2074 = vmul.f32 %v2060, %v2070
        %v2077 = vrot.slane %v2073, 3
        %v2078 = vrot.slane %v2074, 3
        %v2081 = vadd.f32 %v2057, %v2077
        %v2082 = vadd.f32 %v2058, %v2078
        %v2083 = vld [vmem:[#allocation3 + $0x40] sm:$0x1f]
        %v2084 = vld [vmem:[#allocation3 + $0x48] sm:$0x1f]
        %v2085 = vld [vmem:[%s1719] ss:$8 sm:$0x3]
        %v2087 = vlaneseq
        %v2088 = vshrl.u32 %v2087, 7
        %v2089 = vsub.s32 0, %v2088
        %v2090 = vrot.slane %v2085, %v2089
        %v2091 = vlaneseq
        %v2092 = vshrl.u32 %v2091, 7
        %v2093 = vsub.s32 1, %v2092
        %v2094 = vrot.slane %v2085, %v2093
        %v2097 = vmul.f32 %v2083, %v2090
        %v2098 = vmul.f32 %v2084, %v2094
        %v2099 = vadd.f32 %v2081, %v2097
        %v2100 = vadd.f32 %v2082, %v2098
        %v2101 = vld [vmem:[#allocation3 + $0x40] sm:$0x3e]
        %v2102 = vld [vmem:[#allocation3 + $0x48] sm:$0x3e]
        %v2103 = vld [vmem:[%s1738] ss:$8 sm:$0x3]
        %v2105 = vlaneseq
        %v2106 = vshrl.u32 %v2105, 7
        %v2107 = vsub.s32 0, %v2106
        %v2108 = vrot.slane %v2103, %v2107
        %v2109 = vlaneseq
        %v2110 = vshrl.u32 %v2109, 7
        %v2111 = vsub.s32 1, %v2110
        %v2112 = vrot.slane %v2103, %v2111
        %v2115 = vmul.f32 %v2101, %v2108
        %v2116 = vmul.f32 %v2102, %v2112
        %v2119 = vrot.slane %v2115, 1
        %v2120 = vrot.slane %v2116, 1
        %v2123 = vadd.f32 %v2099, %v2119
        %v2124 = vadd.f32 %v2100, %v2120
        %v2125 = vld [vmem:[#allocation3 + $0x40] sm:$0x7c]
        %v2126 = vld [vmem:[#allocation3 + $0x48] sm:$0x7c]
        %v2127 = vld [vmem:[%s1763] ss:$8 sm:$0x3]
        %v2129 = vlaneseq
        %v2130 = vshrl.u32 %v2129, 7
        %v2131 = vsub.s32 0, %v2130
        %v2132 = vrot.slane %v2127, %v2131
        %v2133 = vlaneseq
        %v2134 = vshrl.u32 %v2133, 7
        %v2135 = vsub.s32 1, %v2134
        %v2136 = vrot.slane %v2127, %v2135
        %v2139 = vmul.f32 %v2125, %v2132
        %v2140 = vmul.f32 %v2126, %v2136
        %v2143 = vrot.slane %v2139, 2
        %v2144 = vrot.slane %v2140, 2
        %v2147 = vadd.f32 %v2123, %v2143
        %v2148 = vadd.f32 %v2124, %v2144
        %v2149 = vld [vmem:[#allocation3 + $0x40] sm:$0xf8]
        %v2150 = vld [vmem:[#allocation3 + $0x48] sm:$0xf8]
        %v2151 = vld [vmem:[%s1788] ss:$8 sm:$0x3]
        %v2153 = vlaneseq
        %v2154 = vshrl.u32 %v2153, 7
        %v2155 = vsub.s32 0, %v2154
        %v2156 = vrot.slane %v2151, %v2155
        %v2157 = vlaneseq
        %v2158 = vshrl.u32 %v2157, 7
        %v2159 = vsub.s32 1, %v2158
        %v2160 = vrot.slane %v2151, %v2159
        %v2163 = vmul.f32 %v2149, %v2156
        %v2164 = vmul.f32 %v2150, %v2160
        %v2167 = vrot.slane %v2163, 3
        %v2168 = vrot.slane %v2164, 3
        %v2171 = vadd.f32 %v2147, %v2167
        %v2172 = vadd.f32 %v2148, %v2168
        %v2175 = vrot.slane %v2171, 1
        %v2176 = vrot.slane %v2172, 1
        %2179 = vst [vmem:[#allocation4 + $0x20] sm:$0x80] %v2175
        %2180 = vst [vmem:[#allocation4 + $0x28] sm:$0x80] %v2176
        %2181 = vst [vmem:[#allocation4 + $0x30] sm:$0xf] %v2175
        %2182 = vst [vmem:[#allocation4 + $0x38] sm:$0xf] %v2176
        %v2183 = vld [vmem:[#allocation3 + $0x20] sm:$0x1f]
        %v2184 = vld [vmem:[#allocation3 + $0x28] sm:$0x1f]
        %v2185 = vld [vmem:[#allocation2] ss:$8 sm:$0x3]
        %v2187 = vlaneseq
        %v2188 = vshrl.u32 %v2187, 7
        %v2189 = vsub.s32 0, %v2188
        %v2190 = vrot.slane %v2185, %v2189
        %v2191 = vlaneseq
        %v2192 = vshrl.u32 %v2191, 7
        %v2193 = vsub.s32 1, %v2192
        %v2194 = vrot.slane %v2185, %v2193
        %v2197 = vmul.f32 %v2183, %v2190
        %v2198 = vmul.f32 %v2184, %v2194
        %v2199 = vadd.f32 %v2197, 0.0
        %v2200 = vadd.f32 %v2198, 0.0
        %v2201 = vld [vmem:[#allocation3 + $0x20] sm:$0x3e]
        %v2202 = vld [vmem:[#allocation3 + $0x28] sm:$0x3e]
        %v2203 = vld [vmem:[%s1456] ss:$8 sm:$0x3]
        %v2205 = vlaneseq
        %v2206 = vshrl.u32 %v2205, 7
        %v2207 = vsub.s32 0, %v2206
        %v2208 = vrot.slane %v2203, %v2207
        %v2209 = vlaneseq
        %v2210 = vshrl.u32 %v2209, 7
        %v2211 = vsub.s32 1, %v2210
        %v2212 = vrot.slane %v2203, %v2211
        %v2215 = vmul.f32 %v2201, %v2208
        %v2216 = vmul.f32 %v2202, %v2212
        %v2219 = vrot.slane %v2215, 1
        %v2220 = vrot.slane %v2216, 1
        %v2223 = vadd.f32 %v2199, %v2219
        %v2224 = vadd.f32 %v2200, %v2220
        %v2225 = vld [vmem:[#allocation3 + $0x20] sm:$0x7c]
        %v2226 = vld [vmem:[#allocation3 + $0x28] sm:$0x7c]
        %v2227 = vld [vmem:[%s1481] ss:$8 sm:$0x3]
        %v2229 = vlaneseq
        %v2230 = vshrl.u32 %v2229, 7
        %v2231 = vsub.s32 0, %v2230
        %v2232 = vrot.slane %v2227, %v2231
        %v2233 = vlaneseq
        %v2234 = vshrl.u32 %v2233, 7
        %v2235 = vsub.s32 1, %v2234
        %v2236 = vrot.slane %v2227, %v2235
        %v2239 = vmul.f32 %v2225, %v2232
        %v2240 = vmul.f32 %v2226, %v2236
        %v2243 = vrot.slane %v2239, 2
        %v2244 = vrot.slane %v2240, 2
        %v2247 = vadd.f32 %v2223, %v2243
        %v2248 = vadd.f32 %v2224, %v2244
        %v2249 = vld [vmem:[#allocation3 + $0x20] sm:$0xf8]
        %v2250 = vld [vmem:[#allocation3 + $0x28] sm:$0xf8]
        %v2251 = vld [vmem:[%s1506] ss:$8 sm:$0x3]
        %v2253 = vlaneseq
        %v2254 = vshrl.u32 %v2253, 7
        %v2255 = vsub.s32 0, %v2254
        %v2256 = vrot.slane %v2251, %v2255
        %v2257 = vlaneseq
        %v2258 = vshrl.u32 %v2257, 7
        %v2259 = vsub.s32 1, %v2258
        %v2260 = vrot.slane %v2251, %v2259
        %v2263 = vmul.f32 %v2249, %v2256
        %v2264 = vmul.f32 %v2250, %v2260
        %v2267 = vrot.slane %v2263, 3
        %v2268 = vrot.slane %v2264, 3
        %v2271 = vadd.f32 %v2247, %v2267
        %v2272 = vadd.f32 %v2248, %v2268
        %v2273 = vld [vmem:[#allocation3 + $0x30] sm:$0x1f]
        %v2274 = vld [vmem:[#allocation3 + $0x38] sm:$0x1f]
        %v2275 = vld [vmem:[%s1531] ss:$8 sm:$0x3]
        %v2277 = vlaneseq
        %v2278 = vshrl.u32 %v2277, 7
        %v2279 = vsub.s32 0, %v2278
        %v2280 = vrot.slane %v2275, %v2279
        %v2281 = vlaneseq
        %v2282 = vshrl.u32 %v2281, 7
        %v2283 = vsub.s32 1, %v2282
        %v2284 = vrot.slane %v2275, %v2283
        %v2287 = vmul.f32 %v2273, %v2280
        %v2288 = vmul.f32 %v2274, %v2284
        %v2289 = vadd.f32 %v2271, %v2287
        %v2290 = vadd.f32 %v2272, %v2288
        %v2291 = vld [vmem:[#allocation3 + $0x30] sm:$0x3e]
        %v2292 = vld [vmem:[#allocation3 + $0x38] sm:$0x3e]
        %v2293 = vld [vmem:[%s1550] ss:$8 sm:$0x3]
        %v2295 = vlaneseq
        %v2296 = vshrl.u32 %v2295, 7
        %v2297 = vsub.s32 0, %v2296
        %v2298 = vrot.slane %v2293, %v2297
        %v2299 = vlaneseq
        %v2300 = vshrl.u32 %v2299, 7
        %v2301 = vsub.s32 1, %v2300
        %v2302 = vrot.slane %v2293, %v2301
        %v2305 = vmul.f32 %v2291, %v2298
        %v2306 = vmul.f32 %v2292, %v2302
        %v2309 = vrot.slane %v2305, 1
        %v2310 = vrot.slane %v2306, 1
        %v2313 = vadd.f32 %v2289, %v2309
        %v2314 = vadd.f32 %v2290, %v2310
        %v2315 = vld [vmem:[#allocation3 + $0x30] sm:$0x7c]
        %v2316 = vld [vmem:[#allocation3 + $0x38] sm:$0x7c]
        %v2317 = vld [vmem:[%s1575] ss:$8 sm:$0x3]
        %v2319 = vlaneseq
        %v2320 = vshrl.u32 %v2319, 7
        %v2321 = vsub.s32 0, %v2320
        %v2322 = vrot.slane %v2317, %v2321
        %v2323 = vlaneseq
        %v2324 = vshrl.u32 %v2323, 7
        %v2325 = vsub.s32 1, %v2324
        %v2326 = vrot.slane %v2317, %v2325
        %v2329 = vmul.f32 %v2315, %v2322
        %v2330 = vmul.f32 %v2316, %v2326
        %v2333 = vrot.slane %v2329, 2
        %v2334 = vrot.slane %v2330, 2
        %v2337 = vadd.f32 %v2313, %v2333
        %v2338 = vadd.f32 %v2314, %v2334
        %v2339 = vld [vmem:[#allocation3 + $0x30] sm:$0xf8]
        %v2340 = vld [vmem:[#allocation3 + $0x38] sm:$0xf8]
        %v2341 = vld [vmem:[%s1600] ss:$8 sm:$0x3]
        %v2343 = vlaneseq
        %v2344 = vshrl.u32 %v2343, 7
        %v2345 = vsub.s32 0, %v2344
        %v2346 = vrot.slane %v2341, %v2345
        %v2347 = vlaneseq
        %v2348 = vshrl.u32 %v2347, 7
        %v2349 = vsub.s32 1, %v2348
        %v2350 = vrot.slane %v2341, %v2349
        %v2353 = vmul.f32 %v2339, %v2346
        %v2354 = vmul.f32 %v2340, %v2350
        %v2357 = vrot.slane %v2353, 3
        %v2358 = vrot.slane %v2354, 3
        %v2361 = vadd.f32 %v2337, %v2357
        %v2362 = vadd.f32 %v2338, %v2358
        %v2363 = vld [vmem:[#allocation3 + $0x40] sm:$0x1f]
        %v2364 = vld [vmem:[#allocation3 + $0x48] sm:$0x1f]
        %v2365 = vld [vmem:[%s1625] ss:$8 sm:$0x3]
        %v2367 = vlaneseq
        %v2368 = vshrl.u32 %v2367, 7
        %v2369 = vsub.s32 0, %v2368
        %v2370 = vrot.slane %v2365, %v2369
        %v2371 = vlaneseq
        %v2372 = vshrl.u32 %v2371, 7
        %v2373 = vsub.s32 1, %v2372
        %v2374 = vrot.slane %v2365, %v2373
        %v2377 = vmul.f32 %v2363, %v2370
        %v2378 = vmul.f32 %v2364, %v2374
        %v2379 = vadd.f32 %v2361, %v2377
        %v2380 = vadd.f32 %v2362, %v2378
        %v2381 = vld [vmem:[#allocation3 + $0x40] sm:$0x3e]
        %v2382 = vld [vmem:[#allocation3 + $0x48] sm:$0x3e]
        %v2383 = vld [vmem:[%s1644] ss:$8 sm:$0x3]
        %v2385 = vlaneseq
        %v2386 = vshrl.u32 %v2385, 7
        %v2387 = vsub.s32 0, %v2386
        %v2388 = vrot.slane %v2383, %v2387
        %v2389 = vlaneseq
        %v2390 = vshrl.u32 %v2389, 7
        %v2391 = vsub.s32 1, %v2390
        %v2392 = vrot.slane %v2383, %v2391
        %v2395 = vmul.f32 %v2381, %v2388
        %v2396 = vmul.f32 %v2382, %v2392
        %v2399 = vrot.slane %v2395, 1
        %v2400 = vrot.slane %v2396, 1
        %v2403 = vadd.f32 %v2379, %v2399
        %v2404 = vadd.f32 %v2380, %v2400
        %v2405 = vld [vmem:[#allocation3 + $0x40] sm:$0x7c]
        %v2406 = vld [vmem:[#allocation3 + $0x48] sm:$0x7c]
        %v2407 = vld [vmem:[%s1669] ss:$8 sm:$0x3]
        %v2409 = vlaneseq
        %v2410 = vshrl.u32 %v2409, 7
        %v2411 = vsub.s32 0, %v2410
        %v2412 = vrot.slane %v2407, %v2411
        %v2413 = vlaneseq
        %v2414 = vshrl.u32 %v2413, 7
        %v2415 = vsub.s32 1, %v2414
        %v2416 = vrot.slane %v2407, %v2415
        %v2419 = vmul.f32 %v2405, %v2412
        %v2420 = vmul.f32 %v2406, %v2416
        %v2423 = vrot.slane %v2419, 2
        %v2424 = vrot.slane %v2420, 2
        %v2427 = vadd.f32 %v2403, %v2423
        %v2428 = vadd.f32 %v2404, %v2424
        %v2429 = vld [vmem:[#allocation3 + $0x40] sm:$0xf8]
        %v2430 = vld [vmem:[#allocation3 + $0x48] sm:$0xf8]
        %v2431 = vld [vmem:[%s1694] ss:$8 sm:$0x3]
        %v2433 = vlaneseq
        %v2434 = vshrl.u32 %v2433, 7
        %v2435 = vsub.s32 0, %v2434
        %v2436 = vrot.slane %v2431, %v2435
        %v2437 = vlaneseq
        %v2438 = vshrl.u32 %v2437, 7
        %v2439 = vsub.s32 1, %v2438
        %v2440 = vrot.slane %v2431, %v2439
        %v2443 = vmul.f32 %v2429, %v2436
        %v2444 = vmul.f32 %v2430, %v2440
        %v2447 = vrot.slane %v2443, 3
        %v2448 = vrot.slane %v2444, 3
        %v2451 = vadd.f32 %v2427, %v2447
        %v2452 = vadd.f32 %v2428, %v2448
        %v2453 = vld [vmem:[#allocation3 + $0x50] sm:$0x1f]
        %v2454 = vld [vmem:[#allocation3 + $0x58] sm:$0x1f]
        %v2455 = vld [vmem:[%s1719] ss:$8 sm:$0x3]
        %v2457 = vlaneseq
        %v2458 = vshrl.u32 %v2457, 7
        %v2459 = vsub.s32 0, %v2458
        %v2460 = vrot.slane %v2455, %v2459
        %v2461 = vlaneseq
        %v2462 = vshrl.u32 %v2461, 7
        %v2463 = vsub.s32 1, %v2462
        %v2464 = vrot.slane %v2455, %v2463
        %v2467 = vmul.f32 %v2453, %v2460
        %v2468 = vmul.f32 %v2454, %v2464
        %v2469 = vadd.f32 %v2451, %v2467
        %v2470 = vadd.f32 %v2452, %v2468
        %v2471 = vld [vmem:[#allocation3 + $0x50] sm:$0x3e]
        %v2472 = vld [vmem:[#allocation3 + $0x58] sm:$0x3e]
        %v2473 = vld [vmem:[%s1738] ss:$8 sm:$0x3]
        %v2475 = vlaneseq
        %v2476 = vshrl.u32 %v2475, 7
        %v2477 = vsub.s32 0, %v2476
        %v2478 = vrot.slane %v2473, %v2477
        %v2479 = vlaneseq
        %v2480 = vshrl.u32 %v2479, 7
        %v2481 = vsub.s32 1, %v2480
        %v2482 = vrot.slane %v2473, %v2481
        %v2485 = vmul.f32 %v2471, %v2478
        %v2486 = vmul.f32 %v2472, %v2482
        %v2489 = vrot.slane %v2485, 1
        %v2490 = vrot.slane %v2486, 1
        %v2493 = vadd.f32 %v2469, %v2489
        %v2494 = vadd.f32 %v2470, %v2490
        %v2495 = vld [vmem:[#allocation3 + $0x50] sm:$0x7c]
        %v2496 = vld [vmem:[#allocation3 + $0x58] sm:$0x7c]
        %v2497 = vld [vmem:[%s1763] ss:$8 sm:$0x3]
        %v2499 = vlaneseq
        %v2500 = vshrl.u32 %v2499, 7
        %v2501 = vsub.s32 0, %v2500
        %v2502 = vrot.slane %v2497, %v2501
        %v2503 = vlaneseq
        %v2504 = vshrl.u32 %v2503, 7
        %v2505 = vsub.s32 1, %v2504
        %v2506 = vrot.slane %v2497, %v2505
        %v2509 = vmul.f32 %v2495, %v2502
        %v2510 = vmul.f32 %v2496, %v2506
        %v2513 = vrot.slane %v2509, 2
        %v2514 = vrot.slane %v2510, 2
        %v2517 = vadd.f32 %v2493, %v2513
        %v2518 = vadd.f32 %v2494, %v2514
        %v2519 = vld [vmem:[#allocation3 + $0x50] sm:$0xf8]
        %v2520 = vld [vmem:[#allocation3 + $0x58] sm:$0xf8]
        %v2521 = vld [vmem:[%s1788] ss:$8 sm:$0x3]
        %v2523 = vlaneseq
        %v2524 = vshrl.u32 %v2523, 7
        %v2525 = vsub.s32 0, %v2524
        %v2526 = vrot.slane %v2521, %v2525
        %v2527 = vlaneseq
        %v2528 = vshrl.u32 %v2527, 7
        %v2529 = vsub.s32 1, %v2528
        %v2530 = vrot.slane %v2521, %v2529
        %v2533 = vmul.f32 %v2519, %v2526
        %v2534 = vmul.f32 %v2520, %v2530
        %v2537 = vrot.slane %v2533, 3
        %v2538 = vrot.slane %v2534, 3
        %v2541 = vadd.f32 %v2517, %v2537
        %v2542 = vadd.f32 %v2518, %v2538
        %v2545 = vrot.slane %v2541, 2
        %v2546 = vrot.slane %v2542, 2
        %2549 = vst [vmem:[#allocation4 + $0x30] sm:$0xc0] %v2545
        %2550 = vst [vmem:[#allocation4 + $0x38] sm:$0xc0] %v2546
        %2551 = vst [vmem:[#allocation4 + $0x40] sm:$0x7] %v2545
        %2552 = vst [vmem:[#allocation4 + $0x48] sm:$0x7] %v2546
        %v2553 = vld [vmem:[#allocation3 + $0x30] sm:$0x1f]
        %v2554 = vld [vmem:[#allocation3 + $0x38] sm:$0x1f]
        %v2555 = vld [vmem:[#allocation2] ss:$8 sm:$0x3]
        %v2557 = vlaneseq
        %v2558 = vshrl.u32 %v2557, 7
        %v2559 = vsub.s32 0, %v2558
        %v2560 = vrot.slane %v2555, %v2559
        %v2561 = vlaneseq
        %v2562 = vshrl.u32 %v2561, 7
        %v2563 = vsub.s32 1, %v2562
        %v2564 = vrot.slane %v2555, %v2563
        %v2567 = vmul.f32 %v2553, %v2560
        %v2568 = vmul.f32 %v2554, %v2564
        %v2569 = vadd.f32 %v2567, 0.0
        %v2570 = vadd.f32 %v2568, 0.0
        %v2571 = vld [vmem:[#allocation3 + $0x30] sm:$0x3e]
        %v2572 = vld [vmem:[#allocation3 + $0x38] sm:$0x3e]
        %v2573 = vld [vmem:[%s1456] ss:$8 sm:$0x3]
        %v2575 = vlaneseq
        %v2576 = vshrl.u32 %v2575, 7
        %v2577 = vsub.s32 0, %v2576
        %v2578 = vrot.slane %v2573, %v2577
        %v2579 = vlaneseq
        %v2580 = vshrl.u32 %v2579, 7
        %v2581 = vsub.s32 1, %v2580
        %v2582 = vrot.slane %v2573, %v2581
        %v2585 = vmul.f32 %v2571, %v2578
        %v2586 = vmul.f32 %v2572, %v2582
        %v2589 = vrot.slane %v2585, 1
        %v2590 = vrot.slane %v2586, 1
        %v2593 = vadd.f32 %v2569, %v2589
        %v2594 = vadd.f32 %v2570, %v2590
        %v2595 = vld [vmem:[#allocation3 + $0x30] sm:$0x7c]
        %v2596 = vld [vmem:[#allocation3 + $0x38] sm:$0x7c]
        %v2597 = vld [vmem:[%s1481] ss:$8 sm:$0x3]
        %v2599 = vlaneseq
        %v2600 = vshrl.u32 %v2599, 7
        %v2601 = vsub.s32 0, %v2600
        %v2602 = vrot.slane %v2597, %v2601
        %v2603 = vlaneseq
        %v2604 = vshrl.u32 %v2603, 7
        %v2605 = vsub.s32 1, %v2604
        %v2606 = vrot.slane %v2597, %v2605
        %v2609 = vmul.f32 %v2595, %v2602
        %v2610 = vmul.f32 %v2596, %v2606
        %v2613 = vrot.slane %v2609, 2
        %v2614 = vrot.slane %v2610, 2
        %v2617 = vadd.f32 %v2593, %v2613
        %v2618 = vadd.f32 %v2594, %v2614
        %v2619 = vld [vmem:[#allocation3 + $0x30] sm:$0xf8]
        %v2620 = vld [vmem:[#allocation3 + $0x38] sm:$0xf8]
        %v2621 = vld [vmem:[%s1506] ss:$8 sm:$0x3]
        %v2623 = vlaneseq
        %v2624 = vshrl.u32 %v2623, 7
        %v2625 = vsub.s32 0, %v2624
        %v2626 = vrot.slane %v2621, %v2625
        %v2627 = vlaneseq
        %v2628 = vshrl.u32 %v2627, 7
        %v2629 = vsub.s32 1, %v2628
        %v2630 = vrot.slane %v2621, %v2629
        %v2633 = vmul.f32 %v2619, %v2626
        %v2634 = vmul.f32 %v2620, %v2630
        %v2637 = vrot.slane %v2633, 3
        %v2638 = vrot.slane %v2634, 3
        %v2641 = vadd.f32 %v2617, %v2637
        %v2642 = vadd.f32 %v2618, %v2638
        %v2643 = vld [vmem:[#allocation3 + $0x40] sm:$0x1f]
        %v2644 = vld [vmem:[#allocation3 + $0x48] sm:$0x1f]
        %v2645 = vld [vmem:[%s1531] ss:$8 sm:$0x3]
        %v2647 = vlaneseq
        %v2648 = vshrl.u32 %v2647, 7
        %v2649 = vsub.s32 0, %v2648
        %v2650 = vrot.slane %v2645, %v2649
        %v2651 = vlaneseq
        %v2652 = vshrl.u32 %v2651, 7
        %v2653 = vsub.s32 1, %v2652
        %v2654 = vrot.slane %v2645, %v2653
        %v2657 = vmul.f32 %v2643, %v2650
        %v2658 = vmul.f32 %v2644, %v2654
        %v2659 = vadd.f32 %v2641, %v2657
        %v2660 = vadd.f32 %v2642, %v2658
        %v2661 = vld [vmem:[#allocation3 + $0x40] sm:$0x3e]
        %v2662 = vld [vmem:[#allocation3 + $0x48] sm:$0x3e]
        %v2663 = vld [vmem:[%s1550] ss:$8 sm:$0x3]
        %v2665 = vlaneseq
        %v2666 = vshrl.u32 %v2665, 7
        %v2667 = vsub.s32 0, %v2666
        %v2668 = vrot.slane %v2663, %v2667
        %v2669 = vlaneseq
        %v2670 = vshrl.u32 %v2669, 7
        %v2671 = vsub.s32 1, %v2670
        %v2672 = vrot.slane %v2663, %v2671
        %v2675 = vmul.f32 %v2661, %v2668
        %v2676 = vmul.f32 %v2662, %v2672
        %v2679 = vrot.slane %v2675, 1
        %v2680 = vrot.slane %v2676, 1
        %v2683 = vadd.f32 %v2659, %v2679
        %v2684 = vadd.f32 %v2660, %v2680
        %v2685 = vld [vmem:[#allocation3 + $0x40] sm:$0x7c]
        %v2686 = vld [vmem:[#allocation3 + $0x48] sm:$0x7c]
        %v2687 = vld [vmem:[%s1575] ss:$8 sm:$0x3]
        %v2689 = vlaneseq
        %v2690 = vshrl.u32 %v2689, 7
        %v2691 = vsub.s32 0, %v2690
        %v2692 = vrot.slane %v2687, %v2691
        %v2693 = vlaneseq
        %v2694 = vshrl.u32 %v2693, 7
        %v2695 = vsub.s32 1, %v2694
        %v2696 = vrot.slane %v2687, %v2695
        %v2699 = vmul.f32 %v2685, %v2692
        %v2700 = vmul.f32 %v2686, %v2696
        %v2703 = vrot.slane %v2699, 2
        %v2704 = vrot.slane %v2700, 2
        %v2707 = vadd.f32 %v2683, %v2703
        %v2708 = vadd.f32 %v2684, %v2704
        %v2709 = vld [vmem:[#allocation3 + $0x40] sm:$0xf8]
        %v2710 = vld [vmem:[#allocation3 + $0x48] sm:$0xf8]
        %v2711 = vld [vmem:[%s1600] ss:$8 sm:$0x3]
        %v2713 = vlaneseq
        %v2714 = vshrl.u32 %v2713, 7
        %v2715 = vsub.s32 0, %v2714
        %v2716 = vrot.slane %v2711, %v2715
        %v2717 = vlaneseq
        %v2718 = vshrl.u32 %v2717, 7
        %v2719 = vsub.s32 1, %v2718
        %v2720 = vrot.slane %v2711, %v2719
        %v2723 = vmul.f32 %v2709, %v2716
        %v2724 = vmul.f32 %v2710, %v2720
        %v2727 = vrot.slane %v2723, 3
        %v2728 = vrot.slane %v2724, 3
        %v2731 = vadd.f32 %v2707, %v2727
        %v2732 = vadd.f32 %v2708, %v2728
        %v2733 = vld [vmem:[#allocation3 + $0x50] sm:$0x1f]
        %v2734 = vld [vmem:[#allocation3 + $0x58] sm:$0x1f]
        %v2735 = vld [vmem:[%s1625] ss:$8 sm:$0x3]
        %v2737 = vlaneseq
        %v2738 = vshrl.u32 %v2737, 7
        %v2739 = vsub.s32 0, %v2738
        %v2740 = vrot.slane %v2735, %v2739
        %v2741 = vlaneseq
        %v2742 = vshrl.u32 %v2741, 7
        %v2743 = vsub.s32 1, %v2742
        %v2744 = vrot.slane %v2735, %v2743
        %v2747 = vmul.f32 %v2733, %v2740
        %v2748 = vmul.f32 %v2734, %v2744
        %v2749 = vadd.f32 %v2731, %v2747
        %v2750 = vadd.f32 %v2732, %v2748
        %v2751 = vld [vmem:[#allocation3 + $0x50] sm:$0x3e]
        %v2752 = vld [vmem:[#allocation3 + $0x58] sm:$0x3e]
        %v2753 = vld [vmem:[%s1644] ss:$8 sm:$0x3]
        %v2755 = vlaneseq
        %v2756 = vshrl.u32 %v2755, 7
        %v2757 = vsub.s32 0, %v2756
        %v2758 = vrot.slane %v2753, %v2757
        %v2759 = vlaneseq
        %v2760 = vshrl.u32 %v2759, 7
        %v2761 = vsub.s32 1, %v2760
        %v2762 = vrot.slane %v2753, %v2761
        %v2765 = vmul.f32 %v2751, %v2758
        %v2766 = vmul.f32 %v2752, %v2762
        %v2769 = vrot.slane %v2765, 1
        %v2770 = vrot.slane %v2766, 1
        %v2773 = vadd.f32 %v2749, %v2769
        %v2774 = vadd.f32 %v2750, %v2770
        %v2775 = vld [vmem:[#allocation3 + $0x50] sm:$0x7c]
        %v2776 = vld [vmem:[#allocation3 + $0x58] sm:$0x7c]
        %v2777 = vld [vmem:[%s1669] ss:$8 sm:$0x3]
        %v2779 = vlaneseq
        %v2780 = vshrl.u32 %v2779, 7
        %v2781 = vsub.s32 0, %v2780
        %v2782 = vrot.slane %v2777, %v2781
        %v2783 = vlaneseq
        %v2784 = vshrl.u32 %v2783, 7
        %v2785 = vsub.s32 1, %v2784
        %v2786 = vrot.slane %v2777, %v2785
        %v2789 = vmul.f32 %v2775, %v2782
        %v2790 = vmul.f32 %v2776, %v2786
        %v2793 = vrot.slane %v2789, 2
        %v2794 = vrot.slane %v2790, 2
        %v2797 = vadd.f32 %v2773, %v2793
        %v2798 = vadd.f32 %v2774, %v2794
        %v2799 = vld [vmem:[#allocation3 + $0x50] sm:$0xf8]
        %v2800 = vld [vmem:[#allocation3 + $0x58] sm:$0xf8]
        %v2801 = vld [vmem:[%s1694] ss:$8 sm:$0x3]
        %v2803 = vlaneseq
        %v2804 = vshrl.u32 %v2803, 7
        %v2805 = vsub.s32 0, %v2804
        %v2806 = vrot.slane %v2801, %v2805
        %v2807 = vlaneseq
        %v2808 = vshrl.u32 %v2807, 7
        %v2809 = vsub.s32 1, %v2808
        %v2810 = vrot.slane %v2801, %v2809
        %v2813 = vmul.f32 %v2799, %v2806
        %v2814 = vmul.f32 %v2800, %v2810
        %v2817 = vrot.slane %v2813, 3
        %v2818 = vrot.slane %v2814, 3
        %v2821 = vadd.f32 %v2797, %v2817
        %v2822 = vadd.f32 %v2798, %v2818
        %v2823 = vld [vmem:[#allocation3 + $0x60] sm:$0x1f]
        %v2824 = vld [vmem:[#allocation3 + $0x68] sm:$0x1f]
        %v2825 = vld [vmem:[%s1719] ss:$8 sm:$0x3]
        %v2827 = vlaneseq
        %v2828 = vshrl.u32 %v2827, 7
        %v2829 = vsub.s32 0, %v2828
        %v2830 = vrot.slane %v2825, %v2829
        %v2831 = vlaneseq
        %v2832 = vshrl.u32 %v2831, 7
        %v2833 = vsub.s32 1, %v2832
        %v2834 = vrot.slane %v2825, %v2833
        %v2837 = vmul.f32 %v2823, %v2830
        %v2838 = vmul.f32 %v2824, %v2834
        %v2839 = vadd.f32 %v2821, %v2837
        %v2840 = vadd.f32 %v2822, %v2838
        %v2841 = vld [vmem:[#allocation3 + $0x60] sm:$0x3e]
        %v2842 = vld [vmem:[#allocation3 + $0x68] sm:$0x3e]
        %v2843 = vld [vmem:[%s1738] ss:$8 sm:$0x3]
        %v2845 = vlaneseq
        %v2846 = vshrl.u32 %v2845, 7
        %v2847 = vsub.s32 0, %v2846
        %v2848 = vrot.slane %v2843, %v2847
        %v2849 = vlaneseq
        %v2850 = vshrl.u32 %v2849, 7
        %v2851 = vsub.s32 1, %v2850
        %v2852 = vrot.slane %v2843, %v2851
        %v2855 = vmul.f32 %v2841, %v2848
        %v2856 = vmul.f32 %v2842, %v2852
        %v2859 = vrot.slane %v2855, 1
        %v2860 = vrot.slane %v2856, 1
        %v2863 = vadd.f32 %v2839, %v2859
        %v2864 = vadd.f32 %v2840, %v2860
        %v2865 = vld [vmem:[#allocation3 + $0x60] sm:$0x7c]
        %v2866 = vld [vmem:[#allocation3 + $0x68] sm:$0x7c]
        %v2867 = vld [vmem:[%s1763] ss:$8 sm:$0x3]
        %v2869 = vlaneseq
        %v2870 = vshrl.u32 %v2869, 7
        %v2871 = vsub.s32 0, %v2870
        %v2872 = vrot.slane %v2867, %v2871
        %v2873 = vlaneseq
        %v2874 = vshrl.u32 %v2873, 7
        %v2875 = vsub.s32 1, %v2874
        %v2876 = vrot.slane %v2867, %v2875
        %v2879 = vmul.f32 %v2865, %v2872
        %v2880 = vmul.f32 %v2866, %v2876
        %v2883 = vrot.slane %v2879, 2
        %v2884 = vrot.slane %v2880, 2
        %v2887 = vadd.f32 %v2863, %v2883
        %v2888 = vadd.f32 %v2864, %v2884
        %v2889 = vld [vmem:[#allocation3 + $0x60] sm:$0xf8]
        %v2890 = vld [vmem:[#allocation3 + $0x68] sm:$0xf8]
        %v2891 = vld [vmem:[%s1788] ss:$8 sm:$0x3]
        %v2893 = vlaneseq
        %v2894 = vshrl.u32 %v2893, 7
        %v2895 = vsub.s32 0, %v2894
        %v2896 = vrot.slane %v2891, %v2895
        %v2897 = vlaneseq
        %v2898 = vshrl.u32 %v2897, 7
        %v2899 = vsub.s32 1, %v2898
        %v2900 = vrot.slane %v2891, %v2899
        %v2903 = vmul.f32 %v2889, %v2896
        %v2904 = vmul.f32 %v2890, %v2900
        %v2907 = vrot.slane %v2903, 3
        %v2908 = vrot.slane %v2904, 3
        %v2911 = vadd.f32 %v2887, %v2907
        %v2912 = vadd.f32 %v2888, %v2908
        %v2915 = vrot.slane %v2911, 3
        %v2916 = vrot.slane %v2912, 3
        %2919 = vst [vmem:[#allocation4 + $0x40] sm:$0xe0] %v2915
        %2920 = vst [vmem:[#allocation4 + $0x48] sm:$0xe0] %v2916
        %2921 = vst [vmem:[#allocation4 + $0x50] sm:$0x3] %v2915
        %2922 = vst [vmem:[#allocation4 + $0x58] sm:$0x3] %v2916
        %v2923 = vld [vmem:[#allocation3 + $0x40] sm:$0x1f]
        %v2924 = vld [vmem:[#allocation3 + $0x48] sm:$0x1f]
        %v2925 = vld [vmem:[#allocation2] ss:$8 sm:$0x3]
        %v2927 = vlaneseq
        %v2928 = vshrl.u32 %v2927, 7
        %v2929 = vsub.s32 0, %v2928
        %v2930 = vrot.slane %v2925, %v2929
        %v2931 = vlaneseq
        %v2932 = vshrl.u32 %v2931, 7
        %v2933 = vsub.s32 1, %v2932
        %v2934 = vrot.slane %v2925, %v2933
        %v2937 = vmul.f32 %v2923, %v2930
        %v2938 = vmul.f32 %v2924, %v2934
        %v2939 = vadd.f32 %v2937, 0.0
        %v2940 = vadd.f32 %v2938, 0.0
        %v2941 = vld [vmem:[#allocation3 + $0x40] sm:$0x3e]
        %v2942 = vld [vmem:[#allocation3 + $0x48] sm:$0x3e]
        %v2943 = vld [vmem:[%s1456] ss:$8 sm:$0x3]
        %v2945 = vlaneseq
        %v2946 = vshrl.u32 %v2945, 7
        %v2947 = vsub.s32 0, %v2946
        %v2948 = vrot.slane %v2943, %v2947
        %v2949 = vlaneseq
        %v2950 = vshrl.u32 %v2949, 7
        %v2951 = vsub.s32 1, %v2950
        %v2952 = vrot.slane %v2943, %v2951
        %v2955 = vmul.f32 %v2941, %v2948
        %v2956 = vmul.f32 %v2942, %v2952
        %v2959 = vrot.slane %v2955, 1
        %v2960 = vrot.slane %v2956, 1
        %v2963 = vadd.f32 %v2939, %v2959
        %v2964 = vadd.f32 %v2940, %v2960
        %v2965 = vld [vmem:[#allocation3 + $0x40] sm:$0x7c]
        %v2966 = vld [vmem:[#allocation3 + $0x48] sm:$0x7c]
        %v2967 = vld [vmem:[%s1481] ss:$8 sm:$0x3]
        %v2969 = vlaneseq
        %v2970 = vshrl.u32 %v2969, 7
        %v2971 = vsub.s32 0, %v2970
        %v2972 = vrot.slane %v2967, %v2971
        %v2973 = vlaneseq
        %v2974 = vshrl.u32 %v2973, 7
        %v2975 = vsub.s32 1, %v2974
        %v2976 = vrot.slane %v2967, %v2975
        %v2979 = vmul.f32 %v2965, %v2972
        %v2980 = vmul.f32 %v2966, %v2976
        %v2983 = vrot.slane %v2979, 2
        %v2984 = vrot.slane %v2980, 2
        %v2987 = vadd.f32 %v2963, %v2983
        %v2988 = vadd.f32 %v2964, %v2984
        %v2989 = vld [vmem:[#allocation3 + $0x40] sm:$0xf8]
        %v2990 = vld [vmem:[#allocation3 + $0x48] sm:$0xf8]
        %v2991 = vld [vmem:[%s1506] ss:$8 sm:$0x3]
        %v2993 = vlaneseq
        %v2994 = vshrl.u32 %v2993, 7
        %v2995 = vsub.s32 0, %v2994
        %v2996 = vrot.slane %v2991, %v2995
        %v2997 = vlaneseq
        %v2998 = vshrl.u32 %v2997, 7
        %v2999 = vsub.s32 1, %v2998
        %v3000 = vrot.slane %v2991, %v2999
        %v3003 = vmul.f32 %v2989, %v2996
        %v3004 = vmul.f32 %v2990, %v3000
        %v3007 = vrot.slane %v3003, 3
        %v3008 = vrot.slane %v3004, 3
        %v3011 = vadd.f32 %v2987, %v3007
        %v3012 = vadd.f32 %v2988, %v3008
        %v3013 = vld [vmem:[#allocation3 + $0x50] sm:$0x1f]
        %v3014 = vld [vmem:[#allocation3 + $0x58] sm:$0x1f]
        %v3015 = vld [vmem:[%s1531] ss:$8 sm:$0x3]
        %v3017 = vlaneseq
        %v3018 = vshrl.u32 %v3017, 7
        %v3019 = vsub.s32 0, %v3018
        %v3020 = vrot.slane %v3015, %v3019
        %v3021 = vlaneseq
        %v3022 = vshrl.u32 %v3021, 7
        %v3023 = vsub.s32 1, %v3022
        %v3024 = vrot.slane %v3015, %v3023
        %v3027 = vmul.f32 %v3013, %v3020
        %v3028 = vmul.f32 %v3014, %v3024
        %v3029 = vadd.f32 %v3011, %v3027
        %v3030 = vadd.f32 %v3012, %v3028
        %v3031 = vld [vmem:[#allocation3 + $0x50] sm:$0x3e]
        %v3032 = vld [vmem:[#allocation3 + $0x58] sm:$0x3e]
        %v3033 = vld [vmem:[%s1550] ss:$8 sm:$0x3]
        %v3035 = vlaneseq
        %v3036 = vshrl.u32 %v3035, 7
        %v3037 = vsub.s32 0, %v3036
        %v3038 = vrot.slane %v3033, %v3037
        %v3039 = vlaneseq
        %v3040 = vshrl.u32 %v3039, 7
        %v3041 = vsub.s32 1, %v3040
        %v3042 = vrot.slane %v3033, %v3041
        %v3045 = vmul.f32 %v3031, %v3038
        %v3046 = vmul.f32 %v3032, %v3042
        %v3049 = vrot.slane %v3045, 1
        %v3050 = vrot.slane %v3046, 1
        %v3053 = vadd.f32 %v3029, %v3049
        %v3054 = vadd.f32 %v3030, %v3050
        %v3055 = vld [vmem:[#allocation3 + $0x50] sm:$0x7c]
        %v3056 = vld [vmem:[#allocation3 + $0x58] sm:$0x7c]
        %v3057 = vld [vmem:[%s1575] ss:$8 sm:$0x3]
        %v3059 = vlaneseq
        %v3060 = vshrl.u32 %v3059, 7
        %v3061 = vsub.s32 0, %v3060
        %v3062 = vrot.slane %v3057, %v3061
        %v3063 = vlaneseq
        %v3064 = vshrl.u32 %v3063, 7
        %v3065 = vsub.s32 1, %v3064
        %v3066 = vrot.slane %v3057, %v3065
        %v3069 = vmul.f32 %v3055, %v3062
        %v3070 = vmul.f32 %v3056, %v3066
        %v3073 = vrot.slane %v3069, 2
        %v3074 = vrot.slane %v3070, 2
        %v3077 = vadd.f32 %v3053, %v3073
        %v3078 = vadd.f32 %v3054, %v3074
        %v3079 = vld [vmem:[#allocation3 + $0x50] sm:$0xf8]
        %v3080 = vld [vmem:[#allocation3 + $0x58] sm:$0xf8]
        %v3081 = vld [vmem:[%s1600] ss:$8 sm:$0x3]
        %v3083 = vlaneseq
        %v3084 = vshrl.u32 %v3083, 7
        %v3085 = vsub.s32 0, %v3084
        %v3086 = vrot.slane %v3081, %v3085
        %v3087 = vlaneseq
        %v3088 = vshrl.u32 %v3087, 7
        %v3089 = vsub.s32 1, %v3088
        %v3090 = vrot.slane %v3081, %v3089
        %v3093 = vmul.f32 %v3079, %v3086
        %v3094 = vmul.f32 %v3080, %v3090
        %v3097 = vrot.slane %v3093, 3
        %v3098 = vrot.slane %v3094, 3
        %v3101 = vadd.f32 %v3077, %v3097
        %v3102 = vadd.f32 %v3078, %v3098
        %v3103 = vld [vmem:[#allocation3 + $0x60] sm:$0x1f]
        %v3104 = vld [vmem:[#allocation3 + $0x68] sm:$0x1f]
        %v3105 = vld [vmem:[%s1625] ss:$8 sm:$0x3]
        %v3107 = vlaneseq
        %v3108 = vshrl.u32 %v3107, 7
        %v3109 = vsub.s32 0, %v3108
        %v3110 = vrot.slane %v3105, %v3109
        %v3111 = vlaneseq
        %v3112 = vshrl.u32 %v3111, 7
        %v3113 = vsub.s32 1, %v3112
        %v3114 = vrot.slane %v3105, %v3113
        %v3117 = vmul.f32 %v3103, %v3110
        %v3118 = vmul.f32 %v3104, %v3114
        %v3119 = vadd.f32 %v3101, %v3117
        %v3120 = vadd.f32 %v3102, %v3118
        %v3121 = vld [vmem:[#allocation3 + $0x60] sm:$0x3e]
        %v3122 = vld [vmem:[#allocation3 + $0x68] sm:$0x3e]
        %v3123 = vld [vmem:[%s1644] ss:$8 sm:$0x3]
        %v3125 = vlaneseq
        %v3126 = vshrl.u32 %v3125, 7
        %v3127 = vsub.s32 0, %v3126
        %v3128 = vrot.slane %v3123, %v3127
        %v3129 = vlaneseq
        %v3130 = vshrl.u32 %v3129, 7
        %v3131 = vsub.s32 1, %v3130
        %v3132 = vrot.slane %v3123, %v3131
        %v3135 = vmul.f32 %v3121, %v3128
        %v3136 = vmul.f32 %v3122, %v3132
        %v3139 = vrot.slane %v3135, 1
        %v3140 = vrot.slane %v3136, 1
        %v3143 = vadd.f32 %v3119, %v3139
        %v3144 = vadd.f32 %v3120, %v3140
        %v3145 = vld [vmem:[#allocation3 + $0x60] sm:$0x7c]
        %v3146 = vld [vmem:[#allocation3 + $0x68] sm:$0x7c]
        %v3147 = vld [vmem:[%s1669] ss:$8 sm:$0x3]
        %v3149 = vlaneseq
        %v3150 = vshrl.u32 %v3149, 7
        %v3151 = vsub.s32 0, %v3150
        %v3152 = vrot.slane %v3147, %v3151
        %v3153 = vlaneseq
        %v3154 = vshrl.u32 %v3153, 7
        %v3155 = vsub.s32 1, %v3154
        %v3156 = vrot.slane %v3147, %v3155
        %v3159 = vmul.f32 %v3145, %v3152
        %v3160 = vmul.f32 %v3146, %v3156
        %v3163 = vrot.slane %v3159, 2
        %v3164 = vrot.slane %v3160, 2
        %v3167 = vadd.f32 %v3143, %v3163
        %v3168 = vadd.f32 %v3144, %v3164
        %v3169 = vld [vmem:[#allocation3 + $0x60] sm:$0xf8]
        %v3170 = vld [vmem:[#allocation3 + $0x68] sm:$0xf8]
        %v3171 = vld [vmem:[%s1694] ss:$8 sm:$0x3]
        %v3173 = vlaneseq
        %v3174 = vshrl.u32 %v3173, 7
        %v3175 = vsub.s32 0, %v3174
        %v3176 = vrot.slane %v3171, %v3175
        %v3177 = vlaneseq
        %v3178 = vshrl.u32 %v3177, 7
        %v3179 = vsub.s32 1, %v3178
        %v3180 = vrot.slane %v3171, %v3179
        %v3183 = vmul.f32 %v3169, %v3176
        %v3184 = vmul.f32 %v3170, %v3180
        %v3187 = vrot.slane %v3183, 3
        %v3188 = vrot.slane %v3184, 3
        %v3191 = vadd.f32 %v3167, %v3187
        %v3192 = vadd.f32 %v3168, %v3188
        %v3193 = vld [vmem:[#allocation3 + $0x70] sm:$0x1f]
        %v3194 = vld [vmem:[#allocation3 + $0x78] sm:$0x1f]
        %v3195 = vld [vmem:[%s1719] ss:$8 sm:$0x3]
        %v3197 = vlaneseq
        %v3198 = vshrl.u32 %v3197, 7
        %v3199 = vsub.s32 0, %v3198
        %v3200 = vrot.slane %v3195, %v3199
        %v3201 = vlaneseq
        %v3202 = vshrl.u32 %v3201, 7
        %v3203 = vsub.s32 1, %v3202
        %v3204 = vrot.slane %v3195, %v3203
        %v3207 = vmul.f32 %v3193, %v3200
        %v3208 = vmul.f32 %v3194, %v3204
        %v3209 = vadd.f32 %v3191, %v3207
        %v3210 = vadd.f32 %v3192, %v3208
        %v3211 = vld [vmem:[#allocation3 + $0x70] sm:$0x3e]
        %v3212 = vld [vmem:[#allocation3 + $0x78] sm:$0x3e]
        %v3213 = vld [vmem:[%s1738] ss:$8 sm:$0x3]
        %v3215 = vlaneseq
        %v3216 = vshrl.u32 %v3215, 7
        %v3217 = vsub.s32 0, %v3216
        %v3218 = vrot.slane %v3213, %v3217
        %v3219 = vlaneseq
        %v3220 = vshrl.u32 %v3219, 7
        %v3221 = vsub.s32 1, %v3220
        %v3222 = vrot.slane %v3213, %v3221
        %v3225 = vmul.f32 %v3211, %v3218
        %v3226 = vmul.f32 %v3212, %v3222
        %v3229 = vrot.slane %v3225, 1
        %v3230 = vrot.slane %v3226, 1
        %v3233 = vadd.f32 %v3209, %v3229
        %v3234 = vadd.f32 %v3210, %v3230
        %v3235 = vld [vmem:[#allocation3 + $0x70] sm:$0x7c]
        %v3236 = vld [vmem:[#allocation3 + $0x78] sm:$0x7c]
        %v3237 = vld [vmem:[%s1763] ss:$8 sm:$0x3]
        %v3239 = vlaneseq
        %v3240 = vshrl.u32 %v3239, 7
        %v3241 = vsub.s32 0, %v3240
        %v3242 = vrot.slane %v3237, %v3241
        %v3243 = vlaneseq
        %v3244 = vshrl.u32 %v3243, 7
        %v3245 = vsub.s32 1, %v3244
        %v3246 = vrot.slane %v3237, %v3245
        %v3249 = vmul.f32 %v3235, %v3242
        %v3250 = vmul.f32 %v3236, %v3246
        %v3253 = vrot.slane %v3249, 2
        %v3254 = vrot.slane %v3250, 2
        %v3257 = vadd.f32 %v3233, %v3253
        %v3258 = vadd.f32 %v3234, %v3254
        %v3259 = vld [vmem:[#allocation3 + $0x70] sm:$0xf8]
        %v3260 = vld [vmem:[#allocation3 + $0x78] sm:$0xf8]
        %v3261 = vld [vmem:[%s1788] ss:$8 sm:$0x3]
        %v3263 = vlaneseq
        %v3264 = vshrl.u32 %v3263, 7
        %v3265 = vsub.s32 0, %v3264
        %v3266 = vrot.slane %v3261, %v3265
        %v3267 = vlaneseq
        %v3268 = vshrl.u32 %v3267, 7
        %v3269 = vsub.s32 1, %v3268
        %v3270 = vrot.slane %v3261, %v3269
        %v3273 = vmul.f32 %v3259, %v3266
        %v3274 = vmul.f32 %v3260, %v3270
        %v3277 = vrot.slane %v3273, 3
        %v3278 = vrot.slane %v3274, 3
        %v3281 = vadd.f32 %v3257, %v3277
        %v3282 = vadd.f32 %v3258, %v3278
        %v3285 = vrot.slane %v3281, 4
        %v3286 = vrot.slane %v3282, 4
        %3289 = vst [vmem:[#allocation4 + $0x50] sm:$0xf0] %v3285
        %3290 = vst [vmem:[#allocation4 + $0x58] sm:$0xf0] %v3286
        %3291 = vst [vmem:[#allocation4 + $0x60] sm:$0x1] %v3285
        %3292 = vst [vmem:[#allocation4 + $0x68] sm:$0x1] %v3286
        %v3293 = vld [vmem:[#allocation3 + $0x80] sm:$0x1f]
        %v3294 = vld [vmem:[#allocation3 + $0x88] sm:$0x1f]
        %s3295 = scalar_lea.vmem [#allocation2], 32
        %v3296 = vld [vmem:[%s3295] ss:$8 sm:$0x3]
        %v3298 = vlaneseq
        %v3299 = vshrl.u32 %v3298, 7
        %v3300 = vsub.s32 0, %v3299
        %v3301 = vrot.slane %v3296, %v3300
        %v3302 = vlaneseq
        %v3303 = vshrl.u32 %v3302, 7
        %v3304 = vsub.s32 1, %v3303
        %v3305 = vrot.slane %v3296, %v3304
        %v3308 = vmul.f32 %v3293, %v3301
        %v3309 = vmul.f32 %v3294, %v3305
        %v3310 = vadd.f32 %v3308, 0.0
        %v3311 = vadd.f32 %v3309, 0.0
        %v3312 = vld [vmem:[#allocation3 + $0x80] sm:$0x3e]
        %v3313 = vld [vmem:[#allocation3 + $0x88] sm:$0x3e]
        %s3314 = scalar_lea.vmem [#allocation2], 33
        %v3315 = vld [vmem:[%s3314] ss:$8 sm:$0x3]
        %v3317 = vlaneseq
        %v3318 = vshrl.u32 %v3317, 7
        %v3319 = vsub.s32 0, %v3318
        %v3320 = vrot.slane %v3315, %v3319
        %v3321 = vlaneseq
        %v3322 = vshrl.u32 %v3321, 7
        %v3323 = vsub.s32 1, %v3322
        %v3324 = vrot.slane %v3315, %v3323
        %v3327 = vmul.f32 %v3312, %v3320
        %v3328 = vmul.f32 %v3313, %v3324
        %v3331 = vrot.slane %v3327, 1
        %v3332 = vrot.slane %v3328, 1
        %v3335 = vadd.f32 %v3310, %v3331
        %v3336 = vadd.f32 %v3311, %v3332
        %v3337 = vld [vmem:[#allocation3 + $0x80] sm:$0x7c]
        %v3338 = vld [vmem:[#allocation3 + $0x88] sm:$0x7c]
        %s3339 = scalar_lea.vmem [#allocation2], 34
        %v3340 = vld [vmem:[%s3339] ss:$8 sm:$0x3]
        %v3342 = vlaneseq
        %v3343 = vshrl.u32 %v3342, 7
        %v3344 = vsub.s32 0, %v3343
        %v3345 = vrot.slane %v3340, %v3344
        %v3346 = vlaneseq
        %v3347 = vshrl.u32 %v3346, 7
        %v3348 = vsub.s32 1, %v3347
        %v3349 = vrot.slane %v3340, %v3348
        %v3352 = vmul.f32 %v3337, %v3345
        %v3353 = vmul.f32 %v3338, %v3349
        %v3356 = vrot.slane %v3352, 2
        %v3357 = vrot.slane %v3353, 2
        %v3360 = vadd.f32 %v3335, %v3356
        %v3361 = vadd.f32 %v3336, %v3357
        %v3362 = vld [vmem:[#allocation3 + $0x80] sm:$0xf8]
        %v3363 = vld [vmem:[#allocation3 + $0x88] sm:$0xf8]
        %s3364 = scalar_lea.vmem [#allocation2], 35
        %v3365 = vld [vmem:[%s3364] ss:$8 sm:$0x3]
        %v3367 = vlaneseq
        %v3368 = vshrl.u32 %v3367, 7
        %v3369 = vsub.s32 0, %v3368
        %v3370 = vrot.slane %v3365, %v3369
        %v3371 = vlaneseq
        %v3372 = vshrl.u32 %v3371, 7
        %v3373 = vsub.s32 1, %v3372
        %v3374 = vrot.slane %v3365, %v3373
        %v3377 = vmul.f32 %v3362, %v3370
        %v3378 = vmul.f32 %v3363, %v3374
        %v3381 = vrot.slane %v3377, 3
        %v3382 = vrot.slane %v3378, 3
        %v3385 = vadd.f32 %v3360, %v3381
        %v3386 = vadd.f32 %v3361, %v3382
        %v3387 = vld [vmem:[#allocation3 + $0x90] sm:$0x1f]
        %v3388 = vld [vmem:[#allocation3 + $0x98] sm:$0x1f]
        %s3389 = scalar_lea.vmem [#allocation2], 36
        %v3390 = vld [vmem:[%s3389] ss:$8 sm:$0x3]
        %v3392 = vlaneseq
        %v3393 = vshrl.u32 %v3392, 7
        %v3394 = vsub.s32 0, %v3393
        %v3395 = vrot.slane %v3390, %v3394
        %v3396 = vlaneseq
        %v3397 = vshrl.u32 %v3396, 7
        %v3398 = vsub.s32 1, %v3397
        %v3399 = vrot.slane %v3390, %v3398
        %v3402 = vmul.f32 %v3387, %v3395
        %v3403 = vmul.f32 %v3388, %v3399
        %v3404 = vadd.f32 %v3385, %v3402
        %v3405 = vadd.f32 %v3386, %v3403
        %v3406 = vld [vmem:[#allocation3 + $0x90] sm:$0x3e]
        %v3407 = vld [vmem:[#allocation3 + $0x98] sm:$0x3e]
        %s3408 = scalar_lea.vmem [#allocation2], 37
        %v3409 = vld [vmem:[%s3408] ss:$8 sm:$0x3]
        %v3411 = vlaneseq
        %v3412 = vshrl.u32 %v3411, 7
        %v3413 = vsub.s32 0, %v3412
        %v3414 = vrot.slane %v3409, %v3413
        %v3415 = vlaneseq
        %v3416 = vshrl.u32 %v3415, 7
        %v3417 = vsub.s32 1, %v3416
        %v3418 = vrot.slane %v3409, %v3417
        %v3421 = vmul.f32 %v3406, %v3414
        %v3422 = vmul.f32 %v3407, %v3418
        %v3425 = vrot.slane %v3421, 1
        %v3426 = vrot.slane %v3422, 1
        %v3429 = vadd.f32 %v3404, %v3425
        %v3430 = vadd.f32 %v3405, %v3426
        %v3431 = vld [vmem:[#allocation3 + $0x90] sm:$0x7c]
        %v3432 = vld [vmem:[#allocation3 + $0x98] sm:$0x7c]
        %s3433 = scalar_lea.vmem [#allocation2], 38
        %v3434 = vld [vmem:[%s3433] ss:$8 sm:$0x3]
        %v3436 = vlaneseq
        %v3437 = vshrl.u32 %v3436, 7
        %v3438 = vsub.s32 0, %v3437
        %v3439 = vrot.slane %v3434, %v3438
        %v3440 = vlaneseq
        %v3441 = vshrl.u32 %v3440, 7
        %v3442 = vsub.s32 1, %v3441
        %v3443 = vrot.slane %v3434, %v3442
        %v3446 = vmul.f32 %v3431, %v3439
        %v3447 = vmul.f32 %v3432, %v3443
        %v3450 = vrot.slane %v3446, 2
        %v3451 = vrot.slane %v3447, 2
        %v3454 = vadd.f32 %v3429, %v3450
        %v3455 = vadd.f32 %v3430, %v3451
        %v3456 = vld [vmem:[#allocation3 + $0x90] sm:$0xf8]
        %v3457 = vld [vmem:[#allocation3 + $0x98] sm:$0xf8]
        %s3458 = scalar_lea.vmem [#allocation2], 39
        %v3459 = vld [vmem:[%s3458] ss:$8 sm:$0x3]
        %v3461 = vlaneseq
        %v3462 = vshrl.u32 %v3461, 7
        %v3463 = vsub.s32 0, %v3462
        %v3464 = vrot.slane %v3459, %v3463
        %v3465 = vlaneseq
        %v3466 = vshrl.u32 %v3465, 7
        %v3467 = vsub.s32 1, %v3466
        %v3468 = vrot.slane %v3459, %v3467
        %v3471 = vmul.f32 %v3456, %v3464
        %v3472 = vmul.f32 %v3457, %v3468
        %v3475 = vrot.slane %v3471, 3
        %v3476 = vrot.slane %v3472, 3
        %v3479 = vadd.f32 %v3454, %v3475
        %v3480 = vadd.f32 %v3455, %v3476
        %v3481 = vld [vmem:[#allocation3 + $0xa0] sm:$0x1f]
        %v3482 = vld [vmem:[#allocation3 + $0xa8] sm:$0x1f]
        %s3483 = scalar_lea.vmem [#allocation2], 48
        %v3484 = vld [vmem:[%s3483] ss:$8 sm:$0x3]
        %v3486 = vlaneseq
        %v3487 = vshrl.u32 %v3486, 7
        %v3488 = vsub.s32 0, %v3487
        %v3489 = vrot.slane %v3484, %v3488
        %v3490 = vlaneseq
        %v3491 = vshrl.u32 %v3490, 7
        %v3492 = vsub.s32 1, %v3491
        %v3493 = vrot.slane %v3484, %v3492
        %v3496 = vmul.f32 %v3481, %v3489
        %v3497 = vmul.f32 %v3482, %v3493
        %v3498 = vadd.f32 %v3479, %v3496
        %v3499 = vadd.f32 %v3480, %v3497
        %v3500 = vld [vmem:[#allocation3 + $0xa0] sm:$0x3e]
        %v3501 = vld [vmem:[#allocation3 + $0xa8] sm:$0x3e]
        %s3502 = scalar_lea.vmem [#allocation2], 49
        %v3503 = vld [vmem:[%s3502] ss:$8 sm:$0x3]
        %v3505 = vlaneseq
        %v3506 = vshrl.u32 %v3505, 7
        %v3507 = vsub.s32 0, %v3506
        %v3508 = vrot.slane %v3503, %v3507
        %v3509 = vlaneseq
        %v3510 = vshrl.u32 %v3509, 7
        %v3511 = vsub.s32 1, %v3510
        %v3512 = vrot.slane %v3503, %v3511
        %v3515 = vmul.f32 %v3500, %v3508
        %v3516 = vmul.f32 %v3501, %v3512
        %v3519 = vrot.slane %v3515, 1
        %v3520 = vrot.slane %v3516, 1
        %v3523 = vadd.f32 %v3498, %v3519
        %v3524 = vadd.f32 %v3499, %v3520
        %v3525 = vld [vmem:[#allocation3 + $0xa0] sm:$0x7c]
        %v3526 = vld [vmem:[#allocation3 + $0xa8] sm:$0x7c]
        %s3527 = scalar_lea.vmem [#allocation2], 50
        %v3528 = vld [vmem:[%s3527] ss:$8 sm:$0x3]
        %v3530 = vlaneseq
        %v3531 = vshrl.u32 %v3530, 7
        %v3532 = vsub.s32 0, %v3531
        %v3533 = vrot.slane %v3528, %v3532
        %v3534 = vlaneseq
        %v3535 = vshrl.u32 %v3534, 7
        %v3536 = vsub.s32 1, %v3535
        %v3537 = vrot.slane %v3528, %v3536
        %v3540 = vmul.f32 %v3525, %v3533
        %v3541 = vmul.f32 %v3526, %v3537
        %v3544 = vrot.slane %v3540, 2
        %v3545 = vrot.slane %v3541, 2
        %v3548 = vadd.f32 %v3523, %v3544
        %v3549 = vadd.f32 %v3524, %v3545
        %v3550 = vld [vmem:[#allocation3 + $0xa0] sm:$0xf8]
        %v3551 = vld [vmem:[#allocation3 + $0xa8] sm:$0xf8]
        %s3552 = scalar_lea.vmem [#allocation2], 51
        %v3553 = vld [vmem:[%s3552] ss:$8 sm:$0x3]
        %v3555 = vlaneseq
        %v3556 = vshrl.u32 %v3555, 7
        %v3557 = vsub.s32 0, %v3556
        %v3558 = vrot.slane %v3553, %v3557
        %v3559 = vlaneseq
        %v3560 = vshrl.u32 %v3559, 7
        %v3561 = vsub.s32 1, %v3560
        %v3562 = vrot.slane %v3553, %v3561
        %v3565 = vmul.f32 %v3550, %v3558
        %v3566 = vmul.f32 %v3551, %v3562
        %v3569 = vrot.slane %v3565, 3
        %v3570 = vrot.slane %v3566, 3
        %v3573 = vadd.f32 %v3548, %v3569
        %v3574 = vadd.f32 %v3549, %v3570
        %v3575 = vld [vmem:[#allocation3 + $0xb0] sm:$0x1f]
        %v3576 = vld [vmem:[#allocation3 + $0xb8] sm:$0x1f]
        %s3577 = scalar_lea.vmem [#allocation2], 52
        %v3578 = vld [vmem:[%s3577] ss:$8 sm:$0x3]
        %v3580 = vlaneseq
        %v3581 = vshrl.u32 %v3580, 7
        %v3582 = vsub.s32 0, %v3581
        %v3583 = vrot.slane %v3578, %v3582
        %v3584 = vlaneseq
        %v3585 = vshrl.u32 %v3584, 7
        %v3586 = vsub.s32 1, %v3585
        %v3587 = vrot.slane %v3578, %v3586
        %v3590 = vmul.f32 %v3575, %v3583
        %v3591 = vmul.f32 %v3576, %v3587
        %v3592 = vadd.f32 %v3573, %v3590
        %v3593 = vadd.f32 %v3574, %v3591
        %v3594 = vld [vmem:[#allocation3 + $0xb0] sm:$0x3e]
        %v3595 = vld [vmem:[#allocation3 + $0xb8] sm:$0x3e]
        %s3596 = scalar_lea.vmem [#allocation2], 53
        %v3597 = vld [vmem:[%s3596] ss:$8 sm:$0x3]
        %v3599 = vlaneseq
        %v3600 = vshrl.u32 %v3599, 7
        %v3601 = vsub.s32 0, %v3600
        %v3602 = vrot.slane %v3597, %v3601
        %v3603 = vlaneseq
        %v3604 = vshrl.u32 %v3603, 7
        %v3605 = vsub.s32 1, %v3604
        %v3606 = vrot.slane %v3597, %v3605
        %v3609 = vmul.f32 %v3594, %v3602
        %v3610 = vmul.f32 %v3595, %v3606
        %v3613 = vrot.slane %v3609, 1
        %v3614 = vrot.slane %v3610, 1
        %v3617 = vadd.f32 %v3592, %v3613
        %v3618 = vadd.f32 %v3593, %v3614
        %v3619 = vld [vmem:[#allocation3 + $0xb0] sm:$0x7c]
        %v3620 = vld [vmem:[#allocation3 + $0xb8] sm:$0x7c]
        %s3621 = scalar_lea.vmem [#allocation2], 54
        %v3622 = vld [vmem:[%s3621] ss:$8 sm:$0x3]
        %v3624 = vlaneseq
        %v3625 = vshrl.u32 %v3624, 7
        %v3626 = vsub.s32 0, %v3625
        %v3627 = vrot.slane %v3622, %v3626
        %v3628 = vlaneseq
        %v3629 = vshrl.u32 %v3628, 7
        %v3630 = vsub.s32 1, %v3629
        %v3631 = vrot.slane %v3622, %v3630
        %v3634 = vmul.f32 %v3619, %v3627
        %v3635 = vmul.f32 %v3620, %v3631
        %v3638 = vrot.slane %v3634, 2
        %v3639 = vrot.slane %v3635, 2
        %v3642 = vadd.f32 %v3617, %v3638
        %v3643 = vadd.f32 %v3618, %v3639
        %v3644 = vld [vmem:[#allocation3 + $0xb0] sm:$0xf8]
        %v3645 = vld [vmem:[#allocation3 + $0xb8] sm:$0xf8]
        %s3646 = scalar_lea.vmem [#allocation2], 55
        %v3647 = vld [vmem:[%s3646] ss:$8 sm:$0x3]
        %v3649 = vlaneseq
        %v3650 = vshrl.u32 %v3649, 7
        %v3651 = vsub.s32 0, %v3650
        %v3652 = vrot.slane %v3647, %v3651
        %v3653 = vlaneseq
        %v3654 = vshrl.u32 %v3653, 7
        %v3655 = vsub.s32 1, %v3654
        %v3656 = vrot.slane %v3647, %v3655
        %v3659 = vmul.f32 %v3644, %v3652
        %v3660 = vmul.f32 %v3645, %v3656
        %v3663 = vrot.slane %v3659, 3
        %v3664 = vrot.slane %v3660, 3
        %v3667 = vadd.f32 %v3642, %v3663
        %v3668 = vadd.f32 %v3643, %v3664
        %v3671 = vrot.slane %v3667, 7
        %v3672 = vrot.slane %v3668, 7
        %3675 = vst [vmem:[#allocation4 + $0x80] sm:$0x3e] %v3671
        %3676 = vst [vmem:[#allocation4 + $0x88] sm:$0x3e] %v3672
        %v3677 = vld [vmem:[#allocation3 + $0x90] sm:$0x1f]
        %v3678 = vld [vmem:[#allocation3 + $0x98] sm:$0x1f]
        %v3679 = vld [vmem:[%s3295] ss:$8 sm:$0x3]
        %v3681 = vlaneseq
        %v3682 = vshrl.u32 %v3681, 7
        %v3683 = vsub.s32 0, %v3682
        %v3684 = vrot.slane %v3679, %v3683
        %v3685 = vlaneseq
        %v3686 = vshrl.u32 %v3685, 7
        %v3687 = vsub.s32 1, %v3686
        %v3688 = vrot.slane %v3679, %v3687
        %v3691 = vmul.f32 %v3677, %v3684
        %v3692 = vmul.f32 %v3678, %v3688
        %v3693 = vadd.f32 %v3691, 0.0
        %v3694 = vadd.f32 %v3692, 0.0
        %v3695 = vld [vmem:[#allocation3 + $0x90] sm:$0x3e]
        %v3696 = vld [vmem:[#allocation3 + $0x98] sm:$0x3e]
        %v3697 = vld [vmem:[%s3314] ss:$8 sm:$0x3]
        %v3699 = vlaneseq
        %v3700 = vshrl.u32 %v3699, 7
        %v3701 = vsub.s32 0, %v3700
        %v3702 = vrot.slane %v3697, %v3701
        %v3703 = vlaneseq
        %v3704 = vshrl.u32 %v3703, 7
        %v3705 = vsub.s32 1, %v3704
        %v3706 = vrot.slane %v3697, %v3705
        %v3709 = vmul.f32 %v3695, %v3702
        %v3710 = vmul.f32 %v3696, %v3706
        %v3713 = vrot.slane %v3709, 1
        %v3714 = vrot.slane %v3710, 1
        %v3717 = vadd.f32 %v3693, %v3713
        %v3718 = vadd.f32 %v3694, %v3714
        %v3719 = vld [vmem:[#allocation3 + $0x90] sm:$0x7c]
        %v3720 = vld [vmem:[#allocation3 + $0x98] sm:$0x7c]
        %v3721 = vld [vmem:[%s3339] ss:$8 sm:$0x3]
        %v3723 = vlaneseq
        %v3724 = vshrl.u32 %v3723, 7
        %v3725 = vsub.s32 0, %v3724
        %v3726 = vrot.slane %v3721, %v3725
        %v3727 = vlaneseq
        %v3728 = vshrl.u32 %v3727, 7
        %v3729 = vsub.s32 1, %v3728
        %v3730 = vrot.slane %v3721, %v3729
        %v3733 = vmul.f32 %v3719, %v3726
        %v3734 = vmul.f32 %v3720, %v3730
        %v3737 = vrot.slane %v3733, 2
        %v3738 = vrot.slane %v3734, 2
        %v3741 = vadd.f32 %v3717, %v3737
        %v3742 = vadd.f32 %v3718, %v3738
        %v3743 = vld [vmem:[#allocation3 + $0x90] sm:$0xf8]
        %v3744 = vld [vmem:[#allocation3 + $0x98] sm:$0xf8]
        %v3745 = vld [vmem:[%s3364] ss:$8 sm:$0x3]
        %v3747 = vlaneseq
        %v3748 = vshrl.u32 %v3747, 7
        %v3749 = vsub.s32 0, %v3748
        %v3750 = vrot.slane %v3745, %v3749
        %v3751 = vlaneseq
        %v3752 = vshrl.u32 %v3751, 7
        %v3753 = vsub.s32 1, %v3752
        %v3754 = vrot.slane %v3745, %v3753
        %v3757 = vmul.f32 %v3743, %v3750
        %v3758 = vmul.f32 %v3744, %v3754
        %v3761 = vrot.slane %v3757, 3
        %v3762 = vrot.slane %v3758, 3
        %v3765 = vadd.f32 %v3741, %v3761
        %v3766 = vadd.f32 %v3742, %v3762
        %v3767 = vld [vmem:[#allocation3 + $0xa0] sm:$0x1f]
        %v3768 = vld [vmem:[#allocation3 + $0xa8] sm:$0x1f]
        %v3769 = vld [vmem:[%s3389] ss:$8 sm:$0x3]
        %v3771 = vlaneseq
        %v3772 = vshrl.u32 %v3771, 7
        %v3773 = vsub.s32 0, %v3772
        %v3774 = vrot.slane %v3769, %v3773
        %v3775 = vlaneseq
        %v3776 = vshrl.u32 %v3775, 7
        %v3777 = vsub.s32 1, %v3776
        %v3778 = vrot.slane %v3769, %v3777
        %v3781 = vmul.f32 %v3767, %v3774
        %v3782 = vmul.f32 %v3768, %v3778
        %v3783 = vadd.f32 %v3765, %v3781
        %v3784 = vadd.f32 %v3766, %v3782
        %v3785 = vld [vmem:[#allocation3 + $0xa0] sm:$0x3e]
        %v3786 = vld [vmem:[#allocation3 + $0xa8] sm:$0x3e]
        %v3787 = vld [vmem:[%s3408] ss:$8 sm:$0x3]
        %v3789 = vlaneseq
        %v3790 = vshrl.u32 %v3789, 7
        %v3791 = vsub.s32 0, %v3790
        %v3792 = vrot.slane %v3787, %v3791
        %v3793 = vlaneseq
        %v3794 = vshrl.u32 %v3793, 7
        %v3795 = vsub.s32 1, %v3794
        %v3796 = vrot.slane %v3787, %v3795
        %v3799 = vmul.f32 %v3785, %v3792
        %v3800 = vmul.f32 %v3786, %v3796
        %v3803 = vrot.slane %v3799, 1
        %v3804 = vrot.slane %v3800, 1
        %v3807 = vadd.f32 %v3783, %v3803
        %v3808 = vadd.f32 %v3784, %v3804
        %v3809 = vld [vmem:[#allocation3 + $0xa0] sm:$0x7c]
        %v3810 = vld [vmem:[#allocation3 + $0xa8] sm:$0x7c]
        %v3811 = vld [vmem:[%s3433] ss:$8 sm:$0x3]
        %v3813 = vlaneseq
        %v3814 = vshrl.u32 %v3813, 7
        %v3815 = vsub.s32 0, %v3814
        %v3816 = vrot.slane %v3811, %v3815
        %v3817 = vlaneseq
        %v3818 = vshrl.u32 %v3817, 7
        %v3819 = vsub.s32 1, %v3818
        %v3820 = vrot.slane %v3811, %v3819
        %v3823 = vmul.f32 %v3809, %v3816
        %v3824 = vmul.f32 %v3810, %v3820
        %v3827 = vrot.slane %v3823, 2
        %v3828 = vrot.slane %v3824, 2
        %v3831 = vadd.f32 %v3807, %v3827
        %v3832 = vadd.f32 %v3808, %v3828
        %v3833 = vld [vmem:[#allocation3 + $0xa0] sm:$0xf8]
        %v3834 = vld [vmem:[#allocation3 + $0xa8] sm:$0xf8]
        %v3835 = vld [vmem:[%s3458] ss:$8 sm:$0x3]
        %v3837 = vlaneseq
        %v3838 = vshrl.u32 %v3837, 7
        %v3839 = vsub.s32 0, %v3838
        %v3840 = vrot.slane %v3835, %v3839
        %v3841 = vlaneseq
        %v3842 = vshrl.u32 %v3841, 7
        %v3843 = vsub.s32 1, %v3842
        %v3844 = vrot.slane %v3835, %v3843
        %v3847 = vmul.f32 %v3833, %v3840
        %v3848 = vmul.f32 %v3834, %v3844
        %v3851 = vrot.slane %v3847, 3
        %v3852 = vrot.slane %v3848, 3
        %v3855 = vadd.f32 %v3831, %v3851
        %v3856 = vadd.f32 %v3832, %v3852
        %v3857 = vld [vmem:[#allocation3 + $0xb0] sm:$0x1f]
        %v3858 = vld [vmem:[#allocation3 + $0xb8] sm:$0x1f]
        %v3859 = vld [vmem:[%s3483] ss:$8 sm:$0x3]
        %v3861 = vlaneseq
        %v3862 = vshrl.u32 %v3861, 7
        %v3863 = vsub.s32 0, %v3862
        %v3864 = vrot.slane %v3859, %v3863
        %v3865 = vlaneseq
        %v3866 = vshrl.u32 %v3865, 7
        %v3867 = vsub.s32 1, %v3866
        %v3868 = vrot.slane %v3859, %v3867
        %v3871 = vmul.f32 %v3857, %v3864
        %v3872 = vmul.f32 %v3858, %v3868
        %v3873 = vadd.f32 %v3855, %v3871
        %v3874 = vadd.f32 %v3856, %v3872
        %v3875 = vld [vmem:[#allocation3 + $0xb0] sm:$0x3e]
        %v3876 = vld [vmem:[#allocation3 + $0xb8] sm:$0x3e]
        %v3877 = vld [vmem:[%s3502] ss:$8 sm:$0x3]
        %v3879 = vlaneseq
        %v3880 = vshrl.u32 %v3879, 7
        %v3881 = vsub.s32 0, %v3880
        %v3882 = vrot.slane %v3877, %v3881
        %v3883 = vlaneseq
        %v3884 = vshrl.u32 %v3883, 7
        %v3885 = vsub.s32 1, %v3884
        %v3886 = vrot.slane %v3877, %v3885
        %v3889 = vmul.f32 %v3875, %v3882
        %v3890 = vmul.f32 %v3876, %v3886
        %v3893 = vrot.slane %v3889, 1
        %v3894 = vrot.slane %v3890, 1
        %v3897 = vadd.f32 %v3873, %v3893
        %v3898 = vadd.f32 %v3874, %v3894
        %v3899 = vld [vmem:[#allocation3 + $0xb0] sm:$0x7c]
        %v3900 = vld [vmem:[#allocation3 + $0xb8] sm:$0x7c]
        %v3901 = vld [vmem:[%s3527] ss:$8 sm:$0x3]
        %v3903 = vlaneseq
        %v3904 = vshrl.u32 %v3903, 7
        %v3905 = vsub.s32 0, %v3904
        %v3906 = vrot.slane %v3901, %v3905
        %v3907 = vlaneseq
        %v3908 = vshrl.u32 %v3907, 7
        %v3909 = vsub.s32 1, %v3908
        %v3910 = vrot.slane %v3901, %v3909
        %v3913 = vmul.f32 %v3899, %v3906
        %v3914 = vmul.f32 %v3900, %v3910
        %v3917 = vrot.slane %v3913, 2
        %v3918 = vrot.slane %v3914, 2
        %v3921 = vadd.f32 %v3897, %v3917
        %v3922 = vadd.f32 %v3898, %v3918
        %v3923 = vld [vmem:[#allocation3 + $0xb0] sm:$0xf8]
        %v3924 = vld [vmem:[#allocation3 + $0xb8] sm:$0xf8]
        %v3925 = vld [vmem:[%s3552] ss:$8 sm:$0x3]
        %v3927 = vlaneseq
        %v3928 = vshrl.u32 %v3927, 7
        %v3929 = vsub.s32 0, %v3928
        %v3930 = vrot.slane %v3925, %v3929
        %v3931 = vlaneseq
        %v3932 = vshrl.u32 %v3931, 7
        %v3933 = vsub.s32 1, %v3932
        %v3934 = vrot.slane %v3925, %v3933
        %v3937 = vmul.f32 %v3923, %v3930
        %v3938 = vmul.f32 %v3924, %v3934
        %v3941 = vrot.slane %v3937, 3
        %v3942 = vrot.slane %v3938, 3
        %v3945 = vadd.f32 %v3921, %v3941
        %v3946 = vadd.f32 %v3922, %v3942
        %v3947 = vld [vmem:[#allocation3 + $0xc0] sm:$0x1f]
        %v3948 = vld [vmem:[#allocation3 + $0xc8] sm:$0x1f]
        %v3949 = vld [vmem:[%s3577] ss:$8 sm:$0x3]
        %v3951 = vlaneseq
        %v3952 = vshrl.u32 %v3951, 7
        %v3953 = vsub.s32 0, %v3952
        %v3954 = vrot.slane %v3949, %v3953
        %v3955 = vlaneseq
        %v3956 = vshrl.u32 %v3955, 7
        %v3957 = vsub.s32 1, %v3956
        %v3958 = vrot.slane %v3949, %v3957
        %v3961 = vmul.f32 %v3947, %v3954
        %v3962 = vmul.f32 %v3948, %v3958
        %v3963 = vadd.f32 %v3945, %v3961
        %v3964 = vadd.f32 %v3946, %v3962
        %v3965 = vld [vmem:[#allocation3 + $0xc0] sm:$0x3e]
        %v3966 = vld [vmem:[#allocation3 + $0xc8] sm:$0x3e]
        %v3967 = vld [vmem:[%s3596] ss:$8 sm:$0x3]
        %v3969 = vlaneseq
        %v3970 = vshrl.u32 %v3969, 7
        %v3971 = vsub.s32 0, %v3970
        %v3972 = vrot.slane %v3967, %v3971
        %v3973 = vlaneseq
        %v3974 = vshrl.u32 %v3973, 7
        %v3975 = vsub.s32 1, %v3974
        %v3976 = vrot.slane %v3967, %v3975
        %v3979 = vmul.f32 %v3965, %v3972
        %v3980 = vmul.f32 %v3966, %v3976
        %v3983 = vrot.slane %v3979, 1
        %v3984 = vrot.slane %v3980, 1
        %v3987 = vadd.f32 %v3963, %v3983
        %v3988 = vadd.f32 %v3964, %v3984
        %v3989 = vld [vmem:[#allocation3 + $0xc0] sm:$0x7c]
        %v3990 = vld [vmem:[#allocation3 + $0xc8] sm:$0x7c]
        %v3991 = vld [vmem:[%s3621] ss:$8 sm:$0x3]
        %v3993 = vlaneseq
        %v3994 = vshrl.u32 %v3993, 7
        %v3995 = vsub.s32 0, %v3994
        %v3996 = vrot.slane %v3991, %v3995
        %v3997 = vlaneseq
        %v3998 = vshrl.u32 %v3997, 7
        %v3999 = vsub.s32 1, %v3998
        %v4000 = vrot.slane %v3991, %v3999
        %v4003 = vmul.f32 %v3989, %v3996
        %v4004 = vmul.f32 %v3990, %v4000
        %v4007 = vrot.slane %v4003, 2
        %v4008 = vrot.slane %v4004, 2
        %v4011 = vadd.f32 %v3987, %v4007
        %v4012 = vadd.f32 %v3988, %v4008
        %v4013 = vld [vmem:[#allocation3 + $0xc0] sm:$0xf8]
        %v4014 = vld [vmem:[#allocation3 + $0xc8] sm:$0xf8]
        %v4015 = vld [vmem:[%s3646] ss:$8 sm:$0x3]
        %v4017 = vlaneseq
        %v4018 = vshrl.u32 %v4017, 7
        %v4019 = vsub.s32 0, %v4018
        %v4020 = vrot.slane %v4015, %v4019
        %v4021 = vlaneseq
        %v4022 = vshrl.u32 %v4021, 7
        %v4023 = vsub.s32 1, %v4022
        %v4024 = vrot.slane %v4015, %v4023
        %v4027 = vmul.f32 %v4013, %v4020
        %v4028 = vmul.f32 %v4014, %v4024
        %v4031 = vrot.slane %v4027, 3
        %v4032 = vrot.slane %v4028, 3
        %v4035 = vadd.f32 %v4011, %v4031
        %v4036 = vadd.f32 %v4012, %v4032
        %4037 = vst [vmem:[#allocation4 + $0x90] sm:$0x1f] %v4035
        %4038 = vst [vmem:[#allocation4 + $0x98] sm:$0x1f] %v4036
        %v4039 = vld [vmem:[#allocation3 + $0xa0] sm:$0x1f]
        %v4040 = vld [vmem:[#allocation3 + $0xa8] sm:$0x1f]
        %v4041 = vld [vmem:[%s3295] ss:$8 sm:$0x3]
        %v4043 = vlaneseq
        %v4044 = vshrl.u32 %v4043, 7
        %v4045 = vsub.s32 0, %v4044
        %v4046 = vrot.slane %v4041, %v4045
        %v4047 = vlaneseq
        %v4048 = vshrl.u32 %v4047, 7
        %v4049 = vsub.s32 1, %v4048
        %v4050 = vrot.slane %v4041, %v4049
        %v4053 = vmul.f32 %v4039, %v4046
        %v4054 = vmul.f32 %v4040, %v4050
        %v4055 = vadd.f32 %v4053, 0.0
        %v4056 = vadd.f32 %v4054, 0.0
        %v4057 = vld [vmem:[#allocation3 + $0xa0] sm:$0x3e]
        %v4058 = vld [vmem:[#allocation3 + $0xa8] sm:$0x3e]
        %v4059 = vld [vmem:[%s3314] ss:$8 sm:$0x3]
        %v4061 = vlaneseq
        %v4062 = vshrl.u32 %v4061, 7
        %v4063 = vsub.s32 0, %v4062
        %v4064 = vrot.slane %v4059, %v4063
        %v4065 = vlaneseq
        %v4066 = vshrl.u32 %v4065, 7
        %v4067 = vsub.s32 1, %v4066
        %v4068 = vrot.slane %v4059, %v4067
        %v4071 = vmul.f32 %v4057, %v4064
        %v4072 = vmul.f32 %v4058, %v4068
        %v4075 = vrot.slane %v4071, 1
        %v4076 = vrot.slane %v4072, 1
        %v4079 = vadd.f32 %v4055, %v4075
        %v4080 = vadd.f32 %v4056, %v4076
        %v4081 = vld [vmem:[#allocation3 + $0xa0] sm:$0x7c]
        %v4082 = vld [vmem:[#allocation3 + $0xa8] sm:$0x7c]
        %v4083 = vld [vmem:[%s3339] ss:$8 sm:$0x3]
        %v4085 = vlaneseq
        %v4086 = vshrl.u32 %v4085, 7
        %v4087 = vsub.s32 0, %v4086
        %v4088 = vrot.slane %v4083, %v4087
        %v4089 = vlaneseq
        %v4090 = vshrl.u32 %v4089, 7
        %v4091 = vsub.s32 1, %v4090
        %v4092 = vrot.slane %v4083, %v4091
        %v4095 = vmul.f32 %v4081, %v4088
        %v4096 = vmul.f32 %v4082, %v4092
        %v4099 = vrot.slane %v4095, 2
        %v4100 = vrot.slane %v4096, 2
        %v4103 = vadd.f32 %v4079, %v4099
        %v4104 = vadd.f32 %v4080, %v4100
        %v4105 = vld [vmem:[#allocation3 + $0xa0] sm:$0xf8]
        %v4106 = vld [vmem:[#allocation3 + $0xa8] sm:$0xf8]
        %v4107 = vld [vmem:[%s3364] ss:$8 sm:$0x3]
        %v4109 = vlaneseq
        %v4110 = vshrl.u32 %v4109, 7
        %v4111 = vsub.s32 0, %v4110
        %v4112 = vrot.slane %v4107, %v4111
        %v4113 = vlaneseq
        %v4114 = vshrl.u32 %v4113, 7
        %v4115 = vsub.s32 1, %v4114
        %v4116 = vrot.slane %v4107, %v4115
        %v4119 = vmul.f32 %v4105, %v4112
        %v4120 = vmul.f32 %v4106, %v4116
        %v4123 = vrot.slane %v4119, 3
        %v4124 = vrot.slane %v4120, 3
        %v4127 = vadd.f32 %v4103, %v4123
        %v4128 = vadd.f32 %v4104, %v4124
        %v4129 = vld [vmem:[#allocation3 + $0xb0] sm:$0x1f]
        %v4130 = vld [vmem:[#allocation3 + $0xb8] sm:$0x1f]
        %v4131 = vld [vmem:[%s3389] ss:$8 sm:$0x3]
        %v4133 = vlaneseq
        %v4134 = vshrl.u32 %v4133, 7
        %v4135 = vsub.s32 0, %v4134
        %v4136 = vrot.slane %v4131, %v4135
        %v4137 = vlaneseq
        %v4138 = vshrl.u32 %v4137, 7
        %v4139 = vsub.s32 1, %v4138
        %v4140 = vrot.slane %v4131, %v4139
        %v4143 = vmul.f32 %v4129, %v4136
        %v4144 = vmul.f32 %v4130, %v4140
        %v4145 = vadd.f32 %v4127, %v4143
        %v4146 = vadd.f32 %v4128, %v4144
        %v4147 = vld [vmem:[#allocation3 + $0xb0] sm:$0x3e]
        %v4148 = vld [vmem:[#allocation3 + $0xb8] sm:$0x3e]
        %v4149 = vld [vmem:[%s3408] ss:$8 sm:$0x3]
        %v4151 = vlaneseq
        %v4152 = vshrl.u32 %v4151, 7
        %v4153 = vsub.s32 0, %v4152
        %v4154 = vrot.slane %v4149, %v4153
        %v4155 = vlaneseq
        %v4156 = vshrl.u32 %v4155, 7
        %v4157 = vsub.s32 1, %v4156
        %v4158 = vrot.slane %v4149, %v4157
        %v4161 = vmul.f32 %v4147, %v4154
        %v4162 = vmul.f32 %v4148, %v4158
        %v4165 = vrot.slane %v4161, 1
        %v4166 = vrot.slane %v4162, 1
        %v4169 = vadd.f32 %v4145, %v4165
        %v4170 = vadd.f32 %v4146, %v4166
        %v4171 = vld [vmem:[#allocation3 + $0xb0] sm:$0x7c]
        %v4172 = vld [vmem:[#allocation3 + $0xb8] sm:$0x7c]
        %v4173 = vld [vmem:[%s3433] ss:$8 sm:$0x3]
        %v4175 = vlaneseq
        %v4176 = vshrl.u32 %v4175, 7
        %v4177 = vsub.s32 0, %v4176
        %v4178 = vrot.slane %v4173, %v4177
        %v4179 = vlaneseq
        %v4180 = vshrl.u32 %v4179, 7
        %v4181 = vsub.s32 1, %v4180
        %v4182 = vrot.slane %v4173, %v4181
        %v4185 = vmul.f32 %v4171, %v4178
        %v4186 = vmul.f32 %v4172, %v4182
        %v4189 = vrot.slane %v4185, 2
        %v4190 = vrot.slane %v4186, 2
        %v4193 = vadd.f32 %v4169, %v4189
        %v4194 = vadd.f32 %v4170, %v4190
        %v4195 = vld [vmem:[#allocation3 + $0xb0] sm:$0xf8]
        %v4196 = vld [vmem:[#allocation3 + $0xb8] sm:$0xf8]
        %v4197 = vld [vmem:[%s3458] ss:$8 sm:$0x3]
        %v4199 = vlaneseq
        %v4200 = vshrl.u32 %v4199, 7
        %v4201 = vsub.s32 0, %v4200
        %v4202 = vrot.slane %v4197, %v4201
        %v4203 = vlaneseq
        %v4204 = vshrl.u32 %v4203, 7
        %v4205 = vsub.s32 1, %v4204
        %v4206 = vrot.slane %v4197, %v4205
        %v4209 = vmul.f32 %v4195, %v4202
        %v4210 = vmul.f32 %v4196, %v4206
        %v4213 = vrot.slane %v4209, 3
        %v4214 = vrot.slane %v4210, 3
        %v4217 = vadd.f32 %v4193, %v4213
        %v4218 = vadd.f32 %v4194, %v4214
        %v4219 = vld [vmem:[#allocation3 + $0xc0] sm:$0x1f]
        %v4220 = vld [vmem:[#allocation3 + $0xc8] sm:$0x1f]
        %v4221 = vld [vmem:[%s3483] ss:$8 sm:$0x3]
        %v4223 = vlaneseq
        %v4224 = vshrl.u32 %v4223, 7
        %v4225 = vsub.s32 0, %v4224
        %v4226 = vrot.slane %v4221, %v4225
        %v4227 = vlaneseq
        %v4228 = vshrl.u32 %v4227, 7
        %v4229 = vsub.s32 1, %v4228
        %v4230 = vrot.slane %v4221, %v4229
        %v4233 = vmul.f32 %v4219, %v4226
        %v4234 = vmul.f32 %v4220, %v4230
        %v4235 = vadd.f32 %v4217, %v4233
        %v4236 = vadd.f32 %v4218, %v4234
        %v4237 = vld [vmem:[#allocation3 + $0xc0] sm:$0x3e]
        %v4238 = vld [vmem:[#allocation3 + $0xc8] sm:$0x3e]
        %v4239 = vld [vmem:[%s3502] ss:$8 sm:$0x3]
        %v4241 = vlaneseq
        %v4242 = vshrl.u32 %v4241, 7
        %v4243 = vsub.s32 0, %v4242
        %v4244 = vrot.slane %v4239, %v4243
        %v4245 = vlaneseq
        %v4246 = vshrl.u32 %v4245, 7
        %v4247 = vsub.s32 1, %v4246
        %v4248 = vrot.slane %v4239, %v4247
        %v4251 = vmul.f32 %v4237, %v4244
        %v4252 = vmul.f32 %v4238, %v4248
        %v4255 = vrot.slane %v4251, 1
        %v4256 = vrot.slane %v4252, 1
        %v4259 = vadd.f32 %v4235, %v4255
        %v4260 = vadd.f32 %v4236, %v4256
        %v4261 = vld [vmem:[#allocation3 + $0xc0] sm:$0x7c]
        %v4262 = vld [vmem:[#allocation3 + $0xc8] sm:$0x7c]
        %v4263 = vld [vmem:[%s3527] ss:$8 sm:$0x3]
        %v4265 = vlaneseq
        %v4266 = vshrl.u32 %v4265, 7
        %v4267 = vsub.s32 0, %v4266
        %v4268 = vrot.slane %v4263, %v4267
        %v4269 = vlaneseq
        %v4270 = vshrl.u32 %v4269, 7
        %v4271 = vsub.s32 1, %v4270
        %v4272 = vrot.slane %v4263, %v4271
        %v4275 = vmul.f32 %v4261, %v4268
        %v4276 = vmul.f32 %v4262, %v4272
        %v4279 = vrot.slane %v4275, 2
        %v4280 = vrot.slane %v4276, 2
        %v4283 = vadd.f32 %v4259, %v4279
        %v4284 = vadd.f32 %v4260, %v4280
        %v4285 = vld [vmem:[#allocation3 + $0xc0] sm:$0xf8]
        %v4286 = vld [vmem:[#allocation3 + $0xc8] sm:$0xf8]
        %v4287 = vld [vmem:[%s3552] ss:$8 sm:$0x3]
        %v4289 = vlaneseq
        %v4290 = vshrl.u32 %v4289, 7
        %v4291 = vsub.s32 0, %v4290
        %v4292 = vrot.slane %v4287, %v4291
        %v4293 = vlaneseq
        %v4294 = vshrl.u32 %v4293, 7
        %v4295 = vsub.s32 1, %v4294
        %v4296 = vrot.slane %v4287, %v4295
        %v4299 = vmul.f32 %v4285, %v4292
        %v4300 = vmul.f32 %v4286, %v4296
        %v4303 = vrot.slane %v4299, 3
        %v4304 = vrot.slane %v4300, 3
        %v4307 = vadd.f32 %v4283, %v4303
        %v4308 = vadd.f32 %v4284, %v4304
        %v4309 = vld [vmem:[#allocation3 + $0xd0] sm:$0x1f]
        %v4310 = vld [vmem:[#allocation3 + $0xd8] sm:$0x1f]
        %v4311 = vld [vmem:[%s3577] ss:$8 sm:$0x3]
        %v4313 = vlaneseq
        %v4314 = vshrl.u32 %v4313, 7
        %v4315 = vsub.s32 0, %v4314
        %v4316 = vrot.slane %v4311, %v4315
        %v4317 = vlaneseq
        %v4318 = vshrl.u32 %v4317, 7
        %v4319 = vsub.s32 1, %v4318
        %v4320 = vrot.slane %v4311, %v4319
        %v4323 = vmul.f32 %v4309, %v4316
        %v4324 = vmul.f32 %v4310, %v4320
        %v4325 = vadd.f32 %v4307, %v4323
        %v4326 = vadd.f32 %v4308, %v4324
        %v4327 = vld [vmem:[#allocation3 + $0xd0] sm:$0x3e]
        %v4328 = vld [vmem:[#allocation3 + $0xd8] sm:$0x3e]
        %v4329 = vld [vmem:[%s3596] ss:$8 sm:$0x3]
        %v4331 = vlaneseq
        %v4332 = vshrl.u32 %v4331, 7
        %v4333 = vsub.s32 0, %v4332
        %v4334 = vrot.slane %v4329, %v4333
        %v4335 = vlaneseq
        %v4336 = vshrl.u32 %v4335, 7
        %v4337 = vsub.s32 1, %v4336
        %v4338 = vrot.slane %v4329, %v4337
        %v4341 = vmul.f32 %v4327, %v4334
        %v4342 = vmul.f32 %v4328, %v4338
        %v4345 = vrot.slane %v4341, 1
        %v4346 = vrot.slane %v4342, 1
        %v4349 = vadd.f32 %v4325, %v4345
        %v4350 = vadd.f32 %v4326, %v4346
        %v4351 = vld [vmem:[#allocation3 + $0xd0] sm:$0x7c]
        %v4352 = vld [vmem:[#allocation3 + $0xd8] sm:$0x7c]
        %v4353 = vld [vmem:[%s3621] ss:$8 sm:$0x3]
        %v4355 = vlaneseq
        %v4356 = vshrl.u32 %v4355, 7
        %v4357 = vsub.s32 0, %v4356
        %v4358 = vrot.slane %v4353, %v4357
        %v4359 = vlaneseq
        %v4360 = vshrl.u32 %v4359, 7
        %v4361 = vsub.s32 1, %v4360
        %v4362 = vrot.slane %v4353, %v4361
        %v4365 = vmul.f32 %v4351, %v4358
        %v4366 = vmul.f32 %v4352, %v4362
        %v4369 = vrot.slane %v4365, 2
        %v4370 = vrot.slane %v4366, 2
        %v4373 = vadd.f32 %v4349, %v4369
        %v4374 = vadd.f32 %v4350, %v4370
        %v4375 = vld [vmem:[#allocation3 + $0xd0] sm:$0xf8]
        %v4376 = vld [vmem:[#allocation3 + $0xd8] sm:$0xf8]
        %v4377 = vld [vmem:[%s3646] ss:$8 sm:$0x3]
        %v4379 = vlaneseq
        %v4380 = vshrl.u32 %v4379, 7
        %v4381 = vsub.s32 0, %v4380
        %v4382 = vrot.slane %v4377, %v4381
        %v4383 = vlaneseq
        %v4384 = vshrl.u32 %v4383, 7
        %v4385 = vsub.s32 1, %v4384
        %v4386 = vrot.slane %v4377, %v4385
        %v4389 = vmul.f32 %v4375, %v4382
        %v4390 = vmul.f32 %v4376, %v4386
        %v4393 = vrot.slane %v4389, 3
        %v4394 = vrot.slane %v4390, 3
        %v4397 = vadd.f32 %v4373, %v4393
        %v4398 = vadd.f32 %v4374, %v4394
        %v4401 = vrot.slane %v4397, 1
        %v4402 = vrot.slane %v4398, 1
        %4405 = vst [vmem:[#allocation4 + $0x90] sm:$0x80] %v4401
        %4406 = vst [vmem:[#allocation4 + $0x98] sm:$0x80] %v4402
        %4407 = vst [vmem:[#allocation4 + $0xa0] sm:$0xf] %v4401
        %4408 = vst [vmem:[#allocation4 + $0xa8] sm:$0xf] %v4402
        %v4409 = vld [vmem:[#allocation3 + $0xb0] sm:$0x1f]
        %v4410 = vld [vmem:[#allocation3 + $0xb8] sm:$0x1f]
        %v4411 = vld [vmem:[%s3295] ss:$8 sm:$0x3]
        %v4413 = vlaneseq
        %v4414 = vshrl.u32 %v4413, 7
        %v4415 = vsub.s32 0, %v4414
        %v4416 = vrot.slane %v4411, %v4415
        %v4417 = vlaneseq
        %v4418 = vshrl.u32 %v4417, 7
        %v4419 = vsub.s32 1, %v4418
        %v4420 = vrot.slane %v4411, %v4419
        %v4423 = vmul.f32 %v4409, %v4416
        %v4424 = vmul.f32 %v4410, %v4420
        %v4425 = vadd.f32 %v4423, 0.0
        %v4426 = vadd.f32 %v4424, 0.0
        %v4427 = vld [vmem:[#allocation3 + $0xb0] sm:$0x3e]
        %v4428 = vld [vmem:[#allocation3 + $0xb8] sm:$0x3e]
        %v4429 = vld [vmem:[%s3314] ss:$8 sm:$0x3]
        %v4431 = vlaneseq
        %v4432 = vshrl.u32 %v4431, 7
        %v4433 = vsub.s32 0, %v4432
        %v4434 = vrot.slane %v4429, %v4433
        %v4435 = vlaneseq
        %v4436 = vshrl.u32 %v4435, 7
        %v4437 = vsub.s32 1, %v4436
        %v4438 = vrot.slane %v4429, %v4437
        %v4441 = vmul.f32 %v4427, %v4434
        %v4442 = vmul.f32 %v4428, %v4438
        %v4445 = vrot.slane %v4441, 1
        %v4446 = vrot.slane %v4442, 1
        %v4449 = vadd.f32 %v4425, %v4445
        %v4450 = vadd.f32 %v4426, %v4446
        %v4451 = vld [vmem:[#allocation3 + $0xb0] sm:$0x7c]
        %v4452 = vld [vmem:[#allocation3 + $0xb8] sm:$0x7c]
        %v4453 = vld [vmem:[%s3339] ss:$8 sm:$0x3]
        %v4455 = vlaneseq
        %v4456 = vshrl.u32 %v4455, 7
        %v4457 = vsub.s32 0, %v4456
        %v4458 = vrot.slane %v4453, %v4457
        %v4459 = vlaneseq
        %v4460 = vshrl.u32 %v4459, 7
        %v4461 = vsub.s32 1, %v4460
        %v4462 = vrot.slane %v4453, %v4461
        %v4465 = vmul.f32 %v4451, %v4458
        %v4466 = vmul.f32 %v4452, %v4462
        %v4469 = vrot.slane %v4465, 2
        %v4470 = vrot.slane %v4466, 2
        %v4473 = vadd.f32 %v4449, %v4469
        %v4474 = vadd.f32 %v4450, %v4470
        %v4475 = vld [vmem:[#allocation3 + $0xb0] sm:$0xf8]
        %v4476 = vld [vmem:[#allocation3 + $0xb8] sm:$0xf8]
        %v4477 = vld [vmem:[%s3364] ss:$8 sm:$0x3]
        %v4479 = vlaneseq
        %v4480 = vshrl.u32 %v4479, 7
        %v4481 = vsub.s32 0, %v4480
        %v4482 = vrot.slane %v4477, %v4481
        %v4483 = vlaneseq
        %v4484 = vshrl.u32 %v4483, 7
        %v4485 = vsub.s32 1, %v4484
        %v4486 = vrot.slane %v4477, %v4485
        %v4489 = vmul.f32 %v4475, %v4482
        %v4490 = vmul.f32 %v4476, %v4486
        %v4493 = vrot.slane %v4489, 3
        %v4494 = vrot.slane %v4490, 3
        %v4497 = vadd.f32 %v4473, %v4493
        %v4498 = vadd.f32 %v4474, %v4494
        %v4499 = vld [vmem:[#allocation3 + $0xc0] sm:$0x1f]
        %v4500 = vld [vmem:[#allocation3 + $0xc8] sm:$0x1f]
        %v4501 = vld [vmem:[%s3389] ss:$8 sm:$0x3]
        %v4503 = vlaneseq
        %v4504 = vshrl.u32 %v4503, 7
        %v4505 = vsub.s32 0, %v4504
        %v4506 = vrot.slane %v4501, %v4505
        %v4507 = vlaneseq
        %v4508 = vshrl.u32 %v4507, 7
        %v4509 = vsub.s32 1, %v4508
        %v4510 = vrot.slane %v4501, %v4509
        %v4513 = vmul.f32 %v4499, %v4506
        %v4514 = vmul.f32 %v4500, %v4510
        %v4515 = vadd.f32 %v4497, %v4513
        %v4516 = vadd.f32 %v4498, %v4514
        %v4517 = vld [vmem:[#allocation3 + $0xc0] sm:$0x3e]
        %v4518 = vld [vmem:[#allocation3 + $0xc8] sm:$0x3e]
        %v4519 = vld [vmem:[%s3408] ss:$8 sm:$0x3]
        %v4521 = vlaneseq
        %v4522 = vshrl.u32 %v4521, 7
        %v4523 = vsub.s32 0, %v4522
        %v4524 = vrot.slane %v4519, %v4523
        %v4525 = vlaneseq
        %v4526 = vshrl.u32 %v4525, 7
        %v4527 = vsub.s32 1, %v4526
        %v4528 = vrot.slane %v4519, %v4527
        %v4531 = vmul.f32 %v4517, %v4524
        %v4532 = vmul.f32 %v4518, %v4528
        %v4535 = vrot.slane %v4531, 1
        %v4536 = vrot.slane %v4532, 1
        %v4539 = vadd.f32 %v4515, %v4535
        %v4540 = vadd.f32 %v4516, %v4536
        %v4541 = vld [vmem:[#allocation3 + $0xc0] sm:$0x7c]
        %v4542 = vld [vmem:[#allocation3 + $0xc8] sm:$0x7c]
        %v4543 = vld [vmem:[%s3433] ss:$8 sm:$0x3]
        %v4545 = vlaneseq
        %v4546 = vshrl.u32 %v4545, 7
        %v4547 = vsub.s32 0, %v4546
        %v4548 = vrot.slane %v4543, %v4547
        %v4549 = vlaneseq
        %v4550 = vshrl.u32 %v4549, 7
        %v4551 = vsub.s32 1, %v4550
        %v4552 = vrot.slane %v4543, %v4551
        %v4555 = vmul.f32 %v4541, %v4548
        %v4556 = vmul.f32 %v4542, %v4552
        %v4559 = vrot.slane %v4555, 2
        %v4560 = vrot.slane %v4556, 2
        %v4563 = vadd.f32 %v4539, %v4559
        %v4564 = vadd.f32 %v4540, %v4560
        %v4565 = vld [vmem:[#allocation3 + $0xc0] sm:$0xf8]
        %v4566 = vld [vmem:[#allocation3 + $0xc8] sm:$0xf8]
        %v4567 = vld [vmem:[%s3458] ss:$8 sm:$0x3]
        %v4569 = vlaneseq
        %v4570 = vshrl.u32 %v4569, 7
        %v4571 = vsub.s32 0, %v4570
        %v4572 = vrot.slane %v4567, %v4571
        %v4573 = vlaneseq
        %v4574 = vshrl.u32 %v4573, 7
        %v4575 = vsub.s32 1, %v4574
        %v4576 = vrot.slane %v4567, %v4575
        %v4579 = vmul.f32 %v4565, %v4572
        %v4580 = vmul.f32 %v4566, %v4576
        %v4583 = vrot.slane %v4579, 3
        %v4584 = vrot.slane %v4580, 3
        %v4587 = vadd.f32 %v4563, %v4583
        %v4588 = vadd.f32 %v4564, %v4584
        %v4589 = vld [vmem:[#allocation3 + $0xd0] sm:$0x1f]
        %v4590 = vld [vmem:[#allocation3 + $0xd8] sm:$0x1f]
        %v4591 = vld [vmem:[%s3483] ss:$8 sm:$0x3]
        %v4593 = vlaneseq
        %v4594 = vshrl.u32 %v4593, 7
        %v4595 = vsub.s32 0, %v4594
        %v4596 = vrot.slane %v4591, %v4595
        %v4597 = vlaneseq
        %v4598 = vshrl.u32 %v4597, 7
        %v4599 = vsub.s32 1, %v4598
        %v4600 = vrot.slane %v4591, %v4599
        %v4603 = vmul.f32 %v4589, %v4596
        %v4604 = vmul.f32 %v4590, %v4600
        %v4605 = vadd.f32 %v4587, %v4603
        %v4606 = vadd.f32 %v4588, %v4604
        %v4607 = vld [vmem:[#allocation3 + $0xd0] sm:$0x3e]
        %v4608 = vld [vmem:[#allocation3 + $0xd8] sm:$0x3e]
        %v4609 = vld [vmem:[%s3502] ss:$8 sm:$0x3]
        %v4611 = vlaneseq
        %v4612 = vshrl.u32 %v4611, 7
        %v4613 = vsub.s32 0, %v4612
        %v4614 = vrot.slane %v4609, %v4613
        %v4615 = vlaneseq
        %v4616 = vshrl.u32 %v4615, 7
        %v4617 = vsub.s32 1, %v4616
        %v4618 = vrot.slane %v4609, %v4617
        %v4621 = vmul.f32 %v4607, %v4614
        %v4622 = vmul.f32 %v4608, %v4618
        %v4625 = vrot.slane %v4621, 1
        %v4626 = vrot.slane %v4622, 1
        %v4629 = vadd.f32 %v4605, %v4625
        %v4630 = vadd.f32 %v4606, %v4626
        %v4631 = vld [vmem:[#allocation3 + $0xd0] sm:$0x7c]
        %v4632 = vld [vmem:[#allocation3 + $0xd8] sm:$0x7c]
        %v4633 = vld [vmem:[%s3527] ss:$8 sm:$0x3]
        %v4635 = vlaneseq
        %v4636 = vshrl.u32 %v4635, 7
        %v4637 = vsub.s32 0, %v4636
        %v4638 = vrot.slane %v4633, %v4637
        %v4639 = vlaneseq
        %v4640 = vshrl.u32 %v4639, 7
        %v4641 = vsub.s32 1, %v4640
        %v4642 = vrot.slane %v4633, %v4641
        %v4645 = vmul.f32 %v4631, %v4638
        %v4646 = vmul.f32 %v4632, %v4642
        %v4649 = vrot.slane %v4645, 2
        %v4650 = vrot.slane %v4646, 2
        %v4653 = vadd.f32 %v4629, %v4649
        %v4654 = vadd.f32 %v4630, %v4650
        %v4655 = vld [vmem:[#allocation3 + $0xd0] sm:$0xf8]
        %v4656 = vld [vmem:[#allocation3 + $0xd8] sm:$0xf8]
        %v4657 = vld [vmem:[%s3552] ss:$8 sm:$0x3]
        %v4659 = vlaneseq
        %v4660 = vshrl.u32 %v4659, 7
        %v4661 = vsub.s32 0, %v4660
        %v4662 = vrot.slane %v4657, %v4661
        %v4663 = vlaneseq
        %v4664 = vshrl.u32 %v4663, 7
        %v4665 = vsub.s32 1, %v4664
        %v4666 = vrot.slane %v4657, %v4665
        %v4669 = vmul.f32 %v4655, %v4662
        %v4670 = vmul.f32 %v4656, %v4666
        %v4673 = vrot.slane %v4669, 3
        %v4674 = vrot.slane %v4670, 3
        %v4677 = vadd.f32 %v4653, %v4673
        %v4678 = vadd.f32 %v4654, %v4674
        %v4679 = vld [vmem:[#allocation3 + $0xe0] sm:$0x1f]
        %v4680 = vld [vmem:[#allocation3 + $0xe8] sm:$0x1f]
        %v4681 = vld [vmem:[%s3577] ss:$8 sm:$0x3]
        %v4683 = vlaneseq
        %v4684 = vshrl.u32 %v4683, 7
        %v4685 = vsub.s32 0, %v4684
        %v4686 = vrot.slane %v4681, %v4685
        %v4687 = vlaneseq
        %v4688 = vshrl.u32 %v4687, 7
        %v4689 = vsub.s32 1, %v4688
        %v4690 = vrot.slane %v4681, %v4689
        %v4693 = vmul.f32 %v4679, %v4686
        %v4694 = vmul.f32 %v4680, %v4690
        %v4695 = vadd.f32 %v4677, %v4693
        %v4696 = vadd.f32 %v4678, %v4694
        %v4697 = vld [vmem:[#allocation3 + $0xe0] sm:$0x3e]
        %v4698 = vld [vmem:[#allocation3 + $0xe8] sm:$0x3e]
        %v4699 = vld [vmem:[%s3596] ss:$8 sm:$0x3]
        %v4701 = vlaneseq
        %v4702 = vshrl.u32 %v4701, 7
        %v4703 = vsub.s32 0, %v4702
        %v4704 = vrot.slane %v4699, %v4703
        %v4705 = vlaneseq
        %v4706 = vshrl.u32 %v4705, 7
        %v4707 = vsub.s32 1, %v4706
        %v4708 = vrot.slane %v4699, %v4707
        %v4711 = vmul.f32 %v4697, %v4704
        %v4712 = vmul.f32 %v4698, %v4708
        %v4715 = vrot.slane %v4711, 1
        %v4716 = vrot.slane %v4712, 1
        %v4719 = vadd.f32 %v4695, %v4715
        %v4720 = vadd.f32 %v4696, %v4716
        %v4721 = vld [vmem:[#allocation3 + $0xe0] sm:$0x7c]
        %v4722 = vld [vmem:[#allocation3 + $0xe8] sm:$0x7c]
        %v4723 = vld [vmem:[%s3621] ss:$8 sm:$0x3]
        %v4725 = vlaneseq
        %v4726 = vshrl.u32 %v4725, 7
        %v4727 = vsub.s32 0, %v4726
        %v4728 = vrot.slane %v4723, %v4727
        %v4729 = vlaneseq
        %v4730 = vshrl.u32 %v4729, 7
        %v4731 = vsub.s32 1, %v4730
        %v4732 = vrot.slane %v4723, %v4731
        %v4735 = vmul.f32 %v4721, %v4728
        %v4736 = vmul.f32 %v4722, %v4732
        %v4739 = vrot.slane %v4735, 2
        %v4740 = vrot.slane %v4736, 2
        %v4743 = vadd.f32 %v4719, %v4739
        %v4744 = vadd.f32 %v4720, %v4740
        %v4745 = vld [vmem:[#allocation3 + $0xe0] sm:$0xf8]
        %v4746 = vld [vmem:[#allocation3 + $0xe8] sm:$0xf8]
        %v4747 = vld [vmem:[%s3646] ss:$8 sm:$0x3]
        %v4749 = vlaneseq
        %v4750 = vshrl.u32 %v4749, 7
        %v4751 = vsub.s32 0, %v4750
        %v4752 = vrot.slane %v4747, %v4751
        %v4753 = vlaneseq
        %v4754 = vshrl.u32 %v4753, 7
        %v4755 = vsub.s32 1, %v4754
        %v4756 = vrot.slane %v4747, %v4755
        %v4759 = vmul.f32 %v4745, %v4752
        %v4760 = vmul.f32 %v4746, %v4756
        %v4763 = vrot.slane %v4759, 3
        %v4764 = vrot.slane %v4760, 3
        %v4767 = vadd.f32 %v4743, %v4763
        %v4768 = vadd.f32 %v4744, %v4764
        %v4771 = vrot.slane %v4767, 2
        %v4772 = vrot.slane %v4768, 2
        %4775 = vst [vmem:[#allocation4 + $0xa0] sm:$0xc0] %v4771
        %4776 = vst [vmem:[#allocation4 + $0xa8] sm:$0xc0] %v4772
        %4777 = vst [vmem:[#allocation4 + $0xb0] sm:$0x7] %v4771
        %4778 = vst [vmem:[#allocation4 + $0xb8] sm:$0x7] %v4772
        %v4779 = vld [vmem:[#allocation3 + $0xc0] sm:$0x1f]
        %v4780 = vld [vmem:[#allocation3 + $0xc8] sm:$0x1f]
        %v4781 = vld [vmem:[%s3295] ss:$8 sm:$0x3]
        %v4783 = vlaneseq
        %v4784 = vshrl.u32 %v4783, 7
        %v4785 = vsub.s32 0, %v4784
        %v4786 = vrot.slane %v4781, %v4785
        %v4787 = vlaneseq
        %v4788 = vshrl.u32 %v4787, 7
        %v4789 = vsub.s32 1, %v4788
        %v4790 = vrot.slane %v4781, %v4789
        %v4793 = vmul.f32 %v4779, %v4786
        %v4794 = vmul.f32 %v4780, %v4790
        %v4795 = vadd.f32 %v4793, 0.0
        %v4796 = vadd.f32 %v4794, 0.0
        %v4797 = vld [vmem:[#allocation3 + $0xc0] sm:$0x3e]
        %v4798 = vld [vmem:[#allocation3 + $0xc8] sm:$0x3e]
        %v4799 = vld [vmem:[%s3314] ss:$8 sm:$0x3]
        %v4801 = vlaneseq
        %v4802 = vshrl.u32 %v4801, 7
        %v4803 = vsub.s32 0, %v4802
        %v4804 = vrot.slane %v4799, %v4803
        %v4805 = vlaneseq
        %v4806 = vshrl.u32 %v4805, 7
        %v4807 = vsub.s32 1, %v4806
        %v4808 = vrot.slane %v4799, %v4807
        %v4811 = vmul.f32 %v4797, %v4804
        %v4812 = vmul.f32 %v4798, %v4808
        %v4815 = vrot.slane %v4811, 1
        %v4816 = vrot.slane %v4812, 1
        %v4819 = vadd.f32 %v4795, %v4815
        %v4820 = vadd.f32 %v4796, %v4816
        %v4821 = vld [vmem:[#allocation3 + $0xc0] sm:$0x7c]
        %v4822 = vld [vmem:[#allocation3 + $0xc8] sm:$0x7c]
        %v4823 = vld [vmem:[%s3339] ss:$8 sm:$0x3]
        %v4825 = vlaneseq
        %v4826 = vshrl.u32 %v4825, 7
        %v4827 = vsub.s32 0, %v4826
        %v4828 = vrot.slane %v4823, %v4827
        %v4829 = vlaneseq
        %v4830 = vshrl.u32 %v4829, 7
        %v4831 = vsub.s32 1, %v4830
        %v4832 = vrot.slane %v4823, %v4831
        %v4835 = vmul.f32 %v4821, %v4828
        %v4836 = vmul.f32 %v4822, %v4832
        %v4839 = vrot.slane %v4835, 2
        %v4840 = vrot.slane %v4836, 2
        %v4843 = vadd.f32 %v4819, %v4839
        %v4844 = vadd.f32 %v4820, %v4840
        %v4845 = vld [vmem:[#allocation3 + $0xc0] sm:$0xf8]
        %v4846 = vld [vmem:[#allocation3 + $0xc8] sm:$0xf8]
        %v4847 = vld [vmem:[%s3364] ss:$8 sm:$0x3]
        %v4849 = vlaneseq
        %v4850 = vshrl.u32 %v4849, 7
        %v4851 = vsub.s32 0, %v4850
        %v4852 = vrot.slane %v4847, %v4851
        %v4853 = vlaneseq
        %v4854 = vshrl.u32 %v4853, 7
        %v4855 = vsub.s32 1, %v4854
        %v4856 = vrot.slane %v4847, %v4855
        %v4859 = vmul.f32 %v4845, %v4852
        %v4860 = vmul.f32 %v4846, %v4856
        %v4863 = vrot.slane %v4859, 3
        %v4864 = vrot.slane %v4860, 3
        %v4867 = vadd.f32 %v4843, %v4863
        %v4868 = vadd.f32 %v4844, %v4864
        %v4869 = vld [vmem:[#allocation3 + $0xd0] sm:$0x1f]
        %v4870 = vld [vmem:[#allocation3 + $0xd8] sm:$0x1f]
        %v4871 = vld [vmem:[%s3389] ss:$8 sm:$0x3]
        %v4873 = vlaneseq
        %v4874 = vshrl.u32 %v4873, 7
        %v4875 = vsub.s32 0, %v4874
        %v4876 = vrot.slane %v4871, %v4875
        %v4877 = vlaneseq
        %v4878 = vshrl.u32 %v4877, 7
        %v4879 = vsub.s32 1, %v4878
        %v4880 = vrot.slane %v4871, %v4879
        %v4883 = vmul.f32 %v4869, %v4876
        %v4884 = vmul.f32 %v4870, %v4880
        %v4885 = vadd.f32 %v4867, %v4883
        %v4886 = vadd.f32 %v4868, %v4884
        %v4887 = vld [vmem:[#allocation3 + $0xd0] sm:$0x3e]
        %v4888 = vld [vmem:[#allocation3 + $0xd8] sm:$0x3e]
        %v4889 = vld [vmem:[%s3408] ss:$8 sm:$0x3]
        %v4891 = vlaneseq
        %v4892 = vshrl.u32 %v4891, 7
        %v4893 = vsub.s32 0, %v4892
        %v4894 = vrot.slane %v4889, %v4893
        %v4895 = vlaneseq
        %v4896 = vshrl.u32 %v4895, 7
        %v4897 = vsub.s32 1, %v4896
        %v4898 = vrot.slane %v4889, %v4897
        %v4901 = vmul.f32 %v4887, %v4894
        %v4902 = vmul.f32 %v4888, %v4898
        %v4905 = vrot.slane %v4901, 1
        %v4906 = vrot.slane %v4902, 1
        %v4909 = vadd.f32 %v4885, %v4905
        %v4910 = vadd.f32 %v4886, %v4906
        %v4911 = vld [vmem:[#allocation3 + $0xd0] sm:$0x7c]
        %v4912 = vld [vmem:[#allocation3 + $0xd8] sm:$0x7c]
        %v4913 = vld [vmem:[%s3433] ss:$8 sm:$0x3]
        %v4915 = vlaneseq
        %v4916 = vshrl.u32 %v4915, 7
        %v4917 = vsub.s32 0, %v4916
        %v4918 = vrot.slane %v4913, %v4917
        %v4919 = vlaneseq
        %v4920 = vshrl.u32 %v4919, 7
        %v4921 = vsub.s32 1, %v4920
        %v4922 = vrot.slane %v4913, %v4921
        %v4925 = vmul.f32 %v4911, %v4918
        %v4926 = vmul.f32 %v4912, %v4922
        %v4929 = vrot.slane %v4925, 2
        %v4930 = vrot.slane %v4926, 2
        %v4933 = vadd.f32 %v4909, %v4929
        %v4934 = vadd.f32 %v4910, %v4930
        %v4935 = vld [vmem:[#allocation3 + $0xd0] sm:$0xf8]
        %v4936 = vld [vmem:[#allocation3 + $0xd8] sm:$0xf8]
        %v4937 = vld [vmem:[%s3458] ss:$8 sm:$0x3]
        %v4939 = vlaneseq
        %v4940 = vshrl.u32 %v4939, 7
        %v4941 = vsub.s32 0, %v4940
        %v4942 = vrot.slane %v4937, %v4941
        %v4943 = vlaneseq
        %v4944 = vshrl.u32 %v4943, 7
        %v4945 = vsub.s32 1, %v4944
        %v4946 = vrot.slane %v4937, %v4945
        %v4949 = vmul.f32 %v4935, %v4942
        %v4950 = vmul.f32 %v4936, %v4946
        %v4953 = vrot.slane %v4949, 3
        %v4954 = vrot.slane %v4950, 3
        %v4957 = vadd.f32 %v4933, %v4953
        %v4958 = vadd.f32 %v4934, %v4954
        %v4959 = vld [vmem:[#allocation3 + $0xe0] sm:$0x1f]
        %v4960 = vld [vmem:[#allocation3 + $0xe8] sm:$0x1f]
        %v4961 = vld [vmem:[%s3483] ss:$8 sm:$0x3]
        %v4963 = vlaneseq
        %v4964 = vshrl.u32 %v4963, 7
        %v4965 = vsub.s32 0, %v4964
        %v4966 = vrot.slane %v4961, %v4965
        %v4967 = vlaneseq
        %v4968 = vshrl.u32 %v4967, 7
        %v4969 = vsub.s32 1, %v4968
        %v4970 = vrot.slane %v4961, %v4969
        %v4973 = vmul.f32 %v4959, %v4966
        %v4974 = vmul.f32 %v4960, %v4970
        %v4975 = vadd.f32 %v4957, %v4973
        %v4976 = vadd.f32 %v4958, %v4974
        %v4977 = vld [vmem:[#allocation3 + $0xe0] sm:$0x3e]
        %v4978 = vld [vmem:[#allocation3 + $0xe8] sm:$0x3e]
        %v4979 = vld [vmem:[%s3502] ss:$8 sm:$0x3]
        %v4981 = vlaneseq
        %v4982 = vshrl.u32 %v4981, 7
        %v4983 = vsub.s32 0, %v4982
        %v4984 = vrot.slane %v4979, %v4983
        %v4985 = vlaneseq
        %v4986 = vshrl.u32 %v4985, 7
        %v4987 = vsub.s32 1, %v4986
        %v4988 = vrot.slane %v4979, %v4987
        %v4991 = vmul.f32 %v4977, %v4984
        %v4992 = vmul.f32 %v4978, %v4988
        %v4995 = vrot.slane %v4991, 1
        %v4996 = vrot.slane %v4992, 1
        %v4999 = vadd.f32 %v4975, %v4995
        %v5000 = vadd.f32 %v4976, %v4996
        %v5001 = vld [vmem:[#allocation3 + $0xe0] sm:$0x7c]
        %v5002 = vld [vmem:[#allocation3 + $0xe8] sm:$0x7c]
        %v5003 = vld [vmem:[%s3527] ss:$8 sm:$0x3]
        %v5005 = vlaneseq
        %v5006 = vshrl.u32 %v5005, 7
        %v5007 = vsub.s32 0, %v5006
        %v5008 = vrot.slane %v5003, %v5007
        %v5009 = vlaneseq
        %v5010 = vshrl.u32 %v5009, 7
        %v5011 = vsub.s32 1, %v5010
        %v5012 = vrot.slane %v5003, %v5011
        %v5015 = vmul.f32 %v5001, %v5008
        %v5016 = vmul.f32 %v5002, %v5012
        %v5019 = vrot.slane %v5015, 2
        %v5020 = vrot.slane %v5016, 2
        %v5023 = vadd.f32 %v4999, %v5019
        %v5024 = vadd.f32 %v5000, %v5020
        %v5025 = vld [vmem:[#allocation3 + $0xe0] sm:$0xf8]
        %v5026 = vld [vmem:[#allocation3 + $0xe8] sm:$0xf8]
        %v5027 = vld [vmem:[%s3552] ss:$8 sm:$0x3]
        %v5029 = vlaneseq
        %v5030 = vshrl.u32 %v5029, 7
        %v5031 = vsub.s32 0, %v5030
        %v5032 = vrot.slane %v5027, %v5031
        %v5033 = vlaneseq
        %v5034 = vshrl.u32 %v5033, 7
        %v5035 = vsub.s32 1, %v5034
        %v5036 = vrot.slane %v5027, %v5035
        %v5039 = vmul.f32 %v5025, %v5032
        %v5040 = vmul.f32 %v5026, %v5036
        %v5043 = vrot.slane %v5039, 3
        %v5044 = vrot.slane %v5040, 3
        %v5047 = vadd.f32 %v5023, %v5043
        %v5048 = vadd.f32 %v5024, %v5044
        %v5049 = vld [vmem:[#allocation3 + $0xf0] sm:$0x1f]
        %v5050 = vld [vmem:[#allocation3 + $0xf8] sm:$0x1f]
        %v5051 = vld [vmem:[%s3577] ss:$8 sm:$0x3]
        %v5053 = vlaneseq
        %v5054 = vshrl.u32 %v5053, 7
        %v5055 = vsub.s32 0, %v5054
        %v5056 = vrot.slane %v5051, %v5055
        %v5057 = vlaneseq
        %v5058 = vshrl.u32 %v5057, 7
        %v5059 = vsub.s32 1, %v5058
        %v5060 = vrot.slane %v5051, %v5059
        %v5063 = vmul.f32 %v5049, %v5056
        %v5064 = vmul.f32 %v5050, %v5060
        %v5065 = vadd.f32 %v5047, %v5063
        %v5066 = vadd.f32 %v5048, %v5064
        %v5067 = vld [vmem:[#allocation3 + $0xf0] sm:$0x3e]
        %v5068 = vld [vmem:[#allocation3 + $0xf8] sm:$0x3e]
        %v5069 = vld [vmem:[%s3596] ss:$8 sm:$0x3]
        %v5071 = vlaneseq
        %v5072 = vshrl.u32 %v5071, 7
        %v5073 = vsub.s32 0, %v5072
        %v5074 = vrot.slane %v5069, %v5073
        %v5075 = vlaneseq
        %v5076 = vshrl.u32 %v5075, 7
        %v5077 = vsub.s32 1, %v5076
        %v5078 = vrot.slane %v5069, %v5077
        %v5081 = vmul.f32 %v5067, %v5074
        %v5082 = vmul.f32 %v5068, %v5078
        %v5085 = vrot.slane %v5081, 1
        %v5086 = vrot.slane %v5082, 1
        %v5089 = vadd.f32 %v5065, %v5085
        %v5090 = vadd.f32 %v5066, %v5086
        %v5091 = vld [vmem:[#allocation3 + $0xf0] sm:$0x7c]
        %v5092 = vld [vmem:[#allocation3 + $0xf8] sm:$0x7c]
        %v5093 = vld [vmem:[%s3621] ss:$8 sm:$0x3]
        %v5095 = vlaneseq
        %v5096 = vshrl.u32 %v5095, 7
        %v5097 = vsub.s32 0, %v5096
        %v5098 = vrot.slane %v5093, %v5097
        %v5099 = vlaneseq
        %v5100 = vshrl.u32 %v5099, 7
        %v5101 = vsub.s32 1, %v5100
        %v5102 = vrot.slane %v5093, %v5101
        %v5105 = vmul.f32 %v5091, %v5098
        %v5106 = vmul.f32 %v5092, %v5102
        %v5109 = vrot.slane %v5105, 2
        %v5110 = vrot.slane %v5106, 2
        %v5113 = vadd.f32 %v5089, %v5109
        %v5114 = vadd.f32 %v5090, %v5110
        %v5115 = vld [vmem:[#allocation3 + $0xf0] sm:$0xf8]
        %v5116 = vld [vmem:[#allocation3 + $0xf8] sm:$0xf8]
        %v5117 = vld [vmem:[%s3646] ss:$8 sm:$0x3]
        %v5119 = vlaneseq
        %v5120 = vshrl.u32 %v5119, 7
        %v5121 = vsub.s32 0, %v5120
        %v5122 = vrot.slane %v5117, %v5121
        %v5123 = vlaneseq
        %v5124 = vshrl.u32 %v5123, 7
        %v5125 = vsub.s32 1, %v5124
        %v5126 = vrot.slane %v5117, %v5125
        %v5129 = vmul.f32 %v5115, %v5122
        %v5130 = vmul.f32 %v5116, %v5126
        %v5133 = vrot.slane %v5129, 3
        %v5134 = vrot.slane %v5130, 3
        %v5137 = vadd.f32 %v5113, %v5133
        %v5138 = vadd.f32 %v5114, %v5134
        %v5141 = vrot.slane %v5137, 3
        %v5142 = vrot.slane %v5138, 3
        %5145 = vst [vmem:[#allocation4 + $0xb0] sm:$0xe0] %v5141
        %5146 = vst [vmem:[#allocation4 + $0xb8] sm:$0xe0] %v5142
        %5147 = vst [vmem:[#allocation4 + $0xc0] sm:$0x3] %v5141
        %5148 = vst [vmem:[#allocation4 + $0xc8] sm:$0x3] %v5142
        %v5149 = vld [vmem:[#allocation4] sm:$0xff]
        %v5150 = vld [vmem:[#allocation4 + $0x8] sm:$0xff]
        %v5151 = vld [vmem:[#allocation4 + $0x10] sm:$0xff]
        %v5152 = vld [vmem:[#allocation4 + $0x18] sm:$0xff]
        %v5153 = vld [vmem:[#allocation4 + $0x20] sm:$0xff]
        %v5154 = vld [vmem:[#allocation4 + $0x28] sm:$0xff]
        %v5155 = vld [vmem:[#allocation4 + $0x30] sm:$0xff]
        %v5156 = vld [vmem:[#allocation4 + $0x38] sm:$0xff]
        %v5157 = vld [vmem:[#allocation4 + $0x40] sm:$0xff]
        %v5158 = vld [vmem:[#allocation4 + $0x48] sm:$0xff]
        %v5159 = vld [vmem:[#allocation4 + $0x50] sm:$0xff]
        %v5160 = vld [vmem:[#allocation4 + $0x58] sm:$0xff]
        %v5161 = vld [vmem:[#allocation4 + $0x60] sm:$0xff]
        %v5162 = vld [vmem:[#allocation4 + $0x68] sm:$0xff]
        %v5163 = vld [vmem:[#allocation4 + $0x70] sm:$0xff]
        %v5164 = vld [vmem:[#allocation4 + $0x78] sm:$0xff]
        %v5165 = vld [vmem:[#allocation4 + $0x80] sm:$0xff]
        %v5166 = vld [vmem:[#allocation4 + $0x88] sm:$0xff]
        %v5167 = vld [vmem:[#allocation4 + $0x90] sm:$0xff]
        %v5168 = vld [vmem:[#allocation4 + $0x98] sm:$0xff]
        %v5169 = vld [vmem:[#allocation4 + $0xa0] sm:$0xff]
        %v5170 = vld [vmem:[#allocation4 + $0xa8] sm:$0xff]
        %v5171 = vld [vmem:[#allocation4 + $0xb0] sm:$0xff]
        %v5172 = vld [vmem:[#allocation4 + $0xb8] sm:$0xff]
        %v5173 = vld [vmem:[#allocation4 + $0xc0] sm:$0x3]
        %v5174 = vld [vmem:[#allocation4 + $0xc8] sm:$0x3]
        %v5175 = vpack.c.bf16 %v5151, %v5149
        %v5176 = vpack.c.bf16 %v5152, %v5150
        %v5177 = vpack.c.bf16 %v5155, %v5153
        %v5178 = vpack.c.bf16 %v5156, %v5154
        %v5179 = vpack.c.bf16 %v5159, %v5157
        %v5180 = vpack.c.bf16 %v5160, %v5158
        %v5181 = vpack.c.bf16 %v5163, %v5161
        %v5182 = vpack.c.bf16 %v5164, %v5162
        %v5183 = vpack.c.bf16 %v5167, %v5165
        %v5184 = vpack.c.bf16 %v5168, %v5166
        %v5185 = vpack.c.bf16 %v5171, %v5169
        %v5186 = vpack.c.bf16 %v5172, %v5170
        %v5187 = vpack.c.bf16 %v5173, %v5173
        %v5188 = vpack.c.bf16 %v5174, %v5174
        %v5189 = vld [vmem:[%s587] sm:$0xff]
        %v5190 = vld [vmem:[%s587 + $0x8] sm:$0xff]
        %v5191 = vld [vmem:[%s587 + $0x10] sm:$0xff]
        %v5192 = vld [vmem:[%s587 + $0x18] sm:$0xff]
        %v5193 = vld [vmem:[%s587 + $0x20] sm:$0xff]
        %v5194 = vld [vmem:[%s587 + $0x28] sm:$0xff]
        %v5195 = vld [vmem:[%s587 + $0x30] sm:$0xff]
        %v5196 = vld [vmem:[%s587 + $0x38] sm:$0xff]
        %v5197 = vld [vmem:[%s587 + $0x40] sm:$0xff]
        %v5198 = vld [vmem:[%s587 + $0x48] sm:$0xff]
        %v5199 = vld [vmem:[%s587 + $0x50] sm:$0xff]
        %v5200 = vld [vmem:[%s587 + $0x58] sm:$0xff]
        %v5201 = vld [vmem:[%s587 + $0x60] sm:$0xff]
        %v5202 = vld [vmem:[%s587 + $0x68] sm:$0xff]
        %v5203 = vld [vmem:[%s587 + $0x70] sm:$0xff]
        %v5204 = vld [vmem:[%s587 + $0x78] sm:$0xff]
        %v5205 = vld [vmem:[%s587 + $0x80] sm:$0xff]
        %v5206 = vld [vmem:[%s587 + $0x88] sm:$0xff]
        %v5207 = vld [vmem:[%s587 + $0x90] sm:$0xff]
        %v5208 = vld [vmem:[%s587 + $0x98] sm:$0xff]
        %v5209 = vld [vmem:[%s587 + $0xa0] sm:$0xff]
        %v5210 = vld [vmem:[%s587 + $0xa8] sm:$0xff]
        %v5211 = vld [vmem:[%s587 + $0xb0] sm:$0xff]
        %v5212 = vld [vmem:[%s587 + $0xb8] sm:$0xff]
        %v5213 = vld [vmem:[%s587 + $0xc0] sm:$0xff]
        %v5214 = vld [vmem:[%s587 + $0xc8] sm:$0xff]
        %v5215 = vld [vmem:[%s587 + $0xd0] sm:$0xff]
        %v5216 = vld [vmem:[%s587 + $0xd8] sm:$0xff]
        %v5217 = vld [vmem:[%s587 + $0xe0] sm:$0xff]
        %v5218 = vld [vmem:[%s587 + $0xe8] sm:$0xff]
        %v5219 = vld [vmem:[%s587 + $0xf0] sm:$0xff]
        %v5220 = vld [vmem:[%s587 + $0xf8] sm:$0xff]
        %v5221 = vld [vmem:[#allocation4] sm:$0xfe]
        %v5222 = vld [vmem:[#allocation4 + $0x8] sm:$0xfe]
        %v5223 = vld [vmem:[#allocation4 + $0xc0] sm:$0x7]
        %v5224 = vld [vmem:[#allocation4 + $0xc8] sm:$0x7]
        %v5225 = vpack.c.bf16 %v5151, %v5221
        %v5226 = vpack.c.bf16 %v5152, %v5222
        %v5227 = vpack.c.bf16 %v5223, %v5223
        %v5228 = vpack.c.bf16 %v5224, %v5224
        %s5229 = scalar_lea.vmem %s587, 256 [#allocation16]
        %v5230 = vld [vmem:[%s5229] sm:$0xff]
        %v5231 = vld [vmem:[%s5229 + $0x8] sm:$0xff]
        %v5232 = vld [vmem:[%s5229 + $0x10] sm:$0xff]
        %v5233 = vld [vmem:[%s5229 + $0x18] sm:$0xff]
        %v5234 = vld [vmem:[%s5229 + $0x20] sm:$0xff]
        %v5235 = vld [vmem:[%s5229 + $0x28] sm:$0xff]
        %v5236 = vld [vmem:[%s5229 + $0x30] sm:$0xff]
        %v5237 = vld [vmem:[%s5229 + $0x38] sm:$0xff]
        %v5238 = vld [vmem:[%s5229 + $0x40] sm:$0xff]
        %v5239 = vld [vmem:[%s5229 + $0x48] sm:$0xff]
        %v5240 = vld [vmem:[%s5229 + $0x50] sm:$0xff]
        %v5241 = vld [vmem:[%s5229 + $0x58] sm:$0xff]
        %v5242 = vld [vmem:[%s5229 + $0x60] sm:$0xff]
        %v5243 = vld [vmem:[%s5229 + $0x68] sm:$0xff]
        %v5244 = vld [vmem:[%s5229 + $0x70] sm:$0xff]
        %v5245 = vld [vmem:[%s5229 + $0x78] sm:$0xff]
        %v5246 = vld [vmem:[%s5229 + $0x80] sm:$0xff]
        %v5247 = vld [vmem:[%s5229 + $0x88] sm:$0xff]
        %v5248 = vld [vmem:[%s5229 + $0x90] sm:$0xff]
        %v5249 = vld [vmem:[%s5229 + $0x98] sm:$0xff]
        %v5250 = vld [vmem:[%s5229 + $0xa0] sm:$0xff]
        %v5251 = vld [vmem:[%s5229 + $0xa8] sm:$0xff]
        %v5252 = vld [vmem:[%s5229 + $0xb0] sm:$0xff]
        %v5253 = vld [vmem:[%s5229 + $0xb8] sm:$0xff]
        %v5254 = vld [vmem:[%s5229 + $0xc0] sm:$0xff]
        %v5255 = vld [vmem:[%s5229 + $0xc8] sm:$0xff]
        %v5256 = vld [vmem:[%s5229 + $0xd0] sm:$0xff]
        %v5257 = vld [vmem:[%s5229 + $0xd8] sm:$0xff]
        %v5258 = vld [vmem:[%s5229 + $0xe0] sm:$0xff]
        %v5259 = vld [vmem:[%s5229 + $0xe8] sm:$0xff]
        %v5260 = vld [vmem:[%s5229 + $0xf0] sm:$0xff]
        %v5261 = vld [vmem:[%s5229 + $0xf8] sm:$0xff]
        %vm5262 = vsmask.f32 7424
        %v5264 = vshrl.u32 %v5225, 16
        %v5266 = vshll.u32 %v5225, 16
        %v5268 = vrot.slane %v5266, 1
        %v5269 = vor.u32 %v5264, %v5268
        %v5271 = vshll.u32 %v5177, 16
        %v5273 = vrot.slane %v5271, 1
        %v5274 = vsel %vm5262, %v5269, %v5273
        %v5276 = vshrl.u32 %v5226, 16
        %v5278 = vshll.u32 %v5226, 16
        %v5280 = vrot.slane %v5278, 1
        %v5281 = vor.u32 %v5276, %v5280
        %v5283 = vshll.u32 %v5178, 16
        %v5285 = vrot.slane %v5283, 1
        %v5286 = vsel %vm5262, %v5281, %v5285
        %v5287 = vshrl.u32 %v5177, 16
        %v5289 = vor.u32 %v5287, %v5273
        %v5291 = vshll.u32 %v5179, 16
        %v5293 = vrot.slane %v5291, 1
        %v5294 = vsel %vm5262, %v5289, %v5293
        %v5295 = vshrl.u32 %v5178, 16
        %v5297 = vor.u32 %v5295, %v5285
        %v5299 = vshll.u32 %v5180, 16
        %v5301 = vrot.slane %v5299, 1
        %v5302 = vsel %vm5262, %v5297, %v5301
        %v5303 = vshrl.u32 %v5179, 16
        %v5305 = vor.u32 %v5303, %v5293
        %v5307 = vshll.u32 %v5181, 16
        %v5309 = vrot.slane %v5307, 1
        %v5310 = vsel %vm5262, %v5305, %v5309
        %v5311 = vshrl.u32 %v5180, 16
        %v5313 = vor.u32 %v5311, %v5301
        %v5315 = vshll.u32 %v5182, 16
        %v5317 = vrot.slane %v5315, 1
        %v5318 = vsel %vm5262, %v5313, %v5317
        %v5319 = vshrl.u32 %v5181, 16
        %v5321 = vor.u32 %v5319, %v5309
        %v5323 = vshll.u32 %v5183, 16
        %v5325 = vrot.slane %v5323, 1
        %v5326 = vsel %vm5262, %v5321, %v5325
        %v5327 = vshrl.u32 %v5182, 16
        %v5329 = vor.u32 %v5327, %v5317
        %v5331 = vshll.u32 %v5184, 16
        %v5333 = vrot.slane %v5331, 1
        %v5334 = vsel %vm5262, %v5329, %v5333
        %v5335 = vshrl.u32 %v5183, 16
        %v5337 = vor.u32 %v5335, %v5325
        %v5339 = vshll.u32 %v5185, 16
        %v5341 = vrot.slane %v5339, 1
        %v5342 = vsel %vm5262, %v5337, %v5341
        %v5343 = vshrl.u32 %v5184, 16
        %v5345 = vor.u32 %v5343, %v5333
        %v5347 = vshll.u32 %v5186, 16
        %v5349 = vrot.slane %v5347, 1
        %v5350 = vsel %vm5262, %v5345, %v5349
        %v5351 = vshrl.u32 %v5185, 16
        %v5353 = vor.u32 %v5351, %v5341
        %v5355 = vshll.u32 %v5227, 16
        %v5357 = vrot.slane %v5355, 1
        %v5358 = vsel %vm5262, %v5353, %v5357
        %v5359 = vshrl.u32 %v5186, 16
        %v5361 = vor.u32 %v5359, %v5349
        %v5363 = vshll.u32 %v5228, 16
        %v5365 = vrot.slane %v5363, 1
        %v5366 = vsel %vm5262, %v5361, %v5365
        %v5367 = vshrl.u32 %v5227, 16
        %v5369 = vor.u32 %v5367, %v5357
        %v5370 = vshrl.u32 %v5228, 16
        %v5372 = vor.u32 %v5370, %v5365
        %v5419 = vunpack.c.l.b16 %v5230
        %v5420 = vunpack.c.h.b16 %v5230
        %v5421 = vunpack.c.l.b16 %v5231
        %v5422 = vunpack.c.h.b16 %v5231
        %v5423 = vunpack.c.l.b16 %v5232
        %v5424 = vunpack.c.h.b16 %v5232
        %v5425 = vunpack.c.l.b16 %v5233
        %v5426 = vunpack.c.h.b16 %v5233
        %v5427 = vunpack.c.l.b16 %v5234
        %v5428 = vunpack.c.h.b16 %v5234
        %v5429 = vunpack.c.l.b16 %v5235
        %v5430 = vunpack.c.h.b16 %v5235
        %v5431 = vunpack.c.l.b16 %v5236
        %v5432 = vunpack.c.h.b16 %v5236
        %v5433 = vunpack.c.l.b16 %v5237
        %v5434 = vunpack.c.h.b16 %v5237
        %v5435 = vunpack.c.l.b16 %v5238
        %v5436 = vunpack.c.h.b16 %v5238
        %v5437 = vunpack.c.l.b16 %v5239
        %v5438 = vunpack.c.h.b16 %v5239
        %v5439 = vunpack.c.l.b16 %v5240
        %v5440 = vunpack.c.h.b16 %v5240
        %v5441 = vunpack.c.l.b16 %v5241
        %v5442 = vunpack.c.h.b16 %v5241
        %v5443 = vunpack.c.l.b16 %v5242
        %v5444 = vunpack.c.h.b16 %v5242
        %v5445 = vunpack.c.l.b16 %v5243
        %v5446 = vunpack.c.h.b16 %v5243
        %v5447 = vunpack.c.l.b16 %v5244
        %v5448 = vunpack.c.h.b16 %v5244
        %v5449 = vunpack.c.l.b16 %v5245
        %v5450 = vunpack.c.h.b16 %v5245
        %v5451 = vunpack.c.l.b16 %v5246
        %v5452 = vunpack.c.h.b16 %v5246
        %v5453 = vunpack.c.l.b16 %v5247
        %v5454 = vunpack.c.h.b16 %v5247
        %v5455 = vunpack.c.l.b16 %v5248
        %v5456 = vunpack.c.h.b16 %v5248
        %v5457 = vunpack.c.l.b16 %v5249
        %v5458 = vunpack.c.h.b16 %v5249
        %v5459 = vunpack.c.l.b16 %v5250
        %v5460 = vunpack.c.h.b16 %v5250
        %v5461 = vunpack.c.l.b16 %v5251
        %v5462 = vunpack.c.h.b16 %v5251
        %v5463 = vunpack.c.l.b16 %v5252
        %v5464 = vunpack.c.h.b16 %v5252
        %v5465 = vunpack.c.l.b16 %v5253
        %v5466 = vunpack.c.h.b16 %v5253
        %v5467 = vunpack.c.l.b16 %v5254
        %v5468 = vunpack.c.h.b16 %v5254
        %v5469 = vunpack.c.l.b16 %v5255
        %v5470 = vunpack.c.h.b16 %v5255
        %v5471 = vunpack.c.l.b16 %v5256
        %v5472 = vunpack.c.h.b16 %v5256
        %v5473 = vunpack.c.l.b16 %v5257
        %v5474 = vunpack.c.h.b16 %v5257
        %v5475 = vunpack.c.l.b16 %v5258
        %v5476 = vunpack.c.h.b16 %v5258
        %v5477 = vunpack.c.l.b16 %v5259
        %v5478 = vunpack.c.h.b16 %v5259
        %v5479 = vunpack.c.l.b16 %v5260
        %v5480 = vunpack.c.h.b16 %v5260
        %v5481 = vunpack.c.l.b16 %v5261
        %v5482 = vunpack.c.h.b16 %v5261
        %v5483 = vpack.c.b16 %v5421, %v5419
        %v5484 = vpack.c.b16 %v5422, %v5420
        %v5485 = vpack.c.b16 %v5425, %v5423
        %v5486 = vpack.c.b16 %v5426, %v5424
        %v5487 = vpack.c.b16 %v5429, %v5427
        %v5488 = vpack.c.b16 %v5430, %v5428
        %v5489 = vpack.c.b16 %v5433, %v5431
        %v5490 = vpack.c.b16 %v5434, %v5432
        %v5491 = vpack.c.b16 %v5437, %v5435
        %v5492 = vpack.c.b16 %v5438, %v5436
        %v5493 = vpack.c.b16 %v5441, %v5439
        %v5494 = vpack.c.b16 %v5442, %v5440
        %v5495 = vpack.c.b16 %v5445, %v5443
        %v5496 = vpack.c.b16 %v5446, %v5444
        %v5497 = vpack.c.b16 %v5449, %v5447
        %v5498 = vpack.c.b16 %v5450, %v5448
        %v5499 = vpack.c.b16 %v5453, %v5451
        %v5500 = vpack.c.b16 %v5454, %v5452
        %v5501 = vpack.c.b16 %v5457, %v5455
        %v5502 = vpack.c.b16 %v5458, %v5456
        %v5503 = vpack.c.b16 %v5461, %v5459
        %v5504 = vpack.c.b16 %v5462, %v5460
        %v5505 = vpack.c.b16 %v5465, %v5463
        %v5506 = vpack.c.b16 %v5466, %v5464
        %v5507 = vpack.c.b16 %v5469, %v5467
        %v5508 = vpack.c.b16 %v5470, %v5468
        %v5509 = vpack.c.b16 %v5473, %v5471
        %v5510 = vpack.c.b16 %v5474, %v5472
        %v5511 = vpack.c.b16 %v5477, %v5475
        %v5512 = vpack.c.b16 %v5478, %v5476
        %v5513 = vpack.c.b16 %v5481, %v5479
        %v5514 = vpack.c.b16 %v5482, %v5480
        %5547 = vmatprep.subr.bf16.mxu0 %v5484
        %5548 = vmatpush1.bf16.msra.mxu0 %v5483
        %5549 = vmatprep.subr.bf16.mxu0 %v5486
        %5550 = vmatpush1.bf16.msra.mxu0 %v5485
        %5551 = vmatprep.subr.bf16.mxu0 %v5488
        %5552 = vmatpush1.bf16.msra.mxu0 %v5487
        %5553 = vmatprep.subr.bf16.mxu0 %v5490
        %5554 = vmatpush1.bf16.msra.mxu0 %v5489
        %5555 = vmatprep.subr.bf16.mxu0 %v5492
        %5556 = vmatpush1.bf16.msra.mxu0 %v5491
        %5557 = vmatprep.subr.bf16.mxu0 %v5494
        %5558 = vmatpush1.bf16.msra.mxu0 %v5493
        %5559 = vmatprep.subr.bf16.mxu0 %v5496
        %5560 = vmatpush1.bf16.msra.mxu0 %v5495
        %5561 = vmatprep.subr.bf16.mxu0 %v5498
        %5562 = vmatpush1.bf16.msra.mxu0 %v5497
        %5563 = vmatprep.subr.bf16.mxu0 %v5500
        %5564 = vmatpush1.bf16.msra.mxu0 %v5499
        %5565 = vmatprep.subr.bf16.mxu0 %v5502
        %5566 = vmatpush1.bf16.msra.mxu0 %v5501
        %5567 = vmatprep.subr.bf16.mxu0 %v5504
        %5568 = vmatpush1.bf16.msra.mxu0 %v5503
        %5569 = vmatprep.subr.bf16.mxu0 %v5506
        %5570 = vmatpush1.bf16.msra.mxu0 %v5505
        %5571 = vmatprep.subr.bf16.mxu0 %v5508
        %5572 = vmatpush1.bf16.msra.mxu0 %v5507
        %5573 = vmatprep.subr.bf16.mxu0 %v5510
        %5574 = vmatpush1.bf16.msra.mxu0 %v5509
        %5575 = vmatprep.subr.bf16.mxu0 %v5512
        %5576 = vmatpush1.bf16.msra.mxu0 %v5511
        %5577 = vmatprep.subr.bf16.mxu0 %v5514
        %5578 = vmatpush1.bf16.msra.mxu0 %v5513
        %5579 = vmatprep.mubr.bf16.mxu0 %v5286
        %5580 = vmatmul.mubr.bf16.gmra.mrb[0].mxu0 %v5274
        %v5581 = vpop.f32.mrb[0].mxu0
        %v5582 = vadd.f32 0.0, %v5581
        %v5583 = vpop.f32.mrb[0].mxu0
        %v5584 = vadd.f32 0.0, %v5583
        %v5585 = vpop.f32.mrb[0].mxu0
        %v5586 = vadd.f32 0.0, %v5585
        %v5587 = vpop.f32.mrb[0].mxu0
        %v5588 = vadd.f32 0.0, %v5587
        %5589 = vmatprep.mubr.bf16.mxu0 %v5302
        %5590 = vmatmul.mubr.bf16.gmra.mrb[0].mxu0 %v5294
        %v5591 = vpop.f32.mrb[0].mxu0
        %v5592 = vadd.f32 0.0, %v5591
        %v5593 = vpop.f32.mrb[0].mxu0
        %v5594 = vadd.f32 0.0, %v5593
        %v5595 = vpop.f32.mrb[0].mxu0
        %v5596 = vadd.f32 0.0, %v5595
        %v5597 = vpop.f32.mrb[0].mxu0
        %v5598 = vadd.f32 0.0, %v5597
        %5599 = vmatprep.mubr.bf16.mxu0 %v5318
        %5600 = vmatmul.mubr.bf16.gmra.mrb[0].mxu0 %v5310
        %v5601 = vpop.f32.mrb[0].mxu0
        %v5602 = vadd.f32 0.0, %v5601
        %v5603 = vpop.f32.mrb[0].mxu0
        %v5604 = vadd.f32 0.0, %v5603
        %v5605 = vpop.f32.mrb[0].mxu0
        %v5606 = vadd.f32 0.0, %v5605
        %v5607 = vpop.f32.mrb[0].mxu0
        %v5608 = vadd.f32 0.0, %v5607
        %5609 = vmatprep.mubr.bf16.mxu0 %v5334
        %5610 = vmatmul.mubr.bf16.gmra.mrb[0].mxu0 %v5326
        %v5611 = vpop.f32.mrb[0].mxu0
        %v5612 = vadd.f32 0.0, %v5611
        %v5613 = vpop.f32.mrb[0].mxu0
        %v5614 = vadd.f32 0.0, %v5613
        %v5615 = vpop.f32.mrb[0].mxu0
        %v5616 = vadd.f32 0.0, %v5615
        %v5617 = vpop.f32.mrb[0].mxu0
        %v5618 = vadd.f32 0.0, %v5617
        %5619 = vmatprep.mubr.bf16.mxu0 %v5350
        %5620 = vmatmul.mubr.bf16.gmra.mrb[0].mxu0 %v5342
        %v5621 = vpop.f32.mrb[0].mxu0
        %v5622 = vadd.f32 0.0, %v5621
        %v5623 = vpop.f32.mrb[0].mxu0
        %v5624 = vadd.f32 0.0, %v5623
        %v5625 = vpop.f32.mrb[0].mxu0
        %v5626 = vadd.f32 0.0, %v5625
        %v5627 = vpop.f32.mrb[0].mxu0
        %v5628 = vadd.f32 0.0, %v5627
        %5629 = vmatprep.mubr.bf16.mxu0 %v5366
        %5630 = vmatmul.mubr.bf16.gmra.mrb[0].mxu0 %v5358
        %v5631 = vpop.f32.mrb[0].mxu0
        %v5632 = vadd.f32 0.0, %v5631
        %v5633 = vpop.f32.mrb[0].mxu0
        %v5634 = vadd.f32 0.0, %v5633
        %v5635 = vpop.f32.mrb[0].mxu0
        %v5636 = vadd.f32 0.0, %v5635
        %v5637 = vpop.f32.mrb[0].mxu0
        %v5638 = vadd.f32 0.0, %v5637
        %5639 = vmatprep.mubr.bf16.mxu0 %v5372
        %5640 = vmatmul.mubr.bf16.gmra.mrb[0].mxu0 %v5369
        %v5641 = vpop.f32.mrb[0].mxu0
        %v5642 = vadd.f32 0.0, %v5641
        %v5643 = vpop.f32.mrb[0].mxu0
        %v5644 = vadd.f32 0.0, %v5643
        %v5645 = vpop.f32.mrb[0].mxu0
        %v5646 = vpop.f32.mrb[0].mxu0
        %5647 = vdwg.mxu0
        %v5680 = vunpack.c.l.b16 %v5189
        %v5681 = vunpack.c.h.b16 %v5189
        %v5682 = vunpack.c.l.b16 %v5190
        %v5683 = vunpack.c.h.b16 %v5190
        %v5684 = vunpack.c.l.b16 %v5191
        %v5685 = vunpack.c.h.b16 %v5191
        %v5686 = vunpack.c.l.b16 %v5192
        %v5687 = vunpack.c.h.b16 %v5192
        %v5688 = vunpack.c.l.b16 %v5193
        %v5689 = vunpack.c.h.b16 %v5193
        %v5690 = vunpack.c.l.b16 %v5194
        %v5691 = vunpack.c.h.b16 %v5194
        %v5692 = vunpack.c.l.b16 %v5195
        %v5693 = vunpack.c.h.b16 %v5195
        %v5694 = vunpack.c.l.b16 %v5196
        %v5695 = vunpack.c.h.b16 %v5196
        %v5696 = vunpack.c.l.b16 %v5197
        %v5697 = vunpack.c.h.b16 %v5197
        %v5698 = vunpack.c.l.b16 %v5198
        %v5699 = vunpack.c.h.b16 %v5198
        %v5700 = vunpack.c.l.b16 %v5199
        %v5701 = vunpack.c.h.b16 %v5199
        %v5702 = vunpack.c.l.b16 %v5200
        %v5703 = vunpack.c.h.b16 %v5200
        %v5704 = vunpack.c.l.b16 %v5201
        %v5705 = vunpack.c.h.b16 %v5201
        %v5706 = vunpack.c.l.b16 %v5202
        %v5707 = vunpack.c.h.b16 %v5202
        %v5708 = vunpack.c.l.b16 %v5203
        %v5709 = vunpack.c.h.b16 %v5203
        %v5710 = vunpack.c.l.b16 %v5204
        %v5711 = vunpack.c.h.b16 %v5204
        %v5712 = vunpack.c.l.b16 %v5205
        %v5713 = vunpack.c.h.b16 %v5205
        %v5714 = vunpack.c.l.b16 %v5206
        %v5715 = vunpack.c.h.b16 %v5206
        %v5716 = vunpack.c.l.b16 %v5207
        %v5717 = vunpack.c.h.b16 %v5207
        %v5718 = vunpack.c.l.b16 %v5208
        %v5719 = vunpack.c.h.b16 %v5208
        %v5720 = vunpack.c.l.b16 %v5209
        %v5721 = vunpack.c.h.b16 %v5209
        %v5722 = vunpack.c.l.b16 %v5210
        %v5723 = vunpack.c.h.b16 %v5210
        %v5724 = vunpack.c.l.b16 %v5211
        %v5725 = vunpack.c.h.b16 %v5211
        %v5726 = vunpack.c.l.b16 %v5212
        %v5727 = vunpack.c.h.b16 %v5212
        %v5728 = vunpack.c.l.b16 %v5213
        %v5729 = vunpack.c.h.b16 %v5213
        %v5730 = vunpack.c.l.b16 %v5214
        %v5731 = vunpack.c.h.b16 %v5214
        %v5732 = vunpack.c.l.b16 %v5215
        %v5733 = vunpack.c.h.b16 %v5215
        %v5734 = vunpack.c.l.b16 %v5216
        %v5735 = vunpack.c.h.b16 %v5216
        %v5736 = vunpack.c.l.b16 %v5217
        %v5737 = vunpack.c.h.b16 %v5217
        %v5738 = vunpack.c.l.b16 %v5218
        %v5739 = vunpack.c.h.b16 %v5218
        %v5740 = vunpack.c.l.b16 %v5219
        %v5741 = vunpack.c.h.b16 %v5219
        %v5742 = vunpack.c.l.b16 %v5220
        %v5743 = vunpack.c.h.b16 %v5220
        %v5744 = vpack.c.b16 %v5682, %v5680
        %v5745 = vpack.c.b16 %v5683, %v5681
        %v5746 = vpack.c.b16 %v5686, %v5684
        %v5747 = vpack.c.b16 %v5687, %v5685
        %v5748 = vpack.c.b16 %v5690, %v5688
        %v5749 = vpack.c.b16 %v5691, %v5689
        %v5750 = vpack.c.b16 %v5694, %v5692
        %v5751 = vpack.c.b16 %v5695, %v5693
        %v5752 = vpack.c.b16 %v5698, %v5696
        %v5753 = vpack.c.b16 %v5699, %v5697
        %v5754 = vpack.c.b16 %v5702, %v5700
        %v5755 = vpack.c.b16 %v5703, %v5701
        %v5756 = vpack.c.b16 %v5706, %v5704
        %v5757 = vpack.c.b16 %v5707, %v5705
        %v5758 = vpack.c.b16 %v5710, %v5708
        %v5759 = vpack.c.b16 %v5711, %v5709
        %v5760 = vpack.c.b16 %v5714, %v5712
        %v5761 = vpack.c.b16 %v5715, %v5713
        %v5762 = vpack.c.b16 %v5718, %v5716
        %v5763 = vpack.c.b16 %v5719, %v5717
        %v5764 = vpack.c.b16 %v5722, %v5720
        %v5765 = vpack.c.b16 %v5723, %v5721
        %v5766 = vpack.c.b16 %v5726, %v5724
        %v5767 = vpack.c.b16 %v5727, %v5725
        %v5768 = vpack.c.b16 %v5730, %v5728
        %v5769 = vpack.c.b16 %v5731, %v5729
        %v5770 = vpack.c.b16 %v5734, %v5732
        %v5771 = vpack.c.b16 %v5735, %v5733
        %v5772 = vpack.c.b16 %v5738, %v5736
        %v5773 = vpack.c.b16 %v5739, %v5737
        %v5774 = vpack.c.b16 %v5742, %v5740
        %v5775 = vpack.c.b16 %v5743, %v5741
        %5808 = vmatprep.subr.bf16.mxu0 %v5745
        %5809 = vmatpush1.bf16.msra.mxu0 %v5744
        %5810 = vmatprep.subr.bf16.mxu0 %v5747
        %5811 = vmatpush1.bf16.msra.mxu0 %v5746
        %5812 = vmatprep.subr.bf16.mxu0 %v5749
        %5813 = vmatpush1.bf16.msra.mxu0 %v5748
        %5814 = vmatprep.subr.bf16.mxu0 %v5751
        %5815 = vmatpush1.bf16.msra.mxu0 %v5750
        %5816 = vmatprep.subr.bf16.mxu0 %v5753
        %5817 = vmatpush1.bf16.msra.mxu0 %v5752
        %5818 = vmatprep.subr.bf16.mxu0 %v5755
        %5819 = vmatpush1.bf16.msra.mxu0 %v5754
        %5820 = vmatprep.subr.bf16.mxu0 %v5757
        %5821 = vmatpush1.bf16.msra.mxu0 %v5756
        %5822 = vmatprep.subr.bf16.mxu0 %v5759
        %5823 = vmatpush1.bf16.msra.mxu0 %v5758
        %5824 = vmatprep.subr.bf16.mxu0 %v5761
        %5825 = vmatpush1.bf16.msra.mxu0 %v5760
        %5826 = vmatprep.subr.bf16.mxu0 %v5763
        %5827 = vmatpush1.bf16.msra.mxu0 %v5762
        %5828 = vmatprep.subr.bf16.mxu0 %v5765
        %5829 = vmatpush1.bf16.msra.mxu0 %v5764
        %5830 = vmatprep.subr.bf16.mxu0 %v5767
        %5831 = vmatpush1.bf16.msra.mxu0 %v5766
        %5832 = vmatprep.subr.bf16.mxu0 %v5769
        %5833 = vmatpush1.bf16.msra.mxu0 %v5768
        %5834 = vmatprep.subr.bf16.mxu0 %v5771
        %5835 = vmatpush1.bf16.msra.mxu0 %v5770
        %5836 = vmatprep.subr.bf16.mxu0 %v5773
        %5837 = vmatpush1.bf16.msra.mxu0 %v5772
        %5838 = vmatprep.subr.bf16.mxu0 %v5775
        %5839 = vmatpush1.bf16.msra.mxu0 %v5774
        %5840 = vmatprep.mubr.bf16.mxu0 %v5176
        %5841 = vmatmul.mubr.bf16.gmra.mrb[0].mxu0 %v5175
        %v5842 = vpop.f32.mrb[0].mxu0
        %v5843 = vadd.f32 %v5582, %v5842
        %v5844 = vpop.f32.mrb[0].mxu0
        %v5845 = vadd.f32 %v5584, %v5844
        %v5846 = vpop.f32.mrb[0].mxu0
        %v5847 = vadd.f32 %v5586, %v5846
        %v5848 = vpop.f32.mrb[0].mxu0
        %v5849 = vadd.f32 %v5588, %v5848
        %5850 = vmatprep.mubr.bf16.mxu0 %v5178
        %5851 = vmatmul.mubr.bf16.gmra.mrb[0].mxu0 %v5177
        %v5852 = vpop.f32.mrb[0].mxu0
        %v5853 = vadd.f32 %v5592, %v5852
        %v5854 = vpop.f32.mrb[0].mxu0
        %v5855 = vadd.f32 %v5594, %v5854
        %v5856 = vpop.f32.mrb[0].mxu0
        %v5857 = vadd.f32 %v5596, %v5856
        %v5858 = vpop.f32.mrb[0].mxu0
        %v5859 = vadd.f32 %v5598, %v5858
        %5860 = vmatprep.mubr.bf16.mxu0 %v5180
        %5861 = vmatmul.mubr.bf16.gmra.mrb[0].mxu0 %v5179
        %v5862 = vpop.f32.mrb[0].mxu0
        %v5863 = vadd.f32 %v5602, %v5862
        %v5864 = vpop.f32.mrb[0].mxu0
        %v5865 = vadd.f32 %v5604, %v5864
        %v5866 = vpop.f32.mrb[0].mxu0
        %v5867 = vadd.f32 %v5606, %v5866
        %v5868 = vpop.f32.mrb[0].mxu0
        %v5869 = vadd.f32 %v5608, %v5868
        %5870 = vmatprep.mubr.bf16.mxu0 %v5182
        %5871 = vmatmul.mubr.bf16.gmra.mrb[0].mxu0 %v5181
        %v5872 = vpop.f32.mrb[0].mxu0
        %v5873 = vadd.f32 %v5612, %v5872
        %v5874 = vpop.f32.mrb[0].mxu0
        %v5875 = vadd.f32 %v5614, %v5874
        %v5876 = vpop.f32.mrb[0].mxu0
        %v5877 = vadd.f32 %v5616, %v5876
        %v5878 = vpop.f32.mrb[0].mxu0
        %v5879 = vadd.f32 %v5618, %v5878
        %5880 = vmatprep.mubr.bf16.mxu0 %v5184
        %5881 = vmatmul.mubr.bf16.gmra.mrb[0].mxu0 %v5183
        %v5882 = vpop.f32.mrb[0].mxu0
        %v5883 = vadd.f32 %v5622, %v5882
        %v5884 = vpop.f32.mrb[0].mxu0
        %v5885 = vadd.f32 %v5624, %v5884
        %v5886 = vpop.f32.mrb[0].mxu0
        %v5887 = vadd.f32 %v5626, %v5886
        %v5888 = vpop.f32.mrb[0].mxu0
        %v5889 = vadd.f32 %v5628, %v5888
        %5890 = vmatprep.mubr.bf16.mxu0 %v5186
        %5891 = vmatmul.mubr.bf16.gmra.mrb[0].mxu0 %v5185
        %v5892 = vpop.f32.mrb[0].mxu0
        %v5893 = vadd.f32 %v5632, %v5892
        %v5894 = vpop.f32.mrb[0].mxu0
        %v5895 = vadd.f32 %v5634, %v5894
        %v5896 = vpop.f32.mrb[0].mxu0
        %v5897 = vadd.f32 %v5636, %v5896
        %v5898 = vpop.f32.mrb[0].mxu0
        %v5899 = vadd.f32 %v5638, %v5898
        %5900 = vmatprep.mubr.bf16.mxu0 %v5188
        %5901 = vmatmul.mubr.bf16.gmra.mrb[0].mxu0 %v5187
        %v5902 = vpop.f32.mrb[0].mxu0
        %v5903 = vadd.f32 %v5642, %v5902
        %v5904 = vpop.f32.mrb[0].mxu0
        %v5905 = vadd.f32 %v5644, %v5904
        %v5906 = vpop.f32.mrb[0].mxu0
        %v5907 = vpop.f32.mrb[0].mxu0
        %5908 = vdwg.mxu0
        %v5909 = vld [vmem:[#allocation4] sm:$0xfc]
        %v5910 = vld [vmem:[#allocation4 + $0x8] sm:$0xfc]
        %v5911 = vld [vmem:[#allocation4 + $0xc0] sm:$0xf]
        %v5912 = vld [vmem:[#allocation4 + $0xc8] sm:$0xf]
        %v5913 = vpack.c.bf16 %v5151, %v5909
        %v5914 = vpack.c.bf16 %v5152, %v5910
        %v5915 = vpack.c.bf16 %v5911, %v5911
        %v5916 = vpack.c.bf16 %v5912, %v5912
        %s5917 = scalar_lea.vmem %s587, 512 [#allocation16]
        %v5918 = vld [vmem:[%s5917] sm:$0xff]
        %v5919 = vld [vmem:[%s5917 + $0x8] sm:$0xff]
        %v5920 = vld [vmem:[%s5917 + $0x10] sm:$0xff]
        %v5921 = vld [vmem:[%s5917 + $0x18] sm:$0xff]
        %v5922 = vld [vmem:[%s5917 + $0x20] sm:$0xff]
        %v5923 = vld [vmem:[%s5917 + $0x28] sm:$0xff]
        %v5924 = vld [vmem:[%s5917 + $0x30] sm:$0xff]
        %v5925 = vld [vmem:[%s5917 + $0x38] sm:$0xff]
        %v5926 = vld [vmem:[%s5917 + $0x40] sm:$0xff]
        %v5927 = vld [vmem:[%s5917 + $0x48] sm:$0xff]
        %v5928 = vld [vmem:[%s5917 + $0x50] sm:$0xff]
        %v5929 = vld [vmem:[%s5917 + $0x58] sm:$0xff]
        %v5930 = vld [vmem:[%s5917 + $0x60] sm:$0xff]
        %v5931 = vld [vmem:[%s5917 + $0x68] sm:$0xff]
        %v5932 = vld [vmem:[%s5917 + $0x70] sm:$0xff]
        %v5933 = vld [vmem:[%s5917 + $0x78] sm:$0xff]
        %v5934 = vld [vmem:[%s5917 + $0x80] sm:$0xff]
        %v5935 = vld [vmem:[%s5917 + $0x88] sm:$0xff]
        %v5936 = vld [vmem:[%s5917 + $0x90] sm:$0xff]
        %v5937 = vld [vmem:[%s5917 + $0x98] sm:$0xff]
        %v5938 = vld [vmem:[%s5917 + $0xa0] sm:$0xff]
        %v5939 = vld [vmem:[%s5917 + $0xa8] sm:$0xff]
        %v5940 = vld [vmem:[%s5917 + $0xb0] sm:$0xff]
        %v5941 = vld [vmem:[%s5917 + $0xb8] sm:$0xff]
        %v5942 = vld [vmem:[%s5917 + $0xc0] sm:$0xff]
        %v5943 = vld [vmem:[%s5917 + $0xc8] sm:$0xff]
        %v5944 = vld [vmem:[%s5917 + $0xd0] sm:$0xff]
        %v5945 = vld [vmem:[%s5917 + $0xd8] sm:$0xff]
        %v5946 = vld [vmem:[%s5917 + $0xe0] sm:$0xff]
        %v5947 = vld [vmem:[%s5917 + $0xe8] sm:$0xff]
        %v5948 = vld [vmem:[%s5917 + $0xf0] sm:$0xff]
        %v5949 = vld [vmem:[%s5917 + $0xf8] sm:$0xff]
        %vm5964 = vcmask 1046528
        %v5965 = vrot.slane %v5913, 1
        %v5966 = vrot.slane %v5177, 1
        %v5967 = vsel %vm5964, %v5965, %v5966
        %v5968 = vrot.slane %v5914, 1
        %v5969 = vrot.slane %v5178, 1
        %v5970 = vsel %vm5964, %v5968, %v5969
        %v5971 = vrot.slane %v5179, 1
        %v5972 = vsel %vm5964, %v5966, %v5971
        %v5973 = vrot.slane %v5180, 1
        %v5974 = vsel %vm5964, %v5969, %v5973
        %v5975 = vrot.slane %v5181, 1
        %v5976 = vsel %vm5964, %v5971, %v5975
        %v5977 = vrot.slane %v5182, 1
        %v5978 = vsel %vm5964, %v5973, %v5977
        %v5979 = vrot.slane %v5183, 1
        %v5980 = vsel %vm5964, %v5975, %v5979
        %v5981 = vrot.slane %v5184, 1
        %v5982 = vsel %vm5964, %v5977, %v5981
        %v5983 = vrot.slane %v5185, 1
        %v5984 = vsel %vm5964, %v5979, %v5983
        %v5985 = vrot.slane %v5186, 1
        %v5986 = vsel %vm5964, %v5981, %v5985
        %v5987 = vrot.slane %v5915, 1
        %v5988 = vsel %vm5964, %v5983, %v5987
        %v5989 = vrot.slane %v5916, 1
        %v5990 = vsel %vm5964, %v5985, %v5989
        %v6037 = vunpack.c.l.b16 %v5918
        %v6038 = vunpack.c.h.b16 %v5918
        %v6039 = vunpack.c.l.b16 %v5919
        %v6040 = vunpack.c.h.b16 %v5919
        %v6041 = vunpack.c.l.b16 %v5920
        %v6042 = vunpack.c.h.b16 %v5920
        %v6043 = vunpack.c.l.b16 %v5921
        %v6044 = vunpack.c.h.b16 %v5921
        %v6045 = vunpack.c.l.b16 %v5922
        %v6046 = vunpack.c.h.b16 %v5922
        %v6047 = vunpack.c.l.b16 %v5923
        %v6048 = vunpack.c.h.b16 %v5923
        %v6049 = vunpack.c.l.b16 %v5924
        %v6050 = vunpack.c.h.b16 %v5924
        %v6051 = vunpack.c.l.b16 %v5925
        %v6052 = vunpack.c.h.b16 %v5925
        %v6053 = vunpack.c.l.b16 %v5926
        %v6054 = vunpack.c.h.b16 %v5926
        %v6055 = vunpack.c.l.b16 %v5927
        %v6056 = vunpack.c.h.b16 %v5927
        %v6057 = vunpack.c.l.b16 %v5928
        %v6058 = vunpack.c.h.b16 %v5928
        %v6059 = vunpack.c.l.b16 %v5929
        %v6060 = vunpack.c.h.b16 %v5929
        %v6061 = vunpack.c.l.b16 %v5930
        %v6062 = vunpack.c.h.b16 %v5930
        %v6063 = vunpack.c.l.b16 %v5931
        %v6064 = vunpack.c.h.b16 %v5931
        %v6065 = vunpack.c.l.b16 %v5932
        %v6066 = vunpack.c.h.b16 %v5932
        %v6067 = vunpack.c.l.b16 %v5933
        %v6068 = vunpack.c.h.b16 %v5933
        %v6069 = vunpack.c.l.b16 %v5934
        %v6070 = vunpack.c.h.b16 %v5934
        %v6071 = vunpack.c.l.b16 %v5935
        %v6072 = vunpack.c.h.b16 %v5935
        %v6073 = vunpack.c.l.b16 %v5936
        %v6074 = vunpack.c.h.b16 %v5936
        %v6075 = vunpack.c.l.b16 %v5937
        %v6076 = vunpack.c.h.b16 %v5937
        %v6077 = vunpack.c.l.b16 %v5938
        %v6078 = vunpack.c.h.b16 %v5938
        %v6079 = vunpack.c.l.b16 %v5939
        %v6080 = vunpack.c.h.b16 %v5939
        %v6081 = vunpack.c.l.b16 %v5940
        %v6082 = vunpack.c.h.b16 %v5940
        %v6083 = vunpack.c.l.b16 %v5941
        %v6084 = vunpack.c.h.b16 %v5941
        %v6085 = vunpack.c.l.b16 %v5942
        %v6086 = vunpack.c.h.b16 %v5942
        %v6087 = vunpack.c.l.b16 %v5943
        %v6088 = vunpack.c.h.b16 %v5943
        %v6089 = vunpack.c.l.b16 %v5944
        %v6090 = vunpack.c.h.b16 %v5944
        %v6091 = vunpack.c.l.b16 %v5945
        %v6092 = vunpack.c.h.b16 %v5945
        %v6093 = vunpack.c.l.b16 %v5946
        %v6094 = vunpack.c.h.b16 %v5946
        %v6095 = vunpack.c.l.b16 %v5947
        %v6096 = vunpack.c.h.b16 %v5947
        %v6097 = vunpack.c.l.b16 %v5948
        %v6098 = vunpack.c.h.b16 %v5948
        %v6099 = vunpack.c.l.b16 %v5949
        %v6100 = vunpack.c.h.b16 %v5949
        %v6101 = vpack.c.b16 %v6039, %v6037
        %v6102 = vpack.c.b16 %v6040, %v6038
        %v6103 = vpack.c.b16 %v6043, %v6041
        %v6104 = vpack.c.b16 %v6044, %v6042
        %v6105 = vpack.c.b16 %v6047, %v6045
        %v6106 = vpack.c.b16 %v6048, %v6046
        %v6107 = vpack.c.b16 %v6051, %v6049
        %v6108 = vpack.c.b16 %v6052, %v6050
        %v6109 = vpack.c.b16 %v6055, %v6053
        %v6110 = vpack.c.b16 %v6056, %v6054
        %v6111 = vpack.c.b16 %v6059, %v6057
        %v6112 = vpack.c.b16 %v6060, %v6058
        %v6113 = vpack.c.b16 %v6063, %v6061
        %v6114 = vpack.c.b16 %v6064, %v6062
        %v6115 = vpack.c.b16 %v6067, %v6065
        %v6116 = vpack.c.b16 %v6068, %v6066
        %v6117 = vpack.c.b16 %v6071, %v6069
        %v6118 = vpack.c.b16 %v6072, %v6070
        %v6119 = vpack.c.b16 %v6075, %v6073
        %v6120 = vpack.c.b16 %v6076, %v6074
        %v6121 = vpack.c.b16 %v6079, %v6077
        %v6122 = vpack.c.b16 %v6080, %v6078
        %v6123 = vpack.c.b16 %v6083, %v6081
        %v6124 = vpack.c.b16 %v6084, %v6082
        %v6125 = vpack.c.b16 %v6087, %v6085
        %v6126 = vpack.c.b16 %v6088, %v6086
        %v6127 = vpack.c.b16 %v6091, %v6089
        %v6128 = vpack.c.b16 %v6092, %v6090
        %v6129 = vpack.c.b16 %v6095, %v6093
        %v6130 = vpack.c.b16 %v6096, %v6094
        %v6131 = vpack.c.b16 %v6099, %v6097
        %v6132 = vpack.c.b16 %v6100, %v6098
        %6165 = vmatprep.subr.bf16.mxu0 %v6102
        %6166 = vmatpush1.bf16.msra.mxu0 %v6101
        %6167 = vmatprep.subr.bf16.mxu0 %v6104
        %6168 = vmatpush1.bf16.msra.mxu0 %v6103
        %6169 = vmatprep.subr.bf16.mxu0 %v6106
        %6170 = vmatpush1.bf16.msra.mxu0 %v6105
        %6171 = vmatprep.subr.bf16.mxu0 %v6108
        %6172 = vmatpush1.bf16.msra.mxu0 %v6107
        %6173 = vmatprep.subr.bf16.mxu0 %v6110
        %6174 = vmatpush1.bf16.msra.mxu0 %v6109
        %6175 = vmatprep.subr.bf16.mxu0 %v6112
        %6176 = vmatpush1.bf16.msra.mxu0 %v6111
        %6177 = vmatprep.subr.bf16.mxu0 %v6114
        %6178 = vmatpush1.bf16.msra.mxu0 %v6113
        %6179 = vmatprep.subr.bf16.mxu0 %v6116
        %6180 = vmatpush1.bf16.msra.mxu0 %v6115
        %6181 = vmatprep.subr.bf16.mxu0 %v6118
        %6182 = vmatpush1.bf16.msra.mxu0 %v6117
        %6183 = vmatprep.subr.bf16.mxu0 %v6120
        %6184 = vmatpush1.bf16.msra.mxu0 %v6119
        %6185 = vmatprep.subr.bf16.mxu0 %v6122
        %6186 = vmatpush1.bf16.msra.mxu0 %v6121
        %6187 = vmatprep.subr.bf16.mxu0 %v6124
        %6188 = vmatpush1.bf16.msra.mxu0 %v6123
        %6189 = vmatprep.subr.bf16.mxu0 %v6126
        %6190 = vmatpush1.bf16.msra.mxu0 %v6125
        %6191 = vmatprep.subr.bf16.mxu0 %v6128
        %6192 = vmatpush1.bf16.msra.mxu0 %v6127
        %6193 = vmatprep.subr.bf16.mxu0 %v6130
        %6194 = vmatpush1.bf16.msra.mxu0 %v6129
        %6195 = vmatprep.subr.bf16.mxu0 %v6132
        %6196 = vmatpush1.bf16.msra.mxu0 %v6131
        %6197 = vmatprep.mubr.bf16.mxu0 %v5970
        %6198 = vmatmul.mubr.bf16.gmra.mrb[0].mxu0 %v5967
        %v6199 = vpop.f32.mrb[0].mxu0
        %v6200 = vadd.f32 0.0, %v6199
        %v6201 = vpop.f32.mrb[0].mxu0
        %v6202 = vadd.f32 0.0, %v6201
        %v6203 = vpop.f32.mrb[0].mxu0
        %v6204 = vadd.f32 0.0, %v6203
        %v6205 = vpop.f32.mrb[0].mxu0
        %v6206 = vadd.f32 0.0, %v6205
        %6207 = vmatprep.mubr.bf16.mxu0 %v5974
        %6208 = vmatmul.mubr.bf16.gmra.mrb[0].mxu0 %v5972
        %v6209 = vpop.f32.mrb[0].mxu0
        %v6210 = vadd.f32 0.0, %v6209
        %v6211 = vpop.f32.mrb[0].mxu0
        %v6212 = vadd.f32 0.0, %v6211
        %v6213 = vpop.f32.mrb[0].mxu0
        %v6214 = vadd.f32 0.0, %v6213
        %v6215 = vpop.f32.mrb[0].mxu0
        %v6216 = vadd.f32 0.0, %v6215
        %6217 = vmatprep.mubr.bf16.mxu0 %v5978
        %6218 = vmatmul.mubr.bf16.gmra.mrb[0].mxu0 %v5976
        %v6219 = vpop.f32.mrb[0].mxu0
        %v6220 = vadd.f32 0.0, %v6219
        %v6221 = vpop.f32.mrb[0].mxu0
        %v6222 = vadd.f32 0.0, %v6221
        %v6223 = vpop.f32.mrb[0].mxu0
        %v6224 = vadd.f32 0.0, %v6223
        %v6225 = vpop.f32.mrb[0].mxu0
        %v6226 = vadd.f32 0.0, %v6225
        %6227 = vmatprep.mubr.bf16.mxu0 %v5982
        %6228 = vmatmul.mubr.bf16.gmra.mrb[0].mxu0 %v5980
        %v6229 = vpop.f32.mrb[0].mxu0
        %v6230 = vadd.f32 0.0, %v6229
        %v6231 = vpop.f32.mrb[0].mxu0
        %v6232 = vadd.f32 0.0, %v6231
        %v6233 = vpop.f32.mrb[0].mxu0
        %v6234 = vadd.f32 0.0, %v6233
        %v6235 = vpop.f32.mrb[0].mxu0
        %v6236 = vadd.f32 0.0, %v6235
        %6237 = vmatprep.mubr.bf16.mxu0 %v5986
        %6238 = vmatmul.mubr.bf16.gmra.mrb[0].mxu0 %v5984
        %v6239 = vpop.f32.mrb[0].mxu0
        %v6240 = vadd.f32 0.0, %v6239
        %v6241 = vpop.f32.mrb[0].mxu0
        %v6242 = vadd.f32 0.0, %v6241
        %v6243 = vpop.f32.mrb[0].mxu0
        %v6244 = vadd.f32 0.0, %v6243
        %v6245 = vpop.f32.mrb[0].mxu0
        %v6246 = vadd.f32 0.0, %v6245
        %6247 = vmatprep.mubr.bf16.mxu0 %v5990
        %6248 = vmatmul.mubr.bf16.gmra.mrb[0].mxu0 %v5988
        %v6249 = vpop.f32.mrb[0].mxu0
        %v6250 = vadd.f32 0.0, %v6249
        %v6251 = vpop.f32.mrb[0].mxu0
        %v6252 = vadd.f32 0.0, %v6251
        %v6253 = vpop.f32.mrb[0].mxu0
        %v6254 = vadd.f32 0.0, %v6253
        %v6255 = vpop.f32.mrb[0].mxu0
        %v6256 = vadd.f32 0.0, %v6255
        %6257 = vmatprep.mubr.bf16.mxu0 %v5989
        %6258 = vmatmul.mubr.bf16.gmra.mrb[0].mxu0 %v5987
        %v6259 = vpop.f32.mrb[0].mxu0
        %v6260 = vadd.f32 0.0, %v6259
        %v6261 = vpop.f32.mrb[0].mxu0
        %v6262 = vadd.f32 0.0, %v6261
        %v6263 = vpop.f32.mrb[0].mxu0
        %v6264 = vpop.f32.mrb[0].mxu0
        %6265 = vdwg.mxu0
        %v6266 = vadd.f32 %v5843, %v6200
        %v6267 = vadd.f32 %v5845, %v6202
        %v6268 = vadd.f32 %v5847, %v6204
        %v6269 = vadd.f32 %v5849, %v6206
        %v6270 = vadd.f32 %v5853, %v6210
        %v6271 = vadd.f32 %v5855, %v6212
        %v6272 = vadd.f32 %v5857, %v6214
        %v6273 = vadd.f32 %v5859, %v6216
        %v6274 = vadd.f32 %v5863, %v6220
        %v6275 = vadd.f32 %v5865, %v6222
        %v6276 = vadd.f32 %v5867, %v6224
        %v6277 = vadd.f32 %v5869, %v6226
        %v6278 = vadd.f32 %v5873, %v6230
        %v6279 = vadd.f32 %v5875, %v6232
        %v6280 = vadd.f32 %v5877, %v6234
        %v6281 = vadd.f32 %v5879, %v6236
        %v6282 = vadd.f32 %v5883, %v6240
        %v6283 = vadd.f32 %v5885, %v6242
        %v6284 = vadd.f32 %v5887, %v6244
        %v6285 = vadd.f32 %v5889, %v6246
        %v6286 = vadd.f32 %v5893, %v6250
        %v6287 = vadd.f32 %v5895, %v6252
        %v6288 = vadd.f32 %v5897, %v6254
        %v6289 = vadd.f32 %v5899, %v6256
        %v6290 = vadd.f32 %v5903, %v6260
        %v6291 = vadd.f32 %v5905, %v6262
        %v6292 = vld [vmem:[#allocation4] sm:$0x80]
        %v6293 = vld [vmem:[#allocation4 + $0x8] sm:$0x80]
        %v6294 = vld [vmem:[#allocation4 + $0x10] sm:$0xff]
        %v6295 = vld [vmem:[#allocation4 + $0x18] sm:$0xff]
        %v6296 = vld [vmem:[#allocation4 + $0x20] sm:$0xff]
        %v6297 = vld [vmem:[#allocation4 + $0x28] sm:$0xff]
        %v6298 = vld [vmem:[#allocation4 + $0x30] sm:$0xff]
        %v6299 = vld [vmem:[#allocation4 + $0x38] sm:$0xff]
        %v6300 = vld [vmem:[#allocation4 + $0x40] sm:$0xff]
        %v6301 = vld [vmem:[#allocation4 + $0x48] sm:$0xff]
        %v6302 = vld [vmem:[#allocation4 + $0x50] sm:$0xff]
        %v6303 = vld [vmem:[#allocation4 + $0x58] sm:$0xff]
        %v6304 = vld [vmem:[#allocation4 + $0x60] sm:$0xff]
        %v6305 = vld [vmem:[#allocation4 + $0x68] sm:$0xff]
        %v6306 = vld [vmem:[#allocation4 + $0x70] sm:$0xff]
        %v6307 = vld [vmem:[#allocation4 + $0x78] sm:$0xff]
        %v6308 = vld [vmem:[#allocation4 + $0x80] sm:$0xff]
        %v6309 = vld [vmem:[#allocation4 + $0x88] sm:$0xff]
        %v6310 = vld [vmem:[#allocation4 + $0x90] sm:$0xff]
        %v6311 = vld [vmem:[#allocation4 + $0x98] sm:$0xff]
        %v6312 = vld [vmem:[#allocation4 + $0xa0] sm:$0xff]
        %v6313 = vld [vmem:[#allocation4 + $0xa8] sm:$0xff]
        %v6314 = vld [vmem:[#allocation4 + $0xb0] sm:$0xff]
        %v6315 = vld [vmem:[#allocation4 + $0xb8] sm:$0xff]
        %v6316 = vld [vmem:[#allocation4 + $0xc0] sm:$0xff]
        %v6317 = vld [vmem:[#allocation4 + $0xc8] sm:$0xff]
        %v6318 = vld [vmem:[#allocation4 + $0xd0] sm:$0x1]
        %v6319 = vld [vmem:[#allocation4 + $0xd8] sm:$0x1]
        %v6320 = vpack.c.bf16 %v6294, %v6292
        %v6321 = vpack.c.bf16 %v6295, %v6293
        %v6322 = vpack.c.bf16 %v6298, %v6296
        %v6323 = vpack.c.bf16 %v6299, %v6297
        %v6324 = vpack.c.bf16 %v6302, %v6300
        %v6325 = vpack.c.bf16 %v6303, %v6301
        %v6326 = vpack.c.bf16 %v6306, %v6304
        %v6327 = vpack.c.bf16 %v6307, %v6305
        %v6328 = vpack.c.bf16 %v6310, %v6308
        %v6329 = vpack.c.bf16 %v6311, %v6309
        %v6330 = vpack.c.bf16 %v6314, %v6312
        %v6331 = vpack.c.bf16 %v6315, %v6313
        %v6332 = vpack.c.bf16 %v6318, %v6316
        %v6333 = vpack.c.bf16 %v6319, %v6317
        %s6334 = scalar_lea.vmem %s587, 768 [#allocation16]
        %v6335 = vld [vmem:[%s6334] sm:$0xff]
        %v6336 = vld [vmem:[%s6334 + $0x8] sm:$0xff]
        %v6337 = vld [vmem:[%s6334 + $0x10] sm:$0xff]
        %v6338 = vld [vmem:[%s6334 + $0x18] sm:$0xff]
        %v6339 = vld [vmem:[%s6334 + $0x20] sm:$0xff]
        %v6340 = vld [vmem:[%s6334 + $0x28] sm:$0xff]
        %v6341 = vld [vmem:[%s6334 + $0x30] sm:$0xff]
        %v6342 = vld [vmem:[%s6334 + $0x38] sm:$0xff]
        %v6343 = vld [vmem:[%s6334 + $0x40] sm:$0xff]
        %v6344 = vld [vmem:[%s6334 + $0x48] sm:$0xff]
        %v6345 = vld [vmem:[%s6334 + $0x50] sm:$0xff]
        %v6346 = vld [vmem:[%s6334 + $0x58] sm:$0xff]
        %v6347 = vld [vmem:[%s6334 + $0x60] sm:$0xff]
        %v6348 = vld [vmem:[%s6334 + $0x68] sm:$0xff]
        %v6349 = vld [vmem:[%s6334 + $0x70] sm:$0xff]
        %v6350 = vld [vmem:[%s6334 + $0x78] sm:$0xff]
        %v6351 = vld [vmem:[%s6334 + $0x80] sm:$0xff]
        %v6352 = vld [vmem:[%s6334 + $0x88] sm:$0xff]
        %v6353 = vld [vmem:[%s6334 + $0x90] sm:$0xff]
        %v6354 = vld [vmem:[%s6334 + $0x98] sm:$0xff]
        %v6355 = vld [vmem:[%s6334 + $0xa0] sm:$0xff]
        %v6356 = vld [vmem:[%s6334 + $0xa8] sm:$0xff]
        %v6357 = vld [vmem:[%s6334 + $0xb0] sm:$0xff]
        %v6358 = vld [vmem:[%s6334 + $0xb8] sm:$0xff]
        %v6359 = vld [vmem:[%s6334 + $0xc0] sm:$0xff]
        %v6360 = vld [vmem:[%s6334 + $0xc8] sm:$0xff]
        %v6361 = vld [vmem:[%s6334 + $0xd0] sm:$0xff]
        %v6362 = vld [vmem:[%s6334 + $0xd8] sm:$0xff]
        %v6363 = vld [vmem:[%s6334 + $0xe0] sm:$0xff]
        %v6364 = vld [vmem:[%s6334 + $0xe8] sm:$0xff]
        %v6365 = vld [vmem:[%s6334 + $0xf0] sm:$0xff]
        %v6366 = vld [vmem:[%s6334 + $0xf8] sm:$0xff]
        %vm6367 = vsmask.f32 4352
        %v6369 = vshrl.u32 %v6320, 16
        %v6371 = vrot.slane %v6369, 3
        %v6372 = vshll.u32 %v6320, 16
        %v6374 = vrot.slane %v6372, 4
        %v6375 = vor.u32 %v6371, %v6374
        %v6377 = vshrl.u32 %v6322, 16
        %v6379 = vrot.slane %v6377, 3
        %v6380 = vshll.u32 %v6322, 16
        %v6382 = vrot.slane %v6380, 4
        %v6383 = vor.u32 %v6379, %v6382
        %v6384 = vsel %vm6367, %v6375, %v6383
        %v6386 = vshrl.u32 %v6321, 16
        %v6388 = vrot.slane %v6386, 3
        %v6389 = vshll.u32 %v6321, 16
        %v6391 = vrot.slane %v6389, 4
        %v6392 = vor.u32 %v6388, %v6391
        %v6394 = vshrl.u32 %v6323, 16
        %v6396 = vrot.slane %v6394, 3
        %v6397 = vshll.u32 %v6323, 16
        %v6399 = vrot.slane %v6397, 4
        %v6400 = vor.u32 %v6396, %v6399
        %v6401 = vsel %vm6367, %v6392, %v6400
        %v6403 = vshrl.u32 %v6324, 16
        %v6405 = vrot.slane %v6403, 3
        %v6406 = vshll.u32 %v6324, 16
        %v6408 = vrot.slane %v6406, 4
        %v6409 = vor.u32 %v6405, %v6408
        %v6410 = vsel %vm6367, %v6383, %v6409
        %v6412 = vshrl.u32 %v6325, 16
        %v6414 = vrot.slane %v6412, 3
        %v6415 = vshll.u32 %v6325, 16
        %v6417 = vrot.slane %v6415, 4
        %v6418 = vor.u32 %v6414, %v6417
        %v6419 = vsel %vm6367, %v6400, %v6418
        %v6421 = vshrl.u32 %v6326, 16
        %v6423 = vrot.slane %v6421, 3
        %v6424 = vshll.u32 %v6326, 16
        %v6426 = vrot.slane %v6424, 4
        %v6427 = vor.u32 %v6423, %v6426
        %v6428 = vsel %vm6367, %v6409, %v6427
        %v6430 = vshrl.u32 %v6327, 16
        %v6432 = vrot.slane %v6430, 3
        %v6433 = vshll.u32 %v6327, 16
        %v6435 = vrot.slane %v6433, 4
        %v6436 = vor.u32 %v6432, %v6435
        %v6437 = vsel %vm6367, %v6418, %v6436
        %v6439 = vshrl.u32 %v6328, 16
        %v6441 = vrot.slane %v6439, 3
        %v6442 = vshll.u32 %v6328, 16
        %v6444 = vrot.slane %v6442, 4
        %v6445 = vor.u32 %v6441, %v6444
        %v6446 = vsel %vm6367, %v6427, %v6445
        %v6448 = vshrl.u32 %v6329, 16
        %v6450 = vrot.slane %v6448, 3
        %v6451 = vshll.u32 %v6329, 16
        %v6453 = vrot.slane %v6451, 4
        %v6454 = vor.u32 %v6450, %v6453
        %v6455 = vsel %vm6367, %v6436, %v6454
        %v6457 = vshrl.u32 %v6330, 16
        %v6459 = vrot.slane %v6457, 3
        %v6460 = vshll.u32 %v6330, 16
        %v6462 = vrot.slane %v6460, 4
        %v6463 = vor.u32 %v6459, %v6462
        %v6464 = vsel %vm6367, %v6445, %v6463
        %v6466 = vshrl.u32 %v6331, 16
        %v6468 = vrot.slane %v6466, 3
        %v6469 = vshll.u32 %v6331, 16
        %v6471 = vrot.slane %v6469, 4
        %v6472 = vor.u32 %v6468, %v6471
        %v6473 = vsel %vm6367, %v6454, %v6472
        %v6475 = vshrl.u32 %v6332, 16
        %v6477 = vrot.slane %v6475, 3
        %v6478 = vshll.u32 %v6332, 16
        %v6480 = vrot.slane %v6478, 4
        %v6481 = vor.u32 %v6477, %v6480
        %v6482 = vsel %vm6367, %v6463, %v6481
        %v6484 = vshrl.u32 %v6333, 16
        %v6486 = vrot.slane %v6484, 3
        %v6487 = vshll.u32 %v6333, 16
        %v6489 = vrot.slane %v6487, 4
        %v6490 = vor.u32 %v6486, %v6489
        %v6491 = vsel %vm6367, %v6472, %v6490
        %v6538 = vunpack.c.l.b16 %v6335
        %v6539 = vunpack.c.h.b16 %v6335
        %v6540 = vunpack.c.l.b16 %v6336
        %v6541 = vunpack.c.h.b16 %v6336
        %v6542 = vunpack.c.l.b16 %v6337
        %v6543 = vunpack.c.h.b16 %v6337
        %v6544 = vunpack.c.l.b16 %v6338
        %v6545 = vunpack.c.h.b16 %v6338
        %v6546 = vunpack.c.l.b16 %v6339
        %v6547 = vunpack.c.h.b16 %v6339
        %v6548 = vunpack.c.l.b16 %v6340
        %v6549 = vunpack.c.h.b16 %v6340
        %v6550 = vunpack.c.l.b16 %v6341
        %v6551 = vunpack.c.h.b16 %v6341
        %v6552 = vunpack.c.l.b16 %v6342
        %v6553 = vunpack.c.h.b16 %v6342
        %v6554 = vunpack.c.l.b16 %v6343
        %v6555 = vunpack.c.h.b16 %v6343
        %v6556 = vunpack.c.l.b16 %v6344
        %v6557 = vunpack.c.h.b16 %v6344
        %v6558 = vunpack.c.l.b16 %v6345
        %v6559 = vunpack.c.h.b16 %v6345
        %v6560 = vunpack.c.l.b16 %v6346
        %v6561 = vunpack.c.h.b16 %v6346
        %v6562 = vunpack.c.l.b16 %v6347
        %v6563 = vunpack.c.h.b16 %v6347
        %v6564 = vunpack.c.l.b16 %v6348
        %v6565 = vunpack.c.h.b16 %v6348
        %v6566 = vunpack.c.l.b16 %v6349
        %v6567 = vunpack.c.h.b16 %v6349
        %v6568 = vunpack.c.l.b16 %v6350
        %v6569 = vunpack.c.h.b16 %v6350
        %v6570 = vunpack.c.l.b16 %v6351
        %v6571 = vunpack.c.h.b16 %v6351
        %v6572 = vunpack.c.l.b16 %v6352
        %v6573 = vunpack.c.h.b16 %v6352
        %v6574 = vunpack.c.l.b16 %v6353
        %v6575 = vunpack.c.h.b16 %v6353
        %v6576 = vunpack.c.l.b16 %v6354
        %v6577 = vunpack.c.h.b16 %v6354
        %v6578 = vunpack.c.l.b16 %v6355
        %v6579 = vunpack.c.h.b16 %v6355
        %v6580 = vunpack.c.l.b16 %v6356
        %v6581 = vunpack.c.h.b16 %v6356
        %v6582 = vunpack.c.l.b16 %v6357
        %v6583 = vunpack.c.h.b16 %v6357
        %v6584 = vunpack.c.l.b16 %v6358
        %v6585 = vunpack.c.h.b16 %v6358
        %v6586 = vunpack.c.l.b16 %v6359
        %v6587 = vunpack.c.h.b16 %v6359
        %v6588 = vunpack.c.l.b16 %v6360
        %v6589 = vunpack.c.h.b16 %v6360
        %v6590 = vunpack.c.l.b16 %v6361
        %v6591 = vunpack.c.h.b16 %v6361
        %v6592 = vunpack.c.l.b16 %v6362
        %v6593 = vunpack.c.h.b16 %v6362
        %v6594 = vunpack.c.l.b16 %v6363
        %v6595 = vunpack.c.h.b16 %v6363
        %v6596 = vunpack.c.l.b16 %v6364
        %v6597 = vunpack.c.h.b16 %v6364
        %v6598 = vunpack.c.l.b16 %v6365
        %v6599 = vunpack.c.h.b16 %v6365
        %v6600 = vunpack.c.l.b16 %v6366
        %v6601 = vunpack.c.h.b16 %v6366
        %v6602 = vpack.c.b16 %v6540, %v6538
        %v6603 = vpack.c.b16 %v6541, %v6539
        %v6604 = vpack.c.b16 %v6544, %v6542
        %v6605 = vpack.c.b16 %v6545, %v6543
        %v6606 = vpack.c.b16 %v6548, %v6546
        %v6607 = vpack.c.b16 %v6549, %v6547
        %v6608 = vpack.c.b16 %v6552, %v6550
        %v6609 = vpack.c.b16 %v6553, %v6551
        %v6610 = vpack.c.b16 %v6556, %v6554
        %v6611 = vpack.c.b16 %v6557, %v6555
        %v6612 = vpack.c.b16 %v6560, %v6558
        %v6613 = vpack.c.b16 %v6561, %v6559
        %v6614 = vpack.c.b16 %v6564, %v6562
        %v6615 = vpack.c.b16 %v6565, %v6563
        %v6616 = vpack.c.b16 %v6568, %v6566
        %v6617 = vpack.c.b16 %v6569, %v6567
        %v6618 = vpack.c.b16 %v6572, %v6570
        %v6619 = vpack.c.b16 %v6573, %v6571
        %v6620 = vpack.c.b16 %v6576, %v6574
        %v6621 = vpack.c.b16 %v6577, %v6575
        %v6622 = vpack.c.b16 %v6580, %v6578
        %v6623 = vpack.c.b16 %v6581, %v6579
        %v6624 = vpack.c.b16 %v6584, %v6582
        %v6625 = vpack.c.b16 %v6585, %v6583
        %v6626 = vpack.c.b16 %v6588, %v6586
        %v6627 = vpack.c.b16 %v6589, %v6587
        %v6628 = vpack.c.b16 %v6592, %v6590
        %v6629 = vpack.c.b16 %v6593, %v6591
        %v6630 = vpack.c.b16 %v6596, %v6594
        %v6631 = vpack.c.b16 %v6597, %v6595
        %v6632 = vpack.c.b16 %v6600, %v6598
        %v6633 = vpack.c.b16 %v6601, %v6599
        %6666 = vmatprep.subr.bf16.mxu0 %v6603
        %6667 = vmatpush1.bf16.msra.mxu0 %v6602
        %6668 = vmatprep.subr.bf16.mxu0 %v6605
        %6669 = vmatpush1.bf16.msra.mxu0 %v6604
        %6670 = vmatprep.subr.bf16.mxu0 %v6607
        %6671 = vmatpush1.bf16.msra.mxu0 %v6606
        %6672 = vmatprep.subr.bf16.mxu0 %v6609
        %6673 = vmatpush1.bf16.msra.mxu0 %v6608
        %6674 = vmatprep.subr.bf16.mxu0 %v6611
        %6675 = vmatpush1.bf16.msra.mxu0 %v6610
        %6676 = vmatprep.subr.bf16.mxu0 %v6613
        %6677 = vmatpush1.bf16.msra.mxu0 %v6612
        %6678 = vmatprep.subr.bf16.mxu0 %v6615
        %6679 = vmatpush1.bf16.msra.mxu0 %v6614
        %6680 = vmatprep.subr.bf16.mxu0 %v6617
        %6681 = vmatpush1.bf16.msra.mxu0 %v6616
        %6682 = vmatprep.subr.bf16.mxu0 %v6619
        %6683 = vmatpush1.bf16.msra.mxu0 %v6618
        %6684 = vmatprep.subr.bf16.mxu0 %v6621
        %6685 = vmatpush1.bf16.msra.mxu0 %v6620
        %6686 = vmatprep.subr.bf16.mxu0 %v6623
        %6687 = vmatpush1.bf16.msra.mxu0 %v6622
        %6688 = vmatprep.subr.bf16.mxu0 %v6625
        %6689 = vmatpush1.bf16.msra.mxu0 %v6624
        %6690 = vmatprep.subr.bf16.mxu0 %v6627
        %6691 = vmatpush1.bf16.msra.mxu0 %v6626
        %6692 = vmatprep.subr.bf16.mxu0 %v6629
        %6693 = vmatpush1.bf16.msra.mxu0 %v6628
        %6694 = vmatprep.subr.bf16.mxu0 %v6631
        %6695 = vmatpush1.bf16.msra.mxu0 %v6630
        %6696 = vmatprep.subr.bf16.mxu0 %v6633
        %6697 = vmatpush1.bf16.msra.mxu0 %v6632
        %6698 = vmatprep.mubr.bf16.mxu0 %v6401
        %6699 = vmatmul.mubr.bf16.gmra.mrb[0].mxu0 %v6384
        %v6700 = vpop.f32.mrb[0].mxu0
        %v6701 = vadd.f32 0.0, %v6700
        %v6702 = vpop.f32.mrb[0].mxu0
        %v6703 = vadd.f32 0.0, %v6702
        %v6704 = vpop.f32.mrb[0].mxu0
        %v6705 = vadd.f32 0.0, %v6704
        %v6706 = vpop.f32.mrb[0].mxu0
        %v6707 = vadd.f32 0.0, %v6706
        %6708 = vmatprep.mubr.bf16.mxu0 %v6419
        %6709 = vmatmul.mubr.bf16.gmra.mrb[0].mxu0 %v6410
        %v6710 = vpop.f32.mrb[0].mxu0
        %v6711 = vadd.f32 0.0, %v6710
        %v6712 = vpop.f32.mrb[0].mxu0
        %v6713 = vadd.f32 0.0, %v6712
        %v6714 = vpop.f32.mrb[0].mxu0
        %v6715 = vadd.f32 0.0, %v6714
        %v6716 = vpop.f32.mrb[0].mxu0
        %v6717 = vadd.f32 0.0, %v6716
        %6718 = vmatprep.mubr.bf16.mxu0 %v6437
        %6719 = vmatmul.mubr.bf16.gmra.mrb[0].mxu0 %v6428
        %v6720 = vpop.f32.mrb[0].mxu0
        %v6721 = vadd.f32 0.0, %v6720
        %v6722 = vpop.f32.mrb[0].mxu0
        %v6723 = vadd.f32 0.0, %v6722
        %v6724 = vpop.f32.mrb[0].mxu0
        %v6725 = vadd.f32 0.0, %v6724
        %v6726 = vpop.f32.mrb[0].mxu0
        %v6727 = vadd.f32 0.0, %v6726
        %6728 = vmatprep.mubr.bf16.mxu0 %v6455
        %6729 = vmatmul.mubr.bf16.gmra.mrb[0].mxu0 %v6446
        %v6730 = vpop.f32.mrb[0].mxu0
        %v6731 = vadd.f32 0.0, %v6730
        %v6732 = vpop.f32.mrb[0].mxu0
        %v6733 = vadd.f32 0.0, %v6732
        %v6734 = vpop.f32.mrb[0].mxu0
        %v6735 = vadd.f32 0.0, %v6734
        %v6736 = vpop.f32.mrb[0].mxu0
        %v6737 = vadd.f32 0.0, %v6736
        %6738 = vmatprep.mubr.bf16.mxu0 %v6473
        %6739 = vmatmul.mubr.bf16.gmra.mrb[0].mxu0 %v6464
        %v6740 = vpop.f32.mrb[0].mxu0
        %v6741 = vadd.f32 0.0, %v6740
        %v6742 = vpop.f32.mrb[0].mxu0
        %v6743 = vadd.f32 0.0, %v6742
        %v6744 = vpop.f32.mrb[0].mxu0
        %v6745 = vadd.f32 0.0, %v6744
        %v6746 = vpop.f32.mrb[0].mxu0
        %v6747 = vadd.f32 0.0, %v6746
        %6748 = vmatprep.mubr.bf16.mxu0 %v6491
        %6749 = vmatmul.mubr.bf16.gmra.mrb[0].mxu0 %v6482
        %v6750 = vpop.f32.mrb[0].mxu0
        %v6751 = vadd.f32 0.0, %v6750
        %v6752 = vpop.f32.mrb[0].mxu0
        %v6753 = vadd.f32 0.0, %v6752
        %v6754 = vpop.f32.mrb[0].mxu0
        %v6755 = vadd.f32 0.0, %v6754
        %v6756 = vpop.f32.mrb[0].mxu0
        %v6757 = vadd.f32 0.0, %v6756
        %6758 = vmatprep.mubr.bf16.mxu0 %v6490
        %6759 = vmatmul.mubr.bf16.gmra.mrb[0].mxu0 %v6481
        %v6760 = vpop.f32.mrb[0].mxu0
        %v6761 = vadd.f32 0.0, %v6760
        %v6762 = vpop.f32.mrb[0].mxu0
        %v6763 = vadd.f32 0.0, %v6762
        %v6764 = vpop.f32.mrb[0].mxu0
        %v6765 = vpop.f32.mrb[0].mxu0
        %6766 = vdwg.mxu0
        %v6767 = vadd.f32 %v6266, %v6701
        %v6768 = vadd.f32 %v6267, %v6703
        %v6769 = vadd.f32 %v6268, %v6705
        %v6770 = vadd.f32 %v6269, %v6707
        %v6771 = vadd.f32 %v6270, %v6711
        %v6772 = vadd.f32 %v6271, %v6713
        %v6773 = vadd.f32 %v6272, %v6715
        %v6774 = vadd.f32 %v6273, %v6717
        %v6775 = vadd.f32 %v6274, %v6721
        %v6776 = vadd.f32 %v6275, %v6723
        %v6777 = vadd.f32 %v6276, %v6725
        %v6778 = vadd.f32 %v6277, %v6727
        %v6779 = vadd.f32 %v6278, %v6731
        %v6780 = vadd.f32 %v6279, %v6733
        %v6781 = vadd.f32 %v6280, %v6735
        %v6782 = vadd.f32 %v6281, %v6737
        %v6783 = vadd.f32 %v6282, %v6741
        %v6784 = vadd.f32 %v6283, %v6743
        %v6785 = vadd.f32 %v6284, %v6745
        %v6786 = vadd.f32 %v6285, %v6747
        %v6787 = vadd.f32 %v6286, %v6751
        %v6788 = vadd.f32 %v6287, %v6753
        %v6789 = vadd.f32 %v6288, %v6755
        %v6790 = vadd.f32 %v6289, %v6757
        %v6791 = vadd.f32 %v6290, %v6761
        %v6792 = vadd.f32 %v6291, %v6763
        %v6793 = vld [vmem:[#allocation4 + $0xd0] sm:$0x3]
        %v6794 = vld [vmem:[#allocation4 + $0xd8] sm:$0x3]
        %v6795 = vpack.c.bf16 %v6296, %v6294
        %v6796 = vpack.c.bf16 %v6297, %v6295
        %v6797 = vpack.c.bf16 %v6300, %v6298
        %v6798 = vpack.c.bf16 %v6301, %v6299
        %v6799 = vpack.c.bf16 %v6304, %v6302
        %v6800 = vpack.c.bf16 %v6305, %v6303
        %v6801 = vpack.c.bf16 %v6308, %v6306
        %v6802 = vpack.c.bf16 %v6309, %v6307
        %v6803 = vpack.c.bf16 %v6312, %v6310
        %v6804 = vpack.c.bf16 %v6313, %v6311
        %v6805 = vpack.c.bf16 %v6316, %v6314
        %v6806 = vpack.c.bf16 %v6317, %v6315
        %v6807 = vpack.c.bf16 %v6793, %v6793
        %v6808 = vpack.c.bf16 %v6794, %v6794
        %s6809 = scalar_lea.vmem %s587, 1024 [#allocation16]
        %v6810 = vld [vmem:[%s6809] sm:$0xff]
        %v6811 = vld [vmem:[%s6809 + $0x8] sm:$0xff]
        %v6812 = vld [vmem:[%s6809 + $0x10] sm:$0xff]
        %v6813 = vld [vmem:[%s6809 + $0x18] sm:$0xff]
        %v6814 = vld [vmem:[%s6809 + $0x20] sm:$0xff]
        %v6815 = vld [vmem:[%s6809 + $0x28] sm:$0xff]
        %v6816 = vld [vmem:[%s6809 + $0x30] sm:$0xff]
        %v6817 = vld [vmem:[%s6809 + $0x38] sm:$0xff]
        %v6818 = vld [vmem:[%s6809 + $0x40] sm:$0xff]
        %v6819 = vld [vmem:[%s6809 + $0x48] sm:$0xff]
        %v6820 = vld [vmem:[%s6809 + $0x50] sm:$0xff]
        %v6821 = vld [vmem:[%s6809 + $0x58] sm:$0xff]
        %v6822 = vld [vmem:[%s6809 + $0x60] sm:$0xff]
        %v6823 = vld [vmem:[%s6809 + $0x68] sm:$0xff]
        %v6824 = vld [vmem:[%s6809 + $0x70] sm:$0xff]
        %v6825 = vld [vmem:[%s6809 + $0x78] sm:$0xff]
        %v6826 = vld [vmem:[%s6809 + $0x80] sm:$0xff]
        %v6827 = vld [vmem:[%s6809 + $0x88] sm:$0xff]
        %v6828 = vld [vmem:[%s6809 + $0x90] sm:$0xff]
        %v6829 = vld [vmem:[%s6809 + $0x98] sm:$0xff]
        %v6830 = vld [vmem:[%s6809 + $0xa0] sm:$0xff]
        %v6831 = vld [vmem:[%s6809 + $0xa8] sm:$0xff]
        %v6832 = vld [vmem:[%s6809 + $0xb0] sm:$0xff]
        %v6833 = vld [vmem:[%s6809 + $0xb8] sm:$0xff]
        %v6834 = vld [vmem:[%s6809 + $0xc0] sm:$0xff]
        %v6835 = vld [vmem:[%s6809 + $0xc8] sm:$0xff]
        %v6836 = vld [vmem:[%s6809 + $0xd0] sm:$0xff]
        %v6837 = vld [vmem:[%s6809 + $0xd8] sm:$0xff]
        %v6838 = vld [vmem:[%s6809 + $0xe0] sm:$0xff]
        %v6839 = vld [vmem:[%s6809 + $0xe8] sm:$0xff]
        %v6840 = vld [vmem:[%s6809 + $0xf0] sm:$0xff]
        %v6841 = vld [vmem:[%s6809 + $0xf8] sm:$0xff]
        %v6874 = vunpack.c.l.b16 %v6810
        %v6875 = vunpack.c.h.b16 %v6810
        %v6876 = vunpack.c.l.b16 %v6811
        %v6877 = vunpack.c.h.b16 %v6811
        %v6878 = vunpack.c.l.b16 %v6812
        %v6879 = vunpack.c.h.b16 %v6812
        %v6880 = vunpack.c.l.b16 %v6813
        %v6881 = vunpack.c.h.b16 %v6813
        %v6882 = vunpack.c.l.b16 %v6814
        %v6883 = vunpack.c.h.b16 %v6814
        %v6884 = vunpack.c.l.b16 %v6815
        %v6885 = vunpack.c.h.b16 %v6815
        %v6886 = vunpack.c.l.b16 %v6816
        %v6887 = vunpack.c.h.b16 %v6816
        %v6888 = vunpack.c.l.b16 %v6817
        %v6889 = vunpack.c.h.b16 %v6817
        %v6890 = vunpack.c.l.b16 %v6818
        %v6891 = vunpack.c.h.b16 %v6818
        %v6892 = vunpack.c.l.b16 %v6819
        %v6893 = vunpack.c.h.b16 %v6819
        %v6894 = vunpack.c.l.b16 %v6820
        %v6895 = vunpack.c.h.b16 %v6820
        %v6896 = vunpack.c.l.b16 %v6821
        %v6897 = vunpack.c.h.b16 %v6821
        %v6898 = vunpack.c.l.b16 %v6822
        %v6899 = vunpack.c.h.b16 %v6822
        %v6900 = vunpack.c.l.b16 %v6823
        %v6901 = vunpack.c.h.b16 %v6823
        %v6902 = vunpack.c.l.b16 %v6824
        %v6903 = vunpack.c.h.b16 %v6824
        %v6904 = vunpack.c.l.b16 %v6825
        %v6905 = vunpack.c.h.b16 %v6825
        %v6906 = vunpack.c.l.b16 %v6826
        %v6907 = vunpack.c.h.b16 %v6826
        %v6908 = vunpack.c.l.b16 %v6827
        %v6909 = vunpack.c.h.b16 %v6827
        %v6910 = vunpack.c.l.b16 %v6828
        %v6911 = vunpack.c.h.b16 %v6828
        %v6912 = vunpack.c.l.b16 %v6829
        %v6913 = vunpack.c.h.b16 %v6829
        %v6914 = vunpack.c.l.b16 %v6830
        %v6915 = vunpack.c.h.b16 %v6830
        %v6916 = vunpack.c.l.b16 %v6831
        %v6917 = vunpack.c.h.b16 %v6831
        %v6918 = vunpack.c.l.b16 %v6832
        %v6919 = vunpack.c.h.b16 %v6832
        %v6920 = vunpack.c.l.b16 %v6833
        %v6921 = vunpack.c.h.b16 %v6833
        %v6922 = vunpack.c.l.b16 %v6834
        %v6923 = vunpack.c.h.b16 %v6834
        %v6924 = vunpack.c.l.b16 %v6835
        %v6925 = vunpack.c.h.b16 %v6835
        %v6926 = vunpack.c.l.b16 %v6836
        %v6927 = vunpack.c.h.b16 %v6836
        %v6928 = vunpack.c.l.b16 %v6837
        %v6929 = vunpack.c.h.b16 %v6837
        %v6930 = vunpack.c.l.b16 %v6838
        %v6931 = vunpack.c.h.b16 %v6838
        %v6932 = vunpack.c.l.b16 %v6839
        %v6933 = vunpack.c.h.b16 %v6839
        %v6934 = vunpack.c.l.b16 %v6840
        %v6935 = vunpack.c.h.b16 %v6840
        %v6936 = vunpack.c.l.b16 %v6841
        %v6937 = vunpack.c.h.b16 %v6841
        %v6938 = vpack.c.b16 %v6876, %v6874
        %v6939 = vpack.c.b16 %v6877, %v6875
        %v6940 = vpack.c.b16 %v6880, %v6878
        %v6941 = vpack.c.b16 %v6881, %v6879
        %v6942 = vpack.c.b16 %v6884, %v6882
        %v6943 = vpack.c.b16 %v6885, %v6883
        %v6944 = vpack.c.b16 %v6888, %v6886
        %v6945 = vpack.c.b16 %v6889, %v6887
        %v6946 = vpack.c.b16 %v6892, %v6890
        %v6947 = vpack.c.b16 %v6893, %v6891
        %v6948 = vpack.c.b16 %v6896, %v6894
        %v6949 = vpack.c.b16 %v6897, %v6895
        %v6950 = vpack.c.b16 %v6900, %v6898
        %v6951 = vpack.c.b16 %v6901, %v6899
        %v6952 = vpack.c.b16 %v6904, %v6902
        %v6953 = vpack.c.b16 %v6905, %v6903
        %v6954 = vpack.c.b16 %v6908, %v6906
        %v6955 = vpack.c.b16 %v6909, %v6907
        %v6956 = vpack.c.b16 %v6912, %v6910
        %v6957 = vpack.c.b16 %v6913, %v6911
        %v6958 = vpack.c.b16 %v6916, %v6914
        %v6959 = vpack.c.b16 %v6917, %v6915
        %v6960 = vpack.c.b16 %v6920, %v6918
        %v6961 = vpack.c.b16 %v6921, %v6919
        %v6962 = vpack.c.b16 %v6924, %v6922
        %v6963 = vpack.c.b16 %v6925, %v6923
        %v6964 = vpack.c.b16 %v6928, %v6926
        %v6965 = vpack.c.b16 %v6929, %v6927
        %v6966 = vpack.c.b16 %v6932, %v6930
        %v6967 = vpack.c.b16 %v6933, %v6931
        %v6968 = vpack.c.b16 %v6936, %v6934
        %v6969 = vpack.c.b16 %v6937, %v6935
        %7002 = vmatprep.subr.bf16.mxu0 %v6939
        %7003 = vmatpush1.bf16.msra.mxu0 %v6938
        %7004 = vmatprep.subr.bf16.mxu0 %v6941
        %7005 = vmatpush1.bf16.msra.mxu0 %v6940
        %7006 = vmatprep.subr.bf16.mxu0 %v6943
        %7007 = vmatpush1.bf16.msra.mxu0 %v6942
        %7008 = vmatprep.subr.bf16.mxu0 %v6945
        %7009 = vmatpush1.bf16.msra.mxu0 %v6944
        %7010 = vmatprep.subr.bf16.mxu0 %v6947
        %7011 = vmatpush1.bf16.msra.mxu0 %v6946
        %7012 = vmatprep.subr.bf16.mxu0 %v6949
        %7013 = vmatpush1.bf16.msra.mxu0 %v6948
        %7014 = vmatprep.subr.bf16.mxu0 %v6951
        %7015 = vmatpush1.bf16.msra.mxu0 %v6950
        %7016 = vmatprep.subr.bf16.mxu0 %v6953
        %7017 = vmatpush1.bf16.msra.mxu0 %v6952
        %7018 = vmatprep.subr.bf16.mxu0 %v6955
        %7019 = vmatpush1.bf16.msra.mxu0 %v6954
        %7020 = vmatprep.subr.bf16.mxu0 %v6957
        %7021 = vmatpush1.bf16.msra.mxu0 %v6956
        %7022 = vmatprep.subr.bf16.mxu0 %v6959
        %7023 = vmatpush1.bf16.msra.mxu0 %v6958
        %7024 = vmatprep.subr.bf16.mxu0 %v6961
        %7025 = vmatpush1.bf16.msra.mxu0 %v6960
        %7026 = vmatprep.subr.bf16.mxu0 %v6963
        %7027 = vmatpush1.bf16.msra.mxu0 %v6962
        %7028 = vmatprep.subr.bf16.mxu0 %v6965
        %7029 = vmatpush1.bf16.msra.mxu0 %v6964
        %7030 = vmatprep.subr.bf16.mxu0 %v6967
        %7031 = vmatpush1.bf16.msra.mxu0 %v6966
        %7032 = vmatprep.subr.bf16.mxu0 %v6969
        %7033 = vmatpush1.bf16.msra.mxu0 %v6968
        %7034 = vmatprep.mubr.bf16.mxu0 %v6796
        %7035 = vmatmul.mubr.bf16.gmra.mrb[0].mxu0 %v6795
        %v7036 = vpop.f32.mrb[0].mxu0
        %v7037 = vadd.f32 0.0, %v7036
        %v7038 = vpop.f32.mrb[0].mxu0
        %v7039 = vadd.f32 0.0, %v7038
        %v7040 = vpop.f32.mrb[0].mxu0
        %v7041 = vadd.f32 0.0, %v7040
        %v7042 = vpop.f32.mrb[0].mxu0
        %v7043 = vadd.f32 0.0, %v7042
        %7044 = vmatprep.mubr.bf16.mxu0 %v6798
        %7045 = vmatmul.mubr.bf16.gmra.mrb[0].mxu0 %v6797
        %v7046 = vpop.f32.mrb[0].mxu0
        %v7047 = vadd.f32 0.0, %v7046
        %v7048 = vpop.f32.mrb[0].mxu0
        %v7049 = vadd.f32 0.0, %v7048
        %v7050 = vpop.f32.mrb[0].mxu0
        %v7051 = vadd.f32 0.0, %v7050
        %v7052 = vpop.f32.mrb[0].mxu0
        %v7053 = vadd.f32 0.0, %v7052
        %7054 = vmatprep.mubr.bf16.mxu0 %v6800
        %7055 = vmatmul.mubr.bf16.gmra.mrb[0].mxu0 %v6799
        %v7056 = vpop.f32.mrb[0].mxu0
        %v7057 = vadd.f32 0.0, %v7056
        %v7058 = vpop.f32.mrb[0].mxu0
        %v7059 = vadd.f32 0.0, %v7058
        %v7060 = vpop.f32.mrb[0].mxu0
        %v7061 = vadd.f32 0.0, %v7060
        %v7062 = vpop.f32.mrb[0].mxu0
        %v7063 = vadd.f32 0.0, %v7062
        %7064 = vmatprep.mubr.bf16.mxu0 %v6802
        %7065 = vmatmul.mubr.bf16.gmra.mrb[0].mxu0 %v6801
        %v7066 = vpop.f32.mrb[0].mxu0
        %v7067 = vadd.f32 0.0, %v7066
        %v7068 = vpop.f32.mrb[0].mxu0
        %v7069 = vadd.f32 0.0, %v7068
        %v7070 = vpop.f32.mrb[0].mxu0
        %v7071 = vadd.f32 0.0, %v7070
        %v7072 = vpop.f32.mrb[0].mxu0
        %v7073 = vadd.f32 0.0, %v7072
        %7074 = vmatprep.mubr.bf16.mxu0 %v6804
        %7075 = vmatmul.mubr.bf16.gmra.mrb[0].mxu0 %v6803
        %v7076 = vpop.f32.mrb[0].mxu0
        %v7077 = vadd.f32 0.0, %v7076
        %v7078 = vpop.f32.mrb[0].mxu0
        %v7079 = vadd.f32 0.0, %v7078
        %v7080 = vpop.f32.mrb[0].mxu0
        %v7081 = vadd.f32 0.0, %v7080
        %v7082 = vpop.f32.mrb[0].mxu0
        %v7083 = vadd.f32 0.0, %v7082
        %7084 = vmatprep.mubr.bf16.mxu0 %v6806
        %7085 = vmatmul.mubr.bf16.gmra.mrb[0].mxu0 %v6805
        %v7086 = vpop.f32.mrb[0].mxu0
        %v7087 = vadd.f32 0.0, %v7086
        %v7088 = vpop.f32.mrb[0].mxu0
        %v7089 = vadd.f32 0.0, %v7088
        %v7090 = vpop.f32.mrb[0].mxu0
        %v7091 = vadd.f32 0.0, %v7090
        %v7092 = vpop.f32.mrb[0].mxu0
        %v7093 = vadd.f32 0.0, %v7092
        %7094 = vmatprep.mubr.bf16.mxu0 %v6808
        %7095 = vmatmul.mubr.bf16.gmra.mrb[0].mxu0 %v6807
        %v7096 = vpop.f32.mrb[0].mxu0
        %v7097 = vadd.f32 0.0, %v7096
        %v7098 = vpop.f32.mrb[0].mxu0
        %v7099 = vadd.f32 0.0, %v7098
        %v7100 = vpop.f32.mrb[0].mxu0
        %v7101 = vpop.f32.mrb[0].mxu0
        %7102 = vdwg.mxu0
        %v7103 = vadd.f32 %v6767, %v7037
        %v7104 = vadd.f32 %v6768, %v7039
        %v7105 = vadd.f32 %v6769, %v7041
        %v7106 = vadd.f32 %v6770, %v7043
        %v7107 = vadd.f32 %v6771, %v7047
        %v7108 = vadd.f32 %v6772, %v7049
        %v7109 = vadd.f32 %v6773, %v7051
        %v7110 = vadd.f32 %v6774, %v7053
        %v7111 = vadd.f32 %v6775, %v7057
        %v7112 = vadd.f32 %v6776, %v7059
        %v7113 = vadd.f32 %v6777, %v7061
        %v7114 = vadd.f32 %v6778, %v7063
        %v7115 = vadd.f32 %v6779, %v7067
        %v7116 = vadd.f32 %v6780, %v7069
        %v7117 = vadd.f32 %v6781, %v7071
        %v7118 = vadd.f32 %v6782, %v7073
        %v7119 = vadd.f32 %v6783, %v7077
        %v7120 = vadd.f32 %v6784, %v7079
        %v7121 = vadd.f32 %v6785, %v7081
        %v7122 = vadd.f32 %v6786, %v7083
        %v7123 = vadd.f32 %v6787, %v7087
        %v7124 = vadd.f32 %v6788, %v7089
        %v7125 = vadd.f32 %v6789, %v7091
        %v7126 = vadd.f32 %v6790, %v7093
        %v7127 = vadd.f32 %v6791, %v7097
        %v7128 = vadd.f32 %v6792, %v7099
        %v7129 = vld [vmem:[#allocation4 + $0x10] sm:$0xfe]
        %v7130 = vld [vmem:[#allocation4 + $0x18] sm:$0xfe]
        %v7131 = vld [vmem:[#allocation4 + $0xd0] sm:$0x7]
        %v7132 = vld [vmem:[#allocation4 + $0xd8] sm:$0x7]
        %v7133 = vpack.c.bf16 %v6296, %v7129
        %v7134 = vpack.c.bf16 %v6297, %v7130
        %v7135 = vpack.c.bf16 %v7131, %v7131
        %v7136 = vpack.c.bf16 %v7132, %v7132
        %s7137 = scalar_lea.vmem %s587, 1280 [#allocation16]
        %v7138 = vld [vmem:[%s7137] sm:$0xff]
        %v7139 = vld [vmem:[%s7137 + $0x8] sm:$0xff]
        %v7140 = vld [vmem:[%s7137 + $0x10] sm:$0xff]
        %v7141 = vld [vmem:[%s7137 + $0x18] sm:$0xff]
        %v7142 = vld [vmem:[%s7137 + $0x20] sm:$0xff]
        %v7143 = vld [vmem:[%s7137 + $0x28] sm:$0xff]
        %v7144 = vld [vmem:[%s7137 + $0x30] sm:$0xff]
        %v7145 = vld [vmem:[%s7137 + $0x38] sm:$0xff]
        %v7146 = vld [vmem:[%s7137 + $0x40] sm:$0xff]
        %v7147 = vld [vmem:[%s7137 + $0x48] sm:$0xff]
        %v7148 = vld [vmem:[%s7137 + $0x50] sm:$0xff]
        %v7149 = vld [vmem:[%s7137 + $0x58] sm:$0xff]
        %v7150 = vld [vmem:[%s7137 + $0x60] sm:$0xff]
        %v7151 = vld [vmem:[%s7137 + $0x68] sm:$0xff]
        %v7152 = vld [vmem:[%s7137 + $0x70] sm:$0xff]
        %v7153 = vld [vmem:[%s7137 + $0x78] sm:$0xff]
        %v7154 = vld [vmem:[%s7137 + $0x80] sm:$0xff]
        %v7155 = vld [vmem:[%s7137 + $0x88] sm:$0xff]
        %v7156 = vld [vmem:[%s7137 + $0x90] sm:$0xff]
        %v7157 = vld [vmem:[%s7137 + $0x98] sm:$0xff]
        %v7158 = vld [vmem:[%s7137 + $0xa0] sm:$0xff]
        %v7159 = vld [vmem:[%s7137 + $0xa8] sm:$0xff]
        %v7160 = vld [vmem:[%s7137 + $0xb0] sm:$0xff]
        %v7161 = vld [vmem:[%s7137 + $0xb8] sm:$0xff]
        %v7162 = vld [vmem:[%s7137 + $0xc0] sm:$0xff]
        %v7163 = vld [vmem:[%s7137 + $0xc8] sm:$0xff]
        %v7164 = vld [vmem:[%s7137 + $0xd0] sm:$0xff]
        %v7165 = vld [vmem:[%s7137 + $0xd8] sm:$0xff]
        %v7166 = vld [vmem:[%s7137 + $0xe0] sm:$0xff]
        %v7167 = vld [vmem:[%s7137 + $0xe8] sm:$0xff]
        %v7168 = vld [vmem:[%s7137 + $0xf0] sm:$0xff]
        %v7169 = vld [vmem:[%s7137 + $0xf8] sm:$0xff]
        %v7171 = vshrl.u32 %v7133, 16
        %v7173 = vshll.u32 %v7133, 16
        %v7175 = vrot.slane %v7173, 1
        %v7176 = vor.u32 %v7171, %v7175
        %v7178 = vshll.u32 %v6797, 16
        %v7180 = vrot.slane %v7178, 1
        %v7181 = vsel %vm5262, %v7176, %v7180
        %v7183 = vshrl.u32 %v7134, 16
        %v7185 = vshll.u32 %v7134, 16
        %v7187 = vrot.slane %v7185, 1
        %v7188 = vor.u32 %v7183, %v7187
        %v7190 = vshll.u32 %v6798, 16
        %v7192 = vrot.slane %v7190, 1
        %v7193 = vsel %vm5262, %v7188, %v7192
        %v7194 = vshrl.u32 %v6797, 16
        %v7196 = vor.u32 %v7194, %v7180
        %v7198 = vshll.u32 %v6799, 16
        %v7200 = vrot.slane %v7198, 1
        %v7201 = vsel %vm5262, %v7196, %v7200
        %v7202 = vshrl.u32 %v6798, 16
        %v7204 = vor.u32 %v7202, %v7192
        %v7206 = vshll.u32 %v6800, 16
        %v7208 = vrot.slane %v7206, 1
        %v7209 = vsel %vm5262, %v7204, %v7208
        %v7210 = vshrl.u32 %v6799, 16
        %v7212 = vor.u32 %v7210, %v7200
        %v7214 = vshll.u32 %v6801, 16
        %v7216 = vrot.slane %v7214, 1
        %v7217 = vsel %vm5262, %v7212, %v7216
        %v7218 = vshrl.u32 %v6800, 16
        %v7220 = vor.u32 %v7218, %v7208
        %v7222 = vshll.u32 %v6802, 16
        %v7224 = vrot.slane %v7222, 1
        %v7225 = vsel %vm5262, %v7220, %v7224
        %v7226 = vshrl.u32 %v6801, 16
        %v7228 = vor.u32 %v7226, %v7216
        %v7230 = vshll.u32 %v6803, 16
        %v7232 = vrot.slane %v7230, 1
        %v7233 = vsel %vm5262, %v7228, %v7232
        %v7234 = vshrl.u32 %v6802, 16
        %v7236 = vor.u32 %v7234, %v7224
        %v7238 = vshll.u32 %v6804, 16
        %v7240 = vrot.slane %v7238, 1
        %v7241 = vsel %vm5262, %v7236, %v7240
        %v7242 = vshrl.u32 %v6803, 16
        %v7244 = vor.u32 %v7242, %v7232
        %v7246 = vshll.u32 %v6805, 16
        %v7248 = vrot.slane %v7246, 1
        %v7249 = vsel %vm5262, %v7244, %v7248
        %v7250 = vshrl.u32 %v6804, 16
        %v7252 = vor.u32 %v7250, %v7240
        %v7254 = vshll.u32 %v6806, 16
        %v7256 = vrot.slane %v7254, 1
        %v7257 = vsel %vm5262, %v7252, %v7256
        %v7258 = vshrl.u32 %v6805, 16
        %v7260 = vor.u32 %v7258, %v7248
        %v7262 = vshll.u32 %v7135, 16
        %v7264 = vrot.slane %v7262, 1
        %v7265 = vsel %vm5262, %v7260, %v7264
        %v7266 = vshrl.u32 %v6806, 16
        %v7268 = vor.u32 %v7266, %v7256
        %v7270 = vshll.u32 %v7136, 16
        %v7272 = vrot.slane %v7270, 1
        %v7273 = vsel %vm5262, %v7268, %v7272
        %v7274 = vshrl.u32 %v7135, 16
        %v7276 = vor.u32 %v7274, %v7264
        %v7277 = vshrl.u32 %v7136, 16
        %v7279 = vor.u32 %v7277, %v7272
        %v7326 = vunpack.c.l.b16 %v7138
        %v7327 = vunpack.c.h.b16 %v7138
        %v7328 = vunpack.c.l.b16 %v7139
        %v7329 = vunpack.c.h.b16 %v7139
        %v7330 = vunpack.c.l.b16 %v7140
        %v7331 = vunpack.c.h.b16 %v7140
        %v7332 = vunpack.c.l.b16 %v7141
        %v7333 = vunpack.c.h.b16 %v7141
        %v7334 = vunpack.c.l.b16 %v7142
        %v7335 = vunpack.c.h.b16 %v7142
        %v7336 = vunpack.c.l.b16 %v7143
        %v7337 = vunpack.c.h.b16 %v7143
        %v7338 = vunpack.c.l.b16 %v7144
        %v7339 = vunpack.c.h.b16 %v7144
        %v7340 = vunpack.c.l.b16 %v7145
        %v7341 = vunpack.c.h.b16 %v7145
        %v7342 = vunpack.c.l.b16 %v7146
        %v7343 = vunpack.c.h.b16 %v7146
        %v7344 = vunpack.c.l.b16 %v7147
        %v7345 = vunpack.c.h.b16 %v7147
        %v7346 = vunpack.c.l.b16 %v7148
        %v7347 = vunpack.c.h.b16 %v7148
        %v7348 = vunpack.c.l.b16 %v7149
        %v7349 = vunpack.c.h.b16 %v7149
        %v7350 = vunpack.c.l.b16 %v7150
        %v7351 = vunpack.c.h.b16 %v7150
        %v7352 = vunpack.c.l.b16 %v7151
        %v7353 = vunpack.c.h.b16 %v7151
        %v7354 = vunpack.c.l.b16 %v7152
        %v7355 = vunpack.c.h.b16 %v7152
        %v7356 = vunpack.c.l.b16 %v7153
        %v7357 = vunpack.c.h.b16 %v7153
        %v7358 = vunpack.c.l.b16 %v7154
        %v7359 = vunpack.c.h.b16 %v7154
        %v7360 = vunpack.c.l.b16 %v7155
        %v7361 = vunpack.c.h.b16 %v7155
        %v7362 = vunpack.c.l.b16 %v7156
        %v7363 = vunpack.c.h.b16 %v7156
        %v7364 = vunpack.c.l.b16 %v7157
        %v7365 = vunpack.c.h.b16 %v7157
        %v7366 = vunpack.c.l.b16 %v7158
        %v7367 = vunpack.c.h.b16 %v7158
        %v7368 = vunpack.c.l.b16 %v7159
        %v7369 = vunpack.c.h.b16 %v7159
        %v7370 = vunpack.c.l.b16 %v7160
        %v7371 = vunpack.c.h.b16 %v7160
        %v7372 = vunpack.c.l.b16 %v7161
        %v7373 = vunpack.c.h.b16 %v7161
        %v7374 = vunpack.c.l.b16 %v7162
        %v7375 = vunpack.c.h.b16 %v7162
        %v7376 = vunpack.c.l.b16 %v7163
        %v7377 = vunpack.c.h.b16 %v7163
        %v7378 = vunpack.c.l.b16 %v7164
        %v7379 = vunpack.c.h.b16 %v7164
        %v7380 = vunpack.c.l.b16 %v7165
        %v7381 = vunpack.c.h.b16 %v7165
        %v7382 = vunpack.c.l.b16 %v7166
        %v7383 = vunpack.c.h.b16 %v7166
        %v7384 = vunpack.c.l.b16 %v7167
        %v7385 = vunpack.c.h.b16 %v7167
        %v7386 = vunpack.c.l.b16 %v7168
        %v7387 = vunpack.c.h.b16 %v7168
        %v7388 = vunpack.c.l.b16 %v7169
        %v7389 = vunpack.c.h.b16 %v7169
        %v7390 = vpack.c.b16 %v7328, %v7326
        %v7391 = vpack.c.b16 %v7329, %v7327
        %v7392 = vpack.c.b16 %v7332, %v7330
        %v7393 = vpack.c.b16 %v7333, %v7331
        %v7394 = vpack.c.b16 %v7336, %v7334
        %v7395 = vpack.c.b16 %v7337, %v7335
        %v7396 = vpack.c.b16 %v7340, %v7338
        %v7397 = vpack.c.b16 %v7341, %v7339
        %v7398 = vpack.c.b16 %v7344, %v7342
        %v7399 = vpack.c.b16 %v7345, %v7343
        %v7400 = vpack.c.b16 %v7348, %v7346
        %v7401 = vpack.c.b16 %v7349, %v7347
        %v7402 = vpack.c.b16 %v7352, %v7350
        %v7403 = vpack.c.b16 %v7353, %v7351
        %v7404 = vpack.c.b16 %v7356, %v7354
        %v7405 = vpack.c.b16 %v7357, %v7355
        %v7406 = vpack.c.b16 %v7360, %v7358
        %v7407 = vpack.c.b16 %v7361, %v7359
        %v7408 = vpack.c.b16 %v7364, %v7362
        %v7409 = vpack.c.b16 %v7365, %v7363
        %v7410 = vpack.c.b16 %v7368, %v7366
        %v7411 = vpack.c.b16 %v7369, %v7367
        %v7412 = vpack.c.b16 %v7372, %v7370
        %v7413 = vpack.c.b16 %v7373, %v7371
        %v7414 = vpack.c.b16 %v7376, %v7374
        %v7415 = vpack.c.b16 %v7377, %v7375
        %v7416 = vpack.c.b16 %v7380, %v7378
        %v7417 = vpack.c.b16 %v7381, %v7379
        %v7418 = vpack.c.b16 %v7384, %v7382
        %v7419 = vpack.c.b16 %v7385, %v7383
        %v7420 = vpack.c.b16 %v7388, %v7386
        %v7421 = vpack.c.b16 %v7389, %v7387
        %7454 = vmatprep.subr.bf16.mxu0 %v7391
        %7455 = vmatpush1.bf16.msra.mxu0 %v7390
        %7456 = vmatprep.subr.bf16.mxu0 %v7393
        %7457 = vmatpush1.bf16.msra.mxu0 %v7392
        %7458 = vmatprep.subr.bf16.mxu0 %v7395
        %7459 = vmatpush1.bf16.msra.mxu0 %v7394
        %7460 = vmatprep.subr.bf16.mxu0 %v7397
        %7461 = vmatpush1.bf16.msra.mxu0 %v7396
        %7462 = vmatprep.subr.bf16.mxu0 %v7399
        %7463 = vmatpush1.bf16.msra.mxu0 %v7398
        %7464 = vmatprep.subr.bf16.mxu0 %v7401
        %7465 = vmatpush1.bf16.msra.mxu0 %v7400
        %7466 = vmatprep.subr.bf16.mxu0 %v7403
        %7467 = vmatpush1.bf16.msra.mxu0 %v7402
        %7468 = vmatprep.subr.bf16.mxu0 %v7405
        %7469 = vmatpush1.bf16.msra.mxu0 %v7404
        %7470 = vmatprep.subr.bf16.mxu0 %v7407
        %7471 = vmatpush1.bf16.msra.mxu0 %v7406
        %7472 = vmatprep.subr.bf16.mxu0 %v7409
        %7473 = vmatpush1.bf16.msra.mxu0 %v7408
        %7474 = vmatprep.subr.bf16.mxu0 %v7411
        %7475 = vmatpush1.bf16.msra.mxu0 %v7410
        %7476 = vmatprep.subr.bf16.mxu0 %v7413
        %7477 = vmatpush1.bf16.msra.mxu0 %v7412
        %7478 = vmatprep.subr.bf16.mxu0 %v7415
        %7479 = vmatpush1.bf16.msra.mxu0 %v7414
        %7480 = vmatprep.subr.bf16.mxu0 %v7417
        %7481 = vmatpush1.bf16.msra.mxu0 %v7416
        %7482 = vmatprep.subr.bf16.mxu0 %v7419
        %7483 = vmatpush1.bf16.msra.mxu0 %v7418
        %7484 = vmatprep.subr.bf16.mxu0 %v7421
        %7485 = vmatpush1.bf16.msra.mxu0 %v7420
        %7486 = vmatprep.mubr.bf16.mxu0 %v7193
        %7487 = vmatmul.mubr.bf16.gmra.mrb[0].mxu0 %v7181
        %v7488 = vpop.f32.mrb[0].mxu0
        %v7489 = vadd.f32 0.0, %v7488
        %v7490 = vpop.f32.mrb[0].mxu0
        %v7491 = vadd.f32 0.0, %v7490
        %v7492 = vpop.f32.mrb[0].mxu0
        %v7493 = vadd.f32 0.0, %v7492
        %v7494 = vpop.f32.mrb[0].mxu0
        %v7495 = vadd.f32 0.0, %v7494
        %7496 = vmatprep.mubr.bf16.mxu0 %v7209
        %7497 = vmatmul.mubr.bf16.gmra.mrb[0].mxu0 %v7201
        %v7498 = vpop.f32.mrb[0].mxu0
        %v7499 = vadd.f32 0.0, %v7498
        %v7500 = vpop.f32.mrb[0].mxu0
        %v7501 = vadd.f32 0.0, %v7500
        %v7502 = vpop.f32.mrb[0].mxu0
        %v7503 = vadd.f32 0.0, %v7502
        %v7504 = vpop.f32.mrb[0].mxu0
        %v7505 = vadd.f32 0.0, %v7504
        %7506 = vmatprep.mubr.bf16.mxu0 %v7225
        %7507 = vmatmul.mubr.bf16.gmra.mrb[0].mxu0 %v7217
        %v7508 = vpop.f32.mrb[0].mxu0
        %v7509 = vadd.f32 0.0, %v7508
        %v7510 = vpop.f32.mrb[0].mxu0
        %v7511 = vadd.f32 0.0, %v7510
        %v7512 = vpop.f32.mrb[0].mxu0
        %v7513 = vadd.f32 0.0, %v7512
        %v7514 = vpop.f32.mrb[0].mxu0
        %v7515 = vadd.f32 0.0, %v7514
        %7516 = vmatprep.mubr.bf16.mxu0 %v7241
        %7517 = vmatmul.mubr.bf16.gmra.mrb[0].mxu0 %v7233
        %v7518 = vpop.f32.mrb[0].mxu0
        %v7519 = vadd.f32 0.0, %v7518
        %v7520 = vpop.f32.mrb[0].mxu0
        %v7521 = vadd.f32 0.0, %v7520
        %v7522 = vpop.f32.mrb[0].mxu0
        %v7523 = vadd.f32 0.0, %v7522
        %v7524 = vpop.f32.mrb[0].mxu0
        %v7525 = vadd.f32 0.0, %v7524
        %7526 = vmatprep.mubr.bf16.mxu0 %v7257
        %7527 = vmatmul.mubr.bf16.gmra.mrb[0].mxu0 %v7249
        %v7528 = vpop.f32.mrb[0].mxu0
        %v7529 = vadd.f32 0.0, %v7528
        %v7530 = vpop.f32.mrb[0].mxu0
        %v7531 = vadd.f32 0.0, %v7530
        %v7532 = vpop.f32.mrb[0].mxu0
        %v7533 = vadd.f32 0.0, %v7532
        %v7534 = vpop.f32.mrb[0].mxu0
        %v7535 = vadd.f32 0.0, %v7534
        %7536 = vmatprep.mubr.bf16.mxu0 %v7273
        %7537 = vmatmul.mubr.bf16.gmra.mrb[0].mxu0 %v7265
        %v7538 = vpop.f32.mrb[0].mxu0
        %v7539 = vadd.f32 0.0, %v7538
        %v7540 = vpop.f32.mrb[0].mxu0
        %v7541 = vadd.f32 0.0, %v7540
        %v7542 = vpop.f32.mrb[0].mxu0
        %v7543 = vadd.f32 0.0, %v7542
        %v7544 = vpop.f32.mrb[0].mxu0
        %v7545 = vadd.f32 0.0, %v7544
        %7546 = vmatprep.mubr.bf16.mxu0 %v7279
        %7547 = vmatmul.mubr.bf16.gmra.mrb[0].mxu0 %v7276
        %v7548 = vpop.f32.mrb[0].mxu0
        %v7549 = vadd.f32 0.0, %v7548
        %v7550 = vpop.f32.mrb[0].mxu0
        %v7551 = vadd.f32 0.0, %v7550
        %v7552 = vpop.f32.mrb[0].mxu0
        %v7553 = vpop.f32.mrb[0].mxu0
        %7554 = vdwg.mxu0
        %v7555 = vadd.f32 %v7103, %v7489
        %v7556 = vadd.f32 %v7104, %v7491
        %v7557 = vadd.f32 %v7105, %v7493
        %v7558 = vadd.f32 %v7106, %v7495
        %v7559 = vadd.f32 %v7107, %v7499
        %v7560 = vadd.f32 %v7108, %v7501
        %v7561 = vadd.f32 %v7109, %v7503
        %v7562 = vadd.f32 %v7110, %v7505
        %v7563 = vadd.f32 %v7111, %v7509
        %v7564 = vadd.f32 %v7112, %v7511
        %v7565 = vadd.f32 %v7113, %v7513
        %v7566 = vadd.f32 %v7114, %v7515
        %v7567 = vadd.f32 %v7115, %v7519
        %v7568 = vadd.f32 %v7116, %v7521
        %v7569 = vadd.f32 %v7117, %v7523
        %v7570 = vadd.f32 %v7118, %v7525
        %v7571 = vadd.f32 %v7119, %v7529
        %v7572 = vadd.f32 %v7120, %v7531
        %v7573 = vadd.f32 %v7121, %v7533
        %v7574 = vadd.f32 %v7122, %v7535
        %v7575 = vadd.f32 %v7123, %v7539
        %v7576 = vadd.f32 %v7124, %v7541
        %v7577 = vadd.f32 %v7125, %v7543
        %v7578 = vadd.f32 %v7126, %v7545
        %v7579 = vadd.f32 %v7127, %v7549
        %v7580 = vadd.f32 %v7128, %v7551
        %v7581 = vld [vmem:[#allocation4 + $0x10] sm:$0xc0]
        %v7582 = vld [vmem:[#allocation4 + $0x18] sm:$0xc0]
        %v7583 = vld [vmem:[#allocation4 + $0xd0] sm:$0xff]
        %v7584 = vld [vmem:[#allocation4 + $0xd8] sm:$0xff]
        %v7585 = vpack.c.bf16 %v6296, %v7581
        %v7586 = vpack.c.bf16 %v6297, %v7582
        %v7587 = vpack.c.bf16 %v7583, %v7583
        %v7588 = vpack.c.bf16 %v7584, %v7584
        %s7589 = scalar_lea.vmem %s587, 1536 [#allocation16]
        %v7590 = vld [vmem:[%s7589] sm:$0xff]
        %v7591 = vld [vmem:[%s7589 + $0x8] sm:$0xff]
        %v7592 = vld [vmem:[%s7589 + $0x10] sm:$0xff]
        %v7593 = vld [vmem:[%s7589 + $0x18] sm:$0xff]
        %v7594 = vld [vmem:[%s7589 + $0x20] sm:$0xff]
        %v7595 = vld [vmem:[%s7589 + $0x28] sm:$0xff]
        %v7596 = vld [vmem:[%s7589 + $0x30] sm:$0xff]
        %v7597 = vld [vmem:[%s7589 + $0x38] sm:$0xff]
        %v7598 = vld [vmem:[%s7589 + $0x40] sm:$0xff]
        %v7599 = vld [vmem:[%s7589 + $0x48] sm:$0xff]
        %v7600 = vld [vmem:[%s7589 + $0x50] sm:$0xff]
        %v7601 = vld [vmem:[%s7589 + $0x58] sm:$0xff]
        %v7602 = vld [vmem:[%s7589 + $0x60] sm:$0xff]
        %v7603 = vld [vmem:[%s7589 + $0x68] sm:$0xff]
        %v7604 = vld [vmem:[%s7589 + $0x70] sm:$0xff]
        %v7605 = vld [vmem:[%s7589 + $0x78] sm:$0xff]
        %v7606 = vld [vmem:[%s7589 + $0x80] sm:$0xff]
        %v7607 = vld [vmem:[%s7589 + $0x88] sm:$0xff]
        %v7608 = vld [vmem:[%s7589 + $0x90] sm:$0xff]
        %v7609 = vld [vmem:[%s7589 + $0x98] sm:$0xff]
        %v7610 = vld [vmem:[%s7589 + $0xa0] sm:$0xff]
        %v7611 = vld [vmem:[%s7589 + $0xa8] sm:$0xff]
        %v7612 = vld [vmem:[%s7589 + $0xb0] sm:$0xff]
        %v7613 = vld [vmem:[%s7589 + $0xb8] sm:$0xff]
        %v7614 = vld [vmem:[%s7589 + $0xc0] sm:$0xff]
        %v7615 = vld [vmem:[%s7589 + $0xc8] sm:$0xff]
        %v7616 = vld [vmem:[%s7589 + $0xd0] sm:$0xff]
        %v7617 = vld [vmem:[%s7589 + $0xd8] sm:$0xff]
        %v7618 = vld [vmem:[%s7589 + $0xe0] sm:$0xff]
        %v7619 = vld [vmem:[%s7589 + $0xe8] sm:$0xff]
        %v7620 = vld [vmem:[%s7589 + $0xf0] sm:$0xff]
        %v7621 = vld [vmem:[%s7589 + $0xf8] sm:$0xff]
        %vm7636 = vcmask 1044480
        %v7637 = vrot.slane %v7585, 3
        %v7638 = vrot.slane %v6797, 3
        %v7639 = vsel %vm7636, %v7637, %v7638
        %v7640 = vrot.slane %v7586, 3
        %v7641 = vrot.slane %v6798, 3
        %v7642 = vsel %vm7636, %v7640, %v7641
        %v7643 = vrot.slane %v6799, 3
        %v7644 = vsel %vm7636, %v7638, %v7643
        %v7645 = vrot.slane %v6800, 3
        %v7646 = vsel %vm7636, %v7641, %v7645
        %v7647 = vrot.slane %v6801, 3
        %v7648 = vsel %vm7636, %v7643, %v7647
        %v7649 = vrot.slane %v6802, 3
        %v7650 = vsel %vm7636, %v7645, %v7649
        %v7651 = vrot.slane %v6803, 3
        %v7652 = vsel %vm7636, %v7647, %v7651
        %v7653 = vrot.slane %v6804, 3
        %v7654 = vsel %vm7636, %v7649, %v7653
        %v7655 = vrot.slane %v6805, 3
        %v7656 = vsel %vm7636, %v7651, %v7655
        %v7657 = vrot.slane %v6806, 3
        %v7658 = vsel %vm7636, %v7653, %v7657
        %v7659 = vrot.slane %v7587, 3
        %v7660 = vsel %vm7636, %v7655, %v7659
        %v7661 = vrot.slane %v7588, 3
        %v7662 = vsel %vm7636, %v7657, %v7661
        %v7709 = vunpack.c.l.b16 %v7590
        %v7710 = vunpack.c.h.b16 %v7590
        %v7711 = vunpack.c.l.b16 %v7591
        %v7712 = vunpack.c.h.b16 %v7591
        %v7713 = vunpack.c.l.b16 %v7592
        %v7714 = vunpack.c.h.b16 %v7592
        %v7715 = vunpack.c.l.b16 %v7593
        %v7716 = vunpack.c.h.b16 %v7593
        %v7717 = vunpack.c.l.b16 %v7594
        %v7718 = vunpack.c.h.b16 %v7594
        %v7719 = vunpack.c.l.b16 %v7595
        %v7720 = vunpack.c.h.b16 %v7595
        %v7721 = vunpack.c.l.b16 %v7596
        %v7722 = vunpack.c.h.b16 %v7596
        %v7723 = vunpack.c.l.b16 %v7597
        %v7724 = vunpack.c.h.b16 %v7597
        %v7725 = vunpack.c.l.b16 %v7598
        %v7726 = vunpack.c.h.b16 %v7598
        %v7727 = vunpack.c.l.b16 %v7599
        %v7728 = vunpack.c.h.b16 %v7599
        %v7729 = vunpack.c.l.b16 %v7600
        %v7730 = vunpack.c.h.b16 %v7600
        %v7731 = vunpack.c.l.b16 %v7601
        %v7732 = vunpack.c.h.b16 %v7601
        %v7733 = vunpack.c.l.b16 %v7602
        %v7734 = vunpack.c.h.b16 %v7602
        %v7735 = vunpack.c.l.b16 %v7603
        %v7736 = vunpack.c.h.b16 %v7603
        %v7737 = vunpack.c.l.b16 %v7604
        %v7738 = vunpack.c.h.b16 %v7604
        %v7739 = vunpack.c.l.b16 %v7605
        %v7740 = vunpack.c.h.b16 %v7605
        %v7741 = vunpack.c.l.b16 %v7606
        %v7742 = vunpack.c.h.b16 %v7606
        %v7743 = vunpack.c.l.b16 %v7607
        %v7744 = vunpack.c.h.b16 %v7607
        %v7745 = vunpack.c.l.b16 %v7608
        %v7746 = vunpack.c.h.b16 %v7608
        %v7747 = vunpack.c.l.b16 %v7609
        %v7748 = vunpack.c.h.b16 %v7609
        %v7749 = vunpack.c.l.b16 %v7610
        %v7750 = vunpack.c.h.b16 %v7610
        %v7751 = vunpack.c.l.b16 %v7611
        %v7752 = vunpack.c.h.b16 %v7611
        %v7753 = vunpack.c.l.b16 %v7612
        %v7754 = vunpack.c.h.b16 %v7612
        %v7755 = vunpack.c.l.b16 %v7613
        %v7756 = vunpack.c.h.b16 %v7613
        %v7757 = vunpack.c.l.b16 %v7614
        %v7758 = vunpack.c.h.b16 %v7614
        %v7759 = vunpack.c.l.b16 %v7615
        %v7760 = vunpack.c.h.b16 %v7615
        %v7761 = vunpack.c.l.b16 %v7616
        %v7762 = vunpack.c.h.b16 %v7616
        %v7763 = vunpack.c.l.b16 %v7617
        %v7764 = vunpack.c.h.b16 %v7617
        %v7765 = vunpack.c.l.b16 %v7618
        %v7766 = vunpack.c.h.b16 %v7618
        %v7767 = vunpack.c.l.b16 %v7619
        %v7768 = vunpack.c.h.b16 %v7619
        %v7769 = vunpack.c.l.b16 %v7620
        %v7770 = vunpack.c.h.b16 %v7620
        %v7771 = vunpack.c.l.b16 %v7621
        %v7772 = vunpack.c.h.b16 %v7621
        %v7773 = vpack.c.b16 %v7711, %v7709
        %v7774 = vpack.c.b16 %v7712, %v7710
        %v7775 = vpack.c.b16 %v7715, %v7713
        %v7776 = vpack.c.b16 %v7716, %v7714
        %v7777 = vpack.c.b16 %v7719, %v7717
        %v7778 = vpack.c.b16 %v7720, %v7718
        %v7779 = vpack.c.b16 %v7723, %v7721
        %v7780 = vpack.c.b16 %v7724, %v7722
        %v7781 = vpack.c.b16 %v7727, %v7725
        %v7782 = vpack.c.b16 %v7728, %v7726
        %v7783 = vpack.c.b16 %v7731, %v7729
        %v7784 = vpack.c.b16 %v7732, %v7730
        %v7785 = vpack.c.b16 %v7735, %v7733
        %v7786 = vpack.c.b16 %v7736, %v7734
        %v7787 = vpack.c.b16 %v7739, %v7737
        %v7788 = vpack.c.b16 %v7740, %v7738
        %v7789 = vpack.c.b16 %v7743, %v7741
        %v7790 = vpack.c.b16 %v7744, %v7742
        %v7791 = vpack.c.b16 %v7747, %v7745
        %v7792 = vpack.c.b16 %v7748, %v7746
        %v7793 = vpack.c.b16 %v7751, %v7749
        %v7794 = vpack.c.b16 %v7752, %v7750
        %v7795 = vpack.c.b16 %v7755, %v7753
        %v7796 = vpack.c.b16 %v7756, %v7754
        %v7797 = vpack.c.b16 %v7759, %v7757
        %v7798 = vpack.c.b16 %v7760, %v7758
        %v7799 = vpack.c.b16 %v7763, %v7761
        %v7800 = vpack.c.b16 %v7764, %v7762
        %v7801 = vpack.c.b16 %v7767, %v7765
        %v7802 = vpack.c.b16 %v7768, %v7766
        %v7803 = vpack.c.b16 %v7771, %v7769
        %v7804 = vpack.c.b16 %v7772, %v7770
        %7837 = vmatprep.subr.bf16.mxu0 %v7774
        %7838 = vmatpush1.bf16.msra.mxu0 %v7773
        %7839 = vmatprep.subr.bf16.mxu0 %v7776
        %7840 = vmatpush1.bf16.msra.mxu0 %v7775
        %7841 = vmatprep.subr.bf16.mxu0 %v7778
        %7842 = vmatpush1.bf16.msra.mxu0 %v7777
        %7843 = vmatprep.subr.bf16.mxu0 %v7780
        %7844 = vmatpush1.bf16.msra.mxu0 %v7779
        %7845 = vmatprep.subr.bf16.mxu0 %v7782
        %7846 = vmatpush1.bf16.msra.mxu0 %v7781
        %7847 = vmatprep.subr.bf16.mxu0 %v7784
        %7848 = vmatpush1.bf16.msra.mxu0 %v7783
        %7849 = vmatprep.subr.bf16.mxu0 %v7786
        %7850 = vmatpush1.bf16.msra.mxu0 %v7785
        %7851 = vmatprep.subr.bf16.mxu0 %v7788
        %7852 = vmatpush1.bf16.msra.mxu0 %v7787
        %7853 = vmatprep.subr.bf16.mxu0 %v7790
        %7854 = vmatpush1.bf16.msra.mxu0 %v7789
        %7855 = vmatprep.subr.bf16.mxu0 %v7792
        %7856 = vmatpush1.bf16.msra.mxu0 %v7791
        %7857 = vmatprep.subr.bf16.mxu0 %v7794
        %7858 = vmatpush1.bf16.msra.mxu0 %v7793
        %7859 = vmatprep.subr.bf16.mxu0 %v7796
        %7860 = vmatpush1.bf16.msra.mxu0 %v7795
        %7861 = vmatprep.subr.bf16.mxu0 %v7798
        %7862 = vmatpush1.bf16.msra.mxu0 %v7797
        %7863 = vmatprep.subr.bf16.mxu0 %v7800
        %7864 = vmatpush1.bf16.msra.mxu0 %v7799
        %7865 = vmatprep.subr.bf16.mxu0 %v7802
        %7866 = vmatpush1.bf16.msra.mxu0 %v7801
        %7867 = vmatprep.subr.bf16.mxu0 %v7804
        %7868 = vmatpush1.bf16.msra.mxu0 %v7803
        %7869 = vmatprep.mubr.bf16.mxu0 %v7642
        %7870 = vmatmul.mubr.bf16.gmra.mrb[0].mxu0 %v7639
        %v7871 = vpop.f32.mrb[0].mxu0
        %v7872 = vadd.f32 0.0, %v7871
        %v7873 = vpop.f32.mrb[0].mxu0
        %v7874 = vadd.f32 0.0, %v7873
        %v7875 = vpop.f32.mrb[0].mxu0
        %v7876 = vadd.f32 0.0, %v7875
        %v7877 = vpop.f32.mrb[0].mxu0
        %v7878 = vadd.f32 0.0, %v7877
        %7879 = vmatprep.mubr.bf16.mxu0 %v7646
        %7880 = vmatmul.mubr.bf16.gmra.mrb[0].mxu0 %v7644
        %v7881 = vpop.f32.mrb[0].mxu0
        %v7882 = vadd.f32 0.0, %v7881
        %v7883 = vpop.f32.mrb[0].mxu0
        %v7884 = vadd.f32 0.0, %v7883
        %v7885 = vpop.f32.mrb[0].mxu0
        %v7886 = vadd.f32 0.0, %v7885
        %v7887 = vpop.f32.mrb[0].mxu0
        %v7888 = vadd.f32 0.0, %v7887
        %7889 = vmatprep.mubr.bf16.mxu0 %v7650
        %7890 = vmatmul.mubr.bf16.gmra.mrb[0].mxu0 %v7648
        %v7891 = vpop.f32.mrb[0].mxu0
        %v7892 = vadd.f32 0.0, %v7891
        %v7893 = vpop.f32.mrb[0].mxu0
        %v7894 = vadd.f32 0.0, %v7893
        %v7895 = vpop.f32.mrb[0].mxu0
        %v7896 = vadd.f32 0.0, %v7895
        %v7897 = vpop.f32.mrb[0].mxu0
        %v7898 = vadd.f32 0.0, %v7897
        %7899 = vmatprep.mubr.bf16.mxu0 %v7654
        %7900 = vmatmul.mubr.bf16.gmra.mrb[0].mxu0 %v7652
        %v7901 = vpop.f32.mrb[0].mxu0
        %v7902 = vadd.f32 0.0, %v7901
        %v7903 = vpop.f32.mrb[0].mxu0
        %v7904 = vadd.f32 0.0, %v7903
        %v7905 = vpop.f32.mrb[0].mxu0
        %v7906 = vadd.f32 0.0, %v7905
        %v7907 = vpop.f32.mrb[0].mxu0
        %v7908 = vadd.f32 0.0, %v7907
        %7909 = vmatprep.mubr.bf16.mxu0 %v7658
        %7910 = vmatmul.mubr.bf16.gmra.mrb[0].mxu0 %v7656
        %v7911 = vpop.f32.mrb[0].mxu0
        %v7912 = vadd.f32 0.0, %v7911
        %v7913 = vpop.f32.mrb[0].mxu0
        %v7914 = vadd.f32 0.0, %v7913
        %v7915 = vpop.f32.mrb[0].mxu0
        %v7916 = vadd.f32 0.0, %v7915
        %v7917 = vpop.f32.mrb[0].mxu0
        %v7918 = vadd.f32 0.0, %v7917
        %7919 = vmatprep.mubr.bf16.mxu0 %v7662
        %7920 = vmatmul.mubr.bf16.gmra.mrb[0].mxu0 %v7660
        %v7921 = vpop.f32.mrb[0].mxu0
        %v7922 = vadd.f32 0.0, %v7921
        %v7923 = vpop.f32.mrb[0].mxu0
        %v7924 = vadd.f32 0.0, %v7923
        %v7925 = vpop.f32.mrb[0].mxu0
        %v7926 = vadd.f32 0.0, %v7925
        %v7927 = vpop.f32.mrb[0].mxu0
        %v7928 = vadd.f32 0.0, %v7927
        %7929 = vmatprep.mubr.bf16.mxu0 %v7661
        %7930 = vmatmul.mubr.bf16.gmra.mrb[0].mxu0 %v7659
        %v7931 = vpop.f32.mrb[0].mxu0
        %v7932 = vadd.f32 0.0, %v7931
        %v7933 = vpop.f32.mrb[0].mxu0
        %v7934 = vadd.f32 0.0, %v7933
        %v7935 = vpop.f32.mrb[0].mxu0
        %v7936 = vpop.f32.mrb[0].mxu0
        %7937 = vdwg.mxu0
        %v7938 = vadd.f32 %v7555, %v7872
        %v7939 = vadd.f32 %v7556, %v7874
        %v7940 = vadd.f32 %v7557, %v7876
        %v7941 = vadd.f32 %v7558, %v7878
        %v7942 = vadd.f32 %v7559, %v7882
        %v7943 = vadd.f32 %v7560, %v7884
        %v7944 = vadd.f32 %v7561, %v7886
        %v7945 = vadd.f32 %v7562, %v7888
        %v7946 = vadd.f32 %v7563, %v7892
        %v7947 = vadd.f32 %v7564, %v7894
        %v7948 = vadd.f32 %v7565, %v7896
        %v7949 = vadd.f32 %v7566, %v7898
        %v7950 = vadd.f32 %v7567, %v7902
        %v7951 = vadd.f32 %v7568, %v7904
        %v7952 = vadd.f32 %v7569, %v7906
        %v7953 = vadd.f32 %v7570, %v7908
        %v7954 = vadd.f32 %v7571, %v7912
        %v7955 = vadd.f32 %v7572, %v7914
        %v7956 = vadd.f32 %v7573, %v7916
        %v7957 = vadd.f32 %v7574, %v7918
        %v7958 = vadd.f32 %v7575, %v7922
        %v7959 = vadd.f32 %v7576, %v7924
        %v7960 = vadd.f32 %v7577, %v7926
        %v7961 = vadd.f32 %v7578, %v7928
        %v7962 = vadd.f32 %v7579, %v7932
        %v7963 = vadd.f32 %v7580, %v7934
        %v7964 = vld [vmem:[#allocation4 + $0x10] sm:$0x80]
        %v7965 = vld [vmem:[#allocation4 + $0x18] sm:$0x80]
        %v7966 = vld [vmem:[#allocation4 + $0x20] sm:$0xff]
        %v7967 = vld [vmem:[#allocation4 + $0x28] sm:$0xff]
        %v7968 = vld [vmem:[#allocation4 + $0x30] sm:$0xff]
        %v7969 = vld [vmem:[#allocation4 + $0x38] sm:$0xff]
        %v7970 = vld [vmem:[#allocation4 + $0x40] sm:$0xff]
        %v7971 = vld [vmem:[#allocation4 + $0x48] sm:$0xff]
        %v7972 = vld [vmem:[#allocation4 + $0x50] sm:$0xff]
        %v7973 = vld [vmem:[#allocation4 + $0x58] sm:$0xff]
        %v7974 = vld [vmem:[#allocation4 + $0x60] sm:$0xff]
        %v7975 = vld [vmem:[#allocation4 + $0x68] sm:$0xff]
        %v7976 = vld [vmem:[#allocation4 + $0x70] sm:$0xff]
        %v7977 = vld [vmem:[#allocation4 + $0x78] sm:$0xff]
        %v7978 = vld [vmem:[#allocation4 + $0x80] sm:$0xff]
        %v7979 = vld [vmem:[#allocation4 + $0x88] sm:$0xff]
        %v7980 = vld [vmem:[#allocation4 + $0x90] sm:$0xff]
        %v7981 = vld [vmem:[#allocation4 + $0x98] sm:$0xff]
        %v7982 = vld [vmem:[#allocation4 + $0xa0] sm:$0xff]
        %v7983 = vld [vmem:[#allocation4 + $0xa8] sm:$0xff]
        %v7984 = vld [vmem:[#allocation4 + $0xb0] sm:$0xff]
        %v7985 = vld [vmem:[#allocation4 + $0xb8] sm:$0xff]
        %v7986 = vld [vmem:[#allocation4 + $0xc0] sm:$0xff]
        %v7987 = vld [vmem:[#allocation4 + $0xc8] sm:$0xff]
        %v7988 = vld [vmem:[#allocation4 + $0xd0] sm:$0xff]
        %v7989 = vld [vmem:[#allocation4 + $0xd8] sm:$0xff]
        %v7990 = vld [vmem:[#allocation4 + $0xe0] sm:$0x1]
        %v7991 = vld [vmem:[#allocation4 + $0xe8] sm:$0x1]
        %v7992 = vpack.c.bf16 %v7966, %v7964
        %v7993 = vpack.c.bf16 %v7967, %v7965
        %v7994 = vpack.c.bf16 %v7970, %v7968
        %v7995 = vpack.c.bf16 %v7971, %v7969
        %v7996 = vpack.c.bf16 %v7974, %v7972
        %v7997 = vpack.c.bf16 %v7975, %v7973
        %v7998 = vpack.c.bf16 %v7978, %v7976
        %v7999 = vpack.c.bf16 %v7979, %v7977
        %v8000 = vpack.c.bf16 %v7982, %v7980
        %v8001 = vpack.c.bf16 %v7983, %v7981
        %v8002 = vpack.c.bf16 %v7986, %v7984
        %v8003 = vpack.c.bf16 %v7987, %v7985
        %v8004 = vpack.c.bf16 %v7990, %v7988
        %v8005 = vpack.c.bf16 %v7991, %v7989
        %s8006 = scalar_lea.vmem %s587, 1792 [#allocation16]
        %v8007 = vld [vmem:[%s8006] sm:$0xff]
        %v8008 = vld [vmem:[%s8006 + $0x8] sm:$0xff]
        %v8009 = vld [vmem:[%s8006 + $0x10] sm:$0xff]
        %v8010 = vld [vmem:[%s8006 + $0x18] sm:$0xff]
        %v8011 = vld [vmem:[%s8006 + $0x20] sm:$0xff]
        %v8012 = vld [vmem:[%s8006 + $0x28] sm:$0xff]
        %v8013 = vld [vmem:[%s8006 + $0x30] sm:$0xff]
        %v8014 = vld [vmem:[%s8006 + $0x38] sm:$0xff]
        %v8015 = vld [vmem:[%s8006 + $0x40] sm:$0xff]
        %v8016 = vld [vmem:[%s8006 + $0x48] sm:$0xff]
        %v8017 = vld [vmem:[%s8006 + $0x50] sm:$0xff]
        %v8018 = vld [vmem:[%s8006 + $0x58] sm:$0xff]
        %v8019 = vld [vmem:[%s8006 + $0x60] sm:$0xff]
        %v8020 = vld [vmem:[%s8006 + $0x68] sm:$0xff]
        %v8021 = vld [vmem:[%s8006 + $0x70] sm:$0xff]
        %v8022 = vld [vmem:[%s8006 + $0x78] sm:$0xff]
        %v8023 = vld [vmem:[%s8006 + $0x80] sm:$0xff]
        %v8024 = vld [vmem:[%s8006 + $0x88] sm:$0xff]
        %v8025 = vld [vmem:[%s8006 + $0x90] sm:$0xff]
        %v8026 = vld [vmem:[%s8006 + $0x98] sm:$0xff]
        %v8027 = vld [vmem:[%s8006 + $0xa0] sm:$0xff]
        %v8028 = vld [vmem:[%s8006 + $0xa8] sm:$0xff]
        %v8029 = vld [vmem:[%s8006 + $0xb0] sm:$0xff]
        %v8030 = vld [vmem:[%s8006 + $0xb8] sm:$0xff]
        %v8031 = vld [vmem:[%s8006 + $0xc0] sm:$0xff]
        %v8032 = vld [vmem:[%s8006 + $0xc8] sm:$0xff]
        %v8033 = vld [vmem:[%s8006 + $0xd0] sm:$0xff]
        %v8034 = vld [vmem:[%s8006 + $0xd8] sm:$0xff]
        %v8035 = vld [vmem:[%s8006 + $0xe0] sm:$0xff]
        %v8036 = vld [vmem:[%s8006 + $0xe8] sm:$0xff]
        %v8037 = vld [vmem:[%s8006 + $0xf0] sm:$0xff]
        %v8038 = vld [vmem:[%s8006 + $0xf8] sm:$0xff]
        %v8040 = vshrl.u32 %v7992, 16
        %v8042 = vrot.slane %v8040, 3
        %v8043 = vshll.u32 %v7992, 16
        %v8045 = vrot.slane %v8043, 4
        %v8046 = vor.u32 %v8042, %v8045
        %v8048 = vshrl.u32 %v7994, 16
        %v8050 = vrot.slane %v8048, 3
        %v8051 = vshll.u32 %v7994, 16
        %v8053 = vrot.slane %v8051, 4
        %v8054 = vor.u32 %v8050, %v8053
        %v8055 = vsel %vm6367, %v8046, %v8054
        %v8057 = vshrl.u32 %v7993, 16
        %v8059 = vrot.slane %v8057, 3
        %v8060 = vshll.u32 %v7993, 16
        %v8062 = vrot.slane %v8060, 4
        %v8063 = vor.u32 %v8059, %v8062
        %v8065 = vshrl.u32 %v7995, 16
        %v8067 = vrot.slane %v8065, 3
        %v8068 = vshll.u32 %v7995, 16
        %v8070 = vrot.slane %v8068, 4
        %v8071 = vor.u32 %v8067, %v8070
        %v8072 = vsel %vm6367, %v8063, %v8071
        %v8074 = vshrl.u32 %v7996, 16
        %v8076 = vrot.slane %v8074, 3
        %v8077 = vshll.u32 %v7996, 16
        %v8079 = vrot.slane %v8077, 4
        %v8080 = vor.u32 %v8076, %v8079
        %v8081 = vsel %vm6367, %v8054, %v8080
        %v8083 = vshrl.u32 %v7997, 16
        %v8085 = vrot.slane %v8083, 3
        %v8086 = vshll.u32 %v7997, 16
        %v8088 = vrot.slane %v8086, 4
        %v8089 = vor.u32 %v8085, %v8088
        %v8090 = vsel %vm6367, %v8071, %v8089
        %v8092 = vshrl.u32 %v7998, 16
        %v8094 = vrot.slane %v8092, 3
        %v8095 = vshll.u32 %v7998, 16
        %v8097 = vrot.slane %v8095, 4
        %v8098 = vor.u32 %v8094, %v8097
        %v8099 = vsel %vm6367, %v8080, %v8098
        %v8101 = vshrl.u32 %v7999, 16
        %v8103 = vrot.slane %v8101, 3
        %v8104 = vshll.u32 %v7999, 16
        %v8106 = vrot.slane %v8104, 4
        %v8107 = vor.u32 %v8103, %v8106
        %v8108 = vsel %vm6367, %v8089, %v8107
        %v8110 = vshrl.u32 %v8000, 16
        %v8112 = vrot.slane %v8110, 3
        %v8113 = vshll.u32 %v8000, 16
        %v8115 = vrot.slane %v8113, 4
        %v8116 = vor.u32 %v8112, %v8115
        %v8117 = vsel %vm6367, %v8098, %v8116
        %v8119 = vshrl.u32 %v8001, 16
        %v8121 = vrot.slane %v8119, 3
        %v8122 = vshll.u32 %v8001, 16
        %v8124 = vrot.slane %v8122, 4
        %v8125 = vor.u32 %v8121, %v8124
        %v8126 = vsel %vm6367, %v8107, %v8125
        %v8128 = vshrl.u32 %v8002, 16
        %v8130 = vrot.slane %v8128, 3
        %v8131 = vshll.u32 %v8002, 16
        %v8133 = vrot.slane %v8131, 4
        %v8134 = vor.u32 %v8130, %v8133
        %v8135 = vsel %vm6367, %v8116, %v8134
        %v8137 = vshrl.u32 %v8003, 16
        %v8139 = vrot.slane %v8137, 3
        %v8140 = vshll.u32 %v8003, 16
        %v8142 = vrot.slane %v8140, 4
        %v8143 = vor.u32 %v8139, %v8142
        %v8144 = vsel %vm6367, %v8125, %v8143
        %v8146 = vshrl.u32 %v8004, 16
        %v8148 = vrot.slane %v8146, 3
        %v8149 = vshll.u32 %v8004, 16
        %v8151 = vrot.slane %v8149, 4
        %v8152 = vor.u32 %v8148, %v8151
        %v8153 = vsel %vm6367, %v8134, %v8152
        %v8155 = vshrl.u32 %v8005, 16
        %v8157 = vrot.slane %v8155, 3
        %v8158 = vshll.u32 %v8005, 16
        %v8160 = vrot.slane %v8158, 4
        %v8161 = vor.u32 %v8157, %v8160
        %v8162 = vsel %vm6367, %v8143, %v8161
        %v8209 = vunpack.c.l.b16 %v8007
        %v8210 = vunpack.c.h.b16 %v8007
        %v8211 = vunpack.c.l.b16 %v8008
        %v8212 = vunpack.c.h.b16 %v8008
        %v8213 = vunpack.c.l.b16 %v8009
        %v8214 = vunpack.c.h.b16 %v8009
        %v8215 = vunpack.c.l.b16 %v8010
        %v8216 = vunpack.c.h.b16 %v8010
        %v8217 = vunpack.c.l.b16 %v8011
        %v8218 = vunpack.c.h.b16 %v8011
        %v8219 = vunpack.c.l.b16 %v8012
        %v8220 = vunpack.c.h.b16 %v8012
        %v8221 = vunpack.c.l.b16 %v8013
        %v8222 = vunpack.c.h.b16 %v8013
        %v8223 = vunpack.c.l.b16 %v8014
        %v8224 = vunpack.c.h.b16 %v8014
        %v8225 = vunpack.c.l.b16 %v8015
        %v8226 = vunpack.c.h.b16 %v8015
        %v8227 = vunpack.c.l.b16 %v8016
        %v8228 = vunpack.c.h.b16 %v8016
        %v8229 = vunpack.c.l.b16 %v8017
        %v8230 = vunpack.c.h.b16 %v8017
        %v8231 = vunpack.c.l.b16 %v8018
        %v8232 = vunpack.c.h.b16 %v8018
        %v8233 = vunpack.c.l.b16 %v8019
        %v8234 = vunpack.c.h.b16 %v8019
        %v8235 = vunpack.c.l.b16 %v8020
        %v8236 = vunpack.c.h.b16 %v8020
        %v8237 = vunpack.c.l.b16 %v8021
        %v8238 = vunpack.c.h.b16 %v8021
        %v8239 = vunpack.c.l.b16 %v8022
        %v8240 = vunpack.c.h.b16 %v8022
        %v8241 = vunpack.c.l.b16 %v8023
        %v8242 = vunpack.c.h.b16 %v8023
        %v8243 = vunpack.c.l.b16 %v8024
        %v8244 = vunpack.c.h.b16 %v8024
        %v8245 = vunpack.c.l.b16 %v8025
        %v8246 = vunpack.c.h.b16 %v8025
        %v8247 = vunpack.c.l.b16 %v8026
        %v8248 = vunpack.c.h.b16 %v8026
        %v8249 = vunpack.c.l.b16 %v8027
        %v8250 = vunpack.c.h.b16 %v8027
        %v8251 = vunpack.c.l.b16 %v8028
        %v8252 = vunpack.c.h.b16 %v8028
        %v8253 = vunpack.c.l.b16 %v8029
        %v8254 = vunpack.c.h.b16 %v8029
        %v8255 = vunpack.c.l.b16 %v8030
        %v8256 = vunpack.c.h.b16 %v8030
        %v8257 = vunpack.c.l.b16 %v8031
        %v8258 = vunpack.c.h.b16 %v8031
        %v8259 = vunpack.c.l.b16 %v8032
        %v8260 = vunpack.c.h.b16 %v8032
        %v8261 = vunpack.c.l.b16 %v8033
        %v8262 = vunpack.c.h.b16 %v8033
        %v8263 = vunpack.c.l.b16 %v8034
        %v8264 = vunpack.c.h.b16 %v8034
        %v8265 = vunpack.c.l.b16 %v8035
        %v8266 = vunpack.c.h.b16 %v8035
        %v8267 = vunpack.c.l.b16 %v8036
        %v8268 = vunpack.c.h.b16 %v8036
        %v8269 = vunpack.c.l.b16 %v8037
        %v8270 = vunpack.c.h.b16 %v8037
        %v8271 = vunpack.c.l.b16 %v8038
        %v8272 = vunpack.c.h.b16 %v8038
        %v8273 = vpack.c.b16 %v8211, %v8209
        %v8274 = vpack.c.b16 %v8212, %v8210
        %v8275 = vpack.c.b16 %v8215, %v8213
        %v8276 = vpack.c.b16 %v8216, %v8214
        %v8277 = vpack.c.b16 %v8219, %v8217
        %v8278 = vpack.c.b16 %v8220, %v8218
        %v8279 = vpack.c.b16 %v8223, %v8221
        %v8280 = vpack.c.b16 %v8224, %v8222
        %v8281 = vpack.c.b16 %v8227, %v8225
        %v8282 = vpack.c.b16 %v8228, %v8226
        %v8283 = vpack.c.b16 %v8231, %v8229
        %v8284 = vpack.c.b16 %v8232, %v8230
        %v8285 = vpack.c.b16 %v8235, %v8233
        %v8286 = vpack.c.b16 %v8236, %v8234
        %v8287 = vpack.c.b16 %v8239, %v8237
        %v8288 = vpack.c.b16 %v8240, %v8238
        %v8289 = vpack.c.b16 %v8243, %v8241
        %v8290 = vpack.c.b16 %v8244, %v8242
        %v8291 = vpack.c.b16 %v8247, %v8245
        %v8292 = vpack.c.b16 %v8248, %v8246
        %v8293 = vpack.c.b16 %v8251, %v8249
        %v8294 = vpack.c.b16 %v8252, %v8250
        %v8295 = vpack.c.b16 %v8255, %v8253
        %v8296 = vpack.c.b16 %v8256, %v8254
        %v8297 = vpack.c.b16 %v8259, %v8257
        %v8298 = vpack.c.b16 %v8260, %v8258
        %v8299 = vpack.c.b16 %v8263, %v8261
        %v8300 = vpack.c.b16 %v8264, %v8262
        %v8301 = vpack.c.b16 %v8267, %v8265
        %v8302 = vpack.c.b16 %v8268, %v8266
        %v8303 = vpack.c.b16 %v8271, %v8269
        %v8304 = vpack.c.b16 %v8272, %v8270
        %8337 = vmatprep.subr.bf16.mxu0 %v8274
        %8338 = vmatpush1.bf16.msra.mxu0 %v8273
        %8339 = vmatprep.subr.bf16.mxu0 %v8276
        %8340 = vmatpush1.bf16.msra.mxu0 %v8275
        %8341 = vmatprep.subr.bf16.mxu0 %v8278
        %8342 = vmatpush1.bf16.msra.mxu0 %v8277
        %8343 = vmatprep.subr.bf16.mxu0 %v8280
        %8344 = vmatpush1.bf16.msra.mxu0 %v8279
        %8345 = vmatprep.subr.bf16.mxu0 %v8282
        %8346 = vmatpush1.bf16.msra.mxu0 %v8281
        %8347 = vmatprep.subr.bf16.mxu0 %v8284
        %8348 = vmatpush1.bf16.msra.mxu0 %v8283
        %8349 = vmatprep.subr.bf16.mxu0 %v8286
        %8350 = vmatpush1.bf16.msra.mxu0 %v8285
        %8351 = vmatprep.subr.bf16.mxu0 %v8288
        %8352 = vmatpush1.bf16.msra.mxu0 %v8287
        %8353 = vmatprep.subr.bf16.mxu0 %v8290
        %8354 = vmatpush1.bf16.msra.mxu0 %v8289
        %8355 = vmatprep.subr.bf16.mxu0 %v8292
        %8356 = vmatpush1.bf16.msra.mxu0 %v8291
        %8357 = vmatprep.subr.bf16.mxu0 %v8294
        %8358 = vmatpush1.bf16.msra.mxu0 %v8293
        %8359 = vmatprep.subr.bf16.mxu0 %v8296
        %8360 = vmatpush1.bf16.msra.mxu0 %v8295
        %8361 = vmatprep.subr.bf16.mxu0 %v8298
        %8362 = vmatpush1.bf16.msra.mxu0 %v8297
        %8363 = vmatprep.subr.bf16.mxu0 %v8300
        %8364 = vmatpush1.bf16.msra.mxu0 %v8299
        %8365 = vmatprep.subr.bf16.mxu0 %v8302
        %8366 = vmatpush1.bf16.msra.mxu0 %v8301
        %8367 = vmatprep.subr.bf16.mxu0 %v8304
        %8368 = vmatpush1.bf16.msra.mxu0 %v8303
        %8369 = vmatprep.mubr.bf16.mxu0 %v8072
        %8370 = vmatmul.mubr.bf16.gmra.mrb[0].mxu0 %v8055
        %v8371 = vpop.f32.mrb[0].mxu0
        %v8372 = vadd.f32 0.0, %v8371
        %v8373 = vpop.f32.mrb[0].mxu0
        %v8374 = vadd.f32 0.0, %v8373
        %v8375 = vpop.f32.mrb[0].mxu0
        %v8376 = vadd.f32 0.0, %v8375
        %v8377 = vpop.f32.mrb[0].mxu0
        %v8378 = vadd.f32 0.0, %v8377
        %8379 = vmatprep.mubr.bf16.mxu0 %v8090
        %8380 = vmatmul.mubr.bf16.gmra.mrb[0].mxu0 %v8081
        %v8381 = vpop.f32.mrb[0].mxu0
        %v8382 = vadd.f32 0.0, %v8381
        %v8383 = vpop.f32.mrb[0].mxu0
        %v8384 = vadd.f32 0.0, %v8383
        %v8385 = vpop.f32.mrb[0].mxu0
        %v8386 = vadd.f32 0.0, %v8385
        %v8387 = vpop.f32.mrb[0].mxu0
        %v8388 = vadd.f32 0.0, %v8387
        %8389 = vmatprep.mubr.bf16.mxu0 %v8108
        %8390 = vmatmul.mubr.bf16.gmra.mrb[0].mxu0 %v8099
        %v8391 = vpop.f32.mrb[0].mxu0
        %v8392 = vadd.f32 0.0, %v8391
        %v8393 = vpop.f32.mrb[0].mxu0
        %v8394 = vadd.f32 0.0, %v8393
        %v8395 = vpop.f32.mrb[0].mxu0
        %v8396 = vadd.f32 0.0, %v8395
        %v8397 = vpop.f32.mrb[0].mxu0
        %v8398 = vadd.f32 0.0, %v8397
        %8399 = vmatprep.mubr.bf16.mxu0 %v8126
        %8400 = vmatmul.mubr.bf16.gmra.mrb[0].mxu0 %v8117
        %v8401 = vpop.f32.mrb[0].mxu0
        %v8402 = vadd.f32 0.0, %v8401
        %v8403 = vpop.f32.mrb[0].mxu0
        %v8404 = vadd.f32 0.0, %v8403
        %v8405 = vpop.f32.mrb[0].mxu0
        %v8406 = vadd.f32 0.0, %v8405
        %v8407 = vpop.f32.mrb[0].mxu0
        %v8408 = vadd.f32 0.0, %v8407
        %8409 = vmatprep.mubr.bf16.mxu0 %v8144
        %8410 = vmatmul.mubr.bf16.gmra.mrb[0].mxu0 %v8135
        %v8411 = vpop.f32.mrb[0].mxu0
        %v8412 = vadd.f32 0.0, %v8411
        %v8413 = vpop.f32.mrb[0].mxu0
        %v8414 = vadd.f32 0.0, %v8413
        %v8415 = vpop.f32.mrb[0].mxu0
        %v8416 = vadd.f32 0.0, %v8415
        %v8417 = vpop.f32.mrb[0].mxu0
        %v8418 = vadd.f32 0.0, %v8417
        %8419 = vmatprep.mubr.bf16.mxu0 %v8162
        %8420 = vmatmul.mubr.bf16.gmra.mrb[0].mxu0 %v8153
        %v8421 = vpop.f32.mrb[0].mxu0
        %v8422 = vadd.f32 0.0, %v8421
        %v8423 = vpop.f32.mrb[0].mxu0
        %v8424 = vadd.f32 0.0, %v8423
        %v8425 = vpop.f32.mrb[0].mxu0
        %v8426 = vadd.f32 0.0, %v8425
        %v8427 = vpop.f32.mrb[0].mxu0
        %v8428 = vadd.f32 0.0, %v8427
        %8429 = vmatprep.mubr.bf16.mxu0 %v8161
        %8430 = vmatmul.mubr.bf16.gmra.mrb[0].mxu0 %v8152
        %v8431 = vpop.f32.mrb[0].mxu0
        %v8432 = vadd.f32 0.0, %v8431
        %v8433 = vpop.f32.mrb[0].mxu0
        %v8434 = vadd.f32 0.0, %v8433
        %v8435 = vpop.f32.mrb[0].mxu0
        %v8436 = vpop.f32.mrb[0].mxu0
        %8437 = vdwg.mxu0
        %v8438 = vadd.f32 %v7938, %v8372
        %v8439 = vadd.f32 %v7939, %v8374
        %v8440 = vadd.f32 %v7940, %v8376
        %v8441 = vadd.f32 %v7941, %v8378
        %v8442 = vadd.f32 %v7942, %v8382
        %v8443 = vadd.f32 %v7943, %v8384
        %v8444 = vadd.f32 %v7944, %v8386
        %v8445 = vadd.f32 %v7945, %v8388
        %v8446 = vadd.f32 %v7946, %v8392
        %v8447 = vadd.f32 %v7947, %v8394
        %v8448 = vadd.f32 %v7948, %v8396
        %v8449 = vadd.f32 %v7949, %v8398
        %v8450 = vadd.f32 %v7950, %v8402
        %v8451 = vadd.f32 %v7951, %v8404
        %v8452 = vadd.f32 %v7952, %v8406
        %v8453 = vadd.f32 %v7953, %v8408
        %v8454 = vadd.f32 %v7954, %v8412
        %v8455 = vadd.f32 %v7955, %v8414
        %v8456 = vadd.f32 %v7956, %v8416
        %v8457 = vadd.f32 %v7957, %v8418
        %v8458 = vadd.f32 %v7958, %v8422
        %v8459 = vadd.f32 %v7959, %v8424
        %v8460 = vadd.f32 %v7960, %v8426
        %v8461 = vadd.f32 %v7961, %v8428
        %v8462 = vadd.f32 %v7962, %v8432
        %v8463 = vadd.f32 %v7963, %v8434
        %v8464 = vld [vmem:[#allocation4 + $0xe0] sm:$0x3]
        %v8465 = vld [vmem:[#allocation4 + $0xe8] sm:$0x3]
        %v8466 = vpack.c.bf16 %v7968, %v7966
        %v8467 = vpack.c.bf16 %v7969, %v7967
        %v8468 = vpack.c.bf16 %v7972, %v7970
        %v8469 = vpack.c.bf16 %v7973, %v7971
        %v8470 = vpack.c.bf16 %v7976, %v7974
        %v8471 = vpack.c.bf16 %v7977, %v7975
        %v8472 = vpack.c.bf16 %v7980, %v7978
        %v8473 = vpack.c.bf16 %v7981, %v7979
        %v8474 = vpack.c.bf16 %v7984, %v7982
        %v8475 = vpack.c.bf16 %v7985, %v7983
        %v8476 = vpack.c.bf16 %v7988, %v7986
        %v8477 = vpack.c.bf16 %v7989, %v7987
        %v8478 = vpack.c.bf16 %v8464, %v8464
        %v8479 = vpack.c.bf16 %v8465, %v8465
        %s8480 = scalar_lea.vmem %s587, 2048 [#allocation16]
        %v8481 = vld [vmem:[%s8480] sm:$0xff]
        %v8482 = vld [vmem:[%s8480 + $0x8] sm:$0xff]
        %v8483 = vld [vmem:[%s8480 + $0x10] sm:$0xff]
        %v8484 = vld [vmem:[%s8480 + $0x18] sm:$0xff]
        %v8485 = vld [vmem:[%s8480 + $0x20] sm:$0xff]
        %v8486 = vld [vmem:[%s8480 + $0x28] sm:$0xff]
        %v8487 = vld [vmem:[%s8480 + $0x30] sm:$0xff]
        %v8488 = vld [vmem:[%s8480 + $0x38] sm:$0xff]
        %v8489 = vld [vmem:[%s8480 + $0x40] sm:$0xff]
        %v8490 = vld [vmem:[%s8480 + $0x48] sm:$0xff]
        %v8491 = vld [vmem:[%s8480 + $0x50] sm:$0xff]
        %v8492 = vld [vmem:[%s8480 + $0x58] sm:$0xff]
        %v8493 = vld [vmem:[%s8480 + $0x60] sm:$0xff]
        %v8494 = vld [vmem:[%s8480 + $0x68] sm:$0xff]
        %v8495 = vld [vmem:[%s8480 + $0x70] sm:$0xff]
        %v8496 = vld [vmem:[%s8480 + $0x78] sm:$0xff]
        %v8497 = vld [vmem:[%s8480 + $0x80] sm:$0xff]
        %v8498 = vld [vmem:[%s8480 + $0x88] sm:$0xff]
        %v8499 = vld [vmem:[%s8480 + $0x90] sm:$0xff]
        %v8500 = vld [vmem:[%s8480 + $0x98] sm:$0xff]
        %v8501 = vld [vmem:[%s8480 + $0xa0] sm:$0xff]
        %v8502 = vld [vmem:[%s8480 + $0xa8] sm:$0xff]
        %v8503 = vld [vmem:[%s8480 + $0xb0] sm:$0xff]
        %v8504 = vld [vmem:[%s8480 + $0xb8] sm:$0xff]
        %v8505 = vld [vmem:[%s8480 + $0xc0] sm:$0xff]
        %v8506 = vld [vmem:[%s8480 + $0xc8] sm:$0xff]
        %v8507 = vld [vmem:[%s8480 + $0xd0] sm:$0xff]
        %v8508 = vld [vmem:[%s8480 + $0xd8] sm:$0xff]
        %v8509 = vld [vmem:[%s8480 + $0xe0] sm:$0xff]
        %v8510 = vld [vmem:[%s8480 + $0xe8] sm:$0xff]
        %v8511 = vld [vmem:[%s8480 + $0xf0] sm:$0xff]
        %v8512 = vld [vmem:[%s8480 + $0xf8] sm:$0xff]
        %v8545 = vunpack.c.l.b16 %v8481
        %v8546 = vunpack.c.h.b16 %v8481
        %v8547 = vunpack.c.l.b16 %v8482
        %v8548 = vunpack.c.h.b16 %v8482
        %v8549 = vunpack.c.l.b16 %v8483
        %v8550 = vunpack.c.h.b16 %v8483
        %v8551 = vunpack.c.l.b16 %v8484
        %v8552 = vunpack.c.h.b16 %v8484
        %v8553 = vunpack.c.l.b16 %v8485
        %v8554 = vunpack.c.h.b16 %v8485
        %v8555 = vunpack.c.l.b16 %v8486
        %v8556 = vunpack.c.h.b16 %v8486
        %v8557 = vunpack.c.l.b16 %v8487
        %v8558 = vunpack.c.h.b16 %v8487
        %v8559 = vunpack.c.l.b16 %v8488
        %v8560 = vunpack.c.h.b16 %v8488
        %v8561 = vunpack.c.l.b16 %v8489
        %v8562 = vunpack.c.h.b16 %v8489
        %v8563 = vunpack.c.l.b16 %v8490
        %v8564 = vunpack.c.h.b16 %v8490
        %v8565 = vunpack.c.l.b16 %v8491
        %v8566 = vunpack.c.h.b16 %v8491
        %v8567 = vunpack.c.l.b16 %v8492
        %v8568 = vunpack.c.h.b16 %v8492
        %v8569 = vunpack.c.l.b16 %v8493
        %v8570 = vunpack.c.h.b16 %v8493
        %v8571 = vunpack.c.l.b16 %v8494
        %v8572 = vunpack.c.h.b16 %v8494
        %v8573 = vunpack.c.l.b16 %v8495
        %v8574 = vunpack.c.h.b16 %v8495
        %v8575 = vunpack.c.l.b16 %v8496
        %v8576 = vunpack.c.h.b16 %v8496
        %v8577 = vunpack.c.l.b16 %v8497
        %v8578 = vunpack.c.h.b16 %v8497
        %v8579 = vunpack.c.l.b16 %v8498
        %v8580 = vunpack.c.h.b16 %v8498
        %v8581 = vunpack.c.l.b16 %v8499
        %v8582 = vunpack.c.h.b16 %v8499
        %v8583 = vunpack.c.l.b16 %v8500
        %v8584 = vunpack.c.h.b16 %v8500
        %v8585 = vunpack.c.l.b16 %v8501
        %v8586 = vunpack.c.h.b16 %v8501
        %v8587 = vunpack.c.l.b16 %v8502
        %v8588 = vunpack.c.h.b16 %v8502
        %v8589 = vunpack.c.l.b16 %v8503
        %v8590 = vunpack.c.h.b16 %v8503
        %v8591 = vunpack.c.l.b16 %v8504
        %v8592 = vunpack.c.h.b16 %v8504
        %v8593 = vunpack.c.l.b16 %v8505
        %v8594 = vunpack.c.h.b16 %v8505
        %v8595 = vunpack.c.l.b16 %v8506
        %v8596 = vunpack.c.h.b16 %v8506
        %v8597 = vunpack.c.l.b16 %v8507
        %v8598 = vunpack.c.h.b16 %v8507
        %v8599 = vunpack.c.l.b16 %v8508
        %v8600 = vunpack.c.h.b16 %v8508
        %v8601 = vunpack.c.l.b16 %v8509
        %v8602 = vunpack.c.h.b16 %v8509
        %v8603 = vunpack.c.l.b16 %v8510
        %v8604 = vunpack.c.h.b16 %v8510
        %v8605 = vunpack.c.l.b16 %v8511
        %v8606 = vunpack.c.h.b16 %v8511
        %v8607 = vunpack.c.l.b16 %v8512
        %v8608 = vunpack.c.h.b16 %v8512
        %v8609 = vpack.c.b16 %v8547, %v8545
        %v8610 = vpack.c.b16 %v8548, %v8546
        %v8611 = vpack.c.b16 %v8551, %v8549
        %v8612 = vpack.c.b16 %v8552, %v8550
        %v8613 = vpack.c.b16 %v8555, %v8553
        %v8614 = vpack.c.b16 %v8556, %v8554
        %v8615 = vpack.c.b16 %v8559, %v8557
        %v8616 = vpack.c.b16 %v8560, %v8558
        %v8617 = vpack.c.b16 %v8563, %v8561
        %v8618 = vpack.c.b16 %v8564, %v8562
        %v8619 = vpack.c.b16 %v8567, %v8565
        %v8620 = vpack.c.b16 %v8568, %v8566
        %v8621 = vpack.c.b16 %v8571, %v8569
        %v8622 = vpack.c.b16 %v8572, %v8570
        %v8623 = vpack.c.b16 %v8575, %v8573
        %v8624 = vpack.c.b16 %v8576, %v8574
        %v8625 = vpack.c.b16 %v8579, %v8577
        %v8626 = vpack.c.b16 %v8580, %v8578
        %v8627 = vpack.c.b16 %v8583, %v8581
        %v8628 = vpack.c.b16 %v8584, %v8582
        %v8629 = vpack.c.b16 %v8587, %v8585
        %v8630 = vpack.c.b16 %v8588, %v8586
        %v8631 = vpack.c.b16 %v8591, %v8589
        %v8632 = vpack.c.b16 %v8592, %v8590
        %v8633 = vpack.c.b16 %v8595, %v8593
        %v8634 = vpack.c.b16 %v8596, %v8594
        %v8635 = vpack.c.b16 %v8599, %v8597
        %v8636 = vpack.c.b16 %v8600, %v8598
        %v8637 = vpack.c.b16 %v8603, %v8601
        %v8638 = vpack.c.b16 %v8604, %v8602
        %v8639 = vpack.c.b16 %v8607, %v8605
        %v8640 = vpack.c.b16 %v8608, %v8606
        %8673 = vmatprep.subr.bf16.mxu0 %v8610
        %8674 = vmatpush1.bf16.msra.mxu0 %v8609
        %8675 = vmatprep.subr.bf16.mxu0 %v8612
        %8676 = vmatpush1.bf16.msra.mxu0 %v8611
        %8677 = vmatprep.subr.bf16.mxu0 %v8614
        %8678 = vmatpush1.bf16.msra.mxu0 %v8613
        %8679 = vmatprep.subr.bf16.mxu0 %v8616
        %8680 = vmatpush1.bf16.msra.mxu0 %v8615
        %8681 = vmatprep.subr.bf16.mxu0 %v8618
        %8682 = vmatpush1.bf16.msra.mxu0 %v8617
        %8683 = vmatprep.subr.bf16.mxu0 %v8620
        %8684 = vmatpush1.bf16.msra.mxu0 %v8619
        %8685 = vmatprep.subr.bf16.mxu0 %v8622
        %8686 = vmatpush1.bf16.msra.mxu0 %v8621
        %8687 = vmatprep.subr.bf16.mxu0 %v8624
        %8688 = vmatpush1.bf16.msra.mxu0 %v8623
        %8689 = vmatprep.subr.bf16.mxu0 %v8626
        %8690 = vmatpush1.bf16.msra.mxu0 %v8625
        %8691 = vmatprep.subr.bf16.mxu0 %v8628
        %8692 = vmatpush1.bf16.msra.mxu0 %v8627
        %8693 = vmatprep.subr.bf16.mxu0 %v8630
        %8694 = vmatpush1.bf16.msra.mxu0 %v8629
        %8695 = vmatprep.subr.bf16.mxu0 %v8632
        %8696 = vmatpush1.bf16.msra.mxu0 %v8631
        %8697 = vmatprep.subr.bf16.mxu0 %v8634
        %8698 = vmatpush1.bf16.msra.mxu0 %v8633
        %8699 = vmatprep.subr.bf16.mxu0 %v8636
        %8700 = vmatpush1.bf16.msra.mxu0 %v8635
        %8701 = vmatprep.subr.bf16.mxu0 %v8638
        %8702 = vmatpush1.bf16.msra.mxu0 %v8637
        %8703 = vmatprep.subr.bf16.mxu0 %v8640
        %8704 = vmatpush1.bf16.msra.mxu0 %v8639
        %8705 = vmatprep.mubr.bf16.mxu0 %v8467
        %8706 = vmatmul.mubr.bf16.gmra.mrb[0].mxu0 %v8466
        %v8707 = vpop.f32.mrb[0].mxu0
        %v8708 = vadd.f32 0.0, %v8707
        %v8709 = vpop.f32.mrb[0].mxu0
        %v8710 = vadd.f32 0.0, %v8709
        %v8711 = vpop.f32.mrb[0].mxu0
        %v8712 = vadd.f32 0.0, %v8711
        %v8713 = vpop.f32.mrb[0].mxu0
        %v8714 = vadd.f32 0.0, %v8713
        %8715 = vmatprep.mubr.bf16.mxu0 %v8469
        %8716 = vmatmul.mubr.bf16.gmra.mrb[0].mxu0 %v8468
        %v8717 = vpop.f32.mrb[0].mxu0
        %v8718 = vadd.f32 0.0, %v8717
        %v8719 = vpop.f32.mrb[0].mxu0
        %v8720 = vadd.f32 0.0, %v8719
        %v8721 = vpop.f32.mrb[0].mxu0
        %v8722 = vadd.f32 0.0, %v8721
        %v8723 = vpop.f32.mrb[0].mxu0
        %v8724 = vadd.f32 0.0, %v8723
        %8725 = vmatprep.mubr.bf16.mxu0 %v8471
        %8726 = vmatmul.mubr.bf16.gmra.mrb[0].mxu0 %v8470
        %v8727 = vpop.f32.mrb[0].mxu0
        %v8728 = vadd.f32 0.0, %v8727
        %v8729 = vpop.f32.mrb[0].mxu0
        %v8730 = vadd.f32 0.0, %v8729
        %v8731 = vpop.f32.mrb[0].mxu0
        %v8732 = vadd.f32 0.0, %v8731
        %v8733 = vpop.f32.mrb[0].mxu0
        %v8734 = vadd.f32 0.0, %v8733
        %8735 = vmatprep.mubr.bf16.mxu0 %v8473
        %8736 = vmatmul.mubr.bf16.gmra.mrb[0].mxu0 %v8472
        %v8737 = vpop.f32.mrb[0].mxu0
        %v8738 = vadd.f32 0.0, %v8737
        %v8739 = vpop.f32.mrb[0].mxu0
        %v8740 = vadd.f32 0.0, %v8739
        %v8741 = vpop.f32.mrb[0].mxu0
        %v8742 = vadd.f32 0.0, %v8741
        %v8743 = vpop.f32.mrb[0].mxu0
        %v8744 = vadd.f32 0.0, %v8743
        %8745 = vmatprep.mubr.bf16.mxu0 %v8475
        %8746 = vmatmul.mubr.bf16.gmra.mrb[0].mxu0 %v8474
        %v8747 = vpop.f32.mrb[0].mxu0
        %v8748 = vadd.f32 0.0, %v8747
        %v8749 = vpop.f32.mrb[0].mxu0
        %v8750 = vadd.f32 0.0, %v8749
        %v8751 = vpop.f32.mrb[0].mxu0
        %v8752 = vadd.f32 0.0, %v8751
        %v8753 = vpop.f32.mrb[0].mxu0
        %v8754 = vadd.f32 0.0, %v8753
        %8755 = vmatprep.mubr.bf16.mxu0 %v8477
        %8756 = vmatmul.mubr.bf16.gmra.mrb[0].mxu0 %v8476
        %v8757 = vpop.f32.mrb[0].mxu0
        %v8758 = vadd.f32 0.0, %v8757
        %v8759 = vpop.f32.mrb[0].mxu0
        %v8760 = vadd.f32 0.0, %v8759
        %v8761 = vpop.f32.mrb[0].mxu0
        %v8762 = vadd.f32 0.0, %v8761
        %v8763 = vpop.f32.mrb[0].mxu0
        %v8764 = vadd.f32 0.0, %v8763
        %8765 = vmatprep.mubr.bf16.mxu0 %v8479
        %8766 = vmatmul.mubr.bf16.gmra.mrb[0].mxu0 %v8478
        %v8767 = vpop.f32.mrb[0].mxu0
        %v8768 = vadd.f32 0.0, %v8767
        %v8769 = vpop.f32.mrb[0].mxu0
        %v8770 = vadd.f32 0.0, %v8769
        %v8771 = vpop.f32.mrb[0].mxu0
        %v8772 = vpop.f32.mrb[0].mxu0
        %8773 = vdwg.mxu0
        %v8774 = vadd.f32 %v8438, %v8708
        %v8775 = vadd.f32 %v8439, %v8710
        %v8776 = vadd.f32 %v8440, %v8712
        %v8777 = vadd.f32 %v8441, %v8714
        %v8778 = vadd.f32 %v8442, %v8718
        %v8779 = vadd.f32 %v8443, %v8720
        %v8780 = vadd.f32 %v8444, %v8722
        %v8781 = vadd.f32 %v8445, %v8724
        %v8782 = vadd.f32 %v8446, %v8728
        %v8783 = vadd.f32 %v8447, %v8730
        %v8784 = vadd.f32 %v8448, %v8732
        %v8785 = vadd.f32 %v8449, %v8734
        %v8786 = vadd.f32 %v8450, %v8738
        %v8787 = vadd.f32 %v8451, %v8740
        %v8788 = vadd.f32 %v8452, %v8742
        %v8789 = vadd.f32 %v8453, %v8744
        %v8790 = vadd.f32 %v8454, %v8748
        %v8791 = vadd.f32 %v8455, %v8750
        %v8792 = vadd.f32 %v8456, %v8752
        %v8793 = vadd.f32 %v8457, %v8754
        %v8794 = vadd.f32 %v8458, %v8758
        %v8795 = vadd.f32 %v8459, %v8760
        %v8796 = vadd.f32 %v8460, %v8762
        %v8797 = vadd.f32 %v8461, %v8764
        %v8798 = vadd.f32 %v8462, %v8768
        %v8799 = vadd.f32 %v8463, %v8770
        %v8800 = vld [vmem:[%s596] sm:$0x3]
        %v8802 = vlaneseq
        %v8803 = vshrl.u32 %v8802, 7
        %v8804 = vsub.s32 0, %v8803
        %v8805 = vrot.slane %v8800, %v8804
        %v8806 = vlaneseq
        %v8807 = vshrl.u32 %v8806, 7
        %v8808 = vsub.s32 1, %v8807
        %v8809 = vrot.slane %v8800, %v8808
        %v8812 = vadd.f32 %v8774, %v8805
        %v8813 = vadd.f32 %v8775, %v8809
        %v8814 = vadd.f32 %v8776, %v8805
        %v8815 = vadd.f32 %v8777, %v8809
        %v8816 = vadd.f32 %v8778, %v8805
        %v8817 = vadd.f32 %v8779, %v8809
        %v8818 = vadd.f32 %v8780, %v8805
        %v8819 = vadd.f32 %v8781, %v8809
        %v8820 = vadd.f32 %v8782, %v8805
        %v8821 = vadd.f32 %v8783, %v8809
        %v8822 = vadd.f32 %v8784, %v8805
        %v8823 = vadd.f32 %v8785, %v8809
        %v8824 = vadd.f32 %v8786, %v8805
        %v8825 = vadd.f32 %v8787, %v8809
        %v8826 = vadd.f32 %v8788, %v8805
        %v8827 = vadd.f32 %v8789, %v8809
        %v8828 = vadd.f32 %v8790, %v8805
        %v8829 = vadd.f32 %v8791, %v8809
        %v8830 = vadd.f32 %v8792, %v8805
        %v8831 = vadd.f32 %v8793, %v8809
        %v8832 = vadd.f32 %v8794, %v8805
        %v8833 = vadd.f32 %v8795, %v8809
        %v8834 = vadd.f32 %v8796, %v8805
        %v8835 = vadd.f32 %v8797, %v8809
        %v8836 = vadd.f32 %v8798, %v8805
        %v8837 = vadd.f32 %v8799, %v8809
        %v8838 = vmax.f32 %v8812, 0.0
        %v8839 = vmax.f32 %v8813, 0.0
        %v8840 = vmax.f32 %v8814, 0.0
        %v8841 = vmax.f32 %v8815, 0.0
        %v8842 = vmax.f32 %v8816, 0.0
        %v8843 = vmax.f32 %v8817, 0.0
        %v8844 = vmax.f32 %v8818, 0.0
        %v8845 = vmax.f32 %v8819, 0.0
        %v8846 = vmax.f32 %v8820, 0.0
        %v8847 = vmax.f32 %v8821, 0.0
        %v8848 = vmax.f32 %v8822, 0.0
        %v8849 = vmax.f32 %v8823, 0.0
        %v8850 = vmax.f32 %v8824, 0.0
        %v8851 = vmax.f32 %v8825, 0.0
        %v8852 = vmax.f32 %v8826, 0.0
        %v8853 = vmax.f32 %v8827, 0.0
        %v8854 = vmax.f32 %v8828, 0.0
        %v8855 = vmax.f32 %v8829, 0.0
        %v8856 = vmax.f32 %v8830, 0.0
        %v8857 = vmax.f32 %v8831, 0.0
        %v8858 = vmax.f32 %v8832, 0.0
        %v8859 = vmax.f32 %v8833, 0.0
        %v8860 = vmax.f32 %v8834, 0.0
        %v8861 = vmax.f32 %v8835, 0.0
        %v8862 = vmax.f32 %v8836, 0.0
        %v8863 = vmax.f32 %v8837, 0.0
        %v8864 = vld [vmem:[%s605] sm:$0x3]
        %v8866 = vlaneseq
        %v8867 = vshrl.u32 %v8866, 7
        %v8868 = vsub.s32 0, %v8867
        %v8869 = vrot.slane %v8864, %v8868
        %v8870 = vlaneseq
        %v8871 = vshrl.u32 %v8870, 7
        %v8872 = vsub.s32 1, %v8871
        %v8873 = vrot.slane %v8864, %v8872
        %v8876 = vmul.f32 %v8838, %v8869
        %v8877 = vmul.f32 %v8839, %v8873
        %v8878 = vmul.f32 %v8840, %v8869
        %v8879 = vmul.f32 %v8841, %v8873
        %v8880 = vmul.f32 %v8842, %v8869
        %v8881 = vmul.f32 %v8843, %v8873
        %v8882 = vmul.f32 %v8844, %v8869
        %v8883 = vmul.f32 %v8845, %v8873
        %v8884 = vmul.f32 %v8846, %v8869
        %v8885 = vmul.f32 %v8847, %v8873
        %v8886 = vmul.f32 %v8848, %v8869
        %v8887 = vmul.f32 %v8849, %v8873
        %v8888 = vmul.f32 %v8850, %v8869
        %v8889 = vmul.f32 %v8851, %v8873
        %v8890 = vmul.f32 %v8852, %v8869
        %v8891 = vmul.f32 %v8853, %v8873
        %v8892 = vmul.f32 %v8854, %v8869
        %v8893 = vmul.f32 %v8855, %v8873
        %v8894 = vmul.f32 %v8856, %v8869
        %v8895 = vmul.f32 %v8857, %v8873
        %v8896 = vmul.f32 %v8858, %v8869
        %v8897 = vmul.f32 %v8859, %v8873
        %v8898 = vmul.f32 %v8860, %v8869
        %v8899 = vmul.f32 %v8861, %v8873
        %v8900 = vmul.f32 %v8862, %v8869
        %v8901 = vmul.f32 %v8863, %v8873
        %v8902 = vadd.f32 %v8876, %v8877
        %8903 = vadd.xlane.f32.xlu0 %v8902
        %v8904 = vpop.xlane.xlu0 %8903
        %v8905 = vadd.f32 %v8878, %v8879
        %8906 = vadd.xlane.f32.xlu0 %v8905
        %v8907 = vpop.xlane.xlu0 %8906
        %v8908 = vadd.f32 %v8880, %v8881
        %8909 = vadd.xlane.f32.xlu0 %v8908
        %v8910 = vpop.xlane.xlu0 %8909
        %v8911 = vadd.f32 %v8882, %v8883
        %8912 = vadd.xlane.f32.xlu0 %v8911
        %v8913 = vpop.xlane.xlu0 %8912
        %v8914 = vadd.f32 %v8884, %v8885
        %8915 = vadd.xlane.f32.xlu0 %v8914
        %v8916 = vpop.xlane.xlu0 %8915
        %v8917 = vadd.f32 %v8886, %v8887
        %8918 = vadd.xlane.f32.xlu0 %v8917
        %v8919 = vpop.xlane.xlu0 %8918
        %v8920 = vadd.f32 %v8888, %v8889
        %8921 = vadd.xlane.f32.xlu0 %v8920
        %v8922 = vpop.xlane.xlu0 %8921
        %v8923 = vadd.f32 %v8890, %v8891
        %8924 = vadd.xlane.f32.xlu0 %v8923
        %v8925 = vpop.xlane.xlu0 %8924
        %v8926 = vadd.f32 %v8892, %v8893
        %8927 = vadd.xlane.f32.xlu0 %v8926
        %v8928 = vpop.xlane.xlu0 %8927
        %v8929 = vadd.f32 %v8894, %v8895
        %8930 = vadd.xlane.f32.xlu0 %v8929
        %v8931 = vpop.xlane.xlu0 %8930
        %v8932 = vadd.f32 %v8896, %v8897
        %8933 = vadd.xlane.f32.xlu0 %v8932
        %v8934 = vpop.xlane.xlu0 %8933
        %v8935 = vadd.f32 %v8898, %v8899
        %8936 = vadd.xlane.f32.xlu0 %v8935
        %v8937 = vpop.xlane.xlu0 %8936
        %vm8938 = vcmask 1041408
        %v8939 = vsel %vm8938, %v8900, 0.0
        %v8940 = vsel %vm8938, %v8901, 0.0
        %v8941 = vadd.f32 %v8939, %v8940
        %8942 = vadd.xlane.f32.xlu0 %v8941
        %v8943 = vpop.xlane.xlu0 %8942
        %s8944 = sld [smem:[#allocation20 + %s37]]
        %v8945 = vstv %s8944
        %v8946 = vadd.f32 %v8904, %v8945
        %v8947 = vadd.f32 %v8907, %v8945
        %v8948 = vadd.f32 %v8910, %v8945
        %v8949 = vadd.f32 %v8913, %v8945
        %v8950 = vadd.f32 %v8916, %v8945
        %v8951 = vadd.f32 %v8919, %v8945
        %v8952 = vadd.f32 %v8922, %v8945
        %v8953 = vadd.f32 %v8925, %v8945
        %v8954 = vadd.f32 %v8928, %v8945
        %v8955 = vadd.f32 %v8931, %v8945
        %v8956 = vadd.f32 %v8934, %v8945
        %v8957 = vadd.f32 %v8937, %v8945
        %v8958 = vadd.f32 %v8943, %v8945
        %vm8959 = vcmask 7168
        %8960 = vst.msk [vmem:[%s691] sm:$0xff] %vm8959, %v8946
        %8961 = vst.msk [vmem:[%s691 + $0x8] sm:$0xff] %vm8959, %v8947
        %8962 = vst.msk [vmem:[%s691 + $0x10] sm:$0xff] %vm8959, %v8948
        %8963 = vst.msk [vmem:[%s691 + $0x18] sm:$0xff] %vm8959, %v8949
        %8964 = vst.msk [vmem:[%s691 + $0x20] sm:$0xff] %vm8959, %v8950
        %8965 = vst.msk [vmem:[%s691 + $0x28] sm:$0xff] %vm8959, %v8951
        %8966 = vst.msk [vmem:[%s691 + $0x30] sm:$0xff] %vm8959, %v8952
        %8967 = vst.msk [vmem:[%s691 + $0x38] sm:$0xff] %vm8959, %v8953
        %8968 = vst.msk [vmem:[%s691 + $0x40] sm:$0xff] %vm8959, %v8954
        %8969 = vst.msk [vmem:[%s691 + $0x48] sm:$0xff] %vm8959, %v8955
        %8970 = vst.msk [vmem:[%s691 + $0x50] sm:$0xff] %vm8959, %v8956
        %8971 = vst.msk [vmem:[%s691 + $0x58] sm:$0xff] %vm8959, %v8957
        %vm8972 = vcmask 1024
        %8973 = vst.msk [vmem:[%s691 + $0x60] sm:$0x3] %vm8972, %v8958
        %p8974 = scmp.lt.s32.totalorder %s37, 2
        %s8975 = scalar_select %p8974, %s37, 2
        %s8976 = smul.addr %s8975, 13
        %s8977 = smul.addr %s8976, 8
        %s8978 = scalar_lea.vmem %s10, %s8977
        // Predicated region
        $region101: #{atts_head_fused.1} parent=59 // pred_check
          %p8979 = pneg %p310
        $region102: #{atts_head_fused.1} parent=59 // pred_check_branch
          %8981 = sbr.rel (%p8979) target = $region104
        $region103: #{atts_head_fused.1} parent=59 // pred_region
          _
        $region104: #{atts_head_fused.1} parent=59 // pred_fallthru
          _
      $region60: #{atts_head_fused.1} parent=5 // pred_fallthru
        _
      %p8982 = scmp.le.s32.totalorder 2, %s32
      // Predicated region
      $region105: #{atts_head_fused.1} parent=5 // pred_check
        %p8983 = pneg %p8982
      $region106: #{atts_head_fused.1} parent=5 // pred_check_branch
        %8985 = sbr.rel (%p8983) target = $region108
      $region107: #{atts_head_fused.1} parent=5 // pred_region
        %s8986 = ssub.s32 %s32, 2
        // Predicated region
        $region109: #{atts_head_fused.1} parent=107 // pred_check
          %p8987 = pneg %p316
        $region110: #{atts_head_fused.1} parent=107 // pred_check_branch
          %8989 = sbr.rel (%p8987) target = $region112
        $region111: #{atts_head_fused.1} parent=107 // pred_region
          %p8990 = scmp.lt.s32.totalorder %s38, 2
          %s8991 = scalar_select %p8990, %s38, 2
          %s8992 = smul.addr %s8991, 13
          %s8993 = smul.addr %s8992, 8
          %s8994 = scalar_lea.vmem %s10, %s8993
        $region112: #{atts_head_fused.1} parent=107 // pred_fallthru
          _
      $region108: #{atts_head_fused.1} parent=5 // pred_fallthru
        _
    $region6: #{atts_head_fused.1} parent=1 // loop_footer
      %s36 = sadd.s32 1, %s32
    $region7: #{atts_head_fused.1} parent=1 // loop_footer_branch
      %31 = sbr.rel target = $region3
    $region8: #{atts_head_fused.1} parent=1 // loop_exit
      _
    %8995 = vsyncpa [#allocation6], 1
    %s8996 = scalar_lea.sflag [#allocation6], 1
    %8997 = vsyncpa %s8996, 1
    %8998 = vsyncpa [#allocation9], 1
    %s8999 = scalar_lea.sflag [#allocation9], 1
    %9000 = vsyncpa %s8999, 1
    %9001 = vsyncpa [#allocation12], 1
    %s9002 = scalar_lea.sflag [#allocation12], 1
    %9003 = vsyncpa %s9002, 1
    %9004 = vsyncpa [#allocation15], 1
    %s9005 = scalar_lea.sflag [#allocation15], 1
    %9006 = vsyncpa %s9005, 1
    %9007 = vsyncpa [#allocation18], 1
    %s9008 = scalar_lea.sflag [#allocation18], 1
    %9009 = vsyncpa %s9008, 1
    %9010 = vsyncpa [#allocation7], 1
    %s9011 = scalar_lea.sflag [#allocation7], 1
    %9012 = vsyncpa %s9011, 1

</llo_original>
